<compile_context>
chip_gen: v7x
topology: tpu7x:2x2x1
jax: 0.10.0
libtpu: 0.0.40
codegen_flags: <defaults>
</compile_context>

<pallas_src>
import jax
import jax.numpy as jnp
from jax.experimental import pallas as pl
from jax.experimental.pallas import tpu as pltpu

# ----------------------------- config (small) --------------------------------
BATCH = 2
IMG_H = IMG_W = 16
IMG_C = 3
VOCAB = 100
MAX_LEN = 8            # T
TEXT_HIDDEN = 32       # hidden_dim (bidirectional => per-direction Hh = 16)
EMBED_DIM = 64         # final embedding_dim
PROJ_HIDDEN = 512      # hard-coded in the module
BACKBONE_DIM = 576     # hard-coded in the module
TEMPERATURE = 0.07     # unused in forward()

F32 = jnp.float32
BF16 = jnp.bfloat16
LN_EPS = 1e-5          # nn.LayerNorm default
NORM_EPS = 1e-12       # F.normalize default

HH = TEXT_HIDDEN // 2          # 16 per-direction hidden
GF = 8 * HH                    # 128 = fused (both-direction) gate width

_vmem_spec = pl.BlockSpec(memory_space=pltpu.MemorySpace.VMEM)


# --------------------------------- kernel ------------------------------------
def dual_encoder_kernel(img_ref, emb_ref, mask2_ref,
                        lstm_wih_ref, lstm_whh_ref, lstm_b_ref,
                        w1_img_ref, w1_txt_ref, b1_ref, epi_ref, w2_hbm_ref,
                        out_ref, w2_vmem, w2_sem):
    B, T, H = BATCH, MAX_LEN, TEXT_HIDDEN

    # Kick off the epilogue-weight DMA immediately so its 128 KB transfer overlaps
    # the 16-step serial LSTM recurrence (P4/P10 style manual copy).
    w2_copy = pltpu.make_async_copy(w2_hbm_ref, w2_vmem, w2_sem)
    w2_copy.start()

    # ---------------- text path: 2-layer bidirectional LSTM ----------------
    emb = emb_ref[...]                     # (T*B, H) bf16 embeddings, time-major rows
    mask2 = mask2_ref[...]                 # (T*B, H) f32: [mask(t) x16 | mask(T-1-t) x16]
    wih = lstm_wih_ref[...]                # (H, 512) bf16: [l0 fwd | l0 bwd | l1 M_P | l1 M_Q]
    whh = lstm_whh_ref[...]                # (H, 256) bf16: [l0 block-diag | l1 block-diag]
    bias = lstm_b_ref[...]                 # (2, 128) f32 dense fused biases

    # Fused gate column layout (width GF=128): [i | f | o | g], each 32 = [fwd 16 | bwd 16].
    # hidden/cell state packed as (B, 32) = [h_fwd | h_bwd].
    def run_layer(gx_a, gx_b, whh_bd):
        """One fused fwd+bwd recurrence.  gx_a / gx_b: (T*B, 128) hoisted input-gate
        contributions (gx_a already biased, fwd-placed; gx_b bwd-placed).  Step s uses
        row-block s of gx_a and row-block T-1-s of gx_b.  Returns the T packed hidden
        states in recurrence-step order, carried as live register values."""
        h = jnp.zeros((B, H), F32)
        c = jnp.zeros((B, H), F32)
        hs = []
        for s in range(T):                  # fully unrolled (T static)
            gates = (jnp.dot(h.astype(BF16), whh_bd, preferred_element_type=F32)
                     + gx_a[B * s:B * (s + 1)]
                     + gx_b[B * (T - 1 - s):B * (T - s)])        # (B, 128)
            sg = jax.nn.sigmoid(gates[:, :3 * H])                # i | f | o
            g = jnp.tanh(gates[:, 3 * H:])                       # (B, 32)
            c = sg[:, H:2 * H] * c + sg[:, :H] * g
            h = sg[:, 2 * H:3 * H] * jnp.tanh(c)
            hs.append(h)
        return hs

    # Layer 0: one hoisted (T*B, H) @ (H, 256) bf16 matmul for all timesteps and both
    # directions (fwd-placed cols 0:128, bwd-placed cols 128:256).
    gx0 = jnp.dot(emb, wih[:, :2 * GF], preferred_element_type=F32)       # (T*B, 256)
    hs0 = run_layer(gx0[:, :GF] + bias[0:1, :], gx0[:, GF:], whh[:, :GF])

    # Layer 1: layer-0 hiddens stay in registers; the host-side M_P / M_Q packing of
    # the layer-1 input weights absorbs the fwd/bwd time reversal, so
    #   gates_x[s] = hs0[s] @ M_P + hs0[T-1-s] @ M_Q
    # and no time-reordered sequence is ever materialized.
    h0 = jnp.concatenate(hs0, axis=0).astype(BF16)                        # (T*B, H)
    gx1 = jnp.dot(h0, wih[:, 2 * GF:], preferred_element_type=F32)        # (T*B, 256)
    hs1 = run_layer(gx1[:, :GF] + bias[1:2, :], gx1[:, GF:], whh[:, GF:])

    # Masked mean pooling over valid token positions (both directions).
    acc = jnp.zeros((B, H), F32)
    den = jnp.zeros((B, H), F32)
    for s in range(T):
        m = mask2[B * s:B * (s + 1), :]
        acc = acc + hs1[s] * m
        den = den + m
    mean_pooled = acc * pl.reciprocal(jnp.maximum(den, 1.0), approx=True)  # (B, H)

    # ---------------- image path ----------------
    # TODO(synk): the pretrained MobileNetV3-Small backbone has no compact Pallas
    # equivalent; stand-in = global average pool + linear lift, with that linear stem
    # folded into the first projection weight on the host (w1_img = w_stem @ img_w1).
    pooled = jnp.mean(img_ref[...], axis=-1)                     # (B, C) lane-dense reduce
    w1i = w1_img_ref[...]                                        # (C, 512) f32
    h_img = b1_ref[0:1, :]
    for ch in range(IMG_C):                                      # K=3 -> cheaper as VPU FMAs
        h_img = h_img + pooled[:, ch:ch + 1] * w1i[ch:ch + 1, :]
    h_img = jnp.maximum(h_img, 0.0)                              # (B, 512)

    h_txt = jnp.maximum(
        jnp.dot(mean_pooled.astype(BF16), w1_txt_ref[...],
                preferred_element_type=F32) + b1_ref[1:2, :], 0.0)         # (B, 512)
    h_cat = jnp.concatenate([h_img, h_txt], axis=0)                        # (2B, 512)

    # ---------------- shared epilogue: W2 + LayerNorm + L2 normalize ----------------
    w2_copy.wait()                                                         # overlap ends here
    res = jnp.dot(h_cat.astype(BF16), w2_vmem[...],
                  preferred_element_type=F32)                              # (2B, 128)
    e = jnp.concatenate([res[:B, :EMBED_DIM], res[B:, EMBED_DIM:]], axis=0)  # (2B, E)

    epi = epi_ref[...]                                                     # (3, 2B, E)
    e = e + epi[0]                                                         # Linear bias
    mu = jnp.mean(e, axis=-1, keepdims=True)
    d = e - mu
    var = jnp.mean(d * d, axis=-1, keepdims=True)
    e = d * jax.lax.rsqrt(var + LN_EPS) * epi[1] + epi[2]                  # LayerNorm
    ssq = jnp.sum(e * e, axis=-1, keepdims=True)
    out_ref[...] = e * jax.lax.rsqrt(jnp.maximum(ssq, NORM_EPS * NORM_EPS))  # L2 normalize


# --------------------------- parameter construction ---------------------------
def make_params(key):
    ks = iter(jax.random.split(key, 40))

    def w(shape, scale=0.05):
        return scale * jax.random.normal(next(ks), shape, dtype=F32)

    G = 4 * HH  # 64 gate cols per direction, per-direction gate order (i, f, o, g)

    def place_cols(dir_idx, mat_compact):
        """Scatter a (rows, 64) per-direction matrix into the fused 128-col layout."""
        rows = mat_compact.shape[0]
        out = jnp.zeros((rows, GF), F32)
        for gi in range(4):
            col = 2 * HH * gi + HH * dir_idx
            out = out.at[:, col:col + HH].set(mat_compact[:, HH * gi:HH * (gi + 1)])
        return out

    # ---- LSTM layer 0 (input = 32-d embeddings) ----
    wih0_f, wih0_b = w((TEXT_HIDDEN, G)), w((TEXT_HIDDEN, G))
    whh0_f, whh0_b = w((HH, G)), w((HH, G))
    b0_f, b0_b = w((1, G), 0.01), w((1, G), 0.01)                  # b_ih + b_hh pre-summed
    wih0_fwd = place_cols(0, wih0_f)                               # (32,128) fwd-placed
    wih0_bwd = place_cols(1, wih0_b)                               # (32,128) bwd-placed
    whh_bd0 = jnp.concatenate([place_cols(0, whh0_f), place_cols(1, whh0_b)], axis=0)
    b0_row = place_cols(0, b0_f) + place_cols(1, b0_b)             # (1,128) dense

    # ---- LSTM layer 1 (input = 32-d layer-0 outputs) ----
    wih1_f, wih1_b = w((TEXT_HIDDEN, G)), w((TEXT_HIDDEN, G))
    whh1_f, whh1_b = w((HH, G)), w((HH, G))
    b1l_f, b1l_b = w((1, G), 0.01), w((1, G), 0.01)
    Pf = place_cols(0, wih1_f)                                     # fwd-dir weights, fwd cols
    Pb = place_cols(1, wih1_b)                                     # bwd-dir weights, bwd cols
    # M_P / M_Q let layer-1 consume layer-0 hiddens in recurrence-step order:
    #   gates_x[s] = hs0[s] @ M_P + hs0[T-1-s] @ M_Q
    m_p = jnp.concatenate([Pf[:HH], Pb[HH:]], axis=0)              # (32,128)
    m_q = jnp.concatenate([Pb[:HH], Pf[HH:]], axis=0)              # (32,128)
    whh_bd1 = jnp.concatenate([place_cols(0, whh1_f), place_cols(1, whh1_b)], axis=0)
    b1_row = place_cols(0, b1l_f) + place_cols(1, b1l_b)

    lstm_wih = jnp.concatenate([wih0_fwd, wih0_bwd, m_p, m_q], axis=1).astype(BF16)  # (32,512)
    lstm_whh = jnp.concatenate([whh_bd0, whh_bd1], axis=1).astype(BF16)              # (32,256)
    lstm_b = jnp.concatenate([b0_row, b1_row], axis=0)                               # (2,128) f32

    # ---- image path: stem folded into the first projection (host-side) ----
    w_stem = w((IMG_C, BACKBONE_DIM))
    b_stem = w((1, BACKBONE_DIM), 0.01)
    img_w1 = w((BACKBONE_DIM, PROJ_HIDDEN))
    b1_img = w((1, PROJ_HIDDEN), 0.01)
    w1_img = w_stem @ img_w1                                       # (3, 512)  effective
    b1_img_eff = b_stem @ img_w1 + b1_img                          # (1, 512)

    w1_txt = w((TEXT_HIDDEN, PROJ_HIDDEN)).astype(BF16)            # (32, 512)
    b1_txt = w((1, PROJ_HIDDEN), 0.01)
    b1_pack = jnp.concatenate([b1_img_eff, b1_txt], axis=0)        # (2, 512) f32

    # ---- second projection (per path, side by side) + LayerNorm epilogue ----
    w2_cat = jnp.concatenate([w((PROJ_HIDDEN, EMBED_DIM)),
                              w((PROJ_HIDDEN, EMBED_DIM))], axis=1).astype(BF16)     # (512,128)
    b2 = jnp.concatenate(
        [jnp.broadcast_to(w((1, EMBED_DIM), 0.01), (BATCH, EMBED_DIM)),
         jnp.broadcast_to(w((1, EMBED_DIM), 0.01), (BATCH, EMBED_DIM))], axis=0)     # (2B, E)
    gamma = jnp.ones((2 * BATCH, EMBED_DIM), F32)
    beta = jnp.zeros((2 * BATCH, EMBED_DIM), F32)
    epi = jnp.stack([b2, gamma, beta], axis=0)                                       # (3, 2B, E)

    # embedding table (padding_idx=0 row zeroed)
    emb_table = w((VOCAB, TEXT_HIDDEN), 0.1).at[0].set(0.0)

    params = (lstm_wih, lstm_whh, lstm_b, w1_img, w1_txt, b1_pack, epi, w2_cat)
    return emb_table, params


# -------------------------------- dual encoder --------------------------------
@jax.jit
def dual_encoder_forward(images_nchw, text_tokens, emb_table, params):
    (lstm_wih, lstm_whh, lstm_b, w1_img, w1_txt, b1_pack, epi, w2_cat) = params

    B, C, Hi, Wi = images_nchw.shape
    img_flat = images_nchw.reshape(B, C, Hi * Wi).astype(F32)      # lane-dense pooling layout

    tokens_t = text_tokens.T                                       # (T, B)
    embedded = jnp.take(emb_table, tokens_t, axis=0)               # (T, B, H)
    emb2d = embedded.reshape(MAX_LEN * B, TEXT_HIDDEN).astype(BF16)
    mask = (tokens_t != 0).astype(F32)                             # (T, B)
    mask2 = jnp.concatenate(
        [jnp.broadcast_to(mask[:, :, None], (MAX_LEN, B, HH)),
         jnp.broadcast_to(mask[::-1, :, None], (MAX_LEN, B, HH))],
        axis=-1).reshape(MAX_LEN * B, TEXT_HIDDEN)                 # (T*B, H)

    out = pl.pallas_call(
        dual_encoder_kernel,
        out_shape=jax.ShapeDtypeStruct((2 * B, EMBED_DIM), F32),
        in_specs=[_vmem_spec] * 10 + [pl.BlockSpec(memory_space=pl.ANY)],
        out_specs=_vmem_spec,
        scratch_shapes=[pltpu.VMEM((PROJ_HIDDEN, 2 * EMBED_DIM), BF16),  # w2 landing buffer
                        pltpu.SemaphoreType.DMA],
    )(img_flat, emb2d, mask2, lstm_wih, lstm_whh, lstm_b,
      w1_img, w1_txt, b1_pack, epi, w2_cat)

    return out[:B], out[B:]                                        # image, text embeddings


# ------------------------------------ main ------------------------------------
if __name__ == "__main__":
    key = jax.random.PRNGKey(0)
    k_img, k_tok, k_par = jax.random.split(key, 3)

    images = jax.random.normal(k_img, (BATCH, IMG_C, IMG_H, IMG_W), dtype=F32)
    tokens = jax.random.randint(k_tok, (BATCH, MAX_LEN), 1, VOCAB, dtype=jnp.int32)
    tokens = tokens.at[:, -2:].set(0)      # simulate padding (padding_idx = 0)

    emb_table, params = make_params(k_par)

    img_emb, txt_emb = dual_encoder_forward(images, tokens, emb_table, params)
    jax.block_until_ready((img_emb, txt_emb))

    assert img_emb.shape == (BATCH, EMBED_DIM)
    assert txt_emb.shape == (BATCH, EMBED_DIM)
    # embeddings are L2-normalized
    assert jnp.allclose(jnp.linalg.norm(img_emb, axis=1), 1.0, atol=1e-3)
    assert jnp.allclose(jnp.linalg.norm(txt_emb, axis=1), 1.0, atol=1e-3)

    print("KERNEL_OK")
</pallas_src>

<mosaic_0001>
module attributes {stable_mosaic.version = 11 : i64} {
  func.func @dual_encoder_kernel(%arg0: memref<2x3x256xf32, #tpu.memory_space<vmem>>, %arg1: memref<16x32xbf16, #tpu.memory_space<vmem>>, %arg2: memref<16x32xf32, #tpu.memory_space<vmem>>, %arg3: memref<32x512xbf16, #tpu.memory_space<vmem>>, %arg4: memref<32x256xbf16, #tpu.memory_space<vmem>>, %arg5: memref<2x128xf32, #tpu.memory_space<vmem>>, %arg6: memref<3x512xf32, #tpu.memory_space<vmem>>, %arg7: memref<32x512xbf16, #tpu.memory_space<vmem>>, %arg8: memref<2x512xf32, #tpu.memory_space<vmem>>, %arg9: memref<3x4x64xf32, #tpu.memory_space<vmem>>, %arg10: memref<512x128xbf16, #tpu.memory_space<any>>, %arg11: memref<4x64xf32, #tpu.memory_space<vmem>>, %arg12: memref<512x128xbf16, #tpu.memory_space<vmem>>, %arg13: memref<!tpu.dma_semaphore, #tpu.memory_space<semaphore_mem>>) attributes {dimension_semantics = [], scalar_prefetch = 0 : i64, scratch_operands = 2 : i64, tpu.core_type = #tpu.core_type<tc>} {
    tpu.enqueue_dma source(%arg10 : memref<512x128xbf16, #tpu.memory_space<any>>) target(%arg12 : memref<512x128xbf16, #tpu.memory_space<vmem>>) target_semaphore(%arg13 : memref<!tpu.dma_semaphore, #tpu.memory_space<semaphore_mem>>)
    %c0 = arith.constant 0 : index
    %c0_0 = arith.constant 0 : index
    %0 = vector.load %arg1[%c0, %c0_0] : memref<16x32xbf16, #tpu.memory_space<vmem>>, vector<16x32xbf16>
    %c0_1 = arith.constant 0 : index
    %c0_2 = arith.constant 0 : index
    %1 = vector.load %arg2[%c0_1, %c0_2] : memref<16x32xf32, #tpu.memory_space<vmem>>, vector<16x32xf32>
    %c0_3 = arith.constant 0 : index
    %c0_4 = arith.constant 0 : index
    %2 = vector.load %arg3[%c0_3, %c0_4] : memref<32x512xbf16, #tpu.memory_space<vmem>>, vector<32x512xbf16>
    %c0_5 = arith.constant 0 : index
    %c0_6 = arith.constant 0 : index
    %3 = vector.load %arg4[%c0_5, %c0_6] : memref<32x256xbf16, #tpu.memory_space<vmem>>, vector<32x256xbf16>
    %c0_7 = arith.constant 0 : index
    %c0_8 = arith.constant 0 : index
    %4 = vector.load %arg5[%c0_7, %c0_8] : memref<2x128xf32, #tpu.memory_space<vmem>>, vector<2x128xf32>
    %5 = vector.extract_strided_slice %2 {offsets = [0, 0], sizes = [32, 256], strides = [1, 1]} : vector<32x512xbf16> to vector<32x256xbf16>
    %cst = arith.constant dense<0.000000e+00> : vector<16x256xf32>
    %6 = tpu.matmul %0, %5, %cst {dimension_numbers = #tpu.dot_dimension_numbers<[1], [0], [0], [1], [0, 0, 1, 1], [], []>} : vector<16x32xbf16>, vector<32x256xbf16>, vector<16x256xf32> -> vector<16x256xf32>
    %7 = vector.extract_strided_slice %6 {offsets = [0, 0], sizes = [16, 128], strides = [1, 1]} : vector<16x256xf32> to vector<16x128xf32>
    %8 = vector.extract_strided_slice %4 {offsets = [0, 0], sizes = [1, 128], strides = [1, 1]} : vector<2x128xf32> to vector<1x128xf32>
    %9 = vector.broadcast %8 : vector<1x128xf32> to vector<16x128xf32>
    %10 = arith.addf %7, %9 : vector<16x128xf32>
    %11 = vector.extract_strided_slice %6 {offsets = [0, 128], sizes = [16, 128], strides = [1, 1]} : vector<16x256xf32> to vector<16x128xf32>
    %12 = vector.extract_strided_slice %3 {offsets = [0, 0], sizes = [32, 128], strides = [1, 1]} : vector<32x256xbf16> to vector<32x128xbf16>
    %cst_9 = arith.constant 0.000000e+00 : f32
    %13 = vector.broadcast %cst_9 : f32 to vector<2x32xf32>
    %cst_10 = arith.constant 0.000000e+00 : f32
    %14 = vector.broadcast %cst_10 : f32 to vector<2x32xf32>
    %15 = arith.truncf %13 : vector<2x32xf32> to vector<2x32xbf16>
    %cst_11 = arith.constant dense<0.000000e+00> : vector<2x128xf32>
    %16 = tpu.matmul %15, %12, %cst_11 {dimension_numbers = #tpu.dot_dimension_numbers<[1], [0], [0], [1], [0, 0, 1, 1], [], []>} : vector<2x32xbf16>, vector<32x128xbf16>, vector<2x128xf32> -> vector<2x128xf32>
    %17 = vector.extract_strided_slice %10 {offsets = [0, 0], sizes = [2, 128], strides = [1, 1]} : vector<16x128xf32> to vector<2x128xf32>
    %18 = arith.addf %16, %17 : vector<2x128xf32>
    %19 = vector.extract_strided_slice %11 {offsets = [14, 0], sizes = [2, 128], strides = [1, 1]} : vector<16x128xf32> to vector<2x128xf32>
    %20 = arith.addf %18, %19 : vector<2x128xf32>
    %21 = vector.extract_strided_slice %20 {offsets = [0, 0], sizes = [2, 96], strides = [1, 1]} : vector<2x128xf32> to vector<2x96xf32>
    %22 = arith.negf %21 : vector<2x96xf32>
    %23 = math.exp %22 : vector<2x96xf32>
    %cst_12 = arith.constant 1.000000e+00 : f32
    %24 = vector.broadcast %cst_12 : f32 to vector<2x96xf32>
    %25 = arith.addf %24, %23 : vector<2x96xf32>
    %26 = arith.divf %24, %25 : vector<2x96xf32>
    %27 = vector.extract_strided_slice %20 {offsets = [0, 96], sizes = [2, 32], strides = [1, 1]} : vector<2x128xf32> to vector<2x32xf32>
    %28 = math.tanh %27 : vector<2x32xf32>
    %29 = vector.extract_strided_slice %26 {offsets = [0, 32], sizes = [2, 32], strides = [1, 1]} : vector<2x96xf32> to vector<2x32xf32>
    %30 = arith.mulf %29, %14 : vector<2x32xf32>
    %31 = vector.extract_strided_slice %26 {offsets = [0, 0], sizes = [2, 32], strides = [1, 1]} : vector<2x96xf32> to vector<2x32xf32>
    %32 = arith.mulf %31, %28 : vector<2x32xf32>
    %33 = arith.addf %30, %32 : vector<2x32xf32>
    %34 = vector.extract_strided_slice %26 {offsets = [0, 64], sizes = [2, 32], strides = [1, 1]} : vector<2x96xf32> to vector<2x32xf32>
    %35 = math.tanh %33 : vector<2x32xf32>
    %36 = arith.mulf %34, %35 : vector<2x32xf32>
    %37 = arith.truncf %36 : vector<2x32xf32> to vector<2x32xbf16>
    %cst_13 = arith.constant dense<0.000000e+00> : vector<2x128xf32>
    %38 = tpu.matmul %37, %12, %cst_13 {dimension_numbers = #tpu.dot_dimension_numbers<[1], [0], [0], [1], [0, 0, 1, 1], [], []>} : vector<2x32xbf16>, vector<32x128xbf16>, vector<2x128xf32> -> vector<2x128xf32>
    %39 = vector.extract_strided_slice %10 {offsets = [2, 0], sizes = [2, 128], strides = [1, 1]} : vector<16x128xf32> to vector<2x128xf32>
    %40 = arith.addf %38, %39 : vector<2x128xf32>
    %41 = vector.extract_strided_slice %11 {offsets = [12, 0], sizes = [2, 128], strides = [1, 1]} : vector<16x128xf32> to vector<2x128xf32>
    %42 = arith.addf %40, %41 : vector<2x128xf32>
    %43 = vector.extract_strided_slice %42 {offsets = [0, 0], sizes = [2, 96], strides = [1, 1]} : vector<2x128xf32> to vector<2x96xf32>
    %44 = arith.negf %43 : vector<2x96xf32>
    %45 = math.exp %44 : vector<2x96xf32>
    %cst_14 = arith.constant 1.000000e+00 : f32
    %46 = vector.broadcast %cst_14 : f32 to vector<2x96xf32>
    %47 = arith.addf %46, %45 : vector<2x96xf32>
    %48 = arith.divf %46, %47 : vector<2x96xf32>
    %49 = vector.extract_strided_slice %42 {offsets = [0, 96], sizes = [2, 32], strides = [1, 1]} : vector<2x128xf32> to vector<2x32xf32>
    %50 = math.tanh %49 : vector<2x32xf32>
    %51 = vector.extract_strided_slice %48 {offsets = [0, 32], sizes = [2, 32], strides = [1, 1]} : vector<2x96xf32> to vector<2x32xf32>
    %52 = arith.mulf %51, %33 : vector<2x32xf32>
    %53 = vector.extract_strided_slice %48 {offsets = [0, 0], sizes = [2, 32], strides = [1, 1]} : vector<2x96xf32> to vector<2x32xf32>
    %54 = arith.mulf %53, %50 : vector<2x32xf32>
    %55 = arith.addf %52, %54 : vector<2x32xf32>
    %56 = vector.extract_strided_slice %48 {offsets = [0, 64], sizes = [2, 32], strides = [1, 1]} : vector<2x96xf32> to vector<2x32xf32>
    %57 = math.tanh %55 : vector<2x32xf32>
    %58 = arith.mulf %56, %57 : vector<2x32xf32>
    %59 = arith.truncf %58 : vector<2x32xf32> to vector<2x32xbf16>
    %cst_15 = arith.constant dense<0.000000e+00> : vector<2x128xf32>
    %60 = tpu.matmul %59, %12, %cst_15 {dimension_numbers = #tpu.dot_dimension_numbers<[1], [0], [0], [1], [0, 0, 1, 1], [], []>} : vector<2x32xbf16>, vector<32x128xbf16>, vector<2x128xf32> -> vector<2x128xf32>
    %61 = vector.extract_strided_slice %10 {offsets = [4, 0], sizes = [2, 128], strides = [1, 1]} : vector<16x128xf32> to vector<2x128xf32>
    %62 = arith.addf %60, %61 : vector<2x128xf32>
    %63 = vector.extract_strided_slice %11 {offsets = [10, 0], sizes = [2, 128], strides = [1, 1]} : vector<16x128xf32> to vector<2x128xf32>
    %64 = arith.addf %62, %63 : vector<2x128xf32>
    %65 = vector.extract_strided_slice %64 {offsets = [0, 0], sizes = [2, 96], strides = [1, 1]} : vector<2x128xf32> to vector<2x96xf32>
    %66 = arith.negf %65 : vector<2x96xf32>
    %67 = math.exp %66 : vector<2x96xf32>
    %cst_16 = arith.constant 1.000000e+00 : f32
    %68 = vector.broadcast %cst_16 : f32 to vector<2x96xf32>
    %69 = arith.addf %68, %67 : vector<2x96xf32>
    %70 = arith.divf %68, %69 : vector<2x96xf32>
    %71 = vector.extract_strided_slice %64 {offsets = [0, 96], sizes = [2, 32], strides = [1, 1]} : vector<2x128xf32> to vector<2x32xf32>
    %72 = math.tanh %71 : vector<2x32xf32>
    %73 = vector.extract_strided_slice %70 {offsets = [0, 32], sizes = [2, 32], strides = [1, 1]} : vector<2x96xf32> to vector<2x32xf32>
    %74 = arith.mulf %73, %55 : vector<2x32xf32>
    %75 = vector.extract_strided_slice %70 {offsets = [0, 0], sizes = [2, 32], strides = [1, 1]} : vector<2x96xf32> to vector<2x32xf32>
    %76 = arith.mulf %75, %72 : vector<2x32xf32>
    %77 = arith.addf %74, %76 : vector<2x32xf32>
    %78 = vector.extract_strided_slice %70 {offsets = [0, 64], sizes = [2, 32], strides = [1, 1]} : vector<2x96xf32> to vector<2x32xf32>
    %79 = math.tanh %77 : vector<2x32xf32>
    %80 = arith.mulf %78, %79 : vector<2x32xf32>
    %81 = arith.truncf %80 : vector<2x32xf32> to vector<2x32xbf16>
    %cst_17 = arith.constant dense<0.000000e+00> : vector<2x128xf32>
    %82 = tpu.matmul %81, %12, %cst_17 {dimension_numbers = #tpu.dot_dimension_numbers<[1], [0], [0], [1], [0, 0, 1, 1], [], []>} : vector<2x32xbf16>, vector<32x128xbf16>, vector<2x128xf32> -> vector<2x128xf32>
    %83 = vector.extract_strided_slice %10 {offsets = [6, 0], sizes = [2, 128], strides = [1, 1]} : vector<16x128xf32> to vector<2x128xf32>
    %84 = arith.addf %82, %83 : vector<2x128xf32>
    %85 = vector.extract_strided_slice %11 {offsets = [8, 0], sizes = [2, 128], strides = [1, 1]} : vector<16x128xf32> to vector<2x128xf32>
    %86 = arith.addf %84, %85 : vector<2x128xf32>
    %87 = vector.extract_strided_slice %86 {offsets = [0, 0], sizes = [2, 96], strides = [1, 1]} : vector<2x128xf32> to vector<2x96xf32>
    %88 = arith.negf %87 : vector<2x96xf32>
    %89 = math.exp %88 : vector<2x96xf32>
    %cst_18 = arith.constant 1.000000e+00 : f32
    %90 = vector.broadcast %cst_18 : f32 to vector<2x96xf32>
    %91 = arith.addf %90, %89 : vector<2x96xf32>
    %92 = arith.divf %90, %91 : vector<2x96xf32>
    %93 = vector.extract_strided_slice %86 {offsets = [0, 96], sizes = [2, 32], strides = [1, 1]} : vector<2x128xf32> to vector<2x32xf32>
    %94 = math.tanh %93 : vector<2x32xf32>
    %95 = vector.extract_strided_slice %92 {offsets = [0, 32], sizes = [2, 32], strides = [1, 1]} : vector<2x96xf32> to vector<2x32xf32>
    %96 = arith.mulf %95, %77 : vector<2x32xf32>
    %97 = vector.extract_strided_slice %92 {offsets = [0, 0], sizes = [2, 32], strides = [1, 1]} : vector<2x96xf32> to vector<2x32xf32>
    %98 = arith.mulf %97, %94 : vector<2x32xf32>
    %99 = arith.addf %96, %98 : vector<2x32xf32>
    %100 = vector.extract_strided_slice %92 {offsets = [0, 64], sizes = [2, 32], strides = [1, 1]} : vector<2x96xf32> to vector<2x32xf32>
    %101 = math.tanh %99 : vector<2x32xf32>
    %102 = arith.mulf %100, %101 : vector<2x32xf32>
    %103 = arith.truncf %102 : vector<2x32xf32> to vector<2x32xbf16>
    %cst_19 = arith.constant dense<0.000000e+00> : vector<2x128xf32>
    %104 = tpu.matmul %103, %12, %cst_19 {dimension_numbers = #tpu.dot_dimension_numbers<[1], [0], [0], [1], [0, 0, 1, 1], [], []>} : vector<2x32xbf16>, vector<32x128xbf16>, vector<2x128xf32> -> vector<2x128xf32>
    %105 = vector.extract_strided_slice %10 {offsets = [8, 0], sizes = [2, 128], strides = [1, 1]} : vector<16x128xf32> to vector<2x128xf32>
    %106 = arith.addf %104, %105 : vector<2x128xf32>
    %107 = vector.extract_strided_slice %11 {offsets = [6, 0], sizes = [2, 128], strides = [1, 1]} : vector<16x128xf32> to vector<2x128xf32>
    %108 = arith.addf %106, %107 : vector<2x128xf32>
    %109 = vector.extract_strided_slice %108 {offsets = [0, 0], sizes = [2, 96], strides = [1, 1]} : vector<2x128xf32> to vector<2x96xf32>
    %110 = arith.negf %109 : vector<2x96xf32>
    %111 = math.exp %110 : vector<2x96xf32>
    %cst_20 = arith.constant 1.000000e+00 : f32
    %112 = vector.broadcast %cst_20 : f32 to vector<2x96xf32>
    %113 = arith.addf %112, %111 : vector<2x96xf32>
    %114 = arith.divf %112, %113 : vector<2x96xf32>
    %115 = vector.extract_strided_slice %108 {offsets = [0, 96], sizes = [2, 32], strides = [1, 1]} : vector<2x128xf32> to vector<2x32xf32>
    %116 = math.tanh %115 : vector<2x32xf32>
    %117 = vector.extract_strided_slice %114 {offsets = [0, 32], sizes = [2, 32], strides = [1, 1]} : vector<2x96xf32> to vector<2x32xf32>
    %118 = arith.mulf %117, %99 : vector<2x32xf32>
    %119 = vector.extract_strided_slice %114 {offsets = [0, 0], sizes = [2, 32], strides = [1, 1]} : vector<2x96xf32> to vector<2x32xf32>
    %120 = arith.mulf %119, %116 : vector<2x32xf32>
    %121 = arith.addf %118, %120 : vector<2x32xf32>
    %122 = vector.extract_strided_slice %114 {offsets = [0, 64], sizes = [2, 32], strides = [1, 1]} : vector<2x96xf32> to vector<2x32xf32>
    %123 = math.tanh %121 : vector<2x32xf32>
    %124 = arith.mulf %122, %123 : vector<2x32xf32>
    %125 = arith.truncf %124 : vector<2x32xf32> to vector<2x32xbf16>
    %cst_21 = arith.constant dense<0.000000e+00> : vector<2x128xf32>
    %126 = tpu.matmul %125, %12, %cst_21 {dimension_numbers = #tpu.dot_dimension_numbers<[1], [0], [0], [1], [0, 0, 1, 1], [], []>} : vector<2x32xbf16>, vector<32x128xbf16>, vector<2x128xf32> -> vector<2x128xf32>
    %127 = vector.extract_strided_slice %10 {offsets = [10, 0], sizes = [2, 128], strides = [1, 1]} : vector<16x128xf32> to vector<2x128xf32>
    %128 = arith.addf %126, %127 : vector<2x128xf32>
    %129 = vector.extract_strided_slice %11 {offsets = [4, 0], sizes = [2, 128], strides = [1, 1]} : vector<16x128xf32> to vector<2x128xf32>
    %130 = arith.addf %128, %129 : vector<2x128xf32>
    %131 = vector.extract_strided_slice %130 {offsets = [0, 0], sizes = [2, 96], strides = [1, 1]} : vector<2x128xf32> to vector<2x96xf32>
    %132 = arith.negf %131 : vector<2x96xf32>
    %133 = math.exp %132 : vector<2x96xf32>
    %cst_22 = arith.constant 1.000000e+00 : f32
    %134 = vector.broadcast %cst_22 : f32 to vector<2x96xf32>
    %135 = arith.addf %134, %133 : vector<2x96xf32>
    %136 = arith.divf %134, %135 : vector<2x96xf32>
    %137 = vector.extract_strided_slice %130 {offsets = [0, 96], sizes = [2, 32], strides = [1, 1]} : vector<2x128xf32> to vector<2x32xf32>
    %138 = math.tanh %137 : vector<2x32xf32>
    %139 = vector.extract_strided_slice %136 {offsets = [0, 32], sizes = [2, 32], strides = [1, 1]} : vector<2x96xf32> to vector<2x32xf32>
    %140 = arith.mulf %139, %121 : vector<2x32xf32>
    %141 = vector.extract_strided_slice %136 {offsets = [0, 0], sizes = [2, 32], strides = [1, 1]} : vector<2x96xf32> to vector<2x32xf32>
    %142 = arith.mulf %141, %138 : vector<2x32xf32>
    %143 = arith.addf %140, %142 : vector<2x32xf32>
    %144 = vector.extract_strided_slice %136 {offsets = [0, 64], sizes = [2, 32], strides = [1, 1]} : vector<2x96xf32> to vector<2x32xf32>
    %145 = math.tanh %143 : vector<2x32xf32>
    %146 = arith.mulf %144, %145 : vector<2x32xf32>
    %147 = arith.truncf %146 : vector<2x32xf32> to vector<2x32xbf16>
    %cst_23 = arith.constant dense<0.000000e+00> : vector<2x128xf32>
    %148 = tpu.matmul %147, %12, %cst_23 {dimension_numbers = #tpu.dot_dimension_numbers<[1], [0], [0], [1], [0, 0, 1, 1], [], []>} : vector<2x32xbf16>, vector<32x128xbf16>, vector<2x128xf32> -> vector<2x128xf32>
    %149 = vector.extract_strided_slice %10 {offsets = [12, 0], sizes = [2, 128], strides = [1, 1]} : vector<16x128xf32> to vector<2x128xf32>
    %150 = arith.addf %148, %149 : vector<2x128xf32>
    %151 = vector.extract_strided_slice %11 {offsets = [2, 0], sizes = [2, 128], strides = [1, 1]} : vector<16x128xf32> to vector<2x128xf32>
    %152 = arith.addf %150, %151 : vector<2x128xf32>
    %153 = vector.extract_strided_slice %152 {offsets = [0, 0], sizes = [2, 96], strides = [1, 1]} : vector<2x128xf32> to vector<2x96xf32>
    %154 = arith.negf %153 : vector<2x96xf32>
    %155 = math.exp %154 : vector<2x96xf32>
    %cst_24 = arith.constant 1.000000e+00 : f32
    %156 = vector.broadcast %cst_24 : f32 to vector<2x96xf32>
    %157 = arith.addf %156, %155 : vector<2x96xf32>
    %158 = arith.divf %156, %157 : vector<2x96xf32>
    %159 = vector.extract_strided_slice %152 {offsets = [0, 96], sizes = [2, 32], strides = [1, 1]} : vector<2x128xf32> to vector<2x32xf32>
    %160 = math.tanh %159 : vector<2x32xf32>
    %161 = vector.extract_strided_slice %158 {offsets = [0, 32], sizes = [2, 32], strides = [1, 1]} : vector<2x96xf32> to vector<2x32xf32>
    %162 = arith.mulf %161, %143 : vector<2x32xf32>
    %163 = vector.extract_strided_slice %158 {offsets = [0, 0], sizes = [2, 32], strides = [1, 1]} : vector<2x96xf32> to vector<2x32xf32>
    %164 = arith.mulf %163, %160 : vector<2x32xf32>
    %165 = arith.addf %162, %164 : vector<2x32xf32>
    %166 = vector.extract_strided_slice %158 {offsets = [0, 64], sizes = [2, 32], strides = [1, 1]} : vector<2x96xf32> to vector<2x32xf32>
    %167 = math.tanh %165 : vector<2x32xf32>
    %168 = arith.mulf %166, %167 : vector<2x32xf32>
    %169 = arith.truncf %168 : vector<2x32xf32> to vector<2x32xbf16>
    %cst_25 = arith.constant dense<0.000000e+00> : vector<2x128xf32>
    %170 = tpu.matmul %169, %12, %cst_25 {dimension_numbers = #tpu.dot_dimension_numbers<[1], [0], [0], [1], [0, 0, 1, 1], [], []>} : vector<2x32xbf16>, vector<32x128xbf16>, vector<2x128xf32> -> vector<2x128xf32>
    %171 = vector.extract_strided_slice %10 {offsets = [14, 0], sizes = [2, 128], strides = [1, 1]} : vector<16x128xf32> to vector<2x128xf32>
    %172 = arith.addf %170, %171 : vector<2x128xf32>
    %173 = vector.extract_strided_slice %11 {offsets = [0, 0], sizes = [2, 128], strides = [1, 1]} : vector<16x128xf32> to vector<2x128xf32>
    %174 = arith.addf %172, %173 : vector<2x128xf32>
    %175 = vector.extract_strided_slice %174 {offsets = [0, 0], sizes = [2, 96], strides = [1, 1]} : vector<2x128xf32> to vector<2x96xf32>
    %176 = arith.negf %175 : vector<2x96xf32>
    %177 = math.exp %176 : vector<2x96xf32>
    %cst_26 = arith.constant 1.000000e+00 : f32
    %178 = vector.broadcast %cst_26 : f32 to vector<2x96xf32>
    %179 = arith.addf %178, %177 : vector<2x96xf32>
    %180 = arith.divf %178, %179 : vector<2x96xf32>
    %181 = vector.extract_strided_slice %174 {offsets = [0, 96], sizes = [2, 32], strides = [1, 1]} : vector<2x128xf32> to vector<2x32xf32>
    %182 = math.tanh %181 : vector<2x32xf32>
    %183 = vector.extract_strided_slice %180 {offsets = [0, 32], sizes = [2, 32], strides = [1, 1]} : vector<2x96xf32> to vector<2x32xf32>
    %184 = arith.mulf %183, %165 : vector<2x32xf32>
    %185 = vector.extract_strided_slice %180 {offsets = [0, 0], sizes = [2, 32], strides = [1, 1]} : vector<2x96xf32> to vector<2x32xf32>
    %186 = arith.mulf %185, %182 : vector<2x32xf32>
    %187 = arith.addf %184, %186 : vector<2x32xf32>
    %188 = vector.extract_strided_slice %180 {offsets = [0, 64], sizes = [2, 32], strides = [1, 1]} : vector<2x96xf32> to vector<2x32xf32>
    %189 = math.tanh %187 : vector<2x32xf32>
    %190 = arith.mulf %188, %189 : vector<2x32xf32>
    %191 = tpu.concatenate %36, %58, %80, %102, %124, %146, %168, %190 in 0 : vector<2x32xf32>, vector<2x32xf32>, vector<2x32xf32>, vector<2x32xf32>, vector<2x32xf32>, vector<2x32xf32>, vector<2x32xf32>, vector<2x32xf32> -> vector<16x32xf32>
    %192 = arith.truncf %191 : vector<16x32xf32> to vector<16x32xbf16>
    %193 = vector.extract_strided_slice %2 {offsets = [0, 256], sizes = [32, 256], strides = [1, 1]} : vector<32x512xbf16> to vector<32x256xbf16>
    %cst_27 = arith.constant dense<0.000000e+00> : vector<16x256xf32>
    %194 = tpu.matmul %192, %193, %cst_27 {dimension_numbers = #tpu.dot_dimension_numbers<[1], [0], [0], [1], [0, 0, 1, 1], [], []>} : vector<16x32xbf16>, vector<32x256xbf16>, vector<16x256xf32> -> vector<16x256xf32>
    %195 = vector.extract_strided_slice %194 {offsets = [0, 0], sizes = [16, 128], strides = [1, 1]} : vector<16x256xf32> to vector<16x128xf32>
    %196 = vector.extract_strided_slice %4 {offsets = [1, 0], sizes = [1, 128], strides = [1, 1]} : vector<2x128xf32> to vector<1x128xf32>
    %197 = vector.broadcast %196 : vector<1x128xf32> to vector<16x128xf32>
    %198 = arith.addf %195, %197 : vector<16x128xf32>
    %199 = vector.extract_strided_slice %194 {offsets = [0, 128], sizes = [16, 128], strides = [1, 1]} : vector<16x256xf32> to vector<16x128xf32>
    %200 = vector.extract_strided_slice %3 {offsets = [0, 128], sizes = [32, 128], strides = [1, 1]} : vector<32x256xbf16> to vector<32x128xbf16>
    %cst_28 = arith.constant 0.000000e+00 : f32
    %201 = vector.broadcast %cst_28 : f32 to vector<2x32xf32>
    %cst_29 = arith.constant 0.000000e+00 : f32
    %202 = vector.broadcast %cst_29 : f32 to vector<2x32xf32>
    %203 = arith.truncf %201 : vector<2x32xf32> to vector<2x32xbf16>
    %cst_30 = arith.constant dense<0.000000e+00> : vector<2x128xf32>
    %204 = tpu.matmul %203, %200, %cst_30 {dimension_numbers = #tpu.dot_dimension_numbers<[1], [0], [0], [1], [0, 0, 1, 1], [], []>} : vector<2x32xbf16>, vector<32x128xbf16>, vector<2x128xf32> -> vector<2x128xf32>
    %205 = vector.extract_strided_slice %198 {offsets = [0, 0], sizes = [2, 128], strides = [1, 1]} : vector<16x128xf32> to vector<2x128xf32>
    %206 = arith.addf %204, %205 : vector<2x128xf32>
    %207 = vector.extract_strided_slice %199 {offsets = [14, 0], sizes = [2, 128], strides = [1, 1]} : vector<16x128xf32> to vector<2x128xf32>
    %208 = arith.addf %206, %207 : vector<2x128xf32>
    %209 = vector.extract_strided_slice %208 {offsets = [0, 0], sizes = [2, 96], strides = [1, 1]} : vector<2x128xf32> to vector<2x96xf32>
    %210 = arith.negf %209 : vector<2x96xf32>
    %211 = math.exp %210 : vector<2x96xf32>
    %cst_31 = arith.constant 1.000000e+00 : f32
    %212 = vector.broadcast %cst_31 : f32 to vector<2x96xf32>
    %213 = arith.addf %212, %211 : vector<2x96xf32>
    %214 = arith.divf %212, %213 : vector<2x96xf32>
    %215 = vector.extract_strided_slice %208 {offsets = [0, 96], sizes = [2, 32], strides = [1, 1]} : vector<2x128xf32> to vector<2x32xf32>
    %216 = math.tanh %215 : vector<2x32xf32>
    %217 = vector.extract_strided_slice %214 {offsets = [0, 32], sizes = [2, 32], strides = [1, 1]} : vector<2x96xf32> to vector<2x32xf32>
    %218 = arith.mulf %217, %202 : vector<2x32xf32>
    %219 = vector.extract_strided_slice %214 {offsets = [0, 0], sizes = [2, 32], strides = [1, 1]} : vector<2x96xf32> to vector<2x32xf32>
    %220 = arith.mulf %219, %216 : vector<2x32xf32>
    %221 = arith.addf %218, %220 : vector<2x32xf32>
    %222 = vector.extract_strided_slice %214 {offsets = [0, 64], sizes = [2, 32], strides = [1, 1]} : vector<2x96xf32> to vector<2x32xf32>
    %223 = math.tanh %221 : vector<2x32xf32>
    %224 = arith.mulf %222, %223 : vector<2x32xf32>
    %225 = arith.truncf %224 : vector<2x32xf32> to vector<2x32xbf16>
    %cst_32 = arith.constant dense<0.000000e+00> : vector<2x128xf32>
    %226 = tpu.matmul %225, %200, %cst_32 {dimension_numbers = #tpu.dot_dimension_numbers<[1], [0], [0], [1], [0, 0, 1, 1], [], []>} : vector<2x32xbf16>, vector<32x128xbf16>, vector<2x128xf32> -> vector<2x128xf32>
    %227 = vector.extract_strided_slice %198 {offsets = [2, 0], sizes = [2, 128], strides = [1, 1]} : vector<16x128xf32> to vector<2x128xf32>
    %228 = arith.addf %226, %227 : vector<2x128xf32>
    %229 = vector.extract_strided_slice %199 {offsets = [12, 0], sizes = [2, 128], strides = [1, 1]} : vector<16x128xf32> to vector<2x128xf32>
    %230 = arith.addf %228, %229 : vector<2x128xf32>
    %231 = vector.extract_strided_slice %230 {offsets = [0, 0], sizes = [2, 96], strides = [1, 1]} : vector<2x128xf32> to vector<2x96xf32>
    %232 = arith.negf %231 : vector<2x96xf32>
    %233 = math.exp %232 : vector<2x96xf32>
    %cst_33 = arith.constant 1.000000e+00 : f32
    %234 = vector.broadcast %cst_33 : f32 to vector<2x96xf32>
    %235 = arith.addf %234, %233 : vector<2x96xf32>
    %236 = arith.divf %234, %235 : vector<2x96xf32>
    %237 = vector.extract_strided_slice %230 {offsets = [0, 96], sizes = [2, 32], strides = [1, 1]} : vector<2x128xf32> to vector<2x32xf32>
    %238 = math.tanh %237 : vector<2x32xf32>
    %239 = vector.extract_strided_slice %236 {offsets = [0, 32], sizes = [2, 32], strides = [1, 1]} : vector<2x96xf32> to vector<2x32xf32>
    %240 = arith.mulf %239, %221 : vector<2x32xf32>
    %241 = vector.extract_strided_slice %236 {offsets = [0, 0], sizes = [2, 32], strides = [1, 1]} : vector<2x96xf32> to vector<2x32xf32>
    %242 = arith.mulf %241, %238 : vector<2x32xf32>
    %243 = arith.addf %240, %242 : vector<2x32xf32>
    %244 = vector.extract_strided_slice %236 {offsets = [0, 64], sizes = [2, 32], strides = [1, 1]} : vector<2x96xf32> to vector<2x32xf32>
    %245 = math.tanh %243 : vector<2x32xf32>
    %246 = arith.mulf %244, %245 : vector<2x32xf32>
    %247 = arith.truncf %246 : vector<2x32xf32> to vector<2x32xbf16>
    %cst_34 = arith.constant dense<0.000000e+00> : vector<2x128xf32>
    %248 = tpu.matmul %247, %200, %cst_34 {dimension_numbers = #tpu.dot_dimension_numbers<[1], [0], [0], [1], [0, 0, 1, 1], [], []>} : vector<2x32xbf16>, vector<32x128xbf16>, vector<2x128xf32> -> vector<2x128xf32>
    %249 = vector.extract_strided_slice %198 {offsets = [4, 0], sizes = [2, 128], strides = [1, 1]} : vector<16x128xf32> to vector<2x128xf32>
    %250 = arith.addf %248, %249 : vector<2x128xf32>
    %251 = vector.extract_strided_slice %199 {offsets = [10, 0], sizes = [2, 128], strides = [1, 1]} : vector<16x128xf32> to vector<2x128xf32>
    %252 = arith.addf %250, %251 : vector<2x128xf32>
    %253 = vector.extract_strided_slice %252 {offsets = [0, 0], sizes = [2, 96], strides = [1, 1]} : vector<2x128xf32> to vector<2x96xf32>
    %254 = arith.negf %253 : vector<2x96xf32>
    %255 = math.exp %254 : vector<2x96xf32>
    %cst_35 = arith.constant 1.000000e+00 : f32
    %256 = vector.broadcast %cst_35 : f32 to vector<2x96xf32>
    %257 = arith.addf %256, %255 : vector<2x96xf32>
    %258 = arith.divf %256, %257 : vector<2x96xf32>
    %259 = vector.extract_strided_slice %252 {offsets = [0, 96], sizes = [2, 32], strides = [1, 1]} : vector<2x128xf32> to vector<2x32xf32>
    %260 = math.tanh %259 : vector<2x32xf32>
    %261 = vector.extract_strided_slice %258 {offsets = [0, 32], sizes = [2, 32], strides = [1, 1]} : vector<2x96xf32> to vector<2x32xf32>
    %262 = arith.mulf %261, %243 : vector<2x32xf32>
    %263 = vector.extract_strided_slice %258 {offsets = [0, 0], sizes = [2, 32], strides = [1, 1]} : vector<2x96xf32> to vector<2x32xf32>
    %264 = arith.mulf %263, %260 : vector<2x32xf32>
    %265 = arith.addf %262, %264 : vector<2x32xf32>
    %266 = vector.extract_strided_slice %258 {offsets = [0, 64], sizes = [2, 32], strides = [1, 1]} : vector<2x96xf32> to vector<2x32xf32>
    %267 = math.tanh %265 : vector<2x32xf32>
    %268 = arith.mulf %266, %267 : vector<2x32xf32>
    %269 = arith.truncf %268 : vector<2x32xf32> to vector<2x32xbf16>
    %cst_36 = arith.constant dense<0.000000e+00> : vector<2x128xf32>
    %270 = tpu.matmul %269, %200, %cst_36 {dimension_numbers = #tpu.dot_dimension_numbers<[1], [0], [0], [1], [0, 0, 1, 1], [], []>} : vector<2x32xbf16>, vector<32x128xbf16>, vector<2x128xf32> -> vector<2x128xf32>
    %271 = vector.extract_strided_slice %198 {offsets = [6, 0], sizes = [2, 128], strides = [1, 1]} : vector<16x128xf32> to vector<2x128xf32>
    %272 = arith.addf %270, %271 : vector<2x128xf32>
    %273 = vector.extract_strided_slice %199 {offsets = [8, 0], sizes = [2, 128], strides = [1, 1]} : vector<16x128xf32> to vector<2x128xf32>
    %274 = arith.addf %272, %273 : vector<2x128xf32>
    %275 = vector.extract_strided_slice %274 {offsets = [0, 0], sizes = [2, 96], strides = [1, 1]} : vector<2x128xf32> to vector<2x96xf32>
    %276 = arith.negf %275 : vector<2x96xf32>
    %277 = math.exp %276 : vector<2x96xf32>
    %cst_37 = arith.constant 1.000000e+00 : f32
    %278 = vector.broadcast %cst_37 : f32 to vector<2x96xf32>
    %279 = arith.addf %278, %277 : vector<2x96xf32>
    %280 = arith.divf %278, %279 : vector<2x96xf32>
    %281 = vector.extract_strided_slice %274 {offsets = [0, 96], sizes = [2, 32], strides = [1, 1]} : vector<2x128xf32> to vector<2x32xf32>
    %282 = math.tanh %281 : vector<2x32xf32>
    %283 = vector.extract_strided_slice %280 {offsets = [0, 32], sizes = [2, 32], strides = [1, 1]} : vector<2x96xf32> to vector<2x32xf32>
    %284 = arith.mulf %283, %265 : vector<2x32xf32>
    %285 = vector.extract_strided_slice %280 {offsets = [0, 0], sizes = [2, 32], strides = [1, 1]} : vector<2x96xf32> to vector<2x32xf32>
    %286 = arith.mulf %285, %282 : vector<2x32xf32>
    %287 = arith.addf %284, %286 : vector<2x32xf32>
    %288 = vector.extract_strided_slice %280 {offsets = [0, 64], sizes = [2, 32], strides = [1, 1]} : vector<2x96xf32> to vector<2x32xf32>
    %289 = math.tanh %287 : vector<2x32xf32>
    %290 = arith.mulf %288, %289 : vector<2x32xf32>
    %291 = arith.truncf %290 : vector<2x32xf32> to vector<2x32xbf16>
    %cst_38 = arith.constant dense<0.000000e+00> : vector<2x128xf32>
    %292 = tpu.matmul %291, %200, %cst_38 {dimension_numbers = #tpu.dot_dimension_numbers<[1], [0], [0], [1], [0, 0, 1, 1], [], []>} : vector<2x32xbf16>, vector<32x128xbf16>, vector<2x128xf32> -> vector<2x128xf32>
    %293 = vector.extract_strided_slice %198 {offsets = [8, 0], sizes = [2, 128], strides = [1, 1]} : vector<16x128xf32> to vector<2x128xf32>
    %294 = arith.addf %292, %293 : vector<2x128xf32>
    %295 = vector.extract_strided_slice %199 {offsets = [6, 0], sizes = [2, 128], strides = [1, 1]} : vector<16x128xf32> to vector<2x128xf32>
    %296 = arith.addf %294, %295 : vector<2x128xf32>
    %297 = vector.extract_strided_slice %296 {offsets = [0, 0], sizes = [2, 96], strides = [1, 1]} : vector<2x128xf32> to vector<2x96xf32>
    %298 = arith.negf %297 : vector<2x96xf32>
    %299 = math.exp %298 : vector<2x96xf32>
    %cst_39 = arith.constant 1.000000e+00 : f32
    %300 = vector.broadcast %cst_39 : f32 to vector<2x96xf32>
    %301 = arith.addf %300, %299 : vector<2x96xf32>
    %302 = arith.divf %300, %301 : vector<2x96xf32>
    %303 = vector.extract_strided_slice %296 {offsets = [0, 96], sizes = [2, 32], strides = [1, 1]} : vector<2x128xf32> to vector<2x32xf32>
    %304 = math.tanh %303 : vector<2x32xf32>
    %305 = vector.extract_strided_slice %302 {offsets = [0, 32], sizes = [2, 32], strides = [1, 1]} : vector<2x96xf32> to vector<2x32xf32>
    %306 = arith.mulf %305, %287 : vector<2x32xf32>
    %307 = vector.extract_strided_slice %302 {offsets = [0, 0], sizes = [2, 32], strides = [1, 1]} : vector<2x96xf32> to vector<2x32xf32>
    %308 = arith.mulf %307, %304 : vector<2x32xf32>
    %309 = arith.addf %306, %308 : vector<2x32xf32>
    %310 = vector.extract_strided_slice %302 {offsets = [0, 64], sizes = [2, 32], strides = [1, 1]} : vector<2x96xf32> to vector<2x32xf32>
    %311 = math.tanh %309 : vector<2x32xf32>
    %312 = arith.mulf %310, %311 : vector<2x32xf32>
    %313 = arith.truncf %312 : vector<2x32xf32> to vector<2x32xbf16>
    %cst_40 = arith.constant dense<0.000000e+00> : vector<2x128xf32>
    %314 = tpu.matmul %313, %200, %cst_40 {dimension_numbers = #tpu.dot_dimension_numbers<[1], [0], [0], [1], [0, 0, 1, 1], [], []>} : vector<2x32xbf16>, vector<32x128xbf16>, vector<2x128xf32> -> vector<2x128xf32>
    %315 = vector.extract_strided_slice %198 {offsets = [10, 0], sizes = [2, 128], strides = [1, 1]} : vector<16x128xf32> to vector<2x128xf32>
    %316 = arith.addf %314, %315 : vector<2x128xf32>
    %317 = vector.extract_strided_slice %199 {offsets = [4, 0], sizes = [2, 128], strides = [1, 1]} : vector<16x128xf32> to vector<2x128xf32>
    %318 = arith.addf %316, %317 : vector<2x128xf32>
    %319 = vector.extract_strided_slice %318 {offsets = [0, 0], sizes = [2, 96], strides = [1, 1]} : vector<2x128xf32> to vector<2x96xf32>
    %320 = arith.negf %319 : vector<2x96xf32>
    %321 = math.exp %320 : vector<2x96xf32>
    %cst_41 = arith.constant 1.000000e+00 : f32
    %322 = vector.broadcast %cst_41 : f32 to vector<2x96xf32>
    %323 = arith.addf %322, %321 : vector<2x96xf32>
    %324 = arith.divf %322, %323 : vector<2x96xf32>
    %325 = vector.extract_strided_slice %318 {offsets = [0, 96], sizes = [2, 32], strides = [1, 1]} : vector<2x128xf32> to vector<2x32xf32>
    %326 = math.tanh %325 : vector<2x32xf32>
    %327 = vector.extract_strided_slice %324 {offsets = [0, 32], sizes = [2, 32], strides = [1, 1]} : vector<2x96xf32> to vector<2x32xf32>
    %328 = arith.mulf %327, %309 : vector<2x32xf32>
    %329 = vector.extract_strided_slice %324 {offsets = [0, 0], sizes = [2, 32], strides = [1, 1]} : vector<2x96xf32> to vector<2x32xf32>
    %330 = arith.mulf %329, %326 : vector<2x32xf32>
    %331 = arith.addf %328, %330 : vector<2x32xf32>
    %332 = vector.extract_strided_slice %324 {offsets = [0, 64], sizes = [2, 32], strides = [1, 1]} : vector<2x96xf32> to vector<2x32xf32>
    %333 = math.tanh %331 : vector<2x32xf32>
    %334 = arith.mulf %332, %333 : vector<2x32xf32>
    %335 = arith.truncf %334 : vector<2x32xf32> to vector<2x32xbf16>
    %cst_42 = arith.constant dense<0.000000e+00> : vector<2x128xf32>
    %336 = tpu.matmul %335, %200, %cst_42 {dimension_numbers = #tpu.dot_dimension_numbers<[1], [0], [0], [1], [0, 0, 1, 1], [], []>} : vector<2x32xbf16>, vector<32x128xbf16>, vector<2x128xf32> -> vector<2x128xf32>
    %337 = vector.extract_strided_slice %198 {offsets = [12, 0], sizes = [2, 128], strides = [1, 1]} : vector<16x128xf32> to vector<2x128xf32>
    %338 = arith.addf %336, %337 : vector<2x128xf32>
    %339 = vector.extract_strided_slice %199 {offsets = [2, 0], sizes = [2, 128], strides = [1, 1]} : vector<16x128xf32> to vector<2x128xf32>
    %340 = arith.addf %338, %339 : vector<2x128xf32>
    %341 = vector.extract_strided_slice %340 {offsets = [0, 0], sizes = [2, 96], strides = [1, 1]} : vector<2x128xf32> to vector<2x96xf32>
    %342 = arith.negf %341 : vector<2x96xf32>
    %343 = math.exp %342 : vector<2x96xf32>
    %cst_43 = arith.constant 1.000000e+00 : f32
    %344 = vector.broadcast %cst_43 : f32 to vector<2x96xf32>
    %345 = arith.addf %344, %343 : vector<2x96xf32>
    %346 = arith.divf %344, %345 : vector<2x96xf32>
    %347 = vector.extract_strided_slice %340 {offsets = [0, 96], sizes = [2, 32], strides = [1, 1]} : vector<2x128xf32> to vector<2x32xf32>
    %348 = math.tanh %347 : vector<2x32xf32>
    %349 = vector.extract_strided_slice %346 {offsets = [0, 32], sizes = [2, 32], strides = [1, 1]} : vector<2x96xf32> to vector<2x32xf32>
    %350 = arith.mulf %349, %331 : vector<2x32xf32>
    %351 = vector.extract_strided_slice %346 {offsets = [0, 0], sizes = [2, 32], strides = [1, 1]} : vector<2x96xf32> to vector<2x32xf32>
    %352 = arith.mulf %351, %348 : vector<2x32xf32>
    %353 = arith.addf %350, %352 : vector<2x32xf32>
    %354 = vector.extract_strided_slice %346 {offsets = [0, 64], sizes = [2, 32], strides = [1, 1]} : vector<2x96xf32> to vector<2x32xf32>
    %355 = math.tanh %353 : vector<2x32xf32>
    %356 = arith.mulf %354, %355 : vector<2x32xf32>
    %357 = arith.truncf %356 : vector<2x32xf32> to vector<2x32xbf16>
    %cst_44 = arith.constant dense<0.000000e+00> : vector<2x128xf32>
    %358 = tpu.matmul %357, %200, %cst_44 {dimension_numbers = #tpu.dot_dimension_numbers<[1], [0], [0], [1], [0, 0, 1, 1], [], []>} : vector<2x32xbf16>, vector<32x128xbf16>, vector<2x128xf32> -> vector<2x128xf32>
    %359 = vector.extract_strided_slice %198 {offsets = [14, 0], sizes = [2, 128], strides = [1, 1]} : vector<16x128xf32> to vector<2x128xf32>
    %360 = arith.addf %358, %359 : vector<2x128xf32>
    %361 = vector.extract_strided_slice %199 {offsets = [0, 0], sizes = [2, 128], strides = [1, 1]} : vector<16x128xf32> to vector<2x128xf32>
    %362 = arith.addf %360, %361 : vector<2x128xf32>
    %363 = vector.extract_strided_slice %362 {offsets = [0, 0], sizes = [2, 96], strides = [1, 1]} : vector<2x128xf32> to vector<2x96xf32>
    %364 = arith.negf %363 : vector<2x96xf32>
    %365 = math.exp %364 : vector<2x96xf32>
    %cst_45 = arith.constant 1.000000e+00 : f32
    %366 = vector.broadcast %cst_45 : f32 to vector<2x96xf32>
    %367 = arith.addf %366, %365 : vector<2x96xf32>
    %368 = arith.divf %366, %367 : vector<2x96xf32>
    %369 = vector.extract_strided_slice %362 {offsets = [0, 96], sizes = [2, 32], strides = [1, 1]} : vector<2x128xf32> to vector<2x32xf32>
    %370 = math.tanh %369 : vector<2x32xf32>
    %371 = vector.extract_strided_slice %368 {offsets = [0, 32], sizes = [2, 32], strides = [1, 1]} : vector<2x96xf32> to vector<2x32xf32>
    %372 = arith.mulf %371, %353 : vector<2x32xf32>
    %373 = vector.extract_strided_slice %368 {offsets = [0, 0], sizes = [2, 32], strides = [1, 1]} : vector<2x96xf32> to vector<2x32xf32>
    %374 = arith.mulf %373, %370 : vector<2x32xf32>
    %375 = arith.addf %372, %374 : vector<2x32xf32>
    %376 = vector.extract_strided_slice %368 {offsets = [0, 64], sizes = [2, 32], strides = [1, 1]} : vector<2x96xf32> to vector<2x32xf32>
    %377 = math.tanh %375 : vector<2x32xf32>
    %378 = arith.mulf %376, %377 : vector<2x32xf32>
    %cst_46 = arith.constant 0.000000e+00 : f32
    %379 = vector.broadcast %cst_46 : f32 to vector<2x32xf32>
    %cst_47 = arith.constant 0.000000e+00 : f32
    %380 = vector.broadcast %cst_47 : f32 to vector<2x32xf32>
    %381 = vector.extract_strided_slice %1 {offsets = [0, 0], sizes = [2, 32], strides = [1, 1]} : vector<16x32xf32> to vector<2x32xf32>
    %382 = arith.mulf %224, %381 : vector<2x32xf32>
    %383 = arith.addf %379, %382 : vector<2x32xf32>
    %384 = arith.addf %380, %381 : vector<2x32xf32>
    %385 = vector.extract_strided_slice %1 {offsets = [2, 0], sizes = [2, 32], strides = [1, 1]} : vector<16x32xf32> to vector<2x32xf32>
    %386 = arith.mulf %246, %385 : vector<2x32xf32>
    %387 = arith.addf %383, %386 : vector<2x32xf32>
    %388 = arith.addf %384, %385 : vector<2x32xf32>
    %389 = vector.extract_strided_slice %1 {offsets = [4, 0], sizes = [2, 32], strides = [1, 1]} : vector<16x32xf32> to vector<2x32xf32>
    %390 = arith.mulf %268, %389 : vector<2x32xf32>
    %391 = arith.addf %387, %390 : vector<2x32xf32>
    %392 = arith.addf %388, %389 : vector<2x32xf32>
    %393 = vector.extract_strided_slice %1 {offsets = [6, 0], sizes = [2, 32], strides = [1, 1]} : vector<16x32xf32> to vector<2x32xf32>
    %394 = arith.mulf %290, %393 : vector<2x32xf32>
    %395 = arith.addf %391, %394 : vector<2x32xf32>
    %396 = arith.addf %392, %393 : vector<2x32xf32>
    %397 = vector.extract_strided_slice %1 {offsets = [8, 0], sizes = [2, 32], strides = [1, 1]} : vector<16x32xf32> to vector<2x32xf32>
    %398 = arith.mulf %312, %397 : vector<2x32xf32>
    %399 = arith.addf %395, %398 : vector<2x32xf32>
    %400 = arith.addf %396, %397 : vector<2x32xf32>
    %401 = vector.extract_strided_slice %1 {offsets = [10, 0], sizes = [2, 32], strides = [1, 1]} : vector<16x32xf32> to vector<2x32xf32>
    %402 = arith.mulf %334, %401 : vector<2x32xf32>
    %403 = arith.addf %399, %402 : vector<2x32xf32>
    %404 = arith.addf %400, %401 : vector<2x32xf32>
    %405 = vector.extract_strided_slice %1 {offsets = [12, 0], sizes = [2, 32], strides = [1, 1]} : vector<16x32xf32> to vector<2x32xf32>
    %406 = arith.mulf %356, %405 : vector<2x32xf32>
    %407 = arith.addf %403, %406 : vector<2x32xf32>
    %408 = arith.addf %404, %405 : vector<2x32xf32>
    %409 = vector.extract_strided_slice %1 {offsets = [14, 0], sizes = [2, 32], strides = [1, 1]} : vector<16x32xf32> to vector<2x32xf32>
    %410 = arith.mulf %378, %409 : vector<2x32xf32>
    %411 = arith.addf %407, %410 : vector<2x32xf32>
    %412 = arith.addf %408, %409 : vector<2x32xf32>
    %cst_48 = arith.constant 1.000000e+00 : f32
    %413 = vector.broadcast %cst_48 : f32 to vector<2x32xf32>
    %414 = arith.maximumf %412, %413 : vector<2x32xf32>
    %415 = tpu.reciprocal %414 {approx = true} : vector<2x32xf32> -> vector<2x32xf32>
    %416 = arith.mulf %411, %415 : vector<2x32xf32>
    %c0_49 = arith.constant 0 : index
    %c0_50 = arith.constant 0 : index
    %c0_51 = arith.constant 0 : index
    %417 = vector.load %arg0[%c0_49, %c0_50, %c0_51] : memref<2x3x256xf32, #tpu.memory_space<vmem>>, vector<2x3x256xf32>
    %cst_52 = arith.constant dense<0.000000e+00> : vector<2x3xf32>
    %418 = vector.multi_reduction <add>, %417, %cst_52 [2] : vector<2x3x256xf32> to vector<2x3xf32>
    %cst_53 = arith.constant 2.560000e+02 : f32
    %419 = vector.broadcast %cst_53 : f32 to vector<2x3xf32>
    %420 = arith.divf %418, %419 : vector<2x3xf32>
    %c0_54 = arith.constant 0 : index
    %c0_55 = arith.constant 0 : index
    %421 = vector.load %arg6[%c0_54, %c0_55] : memref<3x512xf32, #tpu.memory_space<vmem>>, vector<3x512xf32>
    %c0_56 = arith.constant 0 : index
    %c0_57 = arith.constant 0 : index
    %422 = vector.load %arg8[%c0_56, %c0_57] : memref<2x512xf32, #tpu.memory_space<vmem>>, vector<1x512xf32>
    %423 = vector.extract_strided_slice %420 {offsets = [0, 0], sizes = [2, 1], strides = [1, 1]} : vector<2x3xf32> to vector<2x1xf32>
    %424 = vector.extract_strided_slice %421 {offsets = [0, 0], sizes = [1, 512], strides = [1, 1]} : vector<3x512xf32> to vector<1x512xf32>
    %425 = vector.broadcast %423 : vector<2x1xf32> to vector<2x512xf32>
    %426 = vector.broadcast %424 : vector<1x512xf32> to vector<2x512xf32>
    %427 = arith.mulf %425, %426 : vector<2x512xf32>
    %428 = vector.broadcast %422 : vector<1x512xf32> to vector<2x512xf32>
    %429 = arith.addf %428, %427 : vector<2x512xf32>
    %430 = vector.extract_strided_slice %420 {offsets = [0, 1], sizes = [2, 1], strides = [1, 1]} : vector<2x3xf32> to vector<2x1xf32>
    %431 = vector.extract_strided_slice %421 {offsets = [1, 0], sizes = [1, 512], strides = [1, 1]} : vector<3x512xf32> to vector<1x512xf32>
    %432 = vector.broadcast %430 : vector<2x1xf32> to vector<2x512xf32>
    %433 = vector.broadcast %431 : vector<1x512xf32> to vector<2x512xf32>
    %434 = arith.mulf %432, %433 : vector<2x512xf32>
    %435 = arith.addf %429, %434 : vector<2x512xf32>
    %436 = vector.extract_strided_slice %420 {offsets = [0, 2], sizes = [2, 1], strides = [1, 1]} : vector<2x3xf32> to vector<2x1xf32>
    %437 = vector.extract_strided_slice %421 {offsets = [2, 0], sizes = [1, 512], strides = [1, 1]} : vector<3x512xf32> to vector<1x512xf32>
    %438 = vector.broadcast %436 : vector<2x1xf32> to vector<2x512xf32>
    %439 = vector.broadcast %437 : vector<1x512xf32> to vector<2x512xf32>
    %440 = arith.mulf %438, %439 : vector<2x512xf32>
    %441 = arith.addf %435, %440 : vector<2x512xf32>
    %cst_58 = arith.constant 0.000000e+00 : f32
    %442 = vector.broadcast %cst_58 : f32 to vector<2x512xf32>
    %443 = arith.maximumf %441, %442 : vector<2x512xf32>
    %444 = arith.truncf %416 : vector<2x32xf32> to vector<2x32xbf16>
    %c0_59 = arith.constant 0 : index
    %c0_60 = arith.constant 0 : index
    %445 = vector.load %arg7[%c0_59, %c0_60] : memref<32x512xbf16, #tpu.memory_space<vmem>>, vector<32x512xbf16>
    %cst_61 = arith.constant dense<0.000000e+00> : vector<2x512xf32>
    %446 = tpu.matmul %444, %445, %cst_61 {dimension_numbers = #tpu.dot_dimension_numbers<[1], [0], [0], [1], [0, 0, 1, 1], [], []>} : vector<2x32xbf16>, vector<32x512xbf16>, vector<2x512xf32> -> vector<2x512xf32>
    %c1 = arith.constant 1 : index
    %c0_62 = arith.constant 0 : index
    %447 = vector.load %arg8[%c1, %c0_62] : memref<2x512xf32, #tpu.memory_space<vmem>>, vector<1x512xf32>
    %448 = vector.broadcast %447 : vector<1x512xf32> to vector<2x512xf32>
    %449 = arith.addf %446, %448 : vector<2x512xf32>
    %cst_63 = arith.constant 0.000000e+00 : f32
    %450 = vector.broadcast %cst_63 : f32 to vector<2x512xf32>
    %451 = arith.maximumf %449, %450 : vector<2x512xf32>
    %452 = tpu.concatenate %443, %451 in 0 : vector<2x512xf32>, vector<2x512xf32> -> vector<4x512xf32>
    tpu.wait_dma2 semaphore(%arg13 : memref<!tpu.dma_semaphore, #tpu.memory_space<semaphore_mem>>) src(%arg10 : memref<512x128xbf16, #tpu.memory_space<any>>) dst(%arg12 : memref<512x128xbf16, #tpu.memory_space<vmem>>)
    %453 = arith.truncf %452 : vector<4x512xf32> to vector<4x512xbf16>
    %c0_64 = arith.constant 0 : index
    %c0_65 = arith.constant 0 : index
    %454 = vector.load %arg12[%c0_64, %c0_65] : memref<512x128xbf16, #tpu.memory_space<vmem>>, vector<512x128xbf16>
    %cst_66 = arith.constant dense<0.000000e+00> : vector<4x128xf32>
    %455 = tpu.matmul %453, %454, %cst_66 {dimension_numbers = #tpu.dot_dimension_numbers<[1], [0], [0], [1], [0, 0, 1, 1], [], []>} : vector<4x512xbf16>, vector<512x128xbf16>, vector<4x128xf32> -> vector<4x128xf32>
    %456 = vector.extract_strided_slice %455 {offsets = [0, 0], sizes = [2, 64], strides = [1, 1]} : vector<4x128xf32> to vector<2x64xf32>
    %457 = vector.extract_strided_slice %455 {offsets = [2, 64], sizes = [2, 64], strides = [1, 1]} : vector<4x128xf32> to vector<2x64xf32>
    %458 = tpu.concatenate %456, %457 in 0 : vector<2x64xf32>, vector<2x64xf32> -> vector<4x64xf32>
    %c0_67 = arith.constant 0 : index
    %c0_68 = arith.constant 0 : index
    %c0_69 = arith.constant 0 : index
    %459 = vector.load %arg9[%c0_67, %c0_68, %c0_69] : memref<3x4x64xf32, #tpu.memory_space<vmem>>, vector<3x4x64xf32>
    %460 = vector.extract_strided_slice %459 {offsets = [0, 0, 0], sizes = [1, 4, 64], strides = [1, 1, 1]} : vector<3x4x64xf32> to vector<1x4x64xf32>
    %461 = vector.shape_cast %460 : vector<1x4x64xf32> to vector<4x64xf32>
    %462 = arith.addf %458, %461 : vector<4x64xf32>
    %cst_70 = arith.constant dense<0.000000e+00> : vector<4xf32>
    %463 = vector.multi_reduction <add>, %462, %cst_70 [1] : vector<4x64xf32> to vector<4xf32>
    %464 = vector.shape_cast %463 : vector<4xf32> to vector<4x1xf32>
    %cst_71 = arith.constant 6.400000e+01 : f32
    %465 = vector.broadcast %cst_71 : f32 to vector<4x1xf32>
    %466 = arith.divf %464, %465 : vector<4x1xf32>
    %467 = vector.broadcast %466 : vector<4x1xf32> to vector<4x64xf32>
    %468 = arith.subf %462, %467 : vector<4x64xf32>
    %469 = arith.mulf %468, %468 : vector<4x64xf32>
    %cst_72 = arith.constant dense<0.000000e+00> : vector<4xf32>
    %470 = vector.multi_reduction <add>, %469, %cst_72 [1] : vector<4x64xf32> to vector<4xf32>
    %471 = vector.shape_cast %470 : vector<4xf32> to vector<4x1xf32>
    %cst_73 = arith.constant 6.400000e+01 : f32
    %472 = vector.broadcast %cst_73 : f32 to vector<4x1xf32>
    %473 = arith.divf %471, %472 : vector<4x1xf32>
    %cst_74 = arith.constant 9.99999974E-6 : f32
    %474 = vector.broadcast %cst_74 : f32 to vector<4x1xf32>
    %475 = arith.addf %473, %474 : vector<4x1xf32>
    %476 = math.rsqrt %475 : vector<4x1xf32>
    %477 = vector.broadcast %476 : vector<4x1xf32> to vector<4x64xf32>
    %478 = arith.mulf %468, %477 : vector<4x64xf32>
    %479 = vector.extract_strided_slice %459 {offsets = [1, 0, 0], sizes = [1, 4, 64], strides = [1, 1, 1]} : vector<3x4x64xf32> to vector<1x4x64xf32>
    %480 = vector.shape_cast %479 : vector<1x4x64xf32> to vector<4x64xf32>
    %481 = arith.mulf %478, %480 : vector<4x64xf32>
    %482 = vector.extract_strided_slice %459 {offsets = [2, 0, 0], sizes = [1, 4, 64], strides = [1, 1, 1]} : vector<3x4x64xf32> to vector<1x4x64xf32>
    %483 = vector.shape_cast %482 : vector<1x4x64xf32> to vector<4x64xf32>
    %484 = arith.addf %481, %483 : vector<4x64xf32>
    %485 = arith.mulf %484, %484 : vector<4x64xf32>
    %cst_75 = arith.constant dense<0.000000e+00> : vector<4xf32>
    %486 = vector.multi_reduction <add>, %485, %cst_75 [1] : vector<4x64xf32> to vector<4xf32>
    %487 = vector.shape_cast %486 : vector<4xf32> to vector<4x1xf32>
    %cst_76 = arith.constant 1.000000e-24 : f32
    %488 = vector.broadcast %cst_76 : f32 to vector<4x1xf32>
    %489 = arith.maximumf %487, %488 : vector<4x1xf32>
    %490 = math.rsqrt %489 : vector<4x1xf32>
    %491 = vector.broadcast %490 : vector<4x1xf32> to vector<4x64xf32>
    %492 = arith.mulf %484, %491 : vector<4x64xf32>
    %c0_77 = arith.constant 0 : index
    %c0_78 = arith.constant 0 : index
    %493 = vector.load %arg11[%c0_77, %c0_78] : memref<4x64xf32, #tpu.memory_space<vmem>>, vector<4x64xf32>
    tpu.vector_store %arg11[%c0_77, %c0_78], %492 {strides = array<i32>} : memref<4x64xf32, #tpu.memory_space<vmem>>, vector<4x64xf32>,
    return
  }
}

</mosaic_0001>

<llo_original>
// kernel: dual_encoder_forward.1
$region0: #{dual_encoder_forward.1}
  #allocation0 [shape = 'u32[]', space=smem, size = 0x4, offset = 0x4, fixed_abs, tag = 'smem constant byte address 0x4 - core index']
  #allocation1 [shape = 'u32[144,128]{1,0:T(1,128)}', space=vmem, size = 0x12000, scoped, tag = 'internal scratch']
  #allocation2 [shape = 'bf16[512,128]{1,0:T(16,128)(2,1)}', space=vmem, size = 0x20000, scoped, tag = 'scratch operand']
  #allocation3 [shape = 's32[1]{0}', space=sflag, size = 0x4, scoped, tag = 'scratch operand']
  #allocation6 [shape = 's32[]', space=sflag, size = 0x4, offset = 0, fixed_abs, tag = 'sflag constant byte address 0x0 - dummy sync flag']
  %s0 = inlined_call_operand.vmem [shape: f32[2,3,256], index: 0, kind: input, shape index: {}]
  %s1 = inlined_call_operand.vmem [shape: bf16[16,32], index: 1, kind: input, shape index: {}]
  %s2 = inlined_call_operand.vmem [shape: f32[16,32], index: 2, kind: input, shape index: {}]
  %s3 = inlined_call_operand.vmem [shape: bf16[32,512], index: 3, kind: input, shape index: {}]
  %s4 = inlined_call_operand.vmem [shape: bf16[32,256], index: 4, kind: input, shape index: {}]
  %s5 = inlined_call_operand.vmem [shape: f32[2,128], index: 5, kind: input, shape index: {}]
  %s6 = inlined_call_operand.vmem [shape: f32[3,512], index: 6, kind: input, shape index: {}]
  %s7 = inlined_call_operand.vmem [shape: bf16[32,512], index: 7, kind: input, shape index: {}]
  %s8 = inlined_call_operand.vmem [shape: f32[2,512], index: 8, kind: input, shape index: {}]
  %s9 = inlined_call_operand.hbm [shape: f32[3,4,64], index: 9, kind: input, shape index: {}]
  %s10 = inlined_call_operand.vmem [shape: bf16[512,128], index: 10, kind: input, shape index: {}]
  %s11 = inlined_call_operand.vmem [shape: f32[4,64], index: 11, kind: output, shape index: {}]
  %s12 = sld [smem:[#allocation0]]
  $region88: #{dual_encoder_forward.1} parent=0
    _
  %s14 = ssub.s32 1, %s12
  %s15 = scalar_select 0, %s14, %s12
  $region1: #{dual_encoder_forward.1} parent=0
    #allocation4 [shape = 'u8[6144]{0}', space=vmem, size = 0x1800, scoped, tag = 'input window, operand 9, single buffered']
    #allocation5 [shape = 's32[1]{0}', space=sflag, size = 0x4, scoped, tag = 'scoped memory for dual_encoder_forward.1']
    %16 = vsyncpa [#allocation5], 0
    // Predicated region
    $region2: #{dual_encoder_forward.1} parent=1 // pred_check
      _
    $region3: #{dual_encoder_forward.1} parent=1 // pred_check_branch
      %18 = sbr.rel (0) target = $region5
    $region4: #{dual_encoder_forward.1} parent=1 // pred_region
      _
    $region5: #{dual_encoder_forward.1} parent=1 // pred_fallthru
      _
    // Predicated region
    $region6: #{dual_encoder_forward.1} parent=1 // pred_check
      _
    $region7: #{dual_encoder_forward.1} parent=1 // pred_check_branch
      %20 = sbr.rel (0) target = $region9
    $region8: #{dual_encoder_forward.1} parent=1 // pred_region
      _
    $region9: #{dual_encoder_forward.1} parent=1 // pred_fallthru
      _
    // Predicated region
    $region10: #{dual_encoder_forward.1} parent=1 // pred_check
      _
    $region11: #{dual_encoder_forward.1} parent=1 // pred_check_branch
      %22 = sbr.rel (0) target = $region13
    $region12: #{dual_encoder_forward.1} parent=1 // pred_region
      _
    $region13: #{dual_encoder_forward.1} parent=1 // pred_fallthru
      _
    // Predicated region
    $region14: #{dual_encoder_forward.1} parent=1 // pred_check
      _
    $region15: #{dual_encoder_forward.1} parent=1 // pred_check_branch
      %24 = sbr.rel (0) target = $region17
    $region16: #{dual_encoder_forward.1} parent=1 // pred_region
      _
    $region17: #{dual_encoder_forward.1} parent=1 // pred_fallthru
      _
    // Predicated region
    $region18: #{dual_encoder_forward.1} parent=1 // pred_check
      _
    $region19: #{dual_encoder_forward.1} parent=1 // pred_check_branch
      %26 = sbr.rel (0) target = $region21
    $region20: #{dual_encoder_forward.1} parent=1 // pred_region
      _
    $region21: #{dual_encoder_forward.1} parent=1 // pred_fallthru
      _
    // Predicated region
    $region22: #{dual_encoder_forward.1} parent=1 // pred_check
      _
    $region23: #{dual_encoder_forward.1} parent=1 // pred_check_branch
      %28 = sbr.rel (0) target = $region25
    $region24: #{dual_encoder_forward.1} parent=1 // pred_region
      _
    $region25: #{dual_encoder_forward.1} parent=1 // pred_fallthru
      _
    // Predicated region
    $region26: #{dual_encoder_forward.1} parent=1 // pred_check
      _
    $region27: #{dual_encoder_forward.1} parent=1 // pred_check_branch
      %30 = sbr.rel (0) target = $region29
    $region28: #{dual_encoder_forward.1} parent=1 // pred_region
      _
    $region29: #{dual_encoder_forward.1} parent=1 // pred_fallthru
      _
    // Predicated region
    $region30: #{dual_encoder_forward.1} parent=1 // pred_check
      _
    $region31: #{dual_encoder_forward.1} parent=1 // pred_check_branch
      %32 = sbr.rel (0) target = $region33
    $region32: #{dual_encoder_forward.1} parent=1 // pred_region
      _
    $region33: #{dual_encoder_forward.1} parent=1 // pred_fallthru
      _
    // Predicated region
    $region34: #{dual_encoder_forward.1} parent=1 // pred_check
      _
    $region35: #{dual_encoder_forward.1} parent=1 // pred_check_branch
      %34 = sbr.rel (0) target = $region37
    $region36: #{dual_encoder_forward.1} parent=1 // pred_region
      _
    $region37: #{dual_encoder_forward.1} parent=1 // pred_fallthru
      _
    // Predicated region
    $region38: #{dual_encoder_forward.1} parent=1 // pred_check
      _
    $region39: #{dual_encoder_forward.1} parent=1 // pred_check_branch
      %36 = sbr.rel (0) target = $region41
    $region40: #{dual_encoder_forward.1} parent=1 // pred_region
      %s38 = ssub.s32 192, 192
      %39 = vsyncadd [#allocation5], %s38
      %s40 = sshll.u32 [#allocation4], 4
      %s41 = int_to_ptr.vmem [resolvable:$true] %s40
      %46 = dma.hbm_to_vmem [thread:$0]  %s9, 192, %s41, [#allocation5], 64, 64, 4
    $region41: #{dual_encoder_forward.1} parent=1 // pred_fallthru
      _
    // Predicated region
    $region42: #{dual_encoder_forward.1} parent=1 // pred_check
      _
    $region43: #{dual_encoder_forward.1} parent=1 // pred_check_branch
      %48 = sbr.rel (0) target = $region45
    $region44: #{dual_encoder_forward.1} parent=1 // pred_region
      %49 = dma.done [#allocation5], 192
    $region45: #{dual_encoder_forward.1} parent=1 // pred_fallthru
      _
    %p52 = scmp.lt.u32.totalorder 256, 8
    %p53 = pneg %p52
    // Predicated region
    $region46: #{dual_encoder_forward.1} parent=1 // pred_check
      _
    $region47: #{dual_encoder_forward.1} parent=1 // pred_check_branch
      %55 = sbr.rel (%p52) target = $region49
    $region48: #{dual_encoder_forward.1} parent=1 // pred_region
      %s70 = sand.u32 256, 7
      %p71 = scmp.eq.s32.totalorder %s70, 0
      // Predicated region
      $region61: #{dual_encoder_forward.1} parent=48 // pred_check
        %p72 = pneg %p71
      $region62: #{dual_encoder_forward.1} parent=48 // pred_check_branch
        %74 = sbr.rel (%p72) target = $region64
      $region63: #{dual_encoder_forward.1} parent=48 // pred_region
        loop: start=0, step=1, limit=1
        $region65: #{dual_encoder_forward.1} parent=63 // loop_pre_header
          _
        $region66: #{dual_encoder_forward.1} parent=63 // loop_header
          %s76 = sphi 0, %s80
          %p77 = scmp.ge.s32.totalorder %s76, 1
          %s81 = sphi %s10, %s10
          %s82 = sphi [#allocation2], [#allocation2]
        $region67: #{dual_encoder_forward.1} parent=63 // loop_header_branch
          %79 = sbr.rel (%p77) target = $region71
        $region68: #{dual_encoder_forward.1} parent=63 // loop_body
          %v83 = vld [vmem:[%s81] sm:$0xff]
          %84 = vst [vmem:[%s82] sm:$0xff] %v83
          %v85 = vld [vmem:[%s81 + $0x8] sm:$0xff]
          %86 = vst [vmem:[%s82 + $0x8] sm:$0xff] %v85
          %v87 = vld [vmem:[%s81 + $0x10] sm:$0xff]
          %88 = vst [vmem:[%s82 + $0x10] sm:$0xff] %v87
          %v89 = vld [vmem:[%s81 + $0x18] sm:$0xff]
          %90 = vst [vmem:[%s82 + $0x18] sm:$0xff] %v89
          %v91 = vld [vmem:[%s81 + $0x20] sm:$0xff]
          %92 = vst [vmem:[%s82 + $0x20] sm:$0xff] %v91
          %v93 = vld [vmem:[%s81 + $0x28] sm:$0xff]
          %94 = vst [vmem:[%s82 + $0x28] sm:$0xff] %v93
          %v95 = vld [vmem:[%s81 + $0x30] sm:$0xff]
          %96 = vst [vmem:[%s82 + $0x30] sm:$0xff] %v95
          %v97 = vld [vmem:[%s81 + $0x38] sm:$0xff]
          %98 = vst [vmem:[%s82 + $0x38] sm:$0xff] %v97
          %v99 = vld [vmem:[%s81 + $0x40] sm:$0xff]
          %100 = vst [vmem:[%s82 + $0x40] sm:$0xff] %v99
          %v101 = vld [vmem:[%s81 + $0x48] sm:$0xff]
          %102 = vst [vmem:[%s82 + $0x48] sm:$0xff] %v101
          %v103 = vld [vmem:[%s81 + $0x50] sm:$0xff]
          %104 = vst [vmem:[%s82 + $0x50] sm:$0xff] %v103
          %v105 = vld [vmem:[%s81 + $0x58] sm:$0xff]
          %106 = vst [vmem:[%s82 + $0x58] sm:$0xff] %v105
          %v107 = vld [vmem:[%s81 + $0x60] sm:$0xff]
          %108 = vst [vmem:[%s82 + $0x60] sm:$0xff] %v107
          %v109 = vld [vmem:[%s81 + $0x68] sm:$0xff]
          %110 = vst [vmem:[%s82 + $0x68] sm:$0xff] %v109
          %v111 = vld [vmem:[%s81 + $0x70] sm:$0xff]
          %112 = vst [vmem:[%s82 + $0x70] sm:$0xff] %v111
          %v113 = vld [vmem:[%s81 + $0x78] sm:$0xff]
          %114 = vst [vmem:[%s82 + $0x78] sm:$0xff] %v113
          %v115 = vld [vmem:[%s81 + $0x80] sm:$0xff]
          %116 = vst [vmem:[%s82 + $0x80] sm:$0xff] %v115
          %v117 = vld [vmem:[%s81 + $0x88] sm:$0xff]
          %118 = vst [vmem:[%s82 + $0x88] sm:$0xff] %v117
          %v119 = vld [vmem:[%s81 + $0x90] sm:$0xff]
          %120 = vst [vmem:[%s82 + $0x90] sm:$0xff] %v119
          %v121 = vld [vmem:[%s81 + $0x98] sm:$0xff]
          %122 = vst [vmem:[%s82 + $0x98] sm:$0xff] %v121
          %v123 = vld [vmem:[%s81 + $0xa0] sm:$0xff]
          %124 = vst [vmem:[%s82 + $0xa0] sm:$0xff] %v123
          %v125 = vld [vmem:[%s81 + $0xa8] sm:$0xff]
          %126 = vst [vmem:[%s82 + $0xa8] sm:$0xff] %v125
          %v127 = vld [vmem:[%s81 + $0xb0] sm:$0xff]
          %128 = vst [vmem:[%s82 + $0xb0] sm:$0xff] %v127
          %v129 = vld [vmem:[%s81 + $0xb8] sm:$0xff]
          %130 = vst [vmem:[%s82 + $0xb8] sm:$0xff] %v129
          %v131 = vld [vmem:[%s81 + $0xc0] sm:$0xff]
          %132 = vst [vmem:[%s82 + $0xc0] sm:$0xff] %v131
          %v133 = vld [vmem:[%s81 + $0xc8] sm:$0xff]
          %134 = vst [vmem:[%s82 + $0xc8] sm:$0xff] %v133
          %v135 = vld [vmem:[%s81 + $0xd0] sm:$0xff]
          %136 = vst [vmem:[%s82 + $0xd0] sm:$0xff] %v135
          %v137 = vld [vmem:[%s81 + $0xd8] sm:$0xff]
          %138 = vst [vmem:[%s82 + $0xd8] sm:$0xff] %v137
          %v139 = vld [vmem:[%s81 + $0xe0] sm:$0xff]
          %140 = vst [vmem:[%s82 + $0xe0] sm:$0xff] %v139
          %v141 = vld [vmem:[%s81 + $0xe8] sm:$0xff]
          %142 = vst [vmem:[%s82 + $0xe8] sm:$0xff] %v141
          %v143 = vld [vmem:[%s81 + $0xf0] sm:$0xff]
          %144 = vst [vmem:[%s82 + $0xf0] sm:$0xff] %v143
          %v145 = vld [vmem:[%s81 + $0xf8] sm:$0xff]
          %146 = vst [vmem:[%s82 + $0xf8] sm:$0xff] %v145
        $region69: #{dual_encoder_forward.1} parent=63 // loop_footer
          %s80 = sadd.s32 1, %s76
        $region70: #{dual_encoder_forward.1} parent=63 // loop_footer_branch
          %75 = sbr.rel target = $region66
        $region71: #{dual_encoder_forward.1} parent=63 // loop_exit
          _
      $region64: #{dual_encoder_forward.1} parent=48 // pred_fallthru
        _
      %p147 = pneg %p71
      // Predicated region
      $region72: #{dual_encoder_forward.1} parent=48 // pred_check
        _
      $region73: #{dual_encoder_forward.1} parent=48 // pred_check_branch
        %149 = sbr.rel (%p71) target = $region75
      $region74: #{dual_encoder_forward.1} parent=48 // pred_region
        %s150 = sand.u32 256, 7
      $region75: #{dual_encoder_forward.1} parent=48 // pred_fallthru
        _
    $region49: #{dual_encoder_forward.1} parent=1 // pred_fallthru
      _
    // Predicated region
    $region50: #{dual_encoder_forward.1} parent=1 // pred_check
      %p56 = pneg %p52
    $region51: #{dual_encoder_forward.1} parent=1 // pred_check_branch
      %58 = sbr.rel (%p56) target = $region53
    $region52: #{dual_encoder_forward.1} parent=1 // pred_region
      %s59 = sshllo.u32 0, 256
      loop: start=0, step=1, limit=1
      $region54: #{dual_encoder_forward.1} parent=52 // loop_pre_header
        _
      $region55: #{dual_encoder_forward.1} parent=52 // loop_header
        %s61 = sphi 0, %s65
        %p62 = scmp.ge.s32.totalorder %s61, 1
        %s66 = sphi %s10, %s10
        %s67 = sphi [#allocation2], [#allocation2]
      $region56: #{dual_encoder_forward.1} parent=52 // loop_header_branch
        %64 = sbr.rel (%p62) target = $region60
      $region57: #{dual_encoder_forward.1} parent=52 // loop_body
        %v68 = vld [vmem:[%s66] sm:%s59]
        %69 = vst [vmem:[%s67] sm:%s59] %v68
      $region58: #{dual_encoder_forward.1} parent=52 // loop_footer
        %s65 = sadd.s32 1, %s61
      $region59: #{dual_encoder_forward.1} parent=52 // loop_footer_branch
        %60 = sbr.rel target = $region55
      $region60: #{dual_encoder_forward.1} parent=52 // loop_exit
        _
    $region53: #{dual_encoder_forward.1} parent=1 // pred_fallthru
      _
    // Predicated region
    $region76: #{dual_encoder_forward.1} parent=1 // pred_check
      _
    $region77: #{dual_encoder_forward.1} parent=1 // pred_check_branch
      %153 = sbr.rel (0) target = $region79
    $region78: #{dual_encoder_forward.1} parent=1 // pred_region
      %154 = vsyncadd [#allocation3], 4096
    $region79: #{dual_encoder_forward.1} parent=1 // pred_fallthru
      _
    %v155 = vld [vmem:[%s1] sm:$0xf]
    %v156 = vld [vmem:[%s1 + $0x4] sm:$0xf]
    %v157 = vld [vmem:[%s2] sm:$0xff]
    %v158 = vld [vmem:[%s2 + $0x8] sm:$0xff]
    %v159 = vld [vmem:[%s3] sm:$0xff]
    %v160 = vld [vmem:[%s3 + $0x8] sm:$0xff]
    %v161 = vld [vmem:[%s3 + $0x10] sm:$0xff]
    %v162 = vld [vmem:[%s3 + $0x18] sm:$0xff]
    %v163 = vld [vmem:[%s3 + $0x20] sm:$0xff]
    %v164 = vld [vmem:[%s3 + $0x28] sm:$0xff]
    %v165 = vld [vmem:[%s3 + $0x30] sm:$0xff]
    %v166 = vld [vmem:[%s3 + $0x38] sm:$0xff]
    %v167 = vld [vmem:[%s4] sm:$0xff]
    %v168 = vld [vmem:[%s4 + $0x8] sm:$0xff]
    %v169 = vld [vmem:[%s4 + $0x10] sm:$0xff]
    %v170 = vld [vmem:[%s4 + $0x18] sm:$0xff]
    %v171 = vld [vmem:[%s5] sm:$0x3]
    %v174 = vunpack.c.l.b16 %v155
    %v175 = vunpack.c.l.b16 %v156
    %v176 = vpack.c.b16 %v175, %v174
    %v181 = vunpack.c.l.b16 %v159
    %v182 = vunpack.c.h.b16 %v159
    %v183 = vunpack.c.l.b16 %v161
    %v184 = vunpack.c.h.b16 %v161
    %v185 = vunpack.c.l.b16 %v163
    %v186 = vunpack.c.h.b16 %v163
    %v187 = vunpack.c.l.b16 %v165
    %v188 = vunpack.c.h.b16 %v165
    %v189 = vpack.c.b16 %v183, %v181
    %v190 = vpack.c.b16 %v184, %v182
    %v191 = vpack.c.b16 %v187, %v185
    %v192 = vpack.c.b16 %v188, %v186
    %vm197 = vcmask 261120
    %v199 = vsel %vm197, %v176, 0
    %201 = vmatprep.subr.bf16.mxu0 %v190
    %202 = vmatpush1.bf16.msra.mxu0 %v189
    %203 = vmatprep.subr.bf16.mxu0 %v192
    %204 = vmatpush1.bf16.msra.mxu0 %v191
    %205 = vmatprep.subr.bf16.mxu0 0
    %206 = vmatpush1.bf16.msra.mxu0 0
    %207 = vmatprep.subr.bf16.mxu0 0
    %208 = vmatpush1.bf16.msra.mxu0 0
    %209 = vmatprep.subr.bf16.mxu0 0
    %210 = vmatpush1.bf16.msra.mxu0 0
    %211 = vmatprep.subr.bf16.mxu0 0
    %212 = vmatpush1.bf16.msra.mxu0 0
    %213 = vmatprep.subr.bf16.mxu0 0
    %214 = vmatpush1.bf16.msra.mxu0 0
    %215 = vmatprep.subr.bf16.mxu0 0
    %216 = vmatpush1.bf16.msra.mxu0 0
    %217 = vmatprep.subr.bf16.mxu0 0
    %218 = vmatpush1.bf16.msra.mxu0 0
    %219 = vmatprep.subr.bf16.mxu0 0
    %220 = vmatpush1.bf16.msra.mxu0 0
    %221 = vmatprep.subr.bf16.mxu0 0
    %222 = vmatpush1.bf16.msra.mxu0 0
    %223 = vmatprep.subr.bf16.mxu0 0
    %224 = vmatpush1.bf16.msra.mxu0 0
    %225 = vmatprep.subr.bf16.mxu0 0
    %226 = vmatpush1.bf16.msra.mxu0 0
    %227 = vmatprep.subr.bf16.mxu0 0
    %228 = vmatpush1.bf16.msra.mxu0 0
    %229 = vmatprep.subr.bf16.mxu0 0
    %230 = vmatpush1.bf16.msra.mxu0 0
    %231 = vmatprep.subr.bf16.mxu0 0
    %232 = vmatpush1.bf16.msra.mxu0 0
    %233 = vmatprep.mubr.bf16.mxu0 0
    %234 = vmatmul.mubr.bf16.gmra.mrb[0].mxu0 %v199
    %v235 = vpop.f32.mrb[0].mxu0
    %v236 = vadd.f32 0.0, %v235
    %v237 = vpop.f32.mrb[0].mxu0
    %v238 = vadd.f32 0.0, %v237
    %v239 = vpop.f32.mrb[0].mxu0
    %v240 = vadd.f32 0.0, %v239
    %v241 = vpop.f32.mrb[0].mxu0
    %v242 = vadd.f32 0.0, %v241
    %243 = vdwg.mxu0
    %v244 = vlaneseq
    %v245 = vshrl.u32 %v244, 7
    %v246 = vsub.s32 0, %v245
    %v247 = vrot.slane %v171, %v246
    %v248 = vadd.f32 %v236, %v247
    %v249 = vadd.f32 %v240, %v247
    %v254 = vunpack.c.l.b16 %v167
    %v255 = vunpack.c.l.b16 %v168
    %v256 = vunpack.c.l.b16 %v169
    %v257 = vunpack.c.l.b16 %v170
    %v258 = vpack.c.b16 %v255, %v254
    %v259 = vpack.c.b16 %v257, %v256
    %v263 = vsel %vm197, 0, 0
    %265 = vmatprep.subr.bf16.mxu0 0
    %266 = vmatpush1.bf16.msra.mxu0 %v258
    %267 = vmatprep.subr.bf16.mxu0 0
    %268 = vmatpush1.bf16.msra.mxu0 %v259
    %269 = vmatprep.subr.bf16.mxu0 0
    %270 = vmatpush1.bf16.msra.mxu0 0
    %271 = vmatprep.subr.bf16.mxu0 0
    %272 = vmatpush1.bf16.msra.mxu0 0
    %273 = vmatprep.subr.bf16.mxu0 0
    %274 = vmatpush1.bf16.msra.mxu0 0
    %275 = vmatprep.subr.bf16.mxu0 0
    %276 = vmatpush1.bf16.msra.mxu0 0
    %277 = vmatprep.subr.bf16.mxu0 0
    %278 = vmatpush1.bf16.msra.mxu0 0
    %279 = vmatprep.subr.bf16.mxu0 0
    %280 = vmatpush1.bf16.msra.mxu0 0
    %281 = vmatprep.subr.bf16.mxu0 0
    %282 = vmatpush1.bf16.msra.mxu0 0
    %283 = vmatprep.subr.bf16.mxu0 0
    %284 = vmatpush1.bf16.msra.mxu0 0
    %285 = vmatprep.subr.bf16.mxu0 0
    %286 = vmatpush1.bf16.msra.mxu0 0
    %287 = vmatprep.subr.bf16.mxu0 0
    %288 = vmatpush1.bf16.msra.mxu0 0
    %289 = vmatprep.subr.bf16.mxu0 0
    %290 = vmatpush1.bf16.msra.mxu0 0
    %291 = vmatprep.subr.bf16.mxu0 0
    %292 = vmatpush1.bf16.msra.mxu0 0
    %293 = vmatprep.subr.bf16.mxu0 0
    %294 = vmatpush1.bf16.msra.mxu0 0
    %295 = vmatprep.subr.bf16.mxu0 0
    %296 = vmatpush1.bf16.msra.mxu0 0
    %297 = vmatprep.mubr.bf16.mxu0 0
    %298 = vmatmul.mubr.bf16.gmra.mrb[0].mxu0 %v263
    %v299 = vpop.f32.mrb[0].mxu0
    %v300 = vadd.f32 %v248, %v299
    %v301 = vpop.f32.mrb[0].mxu0
    %v302 = vpop.f32.mrb[0].mxu0
    %v303 = vpop.f32.mrb[0].mxu0
    %304 = vdwg.mxu0
    %v306 = vrot.slane %v242, 6
    %v308 = vadd.f32 %v300, %v306
    %v309 = vxor.u32 %v308, 2147483648
    %v310 = vmul.f32 %v309, 1.442695
    %v311 = vpow.pop %v310
    %v312 = vadd.f32 %v311, 1.0
    %v313 = vrcp.pop %v312
    %v314 = vmul.f32 1.0, %v313
    %v315 = vtanh.pop %v308
    %v316 = vmul.f32 %v314, 0.0
    %318 = vrot.lane.b32.xlu0 %v315, 32
    %v319 = vpop.permute.xlu0 %318
    %v321 = vmul.f32 %v314, %v319
    %323 = vrot.lane.b32.xlu0 %v321, 32
    %v324 = vpop.permute.xlu0 %323
    %v326 = vadd.f32 %v316, %v324
    %v327 = vtanh.pop %v326
    %329 = vrot.lane.b32.xlu0 %v327, 32
    %v330 = vpop.permute.xlu0 %329
    %v332 = vmul.f32 %v314, %v330
    %v333 = vpack.c.bf16 %v332, %v332
    %335 = vrot.lane.b32.xlu0 %v333, 64
    %v336 = vpop.permute.xlu0 %335
    %v338 = vrot.slane %v248, 2
    %v341 = vsel %vm197, %v336, 0
    %343 = vmatprep.subr.bf16.mxu0 0
    %344 = vmatpush1.bf16.msra.mxu0 %v258
    %345 = vmatprep.subr.bf16.mxu0 0
    %346 = vmatpush1.bf16.msra.mxu0 %v259
    %347 = vmatprep.subr.bf16.mxu0 0
    %348 = vmatpush1.bf16.msra.mxu0 0
    %349 = vmatprep.subr.bf16.mxu0 0
    %350 = vmatpush1.bf16.msra.mxu0 0
    %351 = vmatprep.subr.bf16.mxu0 0
    %352 = vmatpush1.bf16.msra.mxu0 0
    %353 = vmatprep.subr.bf16.mxu0 0
    %354 = vmatpush1.bf16.msra.mxu0 0
    %355 = vmatprep.subr.bf16.mxu0 0
    %356 = vmatpush1.bf16.msra.mxu0 0
    %357 = vmatprep.subr.bf16.mxu0 0
    %358 = vmatpush1.bf16.msra.mxu0 0
    %359 = vmatprep.subr.bf16.mxu0 0
    %360 = vmatpush1.bf16.msra.mxu0 0
    %361 = vmatprep.subr.bf16.mxu0 0
    %362 = vmatpush1.bf16.msra.mxu0 0
    %363 = vmatprep.subr.bf16.mxu0 0
    %364 = vmatpush1.bf16.msra.mxu0 0
    %365 = vmatprep.subr.bf16.mxu0 0
    %366 = vmatpush1.bf16.msra.mxu0 0
    %367 = vmatprep.subr.bf16.mxu0 0
    %368 = vmatpush1.bf16.msra.mxu0 0
    %369 = vmatprep.subr.bf16.mxu0 0
    %370 = vmatpush1.bf16.msra.mxu0 0
    %371 = vmatprep.subr.bf16.mxu0 0
    %372 = vmatpush1.bf16.msra.mxu0 0
    %373 = vmatprep.subr.bf16.mxu0 0
    %374 = vmatpush1.bf16.msra.mxu0 0
    %375 = vmatprep.mubr.bf16.mxu0 0
    %376 = vmatmul.mubr.bf16.gmra.mrb[0].mxu0 %v341
    %v377 = vpop.f32.mrb[0].mxu0
    %v378 = vadd.f32 %v338, %v377
    %v379 = vpop.f32.mrb[0].mxu0
    %v380 = vpop.f32.mrb[0].mxu0
    %v381 = vpop.f32.mrb[0].mxu0
    %382 = vdwg.mxu0
    %v383 = vrot.slane %v242, 4
    %v385 = vadd.f32 %v378, %v383
    %v386 = vxor.u32 %v385, 2147483648
    %v387 = vmul.f32 %v386, 1.442695
    %v388 = vpow.pop %v387
    %v389 = vadd.f32 %v388, 1.0
    %v390 = vrcp.pop %v389
    %v391 = vmul.f32 1.0, %v390
    %v392 = vtanh.pop %v385
    %v393 = vmul.f32 %v391, %v326
    %395 = vrot.lane.b32.xlu0 %v392, 32
    %v396 = vpop.permute.xlu0 %395
    %v398 = vmul.f32 %v391, %v396
    %400 = vrot.lane.b32.xlu0 %v398, 32
    %v401 = vpop.permute.xlu0 %400
    %v403 = vadd.f32 %v393, %v401
    %v404 = vtanh.pop %v403
    %406 = vrot.lane.b32.xlu0 %v404, 32
    %v407 = vpop.permute.xlu0 %406
    %v409 = vmul.f32 %v391, %v407
    %v410 = vpack.c.bf16 %v409, %v409
    %412 = vrot.lane.b32.xlu0 %v410, 64
    %v413 = vpop.permute.xlu0 %412
    %v414 = vrot.slane %v248, 4
    %v417 = vsel %vm197, %v413, 0
    %419 = vmatprep.subr.bf16.mxu0 0
    %420 = vmatpush1.bf16.msra.mxu0 %v258
    %421 = vmatprep.subr.bf16.mxu0 0
    %422 = vmatpush1.bf16.msra.mxu0 %v259
    %423 = vmatprep.subr.bf16.mxu0 0
    %424 = vmatpush1.bf16.msra.mxu0 0
    %425 = vmatprep.subr.bf16.mxu0 0
    %426 = vmatpush1.bf16.msra.mxu0 0
    %427 = vmatprep.subr.bf16.mxu0 0
    %428 = vmatpush1.bf16.msra.mxu0 0
    %429 = vmatprep.subr.bf16.mxu0 0
    %430 = vmatpush1.bf16.msra.mxu0 0
    %431 = vmatprep.subr.bf16.mxu0 0
    %432 = vmatpush1.bf16.msra.mxu0 0
    %433 = vmatprep.subr.bf16.mxu0 0
    %434 = vmatpush1.bf16.msra.mxu0 0
    %435 = vmatprep.subr.bf16.mxu0 0
    %436 = vmatpush1.bf16.msra.mxu0 0
    %437 = vmatprep.subr.bf16.mxu0 0
    %438 = vmatpush1.bf16.msra.mxu0 0
    %439 = vmatprep.subr.bf16.mxu0 0
    %440 = vmatpush1.bf16.msra.mxu0 0
    %441 = vmatprep.subr.bf16.mxu0 0
    %442 = vmatpush1.bf16.msra.mxu0 0
    %443 = vmatprep.subr.bf16.mxu0 0
    %444 = vmatpush1.bf16.msra.mxu0 0
    %445 = vmatprep.subr.bf16.mxu0 0
    %446 = vmatpush1.bf16.msra.mxu0 0
    %447 = vmatprep.subr.bf16.mxu0 0
    %448 = vmatpush1.bf16.msra.mxu0 0
    %449 = vmatprep.subr.bf16.mxu0 0
    %450 = vmatpush1.bf16.msra.mxu0 0
    %451 = vmatprep.mubr.bf16.mxu0 0
    %452 = vmatmul.mubr.bf16.gmra.mrb[0].mxu0 %v417
    %v453 = vpop.f32.mrb[0].mxu0
    %v454 = vadd.f32 %v414, %v453
    %v455 = vpop.f32.mrb[0].mxu0
    %v456 = vpop.f32.mrb[0].mxu0
    %v457 = vpop.f32.mrb[0].mxu0
    %458 = vdwg.mxu0
    %v459 = vrot.slane %v242, 2
    %v461 = vadd.f32 %v454, %v459
    %v462 = vxor.u32 %v461, 2147483648
    %v463 = vmul.f32 %v462, 1.442695
    %v464 = vpow.pop %v463
    %v465 = vadd.f32 %v464, 1.0
    %v466 = vrcp.pop %v465
    %v467 = vmul.f32 1.0, %v466
    %v468 = vtanh.pop %v461
    %v469 = vmul.f32 %v467, %v403
    %471 = vrot.lane.b32.xlu0 %v468, 32
    %v472 = vpop.permute.xlu0 %471
    %v474 = vmul.f32 %v467, %v472
    %476 = vrot.lane.b32.xlu0 %v474, 32
    %v477 = vpop.permute.xlu0 %476
    %v479 = vadd.f32 %v469, %v477
    %v480 = vtanh.pop %v479
    %482 = vrot.lane.b32.xlu0 %v480, 32
    %v483 = vpop.permute.xlu0 %482
    %v485 = vmul.f32 %v467, %v483
    %v486 = vpack.c.bf16 %v485, %v485
    %488 = vrot.lane.b32.xlu0 %v486, 64
    %v489 = vpop.permute.xlu0 %488
    %v490 = vrot.slane %v248, 6
    %v493 = vsel %vm197, %v489, 0
    %495 = vmatprep.subr.bf16.mxu0 0
    %496 = vmatpush1.bf16.msra.mxu0 %v258
    %497 = vmatprep.subr.bf16.mxu0 0
    %498 = vmatpush1.bf16.msra.mxu0 %v259
    %499 = vmatprep.subr.bf16.mxu0 0
    %500 = vmatpush1.bf16.msra.mxu0 0
    %501 = vmatprep.subr.bf16.mxu0 0
    %502 = vmatpush1.bf16.msra.mxu0 0
    %503 = vmatprep.subr.bf16.mxu0 0
    %504 = vmatpush1.bf16.msra.mxu0 0
    %505 = vmatprep.subr.bf16.mxu0 0
    %506 = vmatpush1.bf16.msra.mxu0 0
    %507 = vmatprep.subr.bf16.mxu0 0
    %508 = vmatpush1.bf16.msra.mxu0 0
    %509 = vmatprep.subr.bf16.mxu0 0
    %510 = vmatpush1.bf16.msra.mxu0 0
    %511 = vmatprep.subr.bf16.mxu0 0
    %512 = vmatpush1.bf16.msra.mxu0 0
    %513 = vmatprep.subr.bf16.mxu0 0
    %514 = vmatpush1.bf16.msra.mxu0 0
    %515 = vmatprep.subr.bf16.mxu0 0
    %516 = vmatpush1.bf16.msra.mxu0 0
    %517 = vmatprep.subr.bf16.mxu0 0
    %518 = vmatpush1.bf16.msra.mxu0 0
    %519 = vmatprep.subr.bf16.mxu0 0
    %520 = vmatpush1.bf16.msra.mxu0 0
    %521 = vmatprep.subr.bf16.mxu0 0
    %522 = vmatpush1.bf16.msra.mxu0 0
    %523 = vmatprep.subr.bf16.mxu0 0
    %524 = vmatpush1.bf16.msra.mxu0 0
    %525 = vmatprep.subr.bf16.mxu0 0
    %526 = vmatpush1.bf16.msra.mxu0 0
    %527 = vmatprep.mubr.bf16.mxu0 0
    %528 = vmatmul.mubr.bf16.gmra.mrb[0].mxu0 %v493
    %v529 = vpop.f32.mrb[0].mxu0
    %v530 = vadd.f32 %v490, %v529
    %v531 = vpop.f32.mrb[0].mxu0
    %v532 = vpop.f32.mrb[0].mxu0
    %v533 = vpop.f32.mrb[0].mxu0
    %534 = vdwg.mxu0
    %v535 = vadd.f32 %v530, %v242
    %v536 = vxor.u32 %v535, 2147483648
    %v537 = vmul.f32 %v536, 1.442695
    %v538 = vpow.pop %v537
    %v539 = vadd.f32 %v538, 1.0
    %v540 = vrcp.pop %v539
    %v541 = vmul.f32 1.0, %v540
    %v542 = vtanh.pop %v535
    %v543 = vmul.f32 %v541, %v479
    %545 = vrot.lane.b32.xlu0 %v542, 32
    %v546 = vpop.permute.xlu0 %545
    %v548 = vmul.f32 %v541, %v546
    %550 = vrot.lane.b32.xlu0 %v548, 32
    %v551 = vpop.permute.xlu0 %550
    %v553 = vadd.f32 %v543, %v551
    %v554 = vtanh.pop %v553
    %556 = vrot.lane.b32.xlu0 %v554, 32
    %v557 = vpop.permute.xlu0 %556
    %v559 = vmul.f32 %v541, %v557
    %v560 = vpack.c.bf16 %v559, %v559
    %562 = vrot.lane.b32.xlu0 %v560, 64
    %v563 = vpop.permute.xlu0 %562
    %v565 = vsel %vm197, %v563, 0
    %567 = vmatprep.subr.bf16.mxu0 0
    %568 = vmatpush1.bf16.msra.mxu0 %v258
    %569 = vmatprep.subr.bf16.mxu0 0
    %570 = vmatpush1.bf16.msra.mxu0 %v259
    %571 = vmatprep.subr.bf16.mxu0 0
    %572 = vmatpush1.bf16.msra.mxu0 0
    %573 = vmatprep.subr.bf16.mxu0 0
    %574 = vmatpush1.bf16.msra.mxu0 0
    %575 = vmatprep.subr.bf16.mxu0 0
    %576 = vmatpush1.bf16.msra.mxu0 0
    %577 = vmatprep.subr.bf16.mxu0 0
    %578 = vmatpush1.bf16.msra.mxu0 0
    %579 = vmatprep.subr.bf16.mxu0 0
    %580 = vmatpush1.bf16.msra.mxu0 0
    %581 = vmatprep.subr.bf16.mxu0 0
    %582 = vmatpush1.bf16.msra.mxu0 0
    %583 = vmatprep.subr.bf16.mxu0 0
    %584 = vmatpush1.bf16.msra.mxu0 0
    %585 = vmatprep.subr.bf16.mxu0 0
    %586 = vmatpush1.bf16.msra.mxu0 0
    %587 = vmatprep.subr.bf16.mxu0 0
    %588 = vmatpush1.bf16.msra.mxu0 0
    %589 = vmatprep.subr.bf16.mxu0 0
    %590 = vmatpush1.bf16.msra.mxu0 0
    %591 = vmatprep.subr.bf16.mxu0 0
    %592 = vmatpush1.bf16.msra.mxu0 0
    %593 = vmatprep.subr.bf16.mxu0 0
    %594 = vmatpush1.bf16.msra.mxu0 0
    %595 = vmatprep.subr.bf16.mxu0 0
    %596 = vmatpush1.bf16.msra.mxu0 0
    %597 = vmatprep.subr.bf16.mxu0 0
    %598 = vmatpush1.bf16.msra.mxu0 0
    %599 = vmatprep.mubr.bf16.mxu0 0
    %600 = vmatmul.mubr.bf16.gmra.mrb[0].mxu0 %v565
    %v601 = vpop.f32.mrb[0].mxu0
    %v602 = vadd.f32 %v249, %v601
    %v603 = vpop.f32.mrb[0].mxu0
    %v604 = vpop.f32.mrb[0].mxu0
    %v605 = vpop.f32.mrb[0].mxu0
    %606 = vdwg.mxu0
    %v608 = vrot.slane %v238, 6
    %v610 = vadd.f32 %v602, %v608
    %v611 = vxor.u32 %v610, 2147483648
    %v612 = vmul.f32 %v611, 1.442695
    %v613 = vpow.pop %v612
    %v614 = vadd.f32 %v613, 1.0
    %v615 = vrcp.pop %v614
    %v616 = vmul.f32 1.0, %v615
    %v617 = vtanh.pop %v610
    %v618 = vmul.f32 %v616, %v553
    %620 = vrot.lane.b32.xlu0 %v617, 32
    %v621 = vpop.permute.xlu0 %620
    %v623 = vmul.f32 %v616, %v621
    %625 = vrot.lane.b32.xlu0 %v623, 32
    %v626 = vpop.permute.xlu0 %625
    %v628 = vadd.f32 %v618, %v626
    %v629 = vtanh.pop %v628
    %631 = vrot.lane.b32.xlu0 %v629, 32
    %v632 = vpop.permute.xlu0 %631
    %v634 = vmul.f32 %v616, %v632
    %v635 = vpack.c.bf16 %v634, %v634
    %637 = vrot.lane.b32.xlu0 %v635, 64
    %v638 = vpop.permute.xlu0 %637
    %v640 = vrot.slane %v249, 2
    %v643 = vsel %vm197, %v638, 0
    %645 = vmatprep.subr.bf16.mxu0 0
    %646 = vmatpush1.bf16.msra.mxu0 %v258
    %647 = vmatprep.subr.bf16.mxu0 0
    %648 = vmatpush1.bf16.msra.mxu0 %v259
    %649 = vmatprep.subr.bf16.mxu0 0
    %650 = vmatpush1.bf16.msra.mxu0 0
    %651 = vmatprep.subr.bf16.mxu0 0
    %652 = vmatpush1.bf16.msra.mxu0 0
    %653 = vmatprep.subr.bf16.mxu0 0
    %654 = vmatpush1.bf16.msra.mxu0 0
    %655 = vmatprep.subr.bf16.mxu0 0
    %656 = vmatpush1.bf16.msra.mxu0 0
    %657 = vmatprep.subr.bf16.mxu0 0
    %658 = vmatpush1.bf16.msra.mxu0 0
    %659 = vmatprep.subr.bf16.mxu0 0
    %660 = vmatpush1.bf16.msra.mxu0 0
    %661 = vmatprep.subr.bf16.mxu0 0
    %662 = vmatpush1.bf16.msra.mxu0 0
    %663 = vmatprep.subr.bf16.mxu0 0
    %664 = vmatpush1.bf16.msra.mxu0 0
    %665 = vmatprep.subr.bf16.mxu0 0
    %666 = vmatpush1.bf16.msra.mxu0 0
    %667 = vmatprep.subr.bf16.mxu0 0
    %668 = vmatpush1.bf16.msra.mxu0 0
    %669 = vmatprep.subr.bf16.mxu0 0
    %670 = vmatpush1.bf16.msra.mxu0 0
    %671 = vmatprep.subr.bf16.mxu0 0
    %672 = vmatpush1.bf16.msra.mxu0 0
    %673 = vmatprep.subr.bf16.mxu0 0
    %674 = vmatpush1.bf16.msra.mxu0 0
    %675 = vmatprep.subr.bf16.mxu0 0
    %676 = vmatpush1.bf16.msra.mxu0 0
    %677 = vmatprep.mubr.bf16.mxu0 0
    %678 = vmatmul.mubr.bf16.gmra.mrb[0].mxu0 %v643
    %v679 = vpop.f32.mrb[0].mxu0
    %v680 = vadd.f32 %v640, %v679
    %v681 = vpop.f32.mrb[0].mxu0
    %v682 = vpop.f32.mrb[0].mxu0
    %v683 = vpop.f32.mrb[0].mxu0
    %684 = vdwg.mxu0
    %v685 = vrot.slane %v238, 4
    %v687 = vadd.f32 %v680, %v685
    %v688 = vxor.u32 %v687, 2147483648
    %v689 = vmul.f32 %v688, 1.442695
    %v690 = vpow.pop %v689
    %v691 = vadd.f32 %v690, 1.0
    %v692 = vrcp.pop %v691
    %v693 = vmul.f32 1.0, %v692
    %v694 = vtanh.pop %v687
    %v695 = vmul.f32 %v693, %v628
    %697 = vrot.lane.b32.xlu0 %v694, 32
    %v698 = vpop.permute.xlu0 %697
    %v700 = vmul.f32 %v693, %v698
    %702 = vrot.lane.b32.xlu0 %v700, 32
    %v703 = vpop.permute.xlu0 %702
    %v705 = vadd.f32 %v695, %v703
    %v706 = vtanh.pop %v705
    %708 = vrot.lane.b32.xlu0 %v706, 32
    %v709 = vpop.permute.xlu0 %708
    %v711 = vmul.f32 %v693, %v709
    %v712 = vpack.c.bf16 %v711, %v711
    %714 = vrot.lane.b32.xlu0 %v712, 64
    %v715 = vpop.permute.xlu0 %714
    %v716 = vrot.slane %v249, 4
    %v719 = vsel %vm197, %v715, 0
    %721 = vmatprep.subr.bf16.mxu0 0
    %722 = vmatpush1.bf16.msra.mxu0 %v258
    %723 = vmatprep.subr.bf16.mxu0 0
    %724 = vmatpush1.bf16.msra.mxu0 %v259
    %725 = vmatprep.subr.bf16.mxu0 0
    %726 = vmatpush1.bf16.msra.mxu0 0
    %727 = vmatprep.subr.bf16.mxu0 0
    %728 = vmatpush1.bf16.msra.mxu0 0
    %729 = vmatprep.subr.bf16.mxu0 0
    %730 = vmatpush1.bf16.msra.mxu0 0
    %731 = vmatprep.subr.bf16.mxu0 0
    %732 = vmatpush1.bf16.msra.mxu0 0
    %733 = vmatprep.subr.bf16.mxu0 0
    %734 = vmatpush1.bf16.msra.mxu0 0
    %735 = vmatprep.subr.bf16.mxu0 0
    %736 = vmatpush1.bf16.msra.mxu0 0
    %737 = vmatprep.subr.bf16.mxu0 0
    %738 = vmatpush1.bf16.msra.mxu0 0
    %739 = vmatprep.subr.bf16.mxu0 0
    %740 = vmatpush1.bf16.msra.mxu0 0
    %741 = vmatprep.subr.bf16.mxu0 0
    %742 = vmatpush1.bf16.msra.mxu0 0
    %743 = vmatprep.subr.bf16.mxu0 0
    %744 = vmatpush1.bf16.msra.mxu0 0
    %745 = vmatprep.subr.bf16.mxu0 0
    %746 = vmatpush1.bf16.msra.mxu0 0
    %747 = vmatprep.subr.bf16.mxu0 0
    %748 = vmatpush1.bf16.msra.mxu0 0
    %749 = vmatprep.subr.bf16.mxu0 0
    %750 = vmatpush1.bf16.msra.mxu0 0
    %751 = vmatprep.subr.bf16.mxu0 0
    %752 = vmatpush1.bf16.msra.mxu0 0
    %753 = vmatprep.mubr.bf16.mxu0 0
    %754 = vmatmul.mubr.bf16.gmra.mrb[0].mxu0 %v719
    %v755 = vpop.f32.mrb[0].mxu0
    %v756 = vadd.f32 %v716, %v755
    %v757 = vpop.f32.mrb[0].mxu0
    %v758 = vpop.f32.mrb[0].mxu0
    %v759 = vpop.f32.mrb[0].mxu0
    %760 = vdwg.mxu0
    %v761 = vrot.slane %v238, 2
    %v763 = vadd.f32 %v756, %v761
    %v764 = vxor.u32 %v763, 2147483648
    %v765 = vmul.f32 %v764, 1.442695
    %v766 = vpow.pop %v765
    %v767 = vadd.f32 %v766, 1.0
    %v768 = vrcp.pop %v767
    %v769 = vmul.f32 1.0, %v768
    %v770 = vtanh.pop %v763
    %v771 = vmul.f32 %v769, %v705
    %773 = vrot.lane.b32.xlu0 %v770, 32
    %v774 = vpop.permute.xlu0 %773
    %v776 = vmul.f32 %v769, %v774
    %778 = vrot.lane.b32.xlu0 %v776, 32
    %v779 = vpop.permute.xlu0 %778
    %v781 = vadd.f32 %v771, %v779
    %v782 = vtanh.pop %v781
    %784 = vrot.lane.b32.xlu0 %v782, 32
    %v785 = vpop.permute.xlu0 %784
    %v787 = vmul.f32 %v769, %v785
    %v788 = vpack.c.bf16 %v787, %v787
    %790 = vrot.lane.b32.xlu0 %v788, 64
    %v791 = vpop.permute.xlu0 %790
    %v792 = vrot.slane %v249, 6
    %v795 = vsel %vm197, %v791, 0
    %797 = vmatprep.subr.bf16.mxu0 0
    %798 = vmatpush1.bf16.msra.mxu0 %v258
    %799 = vmatprep.subr.bf16.mxu0 0
    %800 = vmatpush1.bf16.msra.mxu0 %v259
    %801 = vmatprep.subr.bf16.mxu0 0
    %802 = vmatpush1.bf16.msra.mxu0 0
    %803 = vmatprep.subr.bf16.mxu0 0
    %804 = vmatpush1.bf16.msra.mxu0 0
    %805 = vmatprep.subr.bf16.mxu0 0
    %806 = vmatpush1.bf16.msra.mxu0 0
    %807 = vmatprep.subr.bf16.mxu0 0
    %808 = vmatpush1.bf16.msra.mxu0 0
    %809 = vmatprep.subr.bf16.mxu0 0
    %810 = vmatpush1.bf16.msra.mxu0 0
    %811 = vmatprep.subr.bf16.mxu0 0
    %812 = vmatpush1.bf16.msra.mxu0 0
    %813 = vmatprep.subr.bf16.mxu0 0
    %814 = vmatpush1.bf16.msra.mxu0 0
    %815 = vmatprep.subr.bf16.mxu0 0
    %816 = vmatpush1.bf16.msra.mxu0 0
    %817 = vmatprep.subr.bf16.mxu0 0
    %818 = vmatpush1.bf16.msra.mxu0 0
    %819 = vmatprep.subr.bf16.mxu0 0
    %820 = vmatpush1.bf16.msra.mxu0 0
    %821 = vmatprep.subr.bf16.mxu0 0
    %822 = vmatpush1.bf16.msra.mxu0 0
    %823 = vmatprep.subr.bf16.mxu0 0
    %824 = vmatpush1.bf16.msra.mxu0 0
    %825 = vmatprep.subr.bf16.mxu0 0
    %826 = vmatpush1.bf16.msra.mxu0 0
    %827 = vmatprep.subr.bf16.mxu0 0
    %828 = vmatpush1.bf16.msra.mxu0 0
    %829 = vmatprep.mubr.bf16.mxu0 0
    %830 = vmatmul.mubr.bf16.gmra.mrb[0].mxu0 %v795
    %v831 = vpop.f32.mrb[0].mxu0
    %v832 = vadd.f32 %v792, %v831
    %v833 = vpop.f32.mrb[0].mxu0
    %v834 = vpop.f32.mrb[0].mxu0
    %v835 = vpop.f32.mrb[0].mxu0
    %836 = vdwg.mxu0
    %v837 = vadd.f32 %v832, %v238
    %v838 = vxor.u32 %v837, 2147483648
    %v839 = vmul.f32 %v838, 1.442695
    %v840 = vpow.pop %v839
    %v841 = vadd.f32 %v840, 1.0
    %v842 = vrcp.pop %v841
    %v843 = vmul.f32 1.0, %v842
    %v844 = vtanh.pop %v837
    %v845 = vmul.f32 %v843, %v781
    %847 = vrot.lane.b32.xlu0 %v844, 32
    %v848 = vpop.permute.xlu0 %847
    %v850 = vmul.f32 %v843, %v848
    %852 = vrot.lane.b32.xlu0 %v850, 32
    %v853 = vpop.permute.xlu0 %852
    %v855 = vadd.f32 %v845, %v853
    %v856 = vtanh.pop %v855
    %858 = vrot.lane.b32.xlu0 %v856, 32
    %v859 = vpop.permute.xlu0 %858
    %v861 = vmul.f32 %v843, %v859
    %v863 = vrot.slane %v409, 6
    %v866 = vrot.slane %v485, 4
    %v869 = vrot.slane %v559, 2
    %v872 = vrot.slane %v711, 6
    %v875 = vrot.slane %v787, 4
    %v878 = vrot.slane %v861, 2
    %vm880 = vcmask 1041408
    %v881 = vsel %vm880, %v332, %v863
    %vm882 = vcmask 1043456
    %v883 = vsel %vm882, %v881, %v866
    %vm884 = vcmask 1045504
    %v885 = vsel %vm884, %v883, %v869
    %v886 = vsel %vm880, %v634, %v872
    %v887 = vsel %vm882, %v886, %v875
    %v888 = vsel %vm884, %v887, %v878
    %v889 = vpack.c.bf16 %v888, %v885
    %891 = vrot.lane.b32.xlu0 %v889, 64
    %v892 = vpop.permute.xlu0 %891
    %v897 = vunpack.c.l.b16 %v160
    %v898 = vunpack.c.h.b16 %v160
    %v899 = vunpack.c.l.b16 %v162
    %v900 = vunpack.c.h.b16 %v162
    %v901 = vunpack.c.l.b16 %v164
    %v902 = vunpack.c.h.b16 %v164
    %v903 = vunpack.c.l.b16 %v166
    %v904 = vunpack.c.h.b16 %v166
    %v905 = vpack.c.b16 %v899, %v897
    %v906 = vpack.c.b16 %v900, %v898
    %v907 = vpack.c.b16 %v903, %v901
    %v908 = vpack.c.b16 %v904, %v902
    %v914 = vsel %vm197, %v892, 0
    %916 = vmatprep.subr.bf16.mxu0 %v906
    %917 = vmatpush1.bf16.msra.mxu0 %v905
    %918 = vmatprep.subr.bf16.mxu0 %v908
    %919 = vmatpush1.bf16.msra.mxu0 %v907
    %920 = vmatprep.subr.bf16.mxu0 0
    %921 = vmatpush1.bf16.msra.mxu0 0
    %922 = vmatprep.subr.bf16.mxu0 0
    %923 = vmatpush1.bf16.msra.mxu0 0
    %924 = vmatprep.subr.bf16.mxu0 0
    %925 = vmatpush1.bf16.msra.mxu0 0
    %926 = vmatprep.subr.bf16.mxu0 0
    %927 = vmatpush1.bf16.msra.mxu0 0
    %928 = vmatprep.subr.bf16.mxu0 0
    %929 = vmatpush1.bf16.msra.mxu0 0
    %930 = vmatprep.subr.bf16.mxu0 0
    %931 = vmatpush1.bf16.msra.mxu0 0
    %932 = vmatprep.subr.bf16.mxu0 0
    %933 = vmatpush1.bf16.msra.mxu0 0
    %934 = vmatprep.subr.bf16.mxu0 0
    %935 = vmatpush1.bf16.msra.mxu0 0
    %936 = vmatprep.subr.bf16.mxu0 0
    %937 = vmatpush1.bf16.msra.mxu0 0
    %938 = vmatprep.subr.bf16.mxu0 0
    %939 = vmatpush1.bf16.msra.mxu0 0
    %940 = vmatprep.subr.bf16.mxu0 0
    %941 = vmatpush1.bf16.msra.mxu0 0
    %942 = vmatprep.subr.bf16.mxu0 0
    %943 = vmatpush1.bf16.msra.mxu0 0
    %944 = vmatprep.subr.bf16.mxu0 0
    %945 = vmatpush1.bf16.msra.mxu0 0
    %946 = vmatprep.subr.bf16.mxu0 0
    %947 = vmatpush1.bf16.msra.mxu0 0
    %948 = vmatprep.mubr.bf16.mxu0 0
    %949 = vmatmul.mubr.bf16.gmra.mrb[0].mxu0 %v914
    %v950 = vpop.f32.mrb[0].mxu0
    %v951 = vadd.f32 0.0, %v950
    %v952 = vpop.f32.mrb[0].mxu0
    %v953 = vadd.f32 0.0, %v952
    %v954 = vpop.f32.mrb[0].mxu0
    %v955 = vadd.f32 0.0, %v954
    %v956 = vpop.f32.mrb[0].mxu0
    %v957 = vadd.f32 0.0, %v956
    %958 = vdwg.mxu0
    %v959 = vlaneseq
    %v960 = vshrl.u32 %v959, 7
    %v961 = vsub.s32 1, %v960
    %v962 = vrot.slane %v171, %v961
    %v963 = vadd.f32 %v951, %v962
    %v964 = vadd.f32 %v955, %v962
    %v965 = vunpack.c.h.b16 %v167
    %v966 = vunpack.c.h.b16 %v168
    %v967 = vunpack.c.h.b16 %v169
    %v968 = vunpack.c.h.b16 %v170
    %v969 = vpack.c.b16 %v966, %v965
    %v970 = vpack.c.b16 %v968, %v967
    %973 = vmatprep.subr.bf16.mxu0 0
    %974 = vmatpush1.bf16.msra.mxu0 %v969
    %975 = vmatprep.subr.bf16.mxu0 0
    %976 = vmatpush1.bf16.msra.mxu0 %v970
    %977 = vmatprep.subr.bf16.mxu0 0
    %978 = vmatpush1.bf16.msra.mxu0 0
    %979 = vmatprep.subr.bf16.mxu0 0
    %980 = vmatpush1.bf16.msra.mxu0 0
    %981 = vmatprep.subr.bf16.mxu0 0
    %982 = vmatpush1.bf16.msra.mxu0 0
    %983 = vmatprep.subr.bf16.mxu0 0
    %984 = vmatpush1.bf16.msra.mxu0 0
    %985 = vmatprep.subr.bf16.mxu0 0
    %986 = vmatpush1.bf16.msra.mxu0 0
    %987 = vmatprep.subr.bf16.mxu0 0
    %988 = vmatpush1.bf16.msra.mxu0 0
    %989 = vmatprep.subr.bf16.mxu0 0
    %990 = vmatpush1.bf16.msra.mxu0 0
    %991 = vmatprep.subr.bf16.mxu0 0
    %992 = vmatpush1.bf16.msra.mxu0 0
    %993 = vmatprep.subr.bf16.mxu0 0
    %994 = vmatpush1.bf16.msra.mxu0 0
    %995 = vmatprep.subr.bf16.mxu0 0
    %996 = vmatpush1.bf16.msra.mxu0 0
    %997 = vmatprep.subr.bf16.mxu0 0
    %998 = vmatpush1.bf16.msra.mxu0 0
    %999 = vmatprep.subr.bf16.mxu0 0
    %1000 = vmatpush1.bf16.msra.mxu0 0
    %1001 = vmatprep.subr.bf16.mxu0 0
    %1002 = vmatpush1.bf16.msra.mxu0 0
    %1003 = vmatprep.subr.bf16.mxu0 0
    %1004 = vmatpush1.bf16.msra.mxu0 0
    %1005 = vmatprep.mubr.bf16.mxu0 0
    %1006 = vmatmul.mubr.bf16.gmra.mrb[0].mxu0 %v263
    %v1007 = vpop.f32.mrb[0].mxu0
    %v1008 = vadd.f32 %v963, %v1007
    %v1009 = vpop.f32.mrb[0].mxu0
    %v1010 = vpop.f32.mrb[0].mxu0
    %v1011 = vpop.f32.mrb[0].mxu0
    %1012 = vdwg.mxu0
    %v1014 = vrot.slane %v957, 6
    %v1016 = vadd.f32 %v1008, %v1014
    %v1017 = vxor.u32 %v1016, 2147483648
    %v1018 = vmul.f32 %v1017, 1.442695
    %v1019 = vpow.pop %v1018
    %v1020 = vadd.f32 %v1019, 1.0
    %v1021 = vrcp.pop %v1020
    %v1022 = vmul.f32 1.0, %v1021
    %v1023 = vtanh.pop %v1016
    %v1024 = vmul.f32 %v1022, 0.0
    %1026 = vrot.lane.b32.xlu0 %v1023, 32
    %v1027 = vpop.permute.xlu0 %1026
    %v1029 = vmul.f32 %v1022, %v1027
    %1031 = vrot.lane.b32.xlu0 %v1029, 32
    %v1032 = vpop.permute.xlu0 %1031
    %v1034 = vadd.f32 %v1024, %v1032
    %v1035 = vtanh.pop %v1034
    %1037 = vrot.lane.b32.xlu0 %v1035, 32
    %v1038 = vpop.permute.xlu0 %1037
    %v1040 = vmul.f32 %v1022, %v1038
    %v1041 = vpack.c.bf16 %v1040, %v1040
    %1043 = vrot.lane.b32.xlu0 %v1041, 64
    %v1044 = vpop.permute.xlu0 %1043
    %v1046 = vrot.slane %v963, 2
    %v1049 = vsel %vm197, %v1044, 0
    %1051 = vmatprep.subr.bf16.mxu0 0
    %1052 = vmatpush1.bf16.msra.mxu0 %v969
    %1053 = vmatprep.subr.bf16.mxu0 0
    %1054 = vmatpush1.bf16.msra.mxu0 %v970
    %1055 = vmatprep.subr.bf16.mxu0 0
    %1056 = vmatpush1.bf16.msra.mxu0 0
    %1057 = vmatprep.subr.bf16.mxu0 0
    %1058 = vmatpush1.bf16.msra.mxu0 0
    %1059 = vmatprep.subr.bf16.mxu0 0
    %1060 = vmatpush1.bf16.msra.mxu0 0
    %1061 = vmatprep.subr.bf16.mxu0 0
    %1062 = vmatpush1.bf16.msra.mxu0 0
    %1063 = vmatprep.subr.bf16.mxu0 0
    %1064 = vmatpush1.bf16.msra.mxu0 0
    %1065 = vmatprep.subr.bf16.mxu0 0
    %1066 = vmatpush1.bf16.msra.mxu0 0
    %1067 = vmatprep.subr.bf16.mxu0 0
    %1068 = vmatpush1.bf16.msra.mxu0 0
    %1069 = vmatprep.subr.bf16.mxu0 0
    %1070 = vmatpush1.bf16.msra.mxu0 0
    %1071 = vmatprep.subr.bf16.mxu0 0
    %1072 = vmatpush1.bf16.msra.mxu0 0
    %1073 = vmatprep.subr.bf16.mxu0 0
    %1074 = vmatpush1.bf16.msra.mxu0 0
    %1075 = vmatprep.subr.bf16.mxu0 0
    %1076 = vmatpush1.bf16.msra.mxu0 0
    %1077 = vmatprep.subr.bf16.mxu0 0
    %1078 = vmatpush1.bf16.msra.mxu0 0
    %1079 = vmatprep.subr.bf16.mxu0 0
    %1080 = vmatpush1.bf16.msra.mxu0 0
    %1081 = vmatprep.subr.bf16.mxu0 0
    %1082 = vmatpush1.bf16.msra.mxu0 0
    %1083 = vmatprep.mubr.bf16.mxu0 0
    %1084 = vmatmul.mubr.bf16.gmra.mrb[0].mxu0 %v1049
    %v1085 = vpop.f32.mrb[0].mxu0
    %v1086 = vadd.f32 %v1046, %v1085
    %v1087 = vpop.f32.mrb[0].mxu0
    %v1088 = vpop.f32.mrb[0].mxu0
    %v1089 = vpop.f32.mrb[0].mxu0
    %1090 = vdwg.mxu0
    %v1091 = vrot.slane %v957, 4
    %v1093 = vadd.f32 %v1086, %v1091
    %v1094 = vxor.u32 %v1093, 2147483648
    %v1095 = vmul.f32 %v1094, 1.442695
    %v1096 = vpow.pop %v1095
    %v1097 = vadd.f32 %v1096, 1.0
    %v1098 = vrcp.pop %v1097
    %v1099 = vmul.f32 1.0, %v1098
    %v1100 = vtanh.pop %v1093
    %v1101 = vmul.f32 %v1099, %v1034
    %1103 = vrot.lane.b32.xlu0 %v1100, 32
    %v1104 = vpop.permute.xlu0 %1103
    %v1106 = vmul.f32 %v1099, %v1104
    %1108 = vrot.lane.b32.xlu0 %v1106, 32
    %v1109 = vpop.permute.xlu0 %1108
    %v1111 = vadd.f32 %v1101, %v1109
    %v1112 = vtanh.pop %v1111
    %1114 = vrot.lane.b32.xlu0 %v1112, 32
    %v1115 = vpop.permute.xlu0 %1114
    %v1117 = vmul.f32 %v1099, %v1115
    %v1118 = vpack.c.bf16 %v1117, %v1117
    %1120 = vrot.lane.b32.xlu0 %v1118, 64
    %v1121 = vpop.permute.xlu0 %1120
    %v1122 = vrot.slane %v963, 4
    %v1125 = vsel %vm197, %v1121, 0
    %1127 = vmatprep.subr.bf16.mxu0 0
    %1128 = vmatpush1.bf16.msra.mxu0 %v969
    %1129 = vmatprep.subr.bf16.mxu0 0
    %1130 = vmatpush1.bf16.msra.mxu0 %v970
    %1131 = vmatprep.subr.bf16.mxu0 0
    %1132 = vmatpush1.bf16.msra.mxu0 0
    %1133 = vmatprep.subr.bf16.mxu0 0
    %1134 = vmatpush1.bf16.msra.mxu0 0
    %1135 = vmatprep.subr.bf16.mxu0 0
    %1136 = vmatpush1.bf16.msra.mxu0 0
    %1137 = vmatprep.subr.bf16.mxu0 0
    %1138 = vmatpush1.bf16.msra.mxu0 0
    %1139 = vmatprep.subr.bf16.mxu0 0
    %1140 = vmatpush1.bf16.msra.mxu0 0
    %1141 = vmatprep.subr.bf16.mxu0 0
    %1142 = vmatpush1.bf16.msra.mxu0 0
    %1143 = vmatprep.subr.bf16.mxu0 0
    %1144 = vmatpush1.bf16.msra.mxu0 0
    %1145 = vmatprep.subr.bf16.mxu0 0
    %1146 = vmatpush1.bf16.msra.mxu0 0
    %1147 = vmatprep.subr.bf16.mxu0 0
    %1148 = vmatpush1.bf16.msra.mxu0 0
    %1149 = vmatprep.subr.bf16.mxu0 0
    %1150 = vmatpush1.bf16.msra.mxu0 0
    %1151 = vmatprep.subr.bf16.mxu0 0
    %1152 = vmatpush1.bf16.msra.mxu0 0
    %1153 = vmatprep.subr.bf16.mxu0 0
    %1154 = vmatpush1.bf16.msra.mxu0 0
    %1155 = vmatprep.subr.bf16.mxu0 0
    %1156 = vmatpush1.bf16.msra.mxu0 0
    %1157 = vmatprep.subr.bf16.mxu0 0
    %1158 = vmatpush1.bf16.msra.mxu0 0
    %1159 = vmatprep.mubr.bf16.mxu0 0
    %1160 = vmatmul.mubr.bf16.gmra.mrb[0].mxu0 %v1125
    %v1161 = vpop.f32.mrb[0].mxu0
    %v1162 = vadd.f32 %v1122, %v1161
    %v1163 = vpop.f32.mrb[0].mxu0
    %v1164 = vpop.f32.mrb[0].mxu0
    %v1165 = vpop.f32.mrb[0].mxu0
    %1166 = vdwg.mxu0
    %v1167 = vrot.slane %v957, 2
    %v1169 = vadd.f32 %v1162, %v1167
    %v1170 = vxor.u32 %v1169, 2147483648
    %v1171 = vmul.f32 %v1170, 1.442695
    %v1172 = vpow.pop %v1171
    %v1173 = vadd.f32 %v1172, 1.0
    %v1174 = vrcp.pop %v1173
    %v1175 = vmul.f32 1.0, %v1174
    %v1176 = vtanh.pop %v1169
    %v1177 = vmul.f32 %v1175, %v1111
    %1179 = vrot.lane.b32.xlu0 %v1176, 32
    %v1180 = vpop.permute.xlu0 %1179
    %v1182 = vmul.f32 %v1175, %v1180
    %1184 = vrot.lane.b32.xlu0 %v1182, 32
    %v1185 = vpop.permute.xlu0 %1184
    %v1187 = vadd.f32 %v1177, %v1185
    %v1188 = vtanh.pop %v1187
    %1190 = vrot.lane.b32.xlu0 %v1188, 32
    %v1191 = vpop.permute.xlu0 %1190
    %v1193 = vmul.f32 %v1175, %v1191
    %v1194 = vpack.c.bf16 %v1193, %v1193
    %1196 = vrot.lane.b32.xlu0 %v1194, 64
    %v1197 = vpop.permute.xlu0 %1196
    %v1198 = vrot.slane %v963, 6
    %v1201 = vsel %vm197, %v1197, 0
    %1203 = vmatprep.subr.bf16.mxu0 0
    %1204 = vmatpush1.bf16.msra.mxu0 %v969
    %1205 = vmatprep.subr.bf16.mxu0 0
    %1206 = vmatpush1.bf16.msra.mxu0 %v970
    %1207 = vmatprep.subr.bf16.mxu0 0
    %1208 = vmatpush1.bf16.msra.mxu0 0
    %1209 = vmatprep.subr.bf16.mxu0 0
    %1210 = vmatpush1.bf16.msra.mxu0 0
    %1211 = vmatprep.subr.bf16.mxu0 0
    %1212 = vmatpush1.bf16.msra.mxu0 0
    %1213 = vmatprep.subr.bf16.mxu0 0
    %1214 = vmatpush1.bf16.msra.mxu0 0
    %1215 = vmatprep.subr.bf16.mxu0 0
    %1216 = vmatpush1.bf16.msra.mxu0 0
    %1217 = vmatprep.subr.bf16.mxu0 0
    %1218 = vmatpush1.bf16.msra.mxu0 0
    %1219 = vmatprep.subr.bf16.mxu0 0
    %1220 = vmatpush1.bf16.msra.mxu0 0
    %1221 = vmatprep.subr.bf16.mxu0 0
    %1222 = vmatpush1.bf16.msra.mxu0 0
    %1223 = vmatprep.subr.bf16.mxu0 0
    %1224 = vmatpush1.bf16.msra.mxu0 0
    %1225 = vmatprep.subr.bf16.mxu0 0
    %1226 = vmatpush1.bf16.msra.mxu0 0
    %1227 = vmatprep.subr.bf16.mxu0 0
    %1228 = vmatpush1.bf16.msra.mxu0 0
    %1229 = vmatprep.subr.bf16.mxu0 0
    %1230 = vmatpush1.bf16.msra.mxu0 0
    %1231 = vmatprep.subr.bf16.mxu0 0
    %1232 = vmatpush1.bf16.msra.mxu0 0
    %1233 = vmatprep.subr.bf16.mxu0 0
    %1234 = vmatpush1.bf16.msra.mxu0 0
    %1235 = vmatprep.mubr.bf16.mxu0 0
    %1236 = vmatmul.mubr.bf16.gmra.mrb[0].mxu0 %v1201
    %v1237 = vpop.f32.mrb[0].mxu0
    %v1238 = vadd.f32 %v1198, %v1237
    %v1239 = vpop.f32.mrb[0].mxu0
    %v1240 = vpop.f32.mrb[0].mxu0
    %v1241 = vpop.f32.mrb[0].mxu0
    %1242 = vdwg.mxu0
    %v1243 = vadd.f32 %v1238, %v957
    %v1244 = vxor.u32 %v1243, 2147483648
    %v1245 = vmul.f32 %v1244, 1.442695
    %v1246 = vpow.pop %v1245
    %v1247 = vadd.f32 %v1246, 1.0
    %v1248 = vrcp.pop %v1247
    %v1249 = vmul.f32 1.0, %v1248
    %v1250 = vtanh.pop %v1243
    %v1251 = vmul.f32 %v1249, %v1187
    %1253 = vrot.lane.b32.xlu0 %v1250, 32
    %v1254 = vpop.permute.xlu0 %1253
    %v1256 = vmul.f32 %v1249, %v1254
    %1258 = vrot.lane.b32.xlu0 %v1256, 32
    %v1259 = vpop.permute.xlu0 %1258
    %v1261 = vadd.f32 %v1251, %v1259
    %v1262 = vtanh.pop %v1261
    %1264 = vrot.lane.b32.xlu0 %v1262, 32
    %v1265 = vpop.permute.xlu0 %1264
    %v1267 = vmul.f32 %v1249, %v1265
    %v1268 = vpack.c.bf16 %v1267, %v1267
    %1270 = vrot.lane.b32.xlu0 %v1268, 64
    %v1271 = vpop.permute.xlu0 %1270
    %v1273 = vsel %vm197, %v1271, 0
    %1275 = vmatprep.subr.bf16.mxu0 0
    %1276 = vmatpush1.bf16.msra.mxu0 %v969
    %1277 = vmatprep.subr.bf16.mxu0 0
    %1278 = vmatpush1.bf16.msra.mxu0 %v970
    %1279 = vmatprep.subr.bf16.mxu0 0
    %1280 = vmatpush1.bf16.msra.mxu0 0
    %1281 = vmatprep.subr.bf16.mxu0 0
    %1282 = vmatpush1.bf16.msra.mxu0 0
    %1283 = vmatprep.subr.bf16.mxu0 0
    %1284 = vmatpush1.bf16.msra.mxu0 0
    %1285 = vmatprep.subr.bf16.mxu0 0
    %1286 = vmatpush1.bf16.msra.mxu0 0
    %1287 = vmatprep.subr.bf16.mxu0 0
    %1288 = vmatpush1.bf16.msra.mxu0 0
    %1289 = vmatprep.subr.bf16.mxu0 0
    %1290 = vmatpush1.bf16.msra.mxu0 0
    %1291 = vmatprep.subr.bf16.mxu0 0
    %1292 = vmatpush1.bf16.msra.mxu0 0
    %1293 = vmatprep.subr.bf16.mxu0 0
    %1294 = vmatpush1.bf16.msra.mxu0 0
    %1295 = vmatprep.subr.bf16.mxu0 0
    %1296 = vmatpush1.bf16.msra.mxu0 0
    %1297 = vmatprep.subr.bf16.mxu0 0
    %1298 = vmatpush1.bf16.msra.mxu0 0
    %1299 = vmatprep.subr.bf16.mxu0 0
    %1300 = vmatpush1.bf16.msra.mxu0 0
    %1301 = vmatprep.subr.bf16.mxu0 0
    %1302 = vmatpush1.bf16.msra.mxu0 0
    %1303 = vmatprep.subr.bf16.mxu0 0
    %1304 = vmatpush1.bf16.msra.mxu0 0
    %1305 = vmatprep.subr.bf16.mxu0 0
    %1306 = vmatpush1.bf16.msra.mxu0 0
    %1307 = vmatprep.mubr.bf16.mxu0 0
    %1308 = vmatmul.mubr.bf16.gmra.mrb[0].mxu0 %v1273
    %v1309 = vpop.f32.mrb[0].mxu0
    %v1310 = vadd.f32 %v964, %v1309
    %v1311 = vpop.f32.mrb[0].mxu0
    %v1312 = vpop.f32.mrb[0].mxu0
    %v1313 = vpop.f32.mrb[0].mxu0
    %1314 = vdwg.mxu0
    %v1316 = vrot.slane %v953, 6
    %v1318 = vadd.f32 %v1310, %v1316
    %v1319 = vxor.u32 %v1318, 2147483648
    %v1320 = vmul.f32 %v1319, 1.442695
    %v1321 = vpow.pop %v1320
    %v1322 = vadd.f32 %v1321, 1.0
    %v1323 = vrcp.pop %v1322
    %v1324 = vmul.f32 1.0, %v1323
    %v1325 = vtanh.pop %v1318
    %v1326 = vmul.f32 %v1324, %v1261
    %1328 = vrot.lane.b32.xlu0 %v1325, 32
    %v1329 = vpop.permute.xlu0 %1328
    %v1331 = vmul.f32 %v1324, %v1329
    %1333 = vrot.lane.b32.xlu0 %v1331, 32
    %v1334 = vpop.permute.xlu0 %1333
    %v1336 = vadd.f32 %v1326, %v1334
    %v1337 = vtanh.pop %v1336
    %1339 = vrot.lane.b32.xlu0 %v1337, 32
    %v1340 = vpop.permute.xlu0 %1339
    %v1342 = vmul.f32 %v1324, %v1340
    %v1343 = vpack.c.bf16 %v1342, %v1342
    %1345 = vrot.lane.b32.xlu0 %v1343, 64
    %v1346 = vpop.permute.xlu0 %1345
    %v1348 = vrot.slane %v964, 2
    %v1351 = vsel %vm197, %v1346, 0
    %1353 = vmatprep.subr.bf16.mxu0 0
    %1354 = vmatpush1.bf16.msra.mxu0 %v969
    %1355 = vmatprep.subr.bf16.mxu0 0
    %1356 = vmatpush1.bf16.msra.mxu0 %v970
    %1357 = vmatprep.subr.bf16.mxu0 0
    %1358 = vmatpush1.bf16.msra.mxu0 0
    %1359 = vmatprep.subr.bf16.mxu0 0
    %1360 = vmatpush1.bf16.msra.mxu0 0
    %1361 = vmatprep.subr.bf16.mxu0 0
    %1362 = vmatpush1.bf16.msra.mxu0 0
    %1363 = vmatprep.subr.bf16.mxu0 0
    %1364 = vmatpush1.bf16.msra.mxu0 0
    %1365 = vmatprep.subr.bf16.mxu0 0
    %1366 = vmatpush1.bf16.msra.mxu0 0
    %1367 = vmatprep.subr.bf16.mxu0 0
    %1368 = vmatpush1.bf16.msra.mxu0 0
    %1369 = vmatprep.subr.bf16.mxu0 0
    %1370 = vmatpush1.bf16.msra.mxu0 0
    %1371 = vmatprep.subr.bf16.mxu0 0
    %1372 = vmatpush1.bf16.msra.mxu0 0
    %1373 = vmatprep.subr.bf16.mxu0 0
    %1374 = vmatpush1.bf16.msra.mxu0 0
    %1375 = vmatprep.subr.bf16.mxu0 0
    %1376 = vmatpush1.bf16.msra.mxu0 0
    %1377 = vmatprep.subr.bf16.mxu0 0
    %1378 = vmatpush1.bf16.msra.mxu0 0
    %1379 = vmatprep.subr.bf16.mxu0 0
    %1380 = vmatpush1.bf16.msra.mxu0 0
    %1381 = vmatprep.subr.bf16.mxu0 0
    %1382 = vmatpush1.bf16.msra.mxu0 0
    %1383 = vmatprep.subr.bf16.mxu0 0
    %1384 = vmatpush1.bf16.msra.mxu0 0
    %1385 = vmatprep.mubr.bf16.mxu0 0
    %1386 = vmatmul.mubr.bf16.gmra.mrb[0].mxu0 %v1351
    %v1387 = vpop.f32.mrb[0].mxu0
    %v1388 = vadd.f32 %v1348, %v1387
    %v1389 = vpop.f32.mrb[0].mxu0
    %v1390 = vpop.f32.mrb[0].mxu0
    %v1391 = vpop.f32.mrb[0].mxu0
    %1392 = vdwg.mxu0
    %v1393 = vrot.slane %v953, 4
    %v1395 = vadd.f32 %v1388, %v1393
    %v1396 = vxor.u32 %v1395, 2147483648
    %v1397 = vmul.f32 %v1396, 1.442695
    %v1398 = vpow.pop %v1397
    %v1399 = vadd.f32 %v1398, 1.0
    %v1400 = vrcp.pop %v1399
    %v1401 = vmul.f32 1.0, %v1400
    %v1402 = vtanh.pop %v1395
    %v1403 = vmul.f32 %v1401, %v1336
    %1405 = vrot.lane.b32.xlu0 %v1402, 32
    %v1406 = vpop.permute.xlu0 %1405
    %v1408 = vmul.f32 %v1401, %v1406
    %1410 = vrot.lane.b32.xlu0 %v1408, 32
    %v1411 = vpop.permute.xlu0 %1410
    %v1413 = vadd.f32 %v1403, %v1411
    %v1414 = vtanh.pop %v1413
    %1416 = vrot.lane.b32.xlu0 %v1414, 32
    %v1417 = vpop.permute.xlu0 %1416
    %v1419 = vmul.f32 %v1401, %v1417
    %v1420 = vpack.c.bf16 %v1419, %v1419
    %1422 = vrot.lane.b32.xlu0 %v1420, 64
    %v1423 = vpop.permute.xlu0 %1422
    %v1424 = vrot.slane %v964, 4
    %v1427 = vsel %vm197, %v1423, 0
    %1429 = vmatprep.subr.bf16.mxu0 0
    %1430 = vmatpush1.bf16.msra.mxu0 %v969
    %1431 = vmatprep.subr.bf16.mxu0 0
    %1432 = vmatpush1.bf16.msra.mxu0 %v970
    %1433 = vmatprep.subr.bf16.mxu0 0
    %1434 = vmatpush1.bf16.msra.mxu0 0
    %1435 = vmatprep.subr.bf16.mxu0 0
    %1436 = vmatpush1.bf16.msra.mxu0 0
    %1437 = vmatprep.subr.bf16.mxu0 0
    %1438 = vmatpush1.bf16.msra.mxu0 0
    %1439 = vmatprep.subr.bf16.mxu0 0
    %1440 = vmatpush1.bf16.msra.mxu0 0
    %1441 = vmatprep.subr.bf16.mxu0 0
    %1442 = vmatpush1.bf16.msra.mxu0 0
    %1443 = vmatprep.subr.bf16.mxu0 0
    %1444 = vmatpush1.bf16.msra.mxu0 0
    %1445 = vmatprep.subr.bf16.mxu0 0
    %1446 = vmatpush1.bf16.msra.mxu0 0
    %1447 = vmatprep.subr.bf16.mxu0 0
    %1448 = vmatpush1.bf16.msra.mxu0 0
    %1449 = vmatprep.subr.bf16.mxu0 0
    %1450 = vmatpush1.bf16.msra.mxu0 0
    %1451 = vmatprep.subr.bf16.mxu0 0
    %1452 = vmatpush1.bf16.msra.mxu0 0
    %1453 = vmatprep.subr.bf16.mxu0 0
    %1454 = vmatpush1.bf16.msra.mxu0 0
    %1455 = vmatprep.subr.bf16.mxu0 0
    %1456 = vmatpush1.bf16.msra.mxu0 0
    %1457 = vmatprep.subr.bf16.mxu0 0
    %1458 = vmatpush1.bf16.msra.mxu0 0
    %1459 = vmatprep.subr.bf16.mxu0 0
    %1460 = vmatpush1.bf16.msra.mxu0 0
    %1461 = vmatprep.mubr.bf16.mxu0 0
    %1462 = vmatmul.mubr.bf16.gmra.mrb[0].mxu0 %v1427
    %v1463 = vpop.f32.mrb[0].mxu0
    %v1464 = vadd.f32 %v1424, %v1463
    %v1465 = vpop.f32.mrb[0].mxu0
    %v1466 = vpop.f32.mrb[0].mxu0
    %v1467 = vpop.f32.mrb[0].mxu0
    %1468 = vdwg.mxu0
    %v1469 = vrot.slane %v953, 2
    %v1471 = vadd.f32 %v1464, %v1469
    %v1472 = vxor.u32 %v1471, 2147483648
    %v1473 = vmul.f32 %v1472, 1.442695
    %v1474 = vpow.pop %v1473
    %v1475 = vadd.f32 %v1474, 1.0
    %v1476 = vrcp.pop %v1475
    %v1477 = vmul.f32 1.0, %v1476
    %v1478 = vtanh.pop %v1471
    %v1479 = vmul.f32 %v1477, %v1413
    %1481 = vrot.lane.b32.xlu0 %v1478, 32
    %v1482 = vpop.permute.xlu0 %1481
    %v1484 = vmul.f32 %v1477, %v1482
    %1486 = vrot.lane.b32.xlu0 %v1484, 32
    %v1487 = vpop.permute.xlu0 %1486
    %v1489 = vadd.f32 %v1479, %v1487
    %v1490 = vtanh.pop %v1489
    %1492 = vrot.lane.b32.xlu0 %v1490, 32
    %v1493 = vpop.permute.xlu0 %1492
    %v1495 = vmul.f32 %v1477, %v1493
    %v1496 = vpack.c.bf16 %v1495, %v1495
    %1498 = vrot.lane.b32.xlu0 %v1496, 64
    %v1499 = vpop.permute.xlu0 %1498
    %v1500 = vrot.slane %v964, 6
    %v1503 = vsel %vm197, %v1499, 0
    %1505 = vmatprep.subr.bf16.mxu0 0
    %1506 = vmatpush1.bf16.msra.mxu0 %v969
    %1507 = vmatprep.subr.bf16.mxu0 0
    %1508 = vmatpush1.bf16.msra.mxu0 %v970
    %1509 = vmatprep.subr.bf16.mxu0 0
    %1510 = vmatpush1.bf16.msra.mxu0 0
    %1511 = vmatprep.subr.bf16.mxu0 0
    %1512 = vmatpush1.bf16.msra.mxu0 0
    %1513 = vmatprep.subr.bf16.mxu0 0
    %1514 = vmatpush1.bf16.msra.mxu0 0
    %1515 = vmatprep.subr.bf16.mxu0 0
    %1516 = vmatpush1.bf16.msra.mxu0 0
    %1517 = vmatprep.subr.bf16.mxu0 0
    %1518 = vmatpush1.bf16.msra.mxu0 0
    %1519 = vmatprep.subr.bf16.mxu0 0
    %1520 = vmatpush1.bf16.msra.mxu0 0
    %1521 = vmatprep.subr.bf16.mxu0 0
    %1522 = vmatpush1.bf16.msra.mxu0 0
    %1523 = vmatprep.subr.bf16.mxu0 0
    %1524 = vmatpush1.bf16.msra.mxu0 0
    %1525 = vmatprep.subr.bf16.mxu0 0
    %1526 = vmatpush1.bf16.msra.mxu0 0
    %1527 = vmatprep.subr.bf16.mxu0 0
    %1528 = vmatpush1.bf16.msra.mxu0 0
    %1529 = vmatprep.subr.bf16.mxu0 0
    %1530 = vmatpush1.bf16.msra.mxu0 0
    %1531 = vmatprep.subr.bf16.mxu0 0
    %1532 = vmatpush1.bf16.msra.mxu0 0
    %1533 = vmatprep.subr.bf16.mxu0 0
    %1534 = vmatpush1.bf16.msra.mxu0 0
    %1535 = vmatprep.subr.bf16.mxu0 0
    %1536 = vmatpush1.bf16.msra.mxu0 0
    %1537 = vmatprep.mubr.bf16.mxu0 0
    %1538 = vmatmul.mubr.bf16.gmra.mrb[0].mxu0 %v1503
    %v1539 = vpop.f32.mrb[0].mxu0
    %v1540 = vadd.f32 %v1500, %v1539
    %v1541 = vpop.f32.mrb[0].mxu0
    %v1542 = vpop.f32.mrb[0].mxu0
    %v1543 = vpop.f32.mrb[0].mxu0
    %1544 = vdwg.mxu0
    %v1545 = vadd.f32 %v1540, %v953
    %v1546 = vxor.u32 %v1545, 2147483648
    %v1547 = vmul.f32 %v1546, 1.442695
    %v1548 = vpow.pop %v1547
    %v1549 = vadd.f32 %v1548, 1.0
    %v1550 = vrcp.pop %v1549
    %v1551 = vmul.f32 1.0, %v1550
    %v1552 = vtanh.pop %v1545
    %v1553 = vmul.f32 %v1551, %v1489
    %1555 = vrot.lane.b32.xlu0 %v1552, 32
    %v1556 = vpop.permute.xlu0 %1555
    %v1558 = vmul.f32 %v1551, %v1556
    %1560 = vrot.lane.b32.xlu0 %v1558, 32
    %v1561 = vpop.permute.xlu0 %1560
    %v1563 = vadd.f32 %v1553, %v1561
    %v1564 = vtanh.pop %v1563
    %1566 = vrot.lane.b32.xlu0 %v1564, 32
    %v1567 = vpop.permute.xlu0 %1566
    %v1569 = vmul.f32 %v1551, %v1567
    %1571 = vrot.lane.b32.xlu0 %v157, 64
    %v1572 = vpop.permute.xlu0 %1571
    %v1574 = vmul.f32 %v1040, %v1572
    %v1575 = vadd.f32 %v1574, 0.0
    %v1576 = vadd.f32 %v157, 0.0
    %v1577 = vrot.slane %v157, 2
    %1578 = vrot.lane.b32.xlu0 %v1577, 64
    %v1579 = vpop.permute.xlu0 %1578
    %v1581 = vmul.f32 %v1117, %v1579
    %v1582 = vadd.f32 %v1575, %v1581
    %v1584 = vadd.f32 %v1576, %v1577
    %v1585 = vrot.slane %v157, 4
    %1586 = vrot.lane.b32.xlu0 %v1585, 64
    %v1587 = vpop.permute.xlu0 %1586
    %v1589 = vmul.f32 %v1193, %v1587
    %v1590 = vadd.f32 %v1582, %v1589
    %v1592 = vadd.f32 %v1584, %v1585
    %v1593 = vrot.slane %v157, 6
    %1594 = vrot.lane.b32.xlu0 %v1593, 64
    %v1595 = vpop.permute.xlu0 %1594
    %v1597 = vmul.f32 %v1267, %v1595
    %v1598 = vadd.f32 %v1590, %v1597
    %v1600 = vadd.f32 %v1592, %v1593
    %1602 = vrot.lane.b32.xlu0 %v158, 64
    %v1603 = vpop.permute.xlu0 %1602
    %v1605 = vmul.f32 %v1342, %v1603
    %v1606 = vadd.f32 %v1598, %v1605
    %v1607 = vadd.f32 %v1600, %v158
    %v1608 = vrot.slane %v158, 2
    %1609 = vrot.lane.b32.xlu0 %v1608, 64
    %v1610 = vpop.permute.xlu0 %1609
    %v1612 = vmul.f32 %v1419, %v1610
    %v1613 = vadd.f32 %v1606, %v1612
    %v1615 = vadd.f32 %v1607, %v1608
    %v1616 = vrot.slane %v158, 4
    %1617 = vrot.lane.b32.xlu0 %v1616, 64
    %v1618 = vpop.permute.xlu0 %1617
    %v1620 = vmul.f32 %v1495, %v1618
    %v1621 = vadd.f32 %v1613, %v1620
    %v1623 = vadd.f32 %v1615, %v1616
    %v1624 = vrot.slane %v158, 6
    %1625 = vrot.lane.b32.xlu0 %v1624, 64
    %v1626 = vpop.permute.xlu0 %1625
    %v1628 = vmul.f32 %v1569, %v1626
    %v1629 = vadd.f32 %v1621, %v1628
    %v1631 = vadd.f32 %v1623, %v1624
    %v1632 = vmax.f32 %v1631, 1.0
    %v1633 = vrcp.pop %v1632
    %1635 = vrot.lane.b32.xlu0 %v1633, 64
    %v1636 = vpop.permute.xlu0 %1635
    %v1638 = vmul.f32 %v1629, %v1636
    %v1639 = vld [vmem:[%s0] sm:$0x77]
    %v1640 = vld [vmem:[%s0 + $0x8] sm:$0x77]
    %v1643 = vcombine.high %v1639, %v1639
    %v1644 = vcombine.high %v1640, %v1640
    %vm1647 = vcmask 1042432
    %v1648 = vsel %vm1647, %v1639, 0.0
    %v1649 = vsel %vm1647, %v1643, 0.0
    %v1650 = vadd.f32 %v1648, %v1649
    %1651 = vadd.xlane.f32.xlu0 %v1650
    %v1652 = vpop.xlane.xlu0 %1651
    %v1653 = vsel %vm1647, %v1640, 0.0
    %v1654 = vsel %vm1647, %v1644, 0.0
    %v1655 = vadd.f32 %v1653, %v1654
    %1656 = vadd.xlane.f32.xlu0 %v1655
    %v1657 = vpop.xlane.xlu0 %1656
    %v1658 = vrcp.pop 256.0
    %v1659 = vmul.f32 %v1652, %v1658
    %v1660 = vmul.f32 %v1657, %v1658
    %v1661 = vld [vmem:[%s6] sm:$0x77]
    %v1662 = vld [vmem:[%s6 + $0x8] sm:$0x77]
    %v1663 = vld [vmem:[%s8] ss:$2 sm:$0xf]
    %v1664 = vlaneseq
    %v1665 = vshrl.u32 %v1664, 7
    %v1666 = vsub.s32 0, %v1665
    %v1667 = vrot.slane %v1659, %v1666
    %v1668 = vlaneseq
    %v1669 = vshrl.u32 %v1668, 7
    %v1670 = vsub.s32 0, %v1669
    %v1671 = vrot.slane %v1660, %v1670
    %v1674 = vlaneseq
    %v1675 = vshrl.u32 %v1674, 7
    %v1676 = vsub.s32 0, %v1675
    %v1677 = vrot.slane %v1661, %v1676
    %v1678 = vlaneseq
    %v1679 = vshrl.u32 %v1678, 7
    %v1680 = vsub.s32 4, %v1679
    %v1681 = vrot.slane %v1661, %v1680
    %v1682 = vlaneseq
    %v1683 = vshrl.u32 %v1682, 7
    %v1684 = vsub.s32 0, %v1683
    %v1685 = vrot.slane %v1662, %v1684
    %v1686 = vlaneseq
    %v1687 = vshrl.u32 %v1686, 7
    %v1688 = vsub.s32 4, %v1687
    %v1689 = vrot.slane %v1662, %v1688
    %v1694 = vlaneseq
    %v1695 = vshrl.u32 %v1694, 7
    %v1696 = vsub.s32 0, %v1695
    %v1697 = vrot.slane %v1677, %v1696
    %v1698 = vlaneseq
    %v1699 = vshrl.u32 %v1698, 7
    %v1700 = vsub.s32 0, %v1699
    %v1701 = vrot.slane %v1681, %v1700
    %v1702 = vlaneseq
    %v1703 = vshrl.u32 %v1702, 7
    %v1704 = vsub.s32 0, %v1703
    %v1705 = vrot.slane %v1685, %v1704
    %v1706 = vlaneseq
    %v1707 = vshrl.u32 %v1706, 7
    %v1708 = vsub.s32 0, %v1707
    %v1709 = vrot.slane %v1689, %v1708
    %1715 = vbcast.lane.b32.xlu0 %v1697, 256
    %v1716 = vpop.permute.xlu0 %1715
    %s1718 = sor.u32 256, 8
    %1719 = vbcast.lane.b32.xlu0 %v1697, %s1718
    %v1720 = vpop.permute.xlu0 %1719
    %s1722 = sor.u32 256, 16
    %1723 = vbcast.lane.b32.xlu0 %v1697, %s1722
    %v1724 = vpop.permute.xlu0 %1723
    %s1726 = sor.u32 256, 24
    %1727 = vbcast.lane.b32.xlu0 %v1697, %s1726
    %v1728 = vpop.permute.xlu0 %1727
    %s1730 = sor.u32 256, 32
    %1731 = vbcast.lane.b32.xlu0 %v1697, %s1730
    %v1732 = vpop.permute.xlu0 %1731
    %s1734 = sor.u32 256, 40
    %1735 = vbcast.lane.b32.xlu0 %v1697, %s1734
    %v1736 = vpop.permute.xlu0 %1735
    %s1738 = sor.u32 256, 48
    %1739 = vbcast.lane.b32.xlu0 %v1697, %s1738
    %v1740 = vpop.permute.xlu0 %1739
    %s1742 = sor.u32 256, 56
    %1743 = vbcast.lane.b32.xlu0 %v1697, %s1742
    %v1744 = vpop.permute.xlu0 %1743
    %s1746 = sor.u32 256, 64
    %1747 = vbcast.lane.b32.xlu0 %v1697, %s1746
    %v1748 = vpop.permute.xlu0 %1747
    %s1750 = sor.u32 256, 72
    %1751 = vbcast.lane.b32.xlu0 %v1697, %s1750
    %v1752 = vpop.permute.xlu0 %1751
    %s1754 = sor.u32 256, 80
    %1755 = vbcast.lane.b32.xlu0 %v1697, %s1754
    %v1756 = vpop.permute.xlu0 %1755
    %s1758 = sor.u32 256, 88
    %1759 = vbcast.lane.b32.xlu0 %v1697, %s1758
    %v1760 = vpop.permute.xlu0 %1759
    %s1762 = sor.u32 256, 96
    %1763 = vbcast.lane.b32.xlu0 %v1697, %s1762
    %v1764 = vpop.permute.xlu0 %1763
    %s1766 = sor.u32 256, 104
    %1767 = vbcast.lane.b32.xlu0 %v1697, %s1766
    %v1768 = vpop.permute.xlu0 %1767
    %s1770 = sor.u32 256, 112
    %1771 = vbcast.lane.b32.xlu0 %v1697, %s1770
    %v1772 = vpop.permute.xlu0 %1771
    %s1774 = sor.u32 256, 120
    %1775 = vbcast.lane.b32.xlu0 %v1697, %s1774
    %v1776 = vpop.permute.xlu0 %1775
    %1778 = vbcast.lane.b32.xlu0 %v1701, 256
    %v1779 = vpop.permute.xlu0 %1778
    %s1781 = sor.u32 256, 8
    %1782 = vbcast.lane.b32.xlu0 %v1701, %s1781
    %v1783 = vpop.permute.xlu0 %1782
    %s1785 = sor.u32 256, 16
    %1786 = vbcast.lane.b32.xlu0 %v1701, %s1785
    %v1787 = vpop.permute.xlu0 %1786
    %s1789 = sor.u32 256, 24
    %1790 = vbcast.lane.b32.xlu0 %v1701, %s1789
    %v1791 = vpop.permute.xlu0 %1790
    %s1793 = sor.u32 256, 32
    %1794 = vbcast.lane.b32.xlu0 %v1701, %s1793
    %v1795 = vpop.permute.xlu0 %1794
    %s1797 = sor.u32 256, 40
    %1798 = vbcast.lane.b32.xlu0 %v1701, %s1797
    %v1799 = vpop.permute.xlu0 %1798
    %s1801 = sor.u32 256, 48
    %1802 = vbcast.lane.b32.xlu0 %v1701, %s1801
    %v1803 = vpop.permute.xlu0 %1802
    %s1805 = sor.u32 256, 56
    %1806 = vbcast.lane.b32.xlu0 %v1701, %s1805
    %v1807 = vpop.permute.xlu0 %1806
    %s1809 = sor.u32 256, 64
    %1810 = vbcast.lane.b32.xlu0 %v1701, %s1809
    %v1811 = vpop.permute.xlu0 %1810
    %s1813 = sor.u32 256, 72
    %1814 = vbcast.lane.b32.xlu0 %v1701, %s1813
    %v1815 = vpop.permute.xlu0 %1814
    %s1817 = sor.u32 256, 80
    %1818 = vbcast.lane.b32.xlu0 %v1701, %s1817
    %v1819 = vpop.permute.xlu0 %1818
    %s1821 = sor.u32 256, 88
    %1822 = vbcast.lane.b32.xlu0 %v1701, %s1821
    %v1823 = vpop.permute.xlu0 %1822
    %s1825 = sor.u32 256, 96
    %1826 = vbcast.lane.b32.xlu0 %v1701, %s1825
    %v1827 = vpop.permute.xlu0 %1826
    %s1829 = sor.u32 256, 104
    %1830 = vbcast.lane.b32.xlu0 %v1701, %s1829
    %v1831 = vpop.permute.xlu0 %1830
    %s1833 = sor.u32 256, 112
    %1834 = vbcast.lane.b32.xlu0 %v1701, %s1833
    %v1835 = vpop.permute.xlu0 %1834
    %s1837 = sor.u32 256, 120
    %1838 = vbcast.lane.b32.xlu0 %v1701, %s1837
    %v1839 = vpop.permute.xlu0 %1838
    %1841 = vbcast.lane.b32.xlu0 %v1705, 256
    %v1842 = vpop.permute.xlu0 %1841
    %s1844 = sor.u32 256, 8
    %1845 = vbcast.lane.b32.xlu0 %v1705, %s1844
    %v1846 = vpop.permute.xlu0 %1845
    %s1848 = sor.u32 256, 16
    %1849 = vbcast.lane.b32.xlu0 %v1705, %s1848
    %v1850 = vpop.permute.xlu0 %1849
    %s1852 = sor.u32 256, 24
    %1853 = vbcast.lane.b32.xlu0 %v1705, %s1852
    %v1854 = vpop.permute.xlu0 %1853
    %s1856 = sor.u32 256, 32
    %1857 = vbcast.lane.b32.xlu0 %v1705, %s1856
    %v1858 = vpop.permute.xlu0 %1857
    %s1860 = sor.u32 256, 40
    %1861 = vbcast.lane.b32.xlu0 %v1705, %s1860
    %v1862 = vpop.permute.xlu0 %1861
    %s1864 = sor.u32 256, 48
    %1865 = vbcast.lane.b32.xlu0 %v1705, %s1864
    %v1866 = vpop.permute.xlu0 %1865
    %s1868 = sor.u32 256, 56
    %1869 = vbcast.lane.b32.xlu0 %v1705, %s1868
    %v1870 = vpop.permute.xlu0 %1869
    %s1872 = sor.u32 256, 64
    %1873 = vbcast.lane.b32.xlu0 %v1705, %s1872
    %v1874 = vpop.permute.xlu0 %1873
    %s1876 = sor.u32 256, 72
    %1877 = vbcast.lane.b32.xlu0 %v1705, %s1876
    %v1878 = vpop.permute.xlu0 %1877
    %s1880 = sor.u32 256, 80
    %1881 = vbcast.lane.b32.xlu0 %v1705, %s1880
    %v1882 = vpop.permute.xlu0 %1881
    %s1884 = sor.u32 256, 88
    %1885 = vbcast.lane.b32.xlu0 %v1705, %s1884
    %v1886 = vpop.permute.xlu0 %1885
    %s1888 = sor.u32 256, 96
    %1889 = vbcast.lane.b32.xlu0 %v1705, %s1888
    %v1890 = vpop.permute.xlu0 %1889
    %s1892 = sor.u32 256, 104
    %1893 = vbcast.lane.b32.xlu0 %v1705, %s1892
    %v1894 = vpop.permute.xlu0 %1893
    %s1896 = sor.u32 256, 112
    %1897 = vbcast.lane.b32.xlu0 %v1705, %s1896
    %v1898 = vpop.permute.xlu0 %1897
    %s1900 = sor.u32 256, 120
    %1901 = vbcast.lane.b32.xlu0 %v1705, %s1900
    %v1902 = vpop.permute.xlu0 %1901
    %1904 = vbcast.lane.b32.xlu0 %v1709, 256
    %v1905 = vpop.permute.xlu0 %1904
    %s1907 = sor.u32 256, 8
    %1908 = vbcast.lane.b32.xlu0 %v1709, %s1907
    %v1909 = vpop.permute.xlu0 %1908
    %s1911 = sor.u32 256, 16
    %1912 = vbcast.lane.b32.xlu0 %v1709, %s1911
    %v1913 = vpop.permute.xlu0 %1912
    %s1915 = sor.u32 256, 24
    %1916 = vbcast.lane.b32.xlu0 %v1709, %s1915
    %v1917 = vpop.permute.xlu0 %1916
    %s1919 = sor.u32 256, 32
    %1920 = vbcast.lane.b32.xlu0 %v1709, %s1919
    %v1921 = vpop.permute.xlu0 %1920
    %s1923 = sor.u32 256, 40
    %1924 = vbcast.lane.b32.xlu0 %v1709, %s1923
    %v1925 = vpop.permute.xlu0 %1924
    %s1927 = sor.u32 256, 48
    %1928 = vbcast.lane.b32.xlu0 %v1709, %s1927
    %v1929 = vpop.permute.xlu0 %1928
    %s1931 = sor.u32 256, 56
    %1932 = vbcast.lane.b32.xlu0 %v1709, %s1931
    %v1933 = vpop.permute.xlu0 %1932
    %s1935 = sor.u32 256, 64
    %1936 = vbcast.lane.b32.xlu0 %v1709, %s1935
    %v1937 = vpop.permute.xlu0 %1936
    %s1939 = sor.u32 256, 72
    %1940 = vbcast.lane.b32.xlu0 %v1709, %s1939
    %v1941 = vpop.permute.xlu0 %1940
    %s1943 = sor.u32 256, 80
    %1944 = vbcast.lane.b32.xlu0 %v1709, %s1943
    %v1945 = vpop.permute.xlu0 %1944
    %s1947 = sor.u32 256, 88
    %1948 = vbcast.lane.b32.xlu0 %v1709, %s1947
    %v1949 = vpop.permute.xlu0 %1948
    %s1951 = sor.u32 256, 96
    %1952 = vbcast.lane.b32.xlu0 %v1709, %s1951
    %v1953 = vpop.permute.xlu0 %1952
    %s1955 = sor.u32 256, 104
    %1956 = vbcast.lane.b32.xlu0 %v1709, %s1955
    %v1957 = vpop.permute.xlu0 %1956
    %s1959 = sor.u32 256, 112
    %1960 = vbcast.lane.b32.xlu0 %v1709, %s1959
    %v1961 = vpop.permute.xlu0 %1960
    %s1963 = sor.u32 256, 120
    %1964 = vbcast.lane.b32.xlu0 %v1709, %s1963
    %v1965 = vpop.permute.xlu0 %1964
    %v2030 = vmul.f32 %v1667, %v1716
    %v2031 = vmul.f32 %v1667, %v1720
    %v2032 = vmul.f32 %v1667, %v1724
    %v2033 = vmul.f32 %v1667, %v1728
    %v2034 = vmul.f32 %v1667, %v1732
    %v2035 = vmul.f32 %v1667, %v1736
    %v2036 = vmul.f32 %v1667, %v1740
    %v2037 = vmul.f32 %v1667, %v1744
    %v2038 = vmul.f32 %v1667, %v1748
    %v2039 = vmul.f32 %v1667, %v1752
    %v2040 = vmul.f32 %v1667, %v1756
    %v2041 = vmul.f32 %v1667, %v1760
    %v2042 = vmul.f32 %v1667, %v1764
    %v2043 = vmul.f32 %v1667, %v1768
    %v2044 = vmul.f32 %v1667, %v1772
    %v2045 = vmul.f32 %v1667, %v1776
    %v2046 = vmul.f32 %v1667, %v1779
    %v2047 = vmul.f32 %v1667, %v1783
    %v2048 = vmul.f32 %v1667, %v1787
    %v2049 = vmul.f32 %v1667, %v1791
    %v2050 = vmul.f32 %v1667, %v1795
    %v2051 = vmul.f32 %v1667, %v1799
    %v2052 = vmul.f32 %v1667, %v1803
    %v2053 = vmul.f32 %v1667, %v1807
    %v2054 = vmul.f32 %v1667, %v1811
    %v2055 = vmul.f32 %v1667, %v1815
    %v2056 = vmul.f32 %v1667, %v1819
    %v2057 = vmul.f32 %v1667, %v1823
    %v2058 = vmul.f32 %v1667, %v1827
    %v2059 = vmul.f32 %v1667, %v1831
    %v2060 = vmul.f32 %v1667, %v1835
    %v2061 = vmul.f32 %v1667, %v1839
    %v2062 = vmul.f32 %v1667, %v1842
    %v2063 = vmul.f32 %v1667, %v1846
    %v2064 = vmul.f32 %v1667, %v1850
    %v2065 = vmul.f32 %v1667, %v1854
    %v2066 = vmul.f32 %v1667, %v1858
    %v2067 = vmul.f32 %v1667, %v1862
    %v2068 = vmul.f32 %v1667, %v1866
    %v2069 = vmul.f32 %v1667, %v1870
    %v2070 = vmul.f32 %v1667, %v1874
    %v2071 = vmul.f32 %v1667, %v1878
    %v2072 = vmul.f32 %v1667, %v1882
    %v2073 = vmul.f32 %v1667, %v1886
    %v2074 = vmul.f32 %v1667, %v1890
    %v2075 = vmul.f32 %v1667, %v1894
    %v2076 = vmul.f32 %v1667, %v1898
    %v2077 = vmul.f32 %v1667, %v1902
    %v2078 = vmul.f32 %v1667, %v1905
    %v2079 = vmul.f32 %v1667, %v1909
    %v2080 = vmul.f32 %v1667, %v1913
    %v2081 = vmul.f32 %v1667, %v1917
    %v2082 = vmul.f32 %v1667, %v1921
    %v2083 = vmul.f32 %v1667, %v1925
    %v2084 = vmul.f32 %v1667, %v1929
    %v2085 = vmul.f32 %v1667, %v1933
    %v2086 = vmul.f32 %v1667, %v1937
    %v2087 = vmul.f32 %v1667, %v1941
    %v2088 = vmul.f32 %v1667, %v1945
    %v2089 = vmul.f32 %v1667, %v1949
    %v2090 = vmul.f32 %v1667, %v1953
    %v2091 = vmul.f32 %v1667, %v1957
    %v2092 = vmul.f32 %v1667, %v1961
    %v2093 = vmul.f32 %v1667, %v1965
    %v2094 = vmul.f32 %v1671, %v1716
    %v2095 = vmul.f32 %v1671, %v1720
    %v2096 = vmul.f32 %v1671, %v1724
    %v2097 = vmul.f32 %v1671, %v1728
    %v2098 = vmul.f32 %v1671, %v1732
    %v2099 = vmul.f32 %v1671, %v1736
    %v2100 = vmul.f32 %v1671, %v1740
    %v2101 = vmul.f32 %v1671, %v1744
    %v2102 = vmul.f32 %v1671, %v1748
    %v2103 = vmul.f32 %v1671, %v1752
    %v2104 = vmul.f32 %v1671, %v1756
    %v2105 = vmul.f32 %v1671, %v1760
    %v2106 = vmul.f32 %v1671, %v1764
    %v2107 = vmul.f32 %v1671, %v1768
    %v2108 = vmul.f32 %v1671, %v1772
    %v2109 = vmul.f32 %v1671, %v1776
    %v2110 = vmul.f32 %v1671, %v1779
    %v2111 = vmul.f32 %v1671, %v1783
    %v2112 = vmul.f32 %v1671, %v1787
    %v2113 = vmul.f32 %v1671, %v1791
    %v2114 = vmul.f32 %v1671, %v1795
    %v2115 = vmul.f32 %v1671, %v1799
    %v2116 = vmul.f32 %v1671, %v1803
    %v2117 = vmul.f32 %v1671, %v1807
    %v2118 = vmul.f32 %v1671, %v1811
    %v2119 = vmul.f32 %v1671, %v1815
    %v2120 = vmul.f32 %v1671, %v1819
    %v2121 = vmul.f32 %v1671, %v1823
    %v2122 = vmul.f32 %v1671, %v1827
    %v2123 = vmul.f32 %v1671, %v1831
    %v2124 = vmul.f32 %v1671, %v1835
    %v2125 = vmul.f32 %v1671, %v1839
    %v2126 = vmul.f32 %v1671, %v1842
    %v2127 = vmul.f32 %v1671, %v1846
    %v2128 = vmul.f32 %v1671, %v1850
    %v2129 = vmul.f32 %v1671, %v1854
    %v2130 = vmul.f32 %v1671, %v1858
    %v2131 = vmul.f32 %v1671, %v1862
    %v2132 = vmul.f32 %v1671, %v1866
    %v2133 = vmul.f32 %v1671, %v1870
    %v2134 = vmul.f32 %v1671, %v1874
    %v2135 = vmul.f32 %v1671, %v1878
    %v2136 = vmul.f32 %v1671, %v1882
    %v2137 = vmul.f32 %v1671, %v1886
    %v2138 = vmul.f32 %v1671, %v1890
    %v2139 = vmul.f32 %v1671, %v1894
    %v2140 = vmul.f32 %v1671, %v1898
    %v2141 = vmul.f32 %v1671, %v1902
    %v2142 = vmul.f32 %v1671, %v1905
    %v2143 = vmul.f32 %v1671, %v1909
    %v2144 = vmul.f32 %v1671, %v1913
    %v2145 = vmul.f32 %v1671, %v1917
    %v2146 = vmul.f32 %v1671, %v1921
    %v2147 = vmul.f32 %v1671, %v1925
    %v2148 = vmul.f32 %v1671, %v1929
    %v2149 = vmul.f32 %v1671, %v1933
    %v2150 = vmul.f32 %v1671, %v1937
    %v2151 = vmul.f32 %v1671, %v1941
    %v2152 = vmul.f32 %v1671, %v1945
    %v2153 = vmul.f32 %v1671, %v1949
    %v2154 = vmul.f32 %v1671, %v1953
    %v2155 = vmul.f32 %v1671, %v1957
    %v2156 = vmul.f32 %v1671, %v1961
    %v2157 = vmul.f32 %v1671, %v1965
    %v2159 = vlaneseq
    %v2160 = vshrl.u32 %v2159, 7
    %v2161 = vsub.s32 0, %v2160
    %v2162 = vrot.slane %v1663, %v2161
    %v2163 = vlaneseq
    %v2164 = vshrl.u32 %v2163, 7
    %v2165 = vsub.s32 1, %v2164
    %v2166 = vrot.slane %v1663, %v2165
    %v2167 = vlaneseq
    %v2168 = vshrl.u32 %v2167, 7
    %v2169 = vsub.s32 2, %v2168
    %v2170 = vrot.slane %v1663, %v2169
    %v2171 = vlaneseq
    %v2172 = vshrl.u32 %v2171, 7
    %v2173 = vsub.s32 3, %v2172
    %v2174 = vrot.slane %v1663, %v2173
    %2307 = vset.pattern.permute.xlu0 0
    %2308 = vperm.xlu0 %2307, %v2030
    %v2309 = vpop.permute.xlu0 %2308
    %2310 = vset.pattern.permute.xlu0 0
    %2311 = vperm.xlu0 %2310, %v2031
    %v2312 = vpop.permute.xlu0 %2311
    %2313 = vset.pattern.permute.xlu0 0
    %2314 = vperm.xlu0 %2313, %v2032
    %v2315 = vpop.permute.xlu0 %2314
    %2316 = vset.pattern.permute.xlu0 0
    %2317 = vperm.xlu0 %2316, %v2033
    %v2318 = vpop.permute.xlu0 %2317
    %2319 = vset.pattern.permute.xlu0 0
    %2320 = vperm.xlu0 %2319, %v2034
    %v2321 = vpop.permute.xlu0 %2320
    %2322 = vset.pattern.permute.xlu0 0
    %2323 = vperm.xlu0 %2322, %v2035
    %v2324 = vpop.permute.xlu0 %2323
    %2325 = vset.pattern.permute.xlu0 0
    %2326 = vperm.xlu0 %2325, %v2036
    %v2327 = vpop.permute.xlu0 %2326
    %2328 = vset.pattern.permute.xlu0 0
    %2329 = vperm.xlu0 %2328, %v2037
    %v2330 = vpop.permute.xlu0 %2329
    %2331 = vset.pattern.permute.xlu0 0
    %2332 = vperm.xlu0 %2331, %v2038
    %v2333 = vpop.permute.xlu0 %2332
    %2334 = vset.pattern.permute.xlu0 0
    %2335 = vperm.xlu0 %2334, %v2039
    %v2336 = vpop.permute.xlu0 %2335
    %2337 = vset.pattern.permute.xlu0 0
    %2338 = vperm.xlu0 %2337, %v2040
    %v2339 = vpop.permute.xlu0 %2338
    %2340 = vset.pattern.permute.xlu0 0
    %2341 = vperm.xlu0 %2340, %v2041
    %v2342 = vpop.permute.xlu0 %2341
    %2343 = vset.pattern.permute.xlu0 0
    %2344 = vperm.xlu0 %2343, %v2042
    %v2345 = vpop.permute.xlu0 %2344
    %2346 = vset.pattern.permute.xlu0 0
    %2347 = vperm.xlu0 %2346, %v2043
    %v2348 = vpop.permute.xlu0 %2347
    %2349 = vset.pattern.permute.xlu0 0
    %2350 = vperm.xlu0 %2349, %v2044
    %v2351 = vpop.permute.xlu0 %2350
    %2352 = vset.pattern.permute.xlu0 0
    %2353 = vperm.xlu0 %2352, %v2045
    %v2354 = vpop.permute.xlu0 %2353
    %2355 = vset.pattern.permute.xlu0 0
    %2356 = vperm.xlu0 %2355, %v2046
    %v2357 = vpop.permute.xlu0 %2356
    %2358 = vset.pattern.permute.xlu0 0
    %2359 = vperm.xlu0 %2358, %v2047
    %v2360 = vpop.permute.xlu0 %2359
    %2361 = vset.pattern.permute.xlu0 0
    %2362 = vperm.xlu0 %2361, %v2048
    %v2363 = vpop.permute.xlu0 %2362
    %2364 = vset.pattern.permute.xlu0 0
    %2365 = vperm.xlu0 %2364, %v2049
    %v2366 = vpop.permute.xlu0 %2365
    %2367 = vset.pattern.permute.xlu0 0
    %2368 = vperm.xlu0 %2367, %v2050
    %v2369 = vpop.permute.xlu0 %2368
    %2370 = vset.pattern.permute.xlu0 0
    %2371 = vperm.xlu0 %2370, %v2051
    %v2372 = vpop.permute.xlu0 %2371
    %2373 = vset.pattern.permute.xlu0 0
    %2374 = vperm.xlu0 %2373, %v2052
    %v2375 = vpop.permute.xlu0 %2374
    %2376 = vset.pattern.permute.xlu0 0
    %2377 = vperm.xlu0 %2376, %v2053
    %v2378 = vpop.permute.xlu0 %2377
    %2379 = vset.pattern.permute.xlu0 0
    %2380 = vperm.xlu0 %2379, %v2054
    %v2381 = vpop.permute.xlu0 %2380
    %2382 = vset.pattern.permute.xlu0 0
    %2383 = vperm.xlu0 %2382, %v2055
    %v2384 = vpop.permute.xlu0 %2383
    %2385 = vset.pattern.permute.xlu0 0
    %2386 = vperm.xlu0 %2385, %v2056
    %v2387 = vpop.permute.xlu0 %2386
    %2388 = vset.pattern.permute.xlu0 0
    %2389 = vperm.xlu0 %2388, %v2057
    %v2390 = vpop.permute.xlu0 %2389
    %2391 = vset.pattern.permute.xlu0 0
    %2392 = vperm.xlu0 %2391, %v2058
    %v2393 = vpop.permute.xlu0 %2392
    %2394 = vset.pattern.permute.xlu0 0
    %2395 = vperm.xlu0 %2394, %v2059
    %v2396 = vpop.permute.xlu0 %2395
    %2397 = vset.pattern.permute.xlu0 0
    %2398 = vperm.xlu0 %2397, %v2060
    %v2399 = vpop.permute.xlu0 %2398
    %2400 = vset.pattern.permute.xlu0 0
    %2401 = vperm.xlu0 %2400, %v2061
    %v2402 = vpop.permute.xlu0 %2401
    %2403 = vset.pattern.permute.xlu0 0
    %2404 = vperm.xlu0 %2403, %v2062
    %v2405 = vpop.permute.xlu0 %2404
    %2406 = vset.pattern.permute.xlu0 0
    %2407 = vperm.xlu0 %2406, %v2063
    %v2408 = vpop.permute.xlu0 %2407
    %2409 = vset.pattern.permute.xlu0 0
    %2410 = vperm.xlu0 %2409, %v2064
    %v2411 = vpop.permute.xlu0 %2410
    %2412 = vset.pattern.permute.xlu0 0
    %2413 = vperm.xlu0 %2412, %v2065
    %v2414 = vpop.permute.xlu0 %2413
    %2415 = vset.pattern.permute.xlu0 0
    %2416 = vperm.xlu0 %2415, %v2066
    %v2417 = vpop.permute.xlu0 %2416
    %2418 = vset.pattern.permute.xlu0 0
    %2419 = vperm.xlu0 %2418, %v2067
    %v2420 = vpop.permute.xlu0 %2419
    %2421 = vset.pattern.permute.xlu0 0
    %2422 = vperm.xlu0 %2421, %v2068
    %v2423 = vpop.permute.xlu0 %2422
    %2424 = vset.pattern.permute.xlu0 0
    %2425 = vperm.xlu0 %2424, %v2069
    %v2426 = vpop.permute.xlu0 %2425
    %2427 = vset.pattern.permute.xlu0 0
    %2428 = vperm.xlu0 %2427, %v2070
    %v2429 = vpop.permute.xlu0 %2428
    %2430 = vset.pattern.permute.xlu0 0
    %2431 = vperm.xlu0 %2430, %v2071
    %v2432 = vpop.permute.xlu0 %2431
    %2433 = vset.pattern.permute.xlu0 0
    %2434 = vperm.xlu0 %2433, %v2072
    %v2435 = vpop.permute.xlu0 %2434
    %2436 = vset.pattern.permute.xlu0 0
    %2437 = vperm.xlu0 %2436, %v2073
    %v2438 = vpop.permute.xlu0 %2437
    %2439 = vset.pattern.permute.xlu0 0
    %2440 = vperm.xlu0 %2439, %v2074
    %v2441 = vpop.permute.xlu0 %2440
    %2442 = vset.pattern.permute.xlu0 0
    %2443 = vperm.xlu0 %2442, %v2075
    %v2444 = vpop.permute.xlu0 %2443
    %2445 = vset.pattern.permute.xlu0 0
    %2446 = vperm.xlu0 %2445, %v2076
    %v2447 = vpop.permute.xlu0 %2446
    %2448 = vset.pattern.permute.xlu0 0
    %2449 = vperm.xlu0 %2448, %v2077
    %v2450 = vpop.permute.xlu0 %2449
    %2451 = vset.pattern.permute.xlu0 0
    %2452 = vperm.xlu0 %2451, %v2078
    %v2453 = vpop.permute.xlu0 %2452
    %2454 = vset.pattern.permute.xlu0 0
    %2455 = vperm.xlu0 %2454, %v2079
    %v2456 = vpop.permute.xlu0 %2455
    %2457 = vset.pattern.permute.xlu0 0
    %2458 = vperm.xlu0 %2457, %v2080
    %v2459 = vpop.permute.xlu0 %2458
    %2460 = vset.pattern.permute.xlu0 0
    %2461 = vperm.xlu0 %2460, %v2081
    %v2462 = vpop.permute.xlu0 %2461
    %2463 = vset.pattern.permute.xlu0 0
    %2464 = vperm.xlu0 %2463, %v2082
    %v2465 = vpop.permute.xlu0 %2464
    %2466 = vset.pattern.permute.xlu0 0
    %2467 = vperm.xlu0 %2466, %v2083
    %v2468 = vpop.permute.xlu0 %2467
    %2469 = vset.pattern.permute.xlu0 0
    %2470 = vperm.xlu0 %2469, %v2084
    %v2471 = vpop.permute.xlu0 %2470
    %2472 = vset.pattern.permute.xlu0 0
    %2473 = vperm.xlu0 %2472, %v2085
    %v2474 = vpop.permute.xlu0 %2473
    %2475 = vset.pattern.permute.xlu0 0
    %2476 = vperm.xlu0 %2475, %v2086
    %v2477 = vpop.permute.xlu0 %2476
    %2478 = vset.pattern.permute.xlu0 0
    %2479 = vperm.xlu0 %2478, %v2087
    %v2480 = vpop.permute.xlu0 %2479
    %2481 = vset.pattern.permute.xlu0 0
    %2482 = vperm.xlu0 %2481, %v2088
    %v2483 = vpop.permute.xlu0 %2482
    %2484 = vset.pattern.permute.xlu0 0
    %2485 = vperm.xlu0 %2484, %v2089
    %v2486 = vpop.permute.xlu0 %2485
    %2487 = vset.pattern.permute.xlu0 0
    %2488 = vperm.xlu0 %2487, %v2090
    %v2489 = vpop.permute.xlu0 %2488
    %2490 = vset.pattern.permute.xlu0 0
    %2491 = vperm.xlu0 %2490, %v2091
    %v2492 = vpop.permute.xlu0 %2491
    %2493 = vset.pattern.permute.xlu0 0
    %2494 = vperm.xlu0 %2493, %v2092
    %v2495 = vpop.permute.xlu0 %2494
    %2496 = vset.pattern.permute.xlu0 0
    %2497 = vperm.xlu0 %2496, %v2093
    %v2498 = vpop.permute.xlu0 %2497
    %2499 = vset.pattern.permute.xlu0 0
    %2500 = vperm.xlu0 %2499, %v2094
    %v2501 = vpop.permute.xlu0 %2500
    %2502 = vset.pattern.permute.xlu0 0
    %2503 = vperm.xlu0 %2502, %v2095
    %v2504 = vpop.permute.xlu0 %2503
    %2505 = vset.pattern.permute.xlu0 0
    %2506 = vperm.xlu0 %2505, %v2096
    %v2507 = vpop.permute.xlu0 %2506
    %2508 = vset.pattern.permute.xlu0 0
    %2509 = vperm.xlu0 %2508, %v2097
    %v2510 = vpop.permute.xlu0 %2509
    %2511 = vset.pattern.permute.xlu0 0
    %2512 = vperm.xlu0 %2511, %v2098
    %v2513 = vpop.permute.xlu0 %2512
    %2514 = vset.pattern.permute.xlu0 0
    %2515 = vperm.xlu0 %2514, %v2099
    %v2516 = vpop.permute.xlu0 %2515
    %2517 = vset.pattern.permute.xlu0 0
    %2518 = vperm.xlu0 %2517, %v2100
    %v2519 = vpop.permute.xlu0 %2518
    %2520 = vset.pattern.permute.xlu0 0
    %2521 = vperm.xlu0 %2520, %v2101
    %v2522 = vpop.permute.xlu0 %2521
    %2523 = vset.pattern.permute.xlu0 0
    %2524 = vperm.xlu0 %2523, %v2102
    %v2525 = vpop.permute.xlu0 %2524
    %2526 = vset.pattern.permute.xlu0 0
    %2527 = vperm.xlu0 %2526, %v2103
    %v2528 = vpop.permute.xlu0 %2527
    %2529 = vset.pattern.permute.xlu0 0
    %2530 = vperm.xlu0 %2529, %v2104
    %v2531 = vpop.permute.xlu0 %2530
    %2532 = vset.pattern.permute.xlu0 0
    %2533 = vperm.xlu0 %2532, %v2105
    %v2534 = vpop.permute.xlu0 %2533
    %2535 = vset.pattern.permute.xlu0 0
    %2536 = vperm.xlu0 %2535, %v2106
    %v2537 = vpop.permute.xlu0 %2536
    %2538 = vset.pattern.permute.xlu0 0
    %2539 = vperm.xlu0 %2538, %v2107
    %v2540 = vpop.permute.xlu0 %2539
    %2541 = vset.pattern.permute.xlu0 0
    %2542 = vperm.xlu0 %2541, %v2108
    %v2543 = vpop.permute.xlu0 %2542
    %2544 = vset.pattern.permute.xlu0 0
    %2545 = vperm.xlu0 %2544, %v2109
    %v2546 = vpop.permute.xlu0 %2545
    %2547 = vset.pattern.permute.xlu0 0
    %2548 = vperm.xlu0 %2547, %v2110
    %v2549 = vpop.permute.xlu0 %2548
    %2550 = vset.pattern.permute.xlu0 0
    %2551 = vperm.xlu0 %2550, %v2111
    %v2552 = vpop.permute.xlu0 %2551
    %2553 = vset.pattern.permute.xlu0 0
    %2554 = vperm.xlu0 %2553, %v2112
    %v2555 = vpop.permute.xlu0 %2554
    %2556 = vset.pattern.permute.xlu0 0
    %2557 = vperm.xlu0 %2556, %v2113
    %v2558 = vpop.permute.xlu0 %2557
    %2559 = vset.pattern.permute.xlu0 0
    %2560 = vperm.xlu0 %2559, %v2114
    %v2561 = vpop.permute.xlu0 %2560
    %2562 = vset.pattern.permute.xlu0 0
    %2563 = vperm.xlu0 %2562, %v2115
    %v2564 = vpop.permute.xlu0 %2563
    %2565 = vset.pattern.permute.xlu0 0
    %2566 = vperm.xlu0 %2565, %v2116
    %v2567 = vpop.permute.xlu0 %2566
    %2568 = vset.pattern.permute.xlu0 0
    %2569 = vperm.xlu0 %2568, %v2117
    %v2570 = vpop.permute.xlu0 %2569
    %2571 = vset.pattern.permute.xlu0 0
    %2572 = vperm.xlu0 %2571, %v2118
    %v2573 = vpop.permute.xlu0 %2572
    %2574 = vset.pattern.permute.xlu0 0
    %2575 = vperm.xlu0 %2574, %v2119
    %v2576 = vpop.permute.xlu0 %2575
    %2577 = vset.pattern.permute.xlu0 0
    %2578 = vperm.xlu0 %2577, %v2120
    %v2579 = vpop.permute.xlu0 %2578
    %2580 = vset.pattern.permute.xlu0 0
    %2581 = vperm.xlu0 %2580, %v2121
    %v2582 = vpop.permute.xlu0 %2581
    %2583 = vset.pattern.permute.xlu0 0
    %2584 = vperm.xlu0 %2583, %v2122
    %v2585 = vpop.permute.xlu0 %2584
    %2586 = vset.pattern.permute.xlu0 0
    %2587 = vperm.xlu0 %2586, %v2123
    %v2588 = vpop.permute.xlu0 %2587
    %2589 = vset.pattern.permute.xlu0 0
    %2590 = vperm.xlu0 %2589, %v2124
    %v2591 = vpop.permute.xlu0 %2590
    %2592 = vset.pattern.permute.xlu0 0
    %2593 = vperm.xlu0 %2592, %v2125
    %v2594 = vpop.permute.xlu0 %2593
    %2595 = vset.pattern.permute.xlu0 0
    %2596 = vperm.xlu0 %2595, %v2126
    %v2597 = vpop.permute.xlu0 %2596
    %2598 = vset.pattern.permute.xlu0 0
    %2599 = vperm.xlu0 %2598, %v2127
    %v2600 = vpop.permute.xlu0 %2599
    %2601 = vset.pattern.permute.xlu0 0
    %2602 = vperm.xlu0 %2601, %v2128
    %v2603 = vpop.permute.xlu0 %2602
    %2604 = vset.pattern.permute.xlu0 0
    %2605 = vperm.xlu0 %2604, %v2129
    %v2606 = vpop.permute.xlu0 %2605
    %2607 = vset.pattern.permute.xlu0 0
    %2608 = vperm.xlu0 %2607, %v2130
    %v2609 = vpop.permute.xlu0 %2608
    %2610 = vset.pattern.permute.xlu0 0
    %2611 = vperm.xlu0 %2610, %v2131
    %v2612 = vpop.permute.xlu0 %2611
    %2613 = vset.pattern.permute.xlu0 0
    %2614 = vperm.xlu0 %2613, %v2132
    %v2615 = vpop.permute.xlu0 %2614
    %2616 = vset.pattern.permute.xlu0 0
    %2617 = vperm.xlu0 %2616, %v2133
    %v2618 = vpop.permute.xlu0 %2617
    %2619 = vset.pattern.permute.xlu0 0
    %2620 = vperm.xlu0 %2619, %v2134
    %v2621 = vpop.permute.xlu0 %2620
    %2622 = vset.pattern.permute.xlu0 0
    %2623 = vperm.xlu0 %2622, %v2135
    %v2624 = vpop.permute.xlu0 %2623
    %2625 = vset.pattern.permute.xlu0 0
    %2626 = vperm.xlu0 %2625, %v2136
    %v2627 = vpop.permute.xlu0 %2626
    %2628 = vset.pattern.permute.xlu0 0
    %2629 = vperm.xlu0 %2628, %v2137
    %v2630 = vpop.permute.xlu0 %2629
    %2631 = vset.pattern.permute.xlu0 0
    %2632 = vperm.xlu0 %2631, %v2138
    %v2633 = vpop.permute.xlu0 %2632
    %2634 = vset.pattern.permute.xlu0 0
    %2635 = vperm.xlu0 %2634, %v2139
    %v2636 = vpop.permute.xlu0 %2635
    %2637 = vset.pattern.permute.xlu0 0
    %2638 = vperm.xlu0 %2637, %v2140
    %v2639 = vpop.permute.xlu0 %2638
    %2640 = vset.pattern.permute.xlu0 0
    %2641 = vperm.xlu0 %2640, %v2141
    %v2642 = vpop.permute.xlu0 %2641
    %2643 = vset.pattern.permute.xlu0 0
    %2644 = vperm.xlu0 %2643, %v2142
    %v2645 = vpop.permute.xlu0 %2644
    %2646 = vset.pattern.permute.xlu0 0
    %2647 = vperm.xlu0 %2646, %v2143
    %v2648 = vpop.permute.xlu0 %2647
    %2649 = vset.pattern.permute.xlu0 0
    %2650 = vperm.xlu0 %2649, %v2144
    %v2651 = vpop.permute.xlu0 %2650
    %2652 = vset.pattern.permute.xlu0 0
    %2653 = vperm.xlu0 %2652, %v2145
    %v2654 = vpop.permute.xlu0 %2653
    %2655 = vset.pattern.permute.xlu0 0
    %2656 = vperm.xlu0 %2655, %v2146
    %v2657 = vpop.permute.xlu0 %2656
    %2658 = vset.pattern.permute.xlu0 0
    %2659 = vperm.xlu0 %2658, %v2147
    %v2660 = vpop.permute.xlu0 %2659
    %2661 = vset.pattern.permute.xlu0 0
    %2662 = vperm.xlu0 %2661, %v2148
    %v2663 = vpop.permute.xlu0 %2662
    %2664 = vset.pattern.permute.xlu0 0
    %2665 = vperm.xlu0 %2664, %v2149
    %v2666 = vpop.permute.xlu0 %2665
    %2667 = vset.pattern.permute.xlu0 0
    %2668 = vperm.xlu0 %2667, %v2150
    %v2669 = vpop.permute.xlu0 %2668
    %2670 = vset.pattern.permute.xlu0 0
    %2671 = vperm.xlu0 %2670, %v2151
    %v2672 = vpop.permute.xlu0 %2671
    %2673 = vset.pattern.permute.xlu0 0
    %2674 = vperm.xlu0 %2673, %v2152
    %v2675 = vpop.permute.xlu0 %2674
    %2676 = vset.pattern.permute.xlu0 0
    %2677 = vperm.xlu0 %2676, %v2153
    %v2678 = vpop.permute.xlu0 %2677
    %2679 = vset.pattern.permute.xlu0 0
    %2680 = vperm.xlu0 %2679, %v2154
    %v2681 = vpop.permute.xlu0 %2680
    %2682 = vset.pattern.permute.xlu0 0
    %2683 = vperm.xlu0 %2682, %v2155
    %v2684 = vpop.permute.xlu0 %2683
    %2685 = vset.pattern.permute.xlu0 0
    %2686 = vperm.xlu0 %2685, %v2156
    %v2687 = vpop.permute.xlu0 %2686
    %2688 = vset.pattern.permute.xlu0 0
    %2689 = vperm.xlu0 %2688, %v2157
    %v2690 = vpop.permute.xlu0 %2689
    %v2691 = vlaneseq
    %v2692 = vand.u32 %v2691, 127
    %v2693 = vlaneseq
    %v2694 = vshrl.u32 %v2693, 7
    %v2695 = vsub.s32 %v2692, %v2694
    %v2696 = vrot.slane %v2309, %v2695
    %v2697 = vadd.s32 %v2692, 4294967288
    %v2698 = vlaneseq
    %v2699 = vshrl.u32 %v2698, 7
    %v2700 = vsub.s32 %v2697, %v2699
    %v2701 = vrot.slane %v2312, %v2700
    %vm2702 = vcmask 130112
    %v2703 = vsel %vm2702, %v2701, %v2696
    %v2704 = vadd.s32 %v2692, 4294967280
    %v2705 = vlaneseq
    %v2706 = vshrl.u32 %v2705, 7
    %v2707 = vsub.s32 %v2704, %v2706
    %v2708 = vrot.slane %v2315, %v2707
    %vm2709 = vcmask 195712
    %v2710 = vsel %vm2709, %v2708, %v2703
    %v2711 = vadd.s32 %v2692, 4294967272
    %v2712 = vlaneseq
    %v2713 = vshrl.u32 %v2712, 7
    %v2714 = vsub.s32 %v2711, %v2713
    %v2715 = vrot.slane %v2318, %v2714
    %vm2716 = vcmask 261312
    %v2717 = vsel %vm2716, %v2715, %v2710
    %v2718 = vadd.s32 %v2692, 4294967264
    %v2719 = vlaneseq
    %v2720 = vshrl.u32 %v2719, 7
    %v2721 = vsub.s32 %v2718, %v2720
    %v2722 = vrot.slane %v2321, %v2721
    %vm2723 = vcmask 326912
    %v2724 = vsel %vm2723, %v2722, %v2717
    %v2725 = vadd.s32 %v2692, 4294967256
    %v2726 = vlaneseq
    %v2727 = vshrl.u32 %v2726, 7
    %v2728 = vsub.s32 %v2725, %v2727
    %v2729 = vrot.slane %v2324, %v2728
    %vm2730 = vcmask 392512
    %v2731 = vsel %vm2730, %v2729, %v2724
    %v2732 = vadd.s32 %v2692, 4294967248
    %v2733 = vlaneseq
    %v2734 = vshrl.u32 %v2733, 7
    %v2735 = vsub.s32 %v2732, %v2734
    %v2736 = vrot.slane %v2327, %v2735
    %vm2737 = vcmask 458112
    %v2738 = vsel %vm2737, %v2736, %v2731
    %v2739 = vadd.s32 %v2692, 4294967240
    %v2740 = vlaneseq
    %v2741 = vshrl.u32 %v2740, 7
    %v2742 = vsub.s32 %v2739, %v2741
    %v2743 = vrot.slane %v2330, %v2742
    %vm2744 = vcmask 523712
    %v2745 = vsel %vm2744, %v2743, %v2738
    %v2746 = vadd.s32 %v2692, 4294967232
    %v2747 = vlaneseq
    %v2748 = vshrl.u32 %v2747, 7
    %v2749 = vsub.s32 %v2746, %v2748
    %v2750 = vrot.slane %v2333, %v2749
    %vm2751 = vcmask 589312
    %v2752 = vsel %vm2751, %v2750, %v2745
    %v2753 = vadd.s32 %v2692, 4294967224
    %v2754 = vlaneseq
    %v2755 = vshrl.u32 %v2754, 7
    %v2756 = vsub.s32 %v2753, %v2755
    %v2757 = vrot.slane %v2336, %v2756
    %vm2758 = vcmask 654912
    %v2759 = vsel %vm2758, %v2757, %v2752
    %v2760 = vadd.s32 %v2692, 4294967216
    %v2761 = vlaneseq
    %v2762 = vshrl.u32 %v2761, 7
    %v2763 = vsub.s32 %v2760, %v2762
    %v2764 = vrot.slane %v2339, %v2763
    %vm2765 = vcmask 720512
    %v2766 = vsel %vm2765, %v2764, %v2759
    %v2767 = vadd.s32 %v2692, 4294967208
    %v2768 = vlaneseq
    %v2769 = vshrl.u32 %v2768, 7
    %v2770 = vsub.s32 %v2767, %v2769
    %v2771 = vrot.slane %v2342, %v2770
    %vm2772 = vcmask 786112
    %v2773 = vsel %vm2772, %v2771, %v2766
    %v2774 = vadd.s32 %v2692, 4294967200
    %v2775 = vlaneseq
    %v2776 = vshrl.u32 %v2775, 7
    %v2777 = vsub.s32 %v2774, %v2776
    %v2778 = vrot.slane %v2345, %v2777
    %vm2779 = vcmask 851712
    %v2780 = vsel %vm2779, %v2778, %v2773
    %v2781 = vadd.s32 %v2692, 4294967192
    %v2782 = vlaneseq
    %v2783 = vshrl.u32 %v2782, 7
    %v2784 = vsub.s32 %v2781, %v2783
    %v2785 = vrot.slane %v2348, %v2784
    %vm2786 = vcmask 917312
    %v2787 = vsel %vm2786, %v2785, %v2780
    %v2788 = vadd.s32 %v2692, 4294967184
    %v2789 = vlaneseq
    %v2790 = vshrl.u32 %v2789, 7
    %v2791 = vsub.s32 %v2788, %v2790
    %v2792 = vrot.slane %v2351, %v2791
    %vm2793 = vcmask 982912
    %v2794 = vsel %vm2793, %v2792, %v2787
    %v2795 = vadd.s32 %v2692, 4294967176
    %v2796 = vlaneseq
    %v2797 = vshrl.u32 %v2796, 7
    %v2798 = vsub.s32 %v2795, %v2797
    %v2799 = vrot.slane %v2354, %v2798
    %vm2800 = vcmask 1048512
    %v2801 = vsel %vm2800, %v2799, %v2794
    %v2802 = vlaneseq
    %v2803 = vshrl.u32 %v2802, 7
    %v2804 = vsub.s32 %v2692, %v2803
    %v2805 = vrot.slane %v2357, %v2804
    %v2806 = vlaneseq
    %v2807 = vshrl.u32 %v2806, 7
    %v2808 = vsub.s32 %v2697, %v2807
    %v2809 = vrot.slane %v2360, %v2808
    %v2810 = vsel %vm2702, %v2809, %v2805
    %v2811 = vlaneseq
    %v2812 = vshrl.u32 %v2811, 7
    %v2813 = vsub.s32 %v2704, %v2812
    %v2814 = vrot.slane %v2363, %v2813
    %v2815 = vsel %vm2709, %v2814, %v2810
    %v2816 = vlaneseq
    %v2817 = vshrl.u32 %v2816, 7
    %v2818 = vsub.s32 %v2711, %v2817
    %v2819 = vrot.slane %v2366, %v2818
    %v2820 = vsel %vm2716, %v2819, %v2815
    %v2821 = vlaneseq
    %v2822 = vshrl.u32 %v2821, 7
    %v2823 = vsub.s32 %v2718, %v2822
    %v2824 = vrot.slane %v2369, %v2823
    %v2825 = vsel %vm2723, %v2824, %v2820
    %v2826 = vlaneseq
    %v2827 = vshrl.u32 %v2826, 7
    %v2828 = vsub.s32 %v2725, %v2827
    %v2829 = vrot.slane %v2372, %v2828
    %v2830 = vsel %vm2730, %v2829, %v2825
    %v2831 = vlaneseq
    %v2832 = vshrl.u32 %v2831, 7
    %v2833 = vsub.s32 %v2732, %v2832
    %v2834 = vrot.slane %v2375, %v2833
    %v2835 = vsel %vm2737, %v2834, %v2830
    %v2836 = vlaneseq
    %v2837 = vshrl.u32 %v2836, 7
    %v2838 = vsub.s32 %v2739, %v2837
    %v2839 = vrot.slane %v2378, %v2838
    %v2840 = vsel %vm2744, %v2839, %v2835
    %v2841 = vlaneseq
    %v2842 = vshrl.u32 %v2841, 7
    %v2843 = vsub.s32 %v2746, %v2842
    %v2844 = vrot.slane %v2381, %v2843
    %v2845 = vsel %vm2751, %v2844, %v2840
    %v2846 = vlaneseq
    %v2847 = vshrl.u32 %v2846, 7
    %v2848 = vsub.s32 %v2753, %v2847
    %v2849 = vrot.slane %v2384, %v2848
    %v2850 = vsel %vm2758, %v2849, %v2845
    %v2851 = vlaneseq
    %v2852 = vshrl.u32 %v2851, 7
    %v2853 = vsub.s32 %v2760, %v2852
    %v2854 = vrot.slane %v2387, %v2853
    %v2855 = vsel %vm2765, %v2854, %v2850
    %v2856 = vlaneseq
    %v2857 = vshrl.u32 %v2856, 7
    %v2858 = vsub.s32 %v2767, %v2857
    %v2859 = vrot.slane %v2390, %v2858
    %v2860 = vsel %vm2772, %v2859, %v2855
    %v2861 = vlaneseq
    %v2862 = vshrl.u32 %v2861, 7
    %v2863 = vsub.s32 %v2774, %v2862
    %v2864 = vrot.slane %v2393, %v2863
    %v2865 = vsel %vm2779, %v2864, %v2860
    %v2866 = vlaneseq
    %v2867 = vshrl.u32 %v2866, 7
    %v2868 = vsub.s32 %v2781, %v2867
    %v2869 = vrot.slane %v2396, %v2868
    %v2870 = vsel %vm2786, %v2869, %v2865
    %v2871 = vlaneseq
    %v2872 = vshrl.u32 %v2871, 7
    %v2873 = vsub.s32 %v2788, %v2872
    %v2874 = vrot.slane %v2399, %v2873
    %v2875 = vsel %vm2793, %v2874, %v2870
    %v2876 = vlaneseq
    %v2877 = vshrl.u32 %v2876, 7
    %v2878 = vsub.s32 %v2795, %v2877
    %v2879 = vrot.slane %v2402, %v2878
    %v2880 = vsel %vm2800, %v2879, %v2875
    %v2881 = vlaneseq
    %v2882 = vshrl.u32 %v2881, 7
    %v2883 = vsub.s32 %v2692, %v2882
    %v2884 = vrot.slane %v2405, %v2883
    %v2885 = vlaneseq
    %v2886 = vshrl.u32 %v2885, 7
    %v2887 = vsub.s32 %v2697, %v2886
    %v2888 = vrot.slane %v2408, %v2887
    %v2889 = vsel %vm2702, %v2888, %v2884
    %v2890 = vlaneseq
    %v2891 = vshrl.u32 %v2890, 7
    %v2892 = vsub.s32 %v2704, %v2891
    %v2893 = vrot.slane %v2411, %v2892
    %v2894 = vsel %vm2709, %v2893, %v2889
    %v2895 = vlaneseq
    %v2896 = vshrl.u32 %v2895, 7
    %v2897 = vsub.s32 %v2711, %v2896
    %v2898 = vrot.slane %v2414, %v2897
    %v2899 = vsel %vm2716, %v2898, %v2894
    %v2900 = vlaneseq
    %v2901 = vshrl.u32 %v2900, 7
    %v2902 = vsub.s32 %v2718, %v2901
    %v2903 = vrot.slane %v2417, %v2902
    %v2904 = vsel %vm2723, %v2903, %v2899
    %v2905 = vlaneseq
    %v2906 = vshrl.u32 %v2905, 7
    %v2907 = vsub.s32 %v2725, %v2906
    %v2908 = vrot.slane %v2420, %v2907
    %v2909 = vsel %vm2730, %v2908, %v2904
    %v2910 = vlaneseq
    %v2911 = vshrl.u32 %v2910, 7
    %v2912 = vsub.s32 %v2732, %v2911
    %v2913 = vrot.slane %v2423, %v2912
    %v2914 = vsel %vm2737, %v2913, %v2909
    %v2915 = vlaneseq
    %v2916 = vshrl.u32 %v2915, 7
    %v2917 = vsub.s32 %v2739, %v2916
    %v2918 = vrot.slane %v2426, %v2917
    %v2919 = vsel %vm2744, %v2918, %v2914
    %v2920 = vlaneseq
    %v2921 = vshrl.u32 %v2920, 7
    %v2922 = vsub.s32 %v2746, %v2921
    %v2923 = vrot.slane %v2429, %v2922
    %v2924 = vsel %vm2751, %v2923, %v2919
    %v2925 = vlaneseq
    %v2926 = vshrl.u32 %v2925, 7
    %v2927 = vsub.s32 %v2753, %v2926
    %v2928 = vrot.slane %v2432, %v2927
    %v2929 = vsel %vm2758, %v2928, %v2924
    %v2930 = vlaneseq
    %v2931 = vshrl.u32 %v2930, 7
    %v2932 = vsub.s32 %v2760, %v2931
    %v2933 = vrot.slane %v2435, %v2932
    %v2934 = vsel %vm2765, %v2933, %v2929
    %v2935 = vlaneseq
    %v2936 = vshrl.u32 %v2935, 7
    %v2937 = vsub.s32 %v2767, %v2936
    %v2938 = vrot.slane %v2438, %v2937
    %v2939 = vsel %vm2772, %v2938, %v2934
    %v2940 = vlaneseq
    %v2941 = vshrl.u32 %v2940, 7
    %v2942 = vsub.s32 %v2774, %v2941
    %v2943 = vrot.slane %v2441, %v2942
    %v2944 = vsel %vm2779, %v2943, %v2939
    %v2945 = vlaneseq
    %v2946 = vshrl.u32 %v2945, 7
    %v2947 = vsub.s32 %v2781, %v2946
    %v2948 = vrot.slane %v2444, %v2947
    %v2949 = vsel %vm2786, %v2948, %v2944
    %v2950 = vlaneseq
    %v2951 = vshrl.u32 %v2950, 7
    %v2952 = vsub.s32 %v2788, %v2951
    %v2953 = vrot.slane %v2447, %v2952
    %v2954 = vsel %vm2793, %v2953, %v2949
    %v2955 = vlaneseq
    %v2956 = vshrl.u32 %v2955, 7
    %v2957 = vsub.s32 %v2795, %v2956
    %v2958 = vrot.slane %v2450, %v2957
    %v2959 = vsel %vm2800, %v2958, %v2954
    %v2960 = vlaneseq
    %v2961 = vshrl.u32 %v2960, 7
    %v2962 = vsub.s32 %v2692, %v2961
    %v2963 = vrot.slane %v2453, %v2962
    %v2964 = vlaneseq
    %v2965 = vshrl.u32 %v2964, 7
    %v2966 = vsub.s32 %v2697, %v2965
    %v2967 = vrot.slane %v2456, %v2966
    %v2968 = vsel %vm2702, %v2967, %v2963
    %v2969 = vlaneseq
    %v2970 = vshrl.u32 %v2969, 7
    %v2971 = vsub.s32 %v2704, %v2970
    %v2972 = vrot.slane %v2459, %v2971
    %v2973 = vsel %vm2709, %v2972, %v2968
    %v2974 = vlaneseq
    %v2975 = vshrl.u32 %v2974, 7
    %v2976 = vsub.s32 %v2711, %v2975
    %v2977 = vrot.slane %v2462, %v2976
    %v2978 = vsel %vm2716, %v2977, %v2973
    %v2979 = vlaneseq
    %v2980 = vshrl.u32 %v2979, 7
    %v2981 = vsub.s32 %v2718, %v2980
    %v2982 = vrot.slane %v2465, %v2981
    %v2983 = vsel %vm2723, %v2982, %v2978
    %v2984 = vlaneseq
    %v2985 = vshrl.u32 %v2984, 7
    %v2986 = vsub.s32 %v2725, %v2985
    %v2987 = vrot.slane %v2468, %v2986
    %v2988 = vsel %vm2730, %v2987, %v2983
    %v2989 = vlaneseq
    %v2990 = vshrl.u32 %v2989, 7
    %v2991 = vsub.s32 %v2732, %v2990
    %v2992 = vrot.slane %v2471, %v2991
    %v2993 = vsel %vm2737, %v2992, %v2988
    %v2994 = vlaneseq
    %v2995 = vshrl.u32 %v2994, 7
    %v2996 = vsub.s32 %v2739, %v2995
    %v2997 = vrot.slane %v2474, %v2996
    %v2998 = vsel %vm2744, %v2997, %v2993
    %v2999 = vlaneseq
    %v3000 = vshrl.u32 %v2999, 7
    %v3001 = vsub.s32 %v2746, %v3000
    %v3002 = vrot.slane %v2477, %v3001
    %v3003 = vsel %vm2751, %v3002, %v2998
    %v3004 = vlaneseq
    %v3005 = vshrl.u32 %v3004, 7
    %v3006 = vsub.s32 %v2753, %v3005
    %v3007 = vrot.slane %v2480, %v3006
    %v3008 = vsel %vm2758, %v3007, %v3003
    %v3009 = vlaneseq
    %v3010 = vshrl.u32 %v3009, 7
    %v3011 = vsub.s32 %v2760, %v3010
    %v3012 = vrot.slane %v2483, %v3011
    %v3013 = vsel %vm2765, %v3012, %v3008
    %v3014 = vlaneseq
    %v3015 = vshrl.u32 %v3014, 7
    %v3016 = vsub.s32 %v2767, %v3015
    %v3017 = vrot.slane %v2486, %v3016
    %v3018 = vsel %vm2772, %v3017, %v3013
    %v3019 = vlaneseq
    %v3020 = vshrl.u32 %v3019, 7
    %v3021 = vsub.s32 %v2774, %v3020
    %v3022 = vrot.slane %v2489, %v3021
    %v3023 = vsel %vm2779, %v3022, %v3018
    %v3024 = vlaneseq
    %v3025 = vshrl.u32 %v3024, 7
    %v3026 = vsub.s32 %v2781, %v3025
    %v3027 = vrot.slane %v2492, %v3026
    %v3028 = vsel %vm2786, %v3027, %v3023
    %v3029 = vlaneseq
    %v3030 = vshrl.u32 %v3029, 7
    %v3031 = vsub.s32 %v2788, %v3030
    %v3032 = vrot.slane %v2495, %v3031
    %v3033 = vsel %vm2793, %v3032, %v3028
    %v3034 = vlaneseq
    %v3035 = vshrl.u32 %v3034, 7
    %v3036 = vsub.s32 %v2795, %v3035
    %v3037 = vrot.slane %v2498, %v3036
    %v3038 = vsel %vm2800, %v3037, %v3033
    %v3039 = vlaneseq
    %v3040 = vshrl.u32 %v3039, 7
    %v3041 = vsub.s32 %v2692, %v3040
    %v3042 = vrot.slane %v2501, %v3041
    %v3043 = vlaneseq
    %v3044 = vshrl.u32 %v3043, 7
    %v3045 = vsub.s32 %v2697, %v3044
    %v3046 = vrot.slane %v2504, %v3045
    %v3047 = vsel %vm2702, %v3046, %v3042
    %v3048 = vlaneseq
    %v3049 = vshrl.u32 %v3048, 7
    %v3050 = vsub.s32 %v2704, %v3049
    %v3051 = vrot.slane %v2507, %v3050
    %v3052 = vsel %vm2709, %v3051, %v3047
    %v3053 = vlaneseq
    %v3054 = vshrl.u32 %v3053, 7
    %v3055 = vsub.s32 %v2711, %v3054
    %v3056 = vrot.slane %v2510, %v3055
    %v3057 = vsel %vm2716, %v3056, %v3052
    %v3058 = vlaneseq
    %v3059 = vshrl.u32 %v3058, 7
    %v3060 = vsub.s32 %v2718, %v3059
    %v3061 = vrot.slane %v2513, %v3060
    %v3062 = vsel %vm2723, %v3061, %v3057
    %v3063 = vlaneseq
    %v3064 = vshrl.u32 %v3063, 7
    %v3065 = vsub.s32 %v2725, %v3064
    %v3066 = vrot.slane %v2516, %v3065
    %v3067 = vsel %vm2730, %v3066, %v3062
    %v3068 = vlaneseq
    %v3069 = vshrl.u32 %v3068, 7
    %v3070 = vsub.s32 %v2732, %v3069
    %v3071 = vrot.slane %v2519, %v3070
    %v3072 = vsel %vm2737, %v3071, %v3067
    %v3073 = vlaneseq
    %v3074 = vshrl.u32 %v3073, 7
    %v3075 = vsub.s32 %v2739, %v3074
    %v3076 = vrot.slane %v2522, %v3075
    %v3077 = vsel %vm2744, %v3076, %v3072
    %v3078 = vlaneseq
    %v3079 = vshrl.u32 %v3078, 7
    %v3080 = vsub.s32 %v2746, %v3079
    %v3081 = vrot.slane %v2525, %v3080
    %v3082 = vsel %vm2751, %v3081, %v3077
    %v3083 = vlaneseq
    %v3084 = vshrl.u32 %v3083, 7
    %v3085 = vsub.s32 %v2753, %v3084
    %v3086 = vrot.slane %v2528, %v3085
    %v3087 = vsel %vm2758, %v3086, %v3082
    %v3088 = vlaneseq
    %v3089 = vshrl.u32 %v3088, 7
    %v3090 = vsub.s32 %v2760, %v3089
    %v3091 = vrot.slane %v2531, %v3090
    %v3092 = vsel %vm2765, %v3091, %v3087
    %v3093 = vlaneseq
    %v3094 = vshrl.u32 %v3093, 7
    %v3095 = vsub.s32 %v2767, %v3094
    %v3096 = vrot.slane %v2534, %v3095
    %v3097 = vsel %vm2772, %v3096, %v3092
    %v3098 = vlaneseq
    %v3099 = vshrl.u32 %v3098, 7
    %v3100 = vsub.s32 %v2774, %v3099
    %v3101 = vrot.slane %v2537, %v3100
    %v3102 = vsel %vm2779, %v3101, %v3097
    %v3103 = vlaneseq
    %v3104 = vshrl.u32 %v3103, 7
    %v3105 = vsub.s32 %v2781, %v3104
    %v3106 = vrot.slane %v2540, %v3105
    %v3107 = vsel %vm2786, %v3106, %v3102
    %v3108 = vlaneseq
    %v3109 = vshrl.u32 %v3108, 7
    %v3110 = vsub.s32 %v2788, %v3109
    %v3111 = vrot.slane %v2543, %v3110
    %v3112 = vsel %vm2793, %v3111, %v3107
    %v3113 = vlaneseq
    %v3114 = vshrl.u32 %v3113, 7
    %v3115 = vsub.s32 %v2795, %v3114
    %v3116 = vrot.slane %v2546, %v3115
    %v3117 = vsel %vm2800, %v3116, %v3112
    %v3118 = vlaneseq
    %v3119 = vshrl.u32 %v3118, 7
    %v3120 = vsub.s32 %v2692, %v3119
    %v3121 = vrot.slane %v2549, %v3120
    %v3122 = vlaneseq
    %v3123 = vshrl.u32 %v3122, 7
    %v3124 = vsub.s32 %v2697, %v3123
    %v3125 = vrot.slane %v2552, %v3124
    %v3126 = vsel %vm2702, %v3125, %v3121
    %v3127 = vlaneseq
    %v3128 = vshrl.u32 %v3127, 7
    %v3129 = vsub.s32 %v2704, %v3128
    %v3130 = vrot.slane %v2555, %v3129
    %v3131 = vsel %vm2709, %v3130, %v3126
    %v3132 = vlaneseq
    %v3133 = vshrl.u32 %v3132, 7
    %v3134 = vsub.s32 %v2711, %v3133
    %v3135 = vrot.slane %v2558, %v3134
    %v3136 = vsel %vm2716, %v3135, %v3131
    %v3137 = vlaneseq
    %v3138 = vshrl.u32 %v3137, 7
    %v3139 = vsub.s32 %v2718, %v3138
    %v3140 = vrot.slane %v2561, %v3139
    %v3141 = vsel %vm2723, %v3140, %v3136
    %v3142 = vlaneseq
    %v3143 = vshrl.u32 %v3142, 7
    %v3144 = vsub.s32 %v2725, %v3143
    %v3145 = vrot.slane %v2564, %v3144
    %v3146 = vsel %vm2730, %v3145, %v3141
    %v3147 = vlaneseq
    %v3148 = vshrl.u32 %v3147, 7
    %v3149 = vsub.s32 %v2732, %v3148
    %v3150 = vrot.slane %v2567, %v3149
    %v3151 = vsel %vm2737, %v3150, %v3146
    %v3152 = vlaneseq
    %v3153 = vshrl.u32 %v3152, 7
    %v3154 = vsub.s32 %v2739, %v3153
    %v3155 = vrot.slane %v2570, %v3154
    %v3156 = vsel %vm2744, %v3155, %v3151
    %v3157 = vlaneseq
    %v3158 = vshrl.u32 %v3157, 7
    %v3159 = vsub.s32 %v2746, %v3158
    %v3160 = vrot.slane %v2573, %v3159
    %v3161 = vsel %vm2751, %v3160, %v3156
    %v3162 = vlaneseq
    %v3163 = vshrl.u32 %v3162, 7
    %v3164 = vsub.s32 %v2753, %v3163
    %v3165 = vrot.slane %v2576, %v3164
    %v3166 = vsel %vm2758, %v3165, %v3161
    %v3167 = vlaneseq
    %v3168 = vshrl.u32 %v3167, 7
    %v3169 = vsub.s32 %v2760, %v3168
    %v3170 = vrot.slane %v2579, %v3169
    %v3171 = vsel %vm2765, %v3170, %v3166
    %v3172 = vlaneseq
    %v3173 = vshrl.u32 %v3172, 7
    %v3174 = vsub.s32 %v2767, %v3173
    %v3175 = vrot.slane %v2582, %v3174
    %v3176 = vsel %vm2772, %v3175, %v3171
    %v3177 = vlaneseq
    %v3178 = vshrl.u32 %v3177, 7
    %v3179 = vsub.s32 %v2774, %v3178
    %v3180 = vrot.slane %v2585, %v3179
    %v3181 = vsel %vm2779, %v3180, %v3176
    %v3182 = vlaneseq
    %v3183 = vshrl.u32 %v3182, 7
    %v3184 = vsub.s32 %v2781, %v3183
    %v3185 = vrot.slane %v2588, %v3184
    %v3186 = vsel %vm2786, %v3185, %v3181
    %v3187 = vlaneseq
    %v3188 = vshrl.u32 %v3187, 7
    %v3189 = vsub.s32 %v2788, %v3188
    %v3190 = vrot.slane %v2591, %v3189
    %v3191 = vsel %vm2793, %v3190, %v3186
    %v3192 = vlaneseq
    %v3193 = vshrl.u32 %v3192, 7
    %v3194 = vsub.s32 %v2795, %v3193
    %v3195 = vrot.slane %v2594, %v3194
    %v3196 = vsel %vm2800, %v3195, %v3191
    %v3197 = vlaneseq
    %v3198 = vshrl.u32 %v3197, 7
    %v3199 = vsub.s32 %v2692, %v3198
    %v3200 = vrot.slane %v2597, %v3199
    %v3201 = vlaneseq
    %v3202 = vshrl.u32 %v3201, 7
    %v3203 = vsub.s32 %v2697, %v3202
    %v3204 = vrot.slane %v2600, %v3203
    %v3205 = vsel %vm2702, %v3204, %v3200
    %v3206 = vlaneseq
    %v3207 = vshrl.u32 %v3206, 7
    %v3208 = vsub.s32 %v2704, %v3207
    %v3209 = vrot.slane %v2603, %v3208
    %v3210 = vsel %vm2709, %v3209, %v3205
    %v3211 = vlaneseq
    %v3212 = vshrl.u32 %v3211, 7
    %v3213 = vsub.s32 %v2711, %v3212
    %v3214 = vrot.slane %v2606, %v3213
    %v3215 = vsel %vm2716, %v3214, %v3210
    %v3216 = vlaneseq
    %v3217 = vshrl.u32 %v3216, 7
    %v3218 = vsub.s32 %v2718, %v3217
    %v3219 = vrot.slane %v2609, %v3218
    %v3220 = vsel %vm2723, %v3219, %v3215
    %v3221 = vlaneseq
    %v3222 = vshrl.u32 %v3221, 7
    %v3223 = vsub.s32 %v2725, %v3222
    %v3224 = vrot.slane %v2612, %v3223
    %v3225 = vsel %vm2730, %v3224, %v3220
    %v3226 = vlaneseq
    %v3227 = vshrl.u32 %v3226, 7
    %v3228 = vsub.s32 %v2732, %v3227
    %v3229 = vrot.slane %v2615, %v3228
    %v3230 = vsel %vm2737, %v3229, %v3225
    %v3231 = vlaneseq
    %v3232 = vshrl.u32 %v3231, 7
    %v3233 = vsub.s32 %v2739, %v3232
    %v3234 = vrot.slane %v2618, %v3233
    %v3235 = vsel %vm2744, %v3234, %v3230
    %v3236 = vlaneseq
    %v3237 = vshrl.u32 %v3236, 7
    %v3238 = vsub.s32 %v2746, %v3237
    %v3239 = vrot.slane %v2621, %v3238
    %v3240 = vsel %vm2751, %v3239, %v3235
    %v3241 = vlaneseq
    %v3242 = vshrl.u32 %v3241, 7
    %v3243 = vsub.s32 %v2753, %v3242
    %v3244 = vrot.slane %v2624, %v3243
    %v3245 = vsel %vm2758, %v3244, %v3240
    %v3246 = vlaneseq
    %v3247 = vshrl.u32 %v3246, 7
    %v3248 = vsub.s32 %v2760, %v3247
    %v3249 = vrot.slane %v2627, %v3248
    %v3250 = vsel %vm2765, %v3249, %v3245
    %v3251 = vlaneseq
    %v3252 = vshrl.u32 %v3251, 7
    %v3253 = vsub.s32 %v2767, %v3252
    %v3254 = vrot.slane %v2630, %v3253
    %v3255 = vsel %vm2772, %v3254, %v3250
    %v3256 = vlaneseq
    %v3257 = vshrl.u32 %v3256, 7
    %v3258 = vsub.s32 %v2774, %v3257
    %v3259 = vrot.slane %v2633, %v3258
    %v3260 = vsel %vm2779, %v3259, %v3255
    %v3261 = vlaneseq
    %v3262 = vshrl.u32 %v3261, 7
    %v3263 = vsub.s32 %v2781, %v3262
    %v3264 = vrot.slane %v2636, %v3263
    %v3265 = vsel %vm2786, %v3264, %v3260
    %v3266 = vlaneseq
    %v3267 = vshrl.u32 %v3266, 7
    %v3268 = vsub.s32 %v2788, %v3267
    %v3269 = vrot.slane %v2639, %v3268
    %v3270 = vsel %vm2793, %v3269, %v3265
    %v3271 = vlaneseq
    %v3272 = vshrl.u32 %v3271, 7
    %v3273 = vsub.s32 %v2795, %v3272
    %v3274 = vrot.slane %v2642, %v3273
    %v3275 = vsel %vm2800, %v3274, %v3270
    %v3276 = vlaneseq
    %v3277 = vshrl.u32 %v3276, 7
    %v3278 = vsub.s32 %v2692, %v3277
    %v3279 = vrot.slane %v2645, %v3278
    %v3280 = vlaneseq
    %v3281 = vshrl.u32 %v3280, 7
    %v3282 = vsub.s32 %v2697, %v3281
    %v3283 = vrot.slane %v2648, %v3282
    %v3284 = vsel %vm2702, %v3283, %v3279
    %v3285 = vlaneseq
    %v3286 = vshrl.u32 %v3285, 7
    %v3287 = vsub.s32 %v2704, %v3286
    %v3288 = vrot.slane %v2651, %v3287
    %v3289 = vsel %vm2709, %v3288, %v3284
    %v3290 = vlaneseq
    %v3291 = vshrl.u32 %v3290, 7
    %v3292 = vsub.s32 %v2711, %v3291
    %v3293 = vrot.slane %v2654, %v3292
    %v3294 = vsel %vm2716, %v3293, %v3289
    %v3295 = vlaneseq
    %v3296 = vshrl.u32 %v3295, 7
    %v3297 = vsub.s32 %v2718, %v3296
    %v3298 = vrot.slane %v2657, %v3297
    %v3299 = vsel %vm2723, %v3298, %v3294
    %v3300 = vlaneseq
    %v3301 = vshrl.u32 %v3300, 7
    %v3302 = vsub.s32 %v2725, %v3301
    %v3303 = vrot.slane %v2660, %v3302
    %v3304 = vsel %vm2730, %v3303, %v3299
    %v3305 = vlaneseq
    %v3306 = vshrl.u32 %v3305, 7
    %v3307 = vsub.s32 %v2732, %v3306
    %v3308 = vrot.slane %v2663, %v3307
    %v3309 = vsel %vm2737, %v3308, %v3304
    %v3310 = vlaneseq
    %v3311 = vshrl.u32 %v3310, 7
    %v3312 = vsub.s32 %v2739, %v3311
    %v3313 = vrot.slane %v2666, %v3312
    %v3314 = vsel %vm2744, %v3313, %v3309
    %v3315 = vlaneseq
    %v3316 = vshrl.u32 %v3315, 7
    %v3317 = vsub.s32 %v2746, %v3316
    %v3318 = vrot.slane %v2669, %v3317
    %v3319 = vsel %vm2751, %v3318, %v3314
    %v3320 = vlaneseq
    %v3321 = vshrl.u32 %v3320, 7
    %v3322 = vsub.s32 %v2753, %v3321
    %v3323 = vrot.slane %v2672, %v3322
    %v3324 = vsel %vm2758, %v3323, %v3319
    %v3325 = vlaneseq
    %v3326 = vshrl.u32 %v3325, 7
    %v3327 = vsub.s32 %v2760, %v3326
    %v3328 = vrot.slane %v2675, %v3327
    %v3329 = vsel %vm2765, %v3328, %v3324
    %v3330 = vlaneseq
    %v3331 = vshrl.u32 %v3330, 7
    %v3332 = vsub.s32 %v2767, %v3331
    %v3333 = vrot.slane %v2678, %v3332
    %v3334 = vsel %vm2772, %v3333, %v3329
    %v3335 = vlaneseq
    %v3336 = vshrl.u32 %v3335, 7
    %v3337 = vsub.s32 %v2774, %v3336
    %v3338 = vrot.slane %v2681, %v3337
    %v3339 = vsel %vm2779, %v3338, %v3334
    %v3340 = vlaneseq
    %v3341 = vshrl.u32 %v3340, 7
    %v3342 = vsub.s32 %v2781, %v3341
    %v3343 = vrot.slane %v2684, %v3342
    %v3344 = vsel %vm2786, %v3343, %v3339
    %v3345 = vlaneseq
    %v3346 = vshrl.u32 %v3345, 7
    %v3347 = vsub.s32 %v2788, %v3346
    %v3348 = vrot.slane %v2687, %v3347
    %v3349 = vsel %vm2793, %v3348, %v3344
    %v3350 = vlaneseq
    %v3351 = vshrl.u32 %v3350, 7
    %v3352 = vsub.s32 %v2795, %v3351
    %v3353 = vrot.slane %v2690, %v3352
    %v3354 = vsel %vm2800, %v3353, %v3349
    %vm3355 = vcmask 1041409
    %v3356 = vsel %vm3355, %v3117, %v2801
    %v3357 = vsel %vm3355, %v3196, %v2880
    %v3358 = vsel %vm3355, %v3275, %v2959
    %v3359 = vsel %vm3355, %v3354, %v3038
    %v3364 = vadd.f32 %v2162, %v3356
    %v3365 = vadd.f32 %v2166, %v3357
    %v3366 = vadd.f32 %v2170, %v3358
    %v3367 = vadd.f32 %v2174, %v3359
    %v3368 = vlaneseq
    %v3369 = vshrl.u32 %v3368, 7
    %v3370 = vsub.s32 1, %v3369
    %v3371 = vrot.slane %v1659, %v3370
    %v3372 = vlaneseq
    %v3373 = vshrl.u32 %v3372, 7
    %v3374 = vsub.s32 1, %v3373
    %v3375 = vrot.slane %v1660, %v3374
    %v3376 = vlaneseq
    %v3377 = vshrl.u32 %v3376, 7
    %v3378 = vsub.s32 1, %v3377
    %v3379 = vrot.slane %v1661, %v3378
    %v3380 = vlaneseq
    %v3381 = vshrl.u32 %v3380, 7
    %v3382 = vsub.s32 5, %v3381
    %v3383 = vrot.slane %v1661, %v3382
    %v3384 = vlaneseq
    %v3385 = vshrl.u32 %v3384, 7
    %v3386 = vsub.s32 1, %v3385
    %v3387 = vrot.slane %v1662, %v3386
    %v3388 = vlaneseq
    %v3389 = vshrl.u32 %v3388, 7
    %v3390 = vsub.s32 5, %v3389
    %v3391 = vrot.slane %v1662, %v3390
    %v3396 = vlaneseq
    %v3397 = vshrl.u32 %v3396, 7
    %v3398 = vsub.s32 1, %v3397
    %v3399 = vrot.slane %v3379, %v3398
    %v3400 = vlaneseq
    %v3401 = vshrl.u32 %v3400, 7
    %v3402 = vsub.s32 1, %v3401
    %v3403 = vrot.slane %v3383, %v3402
    %v3404 = vlaneseq
    %v3405 = vshrl.u32 %v3404, 7
    %v3406 = vsub.s32 1, %v3405
    %v3407 = vrot.slane %v3387, %v3406
    %v3408 = vlaneseq
    %v3409 = vshrl.u32 %v3408, 7
    %v3410 = vsub.s32 1, %v3409
    %v3411 = vrot.slane %v3391, %v3410
    %3417 = vbcast.lane.b32.xlu0 %v3399, 256
    %v3418 = vpop.permute.xlu0 %3417
    %s3420 = sor.u32 256, 8
    %3421 = vbcast.lane.b32.xlu0 %v3399, %s3420
    %v3422 = vpop.permute.xlu0 %3421
    %s3424 = sor.u32 256, 16
    %3425 = vbcast.lane.b32.xlu0 %v3399, %s3424
    %v3426 = vpop.permute.xlu0 %3425
    %s3428 = sor.u32 256, 24
    %3429 = vbcast.lane.b32.xlu0 %v3399, %s3428
    %v3430 = vpop.permute.xlu0 %3429
    %s3432 = sor.u32 256, 32
    %3433 = vbcast.lane.b32.xlu0 %v3399, %s3432
    %v3434 = vpop.permute.xlu0 %3433
    %s3436 = sor.u32 256, 40
    %3437 = vbcast.lane.b32.xlu0 %v3399, %s3436
    %v3438 = vpop.permute.xlu0 %3437
    %s3440 = sor.u32 256, 48
    %3441 = vbcast.lane.b32.xlu0 %v3399, %s3440
    %v3442 = vpop.permute.xlu0 %3441
    %s3444 = sor.u32 256, 56
    %3445 = vbcast.lane.b32.xlu0 %v3399, %s3444
    %v3446 = vpop.permute.xlu0 %3445
    %s3448 = sor.u32 256, 64
    %3449 = vbcast.lane.b32.xlu0 %v3399, %s3448
    %v3450 = vpop.permute.xlu0 %3449
    %s3452 = sor.u32 256, 72
    %3453 = vbcast.lane.b32.xlu0 %v3399, %s3452
    %v3454 = vpop.permute.xlu0 %3453
    %s3456 = sor.u32 256, 80
    %3457 = vbcast.lane.b32.xlu0 %v3399, %s3456
    %v3458 = vpop.permute.xlu0 %3457
    %s3460 = sor.u32 256, 88
    %3461 = vbcast.lane.b32.xlu0 %v3399, %s3460
    %v3462 = vpop.permute.xlu0 %3461
    %s3464 = sor.u32 256, 96
    %3465 = vbcast.lane.b32.xlu0 %v3399, %s3464
    %v3466 = vpop.permute.xlu0 %3465
    %s3468 = sor.u32 256, 104
    %3469 = vbcast.lane.b32.xlu0 %v3399, %s3468
    %v3470 = vpop.permute.xlu0 %3469
    %s3472 = sor.u32 256, 112
    %3473 = vbcast.lane.b32.xlu0 %v3399, %s3472
    %v3474 = vpop.permute.xlu0 %3473
    %s3476 = sor.u32 256, 120
    %3477 = vbcast.lane.b32.xlu0 %v3399, %s3476
    %v3478 = vpop.permute.xlu0 %3477
    %3480 = vbcast.lane.b32.xlu0 %v3403, 256
    %v3481 = vpop.permute.xlu0 %3480
    %s3483 = sor.u32 256, 8
    %3484 = vbcast.lane.b32.xlu0 %v3403, %s3483
    %v3485 = vpop.permute.xlu0 %3484
    %s3487 = sor.u32 256, 16
    %3488 = vbcast.lane.b32.xlu0 %v3403, %s3487
    %v3489 = vpop.permute.xlu0 %3488
    %s3491 = sor.u32 256, 24
    %3492 = vbcast.lane.b32.xlu0 %v3403, %s3491
    %v3493 = vpop.permute.xlu0 %3492
    %s3495 = sor.u32 256, 32
    %3496 = vbcast.lane.b32.xlu0 %v3403, %s3495
    %v3497 = vpop.permute.xlu0 %3496
    %s3499 = sor.u32 256, 40
    %3500 = vbcast.lane.b32.xlu0 %v3403, %s3499
    %v3501 = vpop.permute.xlu0 %3500
    %s3503 = sor.u32 256, 48
    %3504 = vbcast.lane.b32.xlu0 %v3403, %s3503
    %v3505 = vpop.permute.xlu0 %3504
    %s3507 = sor.u32 256, 56
    %3508 = vbcast.lane.b32.xlu0 %v3403, %s3507
    %v3509 = vpop.permute.xlu0 %3508
    %s3511 = sor.u32 256, 64
    %3512 = vbcast.lane.b32.xlu0 %v3403, %s3511
    %v3513 = vpop.permute.xlu0 %3512
    %s3515 = sor.u32 256, 72
    %3516 = vbcast.lane.b32.xlu0 %v3403, %s3515
    %v3517 = vpop.permute.xlu0 %3516
    %s3519 = sor.u32 256, 80
    %3520 = vbcast.lane.b32.xlu0 %v3403, %s3519
    %v3521 = vpop.permute.xlu0 %3520
    %s3523 = sor.u32 256, 88
    %3524 = vbcast.lane.b32.xlu0 %v3403, %s3523
    %v3525 = vpop.permute.xlu0 %3524
    %s3527 = sor.u32 256, 96
    %3528 = vbcast.lane.b32.xlu0 %v3403, %s3527
    %v3529 = vpop.permute.xlu0 %3528
    %s3531 = sor.u32 256, 104
    %3532 = vbcast.lane.b32.xlu0 %v3403, %s3531
    %v3533 = vpop.permute.xlu0 %3532
    %s3535 = sor.u32 256, 112
    %3536 = vbcast.lane.b32.xlu0 %v3403, %s3535
    %v3537 = vpop.permute.xlu0 %3536
    %s3539 = sor.u32 256, 120
    %3540 = vbcast.lane.b32.xlu0 %v3403, %s3539
    %v3541 = vpop.permute.xlu0 %3540
    %3543 = vbcast.lane.b32.xlu0 %v3407, 256
    %v3544 = vpop.permute.xlu0 %3543
    %s3546 = sor.u32 256, 8
    %3547 = vbcast.lane.b32.xlu0 %v3407, %s3546
    %v3548 = vpop.permute.xlu0 %3547
    %s3550 = sor.u32 256, 16
    %3551 = vbcast.lane.b32.xlu0 %v3407, %s3550
    %v3552 = vpop.permute.xlu0 %3551
    %s3554 = sor.u32 256, 24
    %3555 = vbcast.lane.b32.xlu0 %v3407, %s3554
    %v3556 = vpop.permute.xlu0 %3555
    %s3558 = sor.u32 256, 32
    %3559 = vbcast.lane.b32.xlu0 %v3407, %s3558
    %v3560 = vpop.permute.xlu0 %3559
    %s3562 = sor.u32 256, 40
    %3563 = vbcast.lane.b32.xlu0 %v3407, %s3562
    %v3564 = vpop.permute.xlu0 %3563
    %s3566 = sor.u32 256, 48
    %3567 = vbcast.lane.b32.xlu0 %v3407, %s3566
    %v3568 = vpop.permute.xlu0 %3567
    %s3570 = sor.u32 256, 56
    %3571 = vbcast.lane.b32.xlu0 %v3407, %s3570
    %v3572 = vpop.permute.xlu0 %3571
    %s3574 = sor.u32 256, 64
    %3575 = vbcast.lane.b32.xlu0 %v3407, %s3574
    %v3576 = vpop.permute.xlu0 %3575
    %s3578 = sor.u32 256, 72
    %3579 = vbcast.lane.b32.xlu0 %v3407, %s3578
    %v3580 = vpop.permute.xlu0 %3579
    %s3582 = sor.u32 256, 80
    %3583 = vbcast.lane.b32.xlu0 %v3407, %s3582
    %v3584 = vpop.permute.xlu0 %3583
    %s3586 = sor.u32 256, 88
    %3587 = vbcast.lane.b32.xlu0 %v3407, %s3586
    %v3588 = vpop.permute.xlu0 %3587
    %s3590 = sor.u32 256, 96
    %3591 = vbcast.lane.b32.xlu0 %v3407, %s3590
    %v3592 = vpop.permute.xlu0 %3591
    %s3594 = sor.u32 256, 104
    %3595 = vbcast.lane.b32.xlu0 %v3407, %s3594
    %v3596 = vpop.permute.xlu0 %3595
    %s3598 = sor.u32 256, 112
    %3599 = vbcast.lane.b32.xlu0 %v3407, %s3598
    %v3600 = vpop.permute.xlu0 %3599
    %s3602 = sor.u32 256, 120
    %3603 = vbcast.lane.b32.xlu0 %v3407, %s3602
    %v3604 = vpop.permute.xlu0 %3603
    %3606 = vbcast.lane.b32.xlu0 %v3411, 256
    %v3607 = vpop.permute.xlu0 %3606
    %s3609 = sor.u32 256, 8
    %3610 = vbcast.lane.b32.xlu0 %v3411, %s3609
    %v3611 = vpop.permute.xlu0 %3610
    %s3613 = sor.u32 256, 16
    %3614 = vbcast.lane.b32.xlu0 %v3411, %s3613
    %v3615 = vpop.permute.xlu0 %3614
    %s3617 = sor.u32 256, 24
    %3618 = vbcast.lane.b32.xlu0 %v3411, %s3617
    %v3619 = vpop.permute.xlu0 %3618
    %s3621 = sor.u32 256, 32
    %3622 = vbcast.lane.b32.xlu0 %v3411, %s3621
    %v3623 = vpop.permute.xlu0 %3622
    %s3625 = sor.u32 256, 40
    %3626 = vbcast.lane.b32.xlu0 %v3411, %s3625
    %v3627 = vpop.permute.xlu0 %3626
    %s3629 = sor.u32 256, 48
    %3630 = vbcast.lane.b32.xlu0 %v3411, %s3629
    %v3631 = vpop.permute.xlu0 %3630
    %s3633 = sor.u32 256, 56
    %3634 = vbcast.lane.b32.xlu0 %v3411, %s3633
    %v3635 = vpop.permute.xlu0 %3634
    %s3637 = sor.u32 256, 64
    %3638 = vbcast.lane.b32.xlu0 %v3411, %s3637
    %v3639 = vpop.permute.xlu0 %3638
    %s3641 = sor.u32 256, 72
    %3642 = vbcast.lane.b32.xlu0 %v3411, %s3641
    %v3643 = vpop.permute.xlu0 %3642
    %s3645 = sor.u32 256, 80
    %3646 = vbcast.lane.b32.xlu0 %v3411, %s3645
    %v3647 = vpop.permute.xlu0 %3646
    %s3649 = sor.u32 256, 88
    %3650 = vbcast.lane.b32.xlu0 %v3411, %s3649
    %v3651 = vpop.permute.xlu0 %3650
    %s3653 = sor.u32 256, 96
    %3654 = vbcast.lane.b32.xlu0 %v3411, %s3653
    %v3655 = vpop.permute.xlu0 %3654
    %s3657 = sor.u32 256, 104
    %3658 = vbcast.lane.b32.xlu0 %v3411, %s3657
    %v3659 = vpop.permute.xlu0 %3658
    %s3661 = sor.u32 256, 112
    %3662 = vbcast.lane.b32.xlu0 %v3411, %s3661
    %v3663 = vpop.permute.xlu0 %3662
    %s3665 = sor.u32 256, 120
    %3666 = vbcast.lane.b32.xlu0 %v3411, %s3665
    %v3667 = vpop.permute.xlu0 %3666
    %v3732 = vmul.f32 %v3371, %v3418
    %v3733 = vmul.f32 %v3371, %v3422
    %v3734 = vmul.f32 %v3371, %v3426
    %v3735 = vmul.f32 %v3371, %v3430
    %v3736 = vmul.f32 %v3371, %v3434
    %v3737 = vmul.f32 %v3371, %v3438
    %v3738 = vmul.f32 %v3371, %v3442
    %v3739 = vmul.f32 %v3371, %v3446
    %v3740 = vmul.f32 %v3371, %v3450
    %v3741 = vmul.f32 %v3371, %v3454
    %v3742 = vmul.f32 %v3371, %v3458
    %v3743 = vmul.f32 %v3371, %v3462
    %v3744 = vmul.f32 %v3371, %v3466
    %v3745 = vmul.f32 %v3371, %v3470
    %v3746 = vmul.f32 %v3371, %v3474
    %v3747 = vmul.f32 %v3371, %v3478
    %v3748 = vmul.f32 %v3371, %v3481
    %v3749 = vmul.f32 %v3371, %v3485
    %v3750 = vmul.f32 %v3371, %v3489
    %v3751 = vmul.f32 %v3371, %v3493
    %v3752 = vmul.f32 %v3371, %v3497
    %v3753 = vmul.f32 %v3371, %v3501
    %v3754 = vmul.f32 %v3371, %v3505
    %v3755 = vmul.f32 %v3371, %v3509
    %v3756 = vmul.f32 %v3371, %v3513
    %v3757 = vmul.f32 %v3371, %v3517
    %v3758 = vmul.f32 %v3371, %v3521
    %v3759 = vmul.f32 %v3371, %v3525
    %v3760 = vmul.f32 %v3371, %v3529
    %v3761 = vmul.f32 %v3371, %v3533
    %v3762 = vmul.f32 %v3371, %v3537
    %v3763 = vmul.f32 %v3371, %v3541
    %v3764 = vmul.f32 %v3371, %v3544
    %v3765 = vmul.f32 %v3371, %v3548
    %v3766 = vmul.f32 %v3371, %v3552
    %v3767 = vmul.f32 %v3371, %v3556
    %v3768 = vmul.f32 %v3371, %v3560
    %v3769 = vmul.f32 %v3371, %v3564
    %v3770 = vmul.f32 %v3371, %v3568
    %v3771 = vmul.f32 %v3371, %v3572
    %v3772 = vmul.f32 %v3371, %v3576
    %v3773 = vmul.f32 %v3371, %v3580
    %v3774 = vmul.f32 %v3371, %v3584
    %v3775 = vmul.f32 %v3371, %v3588
    %v3776 = vmul.f32 %v3371, %v3592
    %v3777 = vmul.f32 %v3371, %v3596
    %v3778 = vmul.f32 %v3371, %v3600
    %v3779 = vmul.f32 %v3371, %v3604
    %v3780 = vmul.f32 %v3371, %v3607
    %v3781 = vmul.f32 %v3371, %v3611
    %v3782 = vmul.f32 %v3371, %v3615
    %v3783 = vmul.f32 %v3371, %v3619
    %v3784 = vmul.f32 %v3371, %v3623
    %v3785 = vmul.f32 %v3371, %v3627
    %v3786 = vmul.f32 %v3371, %v3631
    %v3787 = vmul.f32 %v3371, %v3635
    %v3788 = vmul.f32 %v3371, %v3639
    %v3789 = vmul.f32 %v3371, %v3643
    %v3790 = vmul.f32 %v3371, %v3647
    %v3791 = vmul.f32 %v3371, %v3651
    %v3792 = vmul.f32 %v3371, %v3655
    %v3793 = vmul.f32 %v3371, %v3659
    %v3794 = vmul.f32 %v3371, %v3663
    %v3795 = vmul.f32 %v3371, %v3667
    %v3796 = vmul.f32 %v3375, %v3418
    %v3797 = vmul.f32 %v3375, %v3422
    %v3798 = vmul.f32 %v3375, %v3426
    %v3799 = vmul.f32 %v3375, %v3430
    %v3800 = vmul.f32 %v3375, %v3434
    %v3801 = vmul.f32 %v3375, %v3438
    %v3802 = vmul.f32 %v3375, %v3442
    %v3803 = vmul.f32 %v3375, %v3446
    %v3804 = vmul.f32 %v3375, %v3450
    %v3805 = vmul.f32 %v3375, %v3454
    %v3806 = vmul.f32 %v3375, %v3458
    %v3807 = vmul.f32 %v3375, %v3462
    %v3808 = vmul.f32 %v3375, %v3466
    %v3809 = vmul.f32 %v3375, %v3470
    %v3810 = vmul.f32 %v3375, %v3474
    %v3811 = vmul.f32 %v3375, %v3478
    %v3812 = vmul.f32 %v3375, %v3481
    %v3813 = vmul.f32 %v3375, %v3485
    %v3814 = vmul.f32 %v3375, %v3489
    %v3815 = vmul.f32 %v3375, %v3493
    %v3816 = vmul.f32 %v3375, %v3497
    %v3817 = vmul.f32 %v3375, %v3501
    %v3818 = vmul.f32 %v3375, %v3505
    %v3819 = vmul.f32 %v3375, %v3509
    %v3820 = vmul.f32 %v3375, %v3513
    %v3821 = vmul.f32 %v3375, %v3517
    %v3822 = vmul.f32 %v3375, %v3521
    %v3823 = vmul.f32 %v3375, %v3525
    %v3824 = vmul.f32 %v3375, %v3529
    %v3825 = vmul.f32 %v3375, %v3533
    %v3826 = vmul.f32 %v3375, %v3537
    %v3827 = vmul.f32 %v3375, %v3541
    %v3828 = vmul.f32 %v3375, %v3544
    %v3829 = vmul.f32 %v3375, %v3548
    %v3830 = vmul.f32 %v3375, %v3552
    %v3831 = vmul.f32 %v3375, %v3556
    %v3832 = vmul.f32 %v3375, %v3560
    %v3833 = vmul.f32 %v3375, %v3564
    %v3834 = vmul.f32 %v3375, %v3568
    %v3835 = vmul.f32 %v3375, %v3572
    %v3836 = vmul.f32 %v3375, %v3576
    %v3837 = vmul.f32 %v3375, %v3580
    %v3838 = vmul.f32 %v3375, %v3584
    %v3839 = vmul.f32 %v3375, %v3588
    %v3840 = vmul.f32 %v3375, %v3592
    %v3841 = vmul.f32 %v3375, %v3596
    %v3842 = vmul.f32 %v3375, %v3600
    %v3843 = vmul.f32 %v3375, %v3604
    %v3844 = vmul.f32 %v3375, %v3607
    %v3845 = vmul.f32 %v3375, %v3611
    %v3846 = vmul.f32 %v3375, %v3615
    %v3847 = vmul.f32 %v3375, %v3619
    %v3848 = vmul.f32 %v3375, %v3623
    %v3849 = vmul.f32 %v3375, %v3627
    %v3850 = vmul.f32 %v3375, %v3631
    %v3851 = vmul.f32 %v3375, %v3635
    %v3852 = vmul.f32 %v3375, %v3639
    %v3853 = vmul.f32 %v3375, %v3643
    %v3854 = vmul.f32 %v3375, %v3647
    %v3855 = vmul.f32 %v3375, %v3651
    %v3856 = vmul.f32 %v3375, %v3655
    %v3857 = vmul.f32 %v3375, %v3659
    %v3858 = vmul.f32 %v3375, %v3663
    %v3859 = vmul.f32 %v3375, %v3667
    %3988 = vset.pattern.permute.xlu0 0
    %3989 = vperm.xlu0 %3988, %v3732
    %v3990 = vpop.permute.xlu0 %3989
    %3991 = vset.pattern.permute.xlu0 0
    %3992 = vperm.xlu0 %3991, %v3733
    %v3993 = vpop.permute.xlu0 %3992
    %3994 = vset.pattern.permute.xlu0 0
    %3995 = vperm.xlu0 %3994, %v3734
    %v3996 = vpop.permute.xlu0 %3995
    %3997 = vset.pattern.permute.xlu0 0
    %3998 = vperm.xlu0 %3997, %v3735
    %v3999 = vpop.permute.xlu0 %3998
    %4000 = vset.pattern.permute.xlu0 0
    %4001 = vperm.xlu0 %4000, %v3736
    %v4002 = vpop.permute.xlu0 %4001
    %4003 = vset.pattern.permute.xlu0 0
    %4004 = vperm.xlu0 %4003, %v3737
    %v4005 = vpop.permute.xlu0 %4004
    %4006 = vset.pattern.permute.xlu0 0
    %4007 = vperm.xlu0 %4006, %v3738
    %v4008 = vpop.permute.xlu0 %4007
    %4009 = vset.pattern.permute.xlu0 0
    %4010 = vperm.xlu0 %4009, %v3739
    %v4011 = vpop.permute.xlu0 %4010
    %4012 = vset.pattern.permute.xlu0 0
    %4013 = vperm.xlu0 %4012, %v3740
    %v4014 = vpop.permute.xlu0 %4013
    %4015 = vset.pattern.permute.xlu0 0
    %4016 = vperm.xlu0 %4015, %v3741
    %v4017 = vpop.permute.xlu0 %4016
    %4018 = vset.pattern.permute.xlu0 0
    %4019 = vperm.xlu0 %4018, %v3742
    %v4020 = vpop.permute.xlu0 %4019
    %4021 = vset.pattern.permute.xlu0 0
    %4022 = vperm.xlu0 %4021, %v3743
    %v4023 = vpop.permute.xlu0 %4022
    %4024 = vset.pattern.permute.xlu0 0
    %4025 = vperm.xlu0 %4024, %v3744
    %v4026 = vpop.permute.xlu0 %4025
    %4027 = vset.pattern.permute.xlu0 0
    %4028 = vperm.xlu0 %4027, %v3745
    %v4029 = vpop.permute.xlu0 %4028
    %4030 = vset.pattern.permute.xlu0 0
    %4031 = vperm.xlu0 %4030, %v3746
    %v4032 = vpop.permute.xlu0 %4031
    %4033 = vset.pattern.permute.xlu0 0
    %4034 = vperm.xlu0 %4033, %v3747
    %v4035 = vpop.permute.xlu0 %4034
    %4036 = vset.pattern.permute.xlu0 0
    %4037 = vperm.xlu0 %4036, %v3748
    %v4038 = vpop.permute.xlu0 %4037
    %4039 = vset.pattern.permute.xlu0 0
    %4040 = vperm.xlu0 %4039, %v3749
    %v4041 = vpop.permute.xlu0 %4040
    %4042 = vset.pattern.permute.xlu0 0
    %4043 = vperm.xlu0 %4042, %v3750
    %v4044 = vpop.permute.xlu0 %4043
    %4045 = vset.pattern.permute.xlu0 0
    %4046 = vperm.xlu0 %4045, %v3751
    %v4047 = vpop.permute.xlu0 %4046
    %4048 = vset.pattern.permute.xlu0 0
    %4049 = vperm.xlu0 %4048, %v3752
    %v4050 = vpop.permute.xlu0 %4049
    %4051 = vset.pattern.permute.xlu0 0
    %4052 = vperm.xlu0 %4051, %v3753
    %v4053 = vpop.permute.xlu0 %4052
    %4054 = vset.pattern.permute.xlu0 0
    %4055 = vperm.xlu0 %4054, %v3754
    %v4056 = vpop.permute.xlu0 %4055
    %4057 = vset.pattern.permute.xlu0 0
    %4058 = vperm.xlu0 %4057, %v3755
    %v4059 = vpop.permute.xlu0 %4058
    %4060 = vset.pattern.permute.xlu0 0
    %4061 = vperm.xlu0 %4060, %v3756
    %v4062 = vpop.permute.xlu0 %4061
    %4063 = vset.pattern.permute.xlu0 0
    %4064 = vperm.xlu0 %4063, %v3757
    %v4065 = vpop.permute.xlu0 %4064
    %4066 = vset.pattern.permute.xlu0 0
    %4067 = vperm.xlu0 %4066, %v3758
    %v4068 = vpop.permute.xlu0 %4067
    %4069 = vset.pattern.permute.xlu0 0
    %4070 = vperm.xlu0 %4069, %v3759
    %v4071 = vpop.permute.xlu0 %4070
    %4072 = vset.pattern.permute.xlu0 0
    %4073 = vperm.xlu0 %4072, %v3760
    %v4074 = vpop.permute.xlu0 %4073
    %4075 = vset.pattern.permute.xlu0 0
    %4076 = vperm.xlu0 %4075, %v3761
    %v4077 = vpop.permute.xlu0 %4076
    %4078 = vset.pattern.permute.xlu0 0
    %4079 = vperm.xlu0 %4078, %v3762
    %v4080 = vpop.permute.xlu0 %4079
    %4081 = vset.pattern.permute.xlu0 0
    %4082 = vperm.xlu0 %4081, %v3763
    %v4083 = vpop.permute.xlu0 %4082
    %4084 = vset.pattern.permute.xlu0 0
    %4085 = vperm.xlu0 %4084, %v3764
    %v4086 = vpop.permute.xlu0 %4085
    %4087 = vset.pattern.permute.xlu0 0
    %4088 = vperm.xlu0 %4087, %v3765
    %v4089 = vpop.permute.xlu0 %4088
    %4090 = vset.pattern.permute.xlu0 0
    %4091 = vperm.xlu0 %4090, %v3766
    %v4092 = vpop.permute.xlu0 %4091
    %4093 = vset.pattern.permute.xlu0 0
    %4094 = vperm.xlu0 %4093, %v3767
    %v4095 = vpop.permute.xlu0 %4094
    %4096 = vset.pattern.permute.xlu0 0
    %4097 = vperm.xlu0 %4096, %v3768
    %v4098 = vpop.permute.xlu0 %4097
    %4099 = vset.pattern.permute.xlu0 0
    %4100 = vperm.xlu0 %4099, %v3769
    %v4101 = vpop.permute.xlu0 %4100
    %4102 = vset.pattern.permute.xlu0 0
    %4103 = vperm.xlu0 %4102, %v3770
    %v4104 = vpop.permute.xlu0 %4103
    %4105 = vset.pattern.permute.xlu0 0
    %4106 = vperm.xlu0 %4105, %v3771
    %v4107 = vpop.permute.xlu0 %4106
    %4108 = vset.pattern.permute.xlu0 0
    %4109 = vperm.xlu0 %4108, %v3772
    %v4110 = vpop.permute.xlu0 %4109
    %4111 = vset.pattern.permute.xlu0 0
    %4112 = vperm.xlu0 %4111, %v3773
    %v4113 = vpop.permute.xlu0 %4112
    %4114 = vset.pattern.permute.xlu0 0
    %4115 = vperm.xlu0 %4114, %v3774
    %v4116 = vpop.permute.xlu0 %4115
    %4117 = vset.pattern.permute.xlu0 0
    %4118 = vperm.xlu0 %4117, %v3775
    %v4119 = vpop.permute.xlu0 %4118
    %4120 = vset.pattern.permute.xlu0 0
    %4121 = vperm.xlu0 %4120, %v3776
    %v4122 = vpop.permute.xlu0 %4121
    %4123 = vset.pattern.permute.xlu0 0
    %4124 = vperm.xlu0 %4123, %v3777
    %v4125 = vpop.permute.xlu0 %4124
    %4126 = vset.pattern.permute.xlu0 0
    %4127 = vperm.xlu0 %4126, %v3778
    %v4128 = vpop.permute.xlu0 %4127
    %4129 = vset.pattern.permute.xlu0 0
    %4130 = vperm.xlu0 %4129, %v3779
    %v4131 = vpop.permute.xlu0 %4130
    %4132 = vset.pattern.permute.xlu0 0
    %4133 = vperm.xlu0 %4132, %v3780
    %v4134 = vpop.permute.xlu0 %4133
    %4135 = vset.pattern.permute.xlu0 0
    %4136 = vperm.xlu0 %4135, %v3781
    %v4137 = vpop.permute.xlu0 %4136
    %4138 = vset.pattern.permute.xlu0 0
    %4139 = vperm.xlu0 %4138, %v3782
    %v4140 = vpop.permute.xlu0 %4139
    %4141 = vset.pattern.permute.xlu0 0
    %4142 = vperm.xlu0 %4141, %v3783
    %v4143 = vpop.permute.xlu0 %4142
    %4144 = vset.pattern.permute.xlu0 0
    %4145 = vperm.xlu0 %4144, %v3784
    %v4146 = vpop.permute.xlu0 %4145
    %4147 = vset.pattern.permute.xlu0 0
    %4148 = vperm.xlu0 %4147, %v3785
    %v4149 = vpop.permute.xlu0 %4148
    %4150 = vset.pattern.permute.xlu0 0
    %4151 = vperm.xlu0 %4150, %v3786
    %v4152 = vpop.permute.xlu0 %4151
    %4153 = vset.pattern.permute.xlu0 0
    %4154 = vperm.xlu0 %4153, %v3787
    %v4155 = vpop.permute.xlu0 %4154
    %4156 = vset.pattern.permute.xlu0 0
    %4157 = vperm.xlu0 %4156, %v3788
    %v4158 = vpop.permute.xlu0 %4157
    %4159 = vset.pattern.permute.xlu0 0
    %4160 = vperm.xlu0 %4159, %v3789
    %v4161 = vpop.permute.xlu0 %4160
    %4162 = vset.pattern.permute.xlu0 0
    %4163 = vperm.xlu0 %4162, %v3790
    %v4164 = vpop.permute.xlu0 %4163
    %4165 = vset.pattern.permute.xlu0 0
    %4166 = vperm.xlu0 %4165, %v3791
    %v4167 = vpop.permute.xlu0 %4166
    %4168 = vset.pattern.permute.xlu0 0
    %4169 = vperm.xlu0 %4168, %v3792
    %v4170 = vpop.permute.xlu0 %4169
    %4171 = vset.pattern.permute.xlu0 0
    %4172 = vperm.xlu0 %4171, %v3793
    %v4173 = vpop.permute.xlu0 %4172
    %4174 = vset.pattern.permute.xlu0 0
    %4175 = vperm.xlu0 %4174, %v3794
    %v4176 = vpop.permute.xlu0 %4175
    %4177 = vset.pattern.permute.xlu0 0
    %4178 = vperm.xlu0 %4177, %v3795
    %v4179 = vpop.permute.xlu0 %4178
    %4180 = vset.pattern.permute.xlu0 0
    %4181 = vperm.xlu0 %4180, %v3796
    %v4182 = vpop.permute.xlu0 %4181
    %4183 = vset.pattern.permute.xlu0 0
    %4184 = vperm.xlu0 %4183, %v3797
    %v4185 = vpop.permute.xlu0 %4184
    %4186 = vset.pattern.permute.xlu0 0
    %4187 = vperm.xlu0 %4186, %v3798
    %v4188 = vpop.permute.xlu0 %4187
    %4189 = vset.pattern.permute.xlu0 0
    %4190 = vperm.xlu0 %4189, %v3799
    %v4191 = vpop.permute.xlu0 %4190
    %4192 = vset.pattern.permute.xlu0 0
    %4193 = vperm.xlu0 %4192, %v3800
    %v4194 = vpop.permute.xlu0 %4193
    %4195 = vset.pattern.permute.xlu0 0
    %4196 = vperm.xlu0 %4195, %v3801
    %v4197 = vpop.permute.xlu0 %4196
    %4198 = vset.pattern.permute.xlu0 0
    %4199 = vperm.xlu0 %4198, %v3802
    %v4200 = vpop.permute.xlu0 %4199
    %4201 = vset.pattern.permute.xlu0 0
    %4202 = vperm.xlu0 %4201, %v3803
    %v4203 = vpop.permute.xlu0 %4202
    %4204 = vset.pattern.permute.xlu0 0
    %4205 = vperm.xlu0 %4204, %v3804
    %v4206 = vpop.permute.xlu0 %4205
    %4207 = vset.pattern.permute.xlu0 0
    %4208 = vperm.xlu0 %4207, %v3805
    %v4209 = vpop.permute.xlu0 %4208
    %4210 = vset.pattern.permute.xlu0 0
    %4211 = vperm.xlu0 %4210, %v3806
    %v4212 = vpop.permute.xlu0 %4211
    %4213 = vset.pattern.permute.xlu0 0
    %4214 = vperm.xlu0 %4213, %v3807
    %v4215 = vpop.permute.xlu0 %4214
    %4216 = vset.pattern.permute.xlu0 0
    %4217 = vperm.xlu0 %4216, %v3808
    %v4218 = vpop.permute.xlu0 %4217
    %4219 = vset.pattern.permute.xlu0 0
    %4220 = vperm.xlu0 %4219, %v3809
    %v4221 = vpop.permute.xlu0 %4220
    %4222 = vset.pattern.permute.xlu0 0
    %4223 = vperm.xlu0 %4222, %v3810
    %v4224 = vpop.permute.xlu0 %4223
    %4225 = vset.pattern.permute.xlu0 0
    %4226 = vperm.xlu0 %4225, %v3811
    %v4227 = vpop.permute.xlu0 %4226
    %4228 = vset.pattern.permute.xlu0 0
    %4229 = vperm.xlu0 %4228, %v3812
    %v4230 = vpop.permute.xlu0 %4229
    %4231 = vset.pattern.permute.xlu0 0
    %4232 = vperm.xlu0 %4231, %v3813
    %v4233 = vpop.permute.xlu0 %4232
    %4234 = vset.pattern.permute.xlu0 0
    %4235 = vperm.xlu0 %4234, %v3814
    %v4236 = vpop.permute.xlu0 %4235
    %4237 = vset.pattern.permute.xlu0 0
    %4238 = vperm.xlu0 %4237, %v3815
    %v4239 = vpop.permute.xlu0 %4238
    %4240 = vset.pattern.permute.xlu0 0
    %4241 = vperm.xlu0 %4240, %v3816
    %v4242 = vpop.permute.xlu0 %4241
    %4243 = vset.pattern.permute.xlu0 0
    %4244 = vperm.xlu0 %4243, %v3817
    %v4245 = vpop.permute.xlu0 %4244
    %4246 = vset.pattern.permute.xlu0 0
    %4247 = vperm.xlu0 %4246, %v3818
    %v4248 = vpop.permute.xlu0 %4247
    %4249 = vset.pattern.permute.xlu0 0
    %4250 = vperm.xlu0 %4249, %v3819
    %v4251 = vpop.permute.xlu0 %4250
    %4252 = vset.pattern.permute.xlu0 0
    %4253 = vperm.xlu0 %4252, %v3820
    %v4254 = vpop.permute.xlu0 %4253
    %4255 = vset.pattern.permute.xlu0 0
    %4256 = vperm.xlu0 %4255, %v3821
    %v4257 = vpop.permute.xlu0 %4256
    %4258 = vset.pattern.permute.xlu0 0
    %4259 = vperm.xlu0 %4258, %v3822
    %v4260 = vpop.permute.xlu0 %4259
    %4261 = vset.pattern.permute.xlu0 0
    %4262 = vperm.xlu0 %4261, %v3823
    %v4263 = vpop.permute.xlu0 %4262
    %4264 = vset.pattern.permute.xlu0 0
    %4265 = vperm.xlu0 %4264, %v3824
    %v4266 = vpop.permute.xlu0 %4265
    %4267 = vset.pattern.permute.xlu0 0
    %4268 = vperm.xlu0 %4267, %v3825
    %v4269 = vpop.permute.xlu0 %4268
    %4270 = vset.pattern.permute.xlu0 0
    %4271 = vperm.xlu0 %4270, %v3826
    %v4272 = vpop.permute.xlu0 %4271
    %4273 = vset.pattern.permute.xlu0 0
    %4274 = vperm.xlu0 %4273, %v3827
    %v4275 = vpop.permute.xlu0 %4274
    %4276 = vset.pattern.permute.xlu0 0
    %4277 = vperm.xlu0 %4276, %v3828
    %v4278 = vpop.permute.xlu0 %4277
    %4279 = vset.pattern.permute.xlu0 0
    %4280 = vperm.xlu0 %4279, %v3829
    %v4281 = vpop.permute.xlu0 %4280
    %4282 = vset.pattern.permute.xlu0 0
    %4283 = vperm.xlu0 %4282, %v3830
    %v4284 = vpop.permute.xlu0 %4283
    %4285 = vset.pattern.permute.xlu0 0
    %4286 = vperm.xlu0 %4285, %v3831
    %v4287 = vpop.permute.xlu0 %4286
    %4288 = vset.pattern.permute.xlu0 0
    %4289 = vperm.xlu0 %4288, %v3832
    %v4290 = vpop.permute.xlu0 %4289
    %4291 = vset.pattern.permute.xlu0 0
    %4292 = vperm.xlu0 %4291, %v3833
    %v4293 = vpop.permute.xlu0 %4292
    %4294 = vset.pattern.permute.xlu0 0
    %4295 = vperm.xlu0 %4294, %v3834
    %v4296 = vpop.permute.xlu0 %4295
    %4297 = vset.pattern.permute.xlu0 0
    %4298 = vperm.xlu0 %4297, %v3835
    %v4299 = vpop.permute.xlu0 %4298
    %4300 = vset.pattern.permute.xlu0 0
    %4301 = vperm.xlu0 %4300, %v3836
    %v4302 = vpop.permute.xlu0 %4301
    %4303 = vset.pattern.permute.xlu0 0
    %4304 = vperm.xlu0 %4303, %v3837
    %v4305 = vpop.permute.xlu0 %4304
    %4306 = vset.pattern.permute.xlu0 0
    %4307 = vperm.xlu0 %4306, %v3838
    %v4308 = vpop.permute.xlu0 %4307
    %4309 = vset.pattern.permute.xlu0 0
    %4310 = vperm.xlu0 %4309, %v3839
    %v4311 = vpop.permute.xlu0 %4310
    %4312 = vset.pattern.permute.xlu0 0
    %4313 = vperm.xlu0 %4312, %v3840
    %v4314 = vpop.permute.xlu0 %4313
    %4315 = vset.pattern.permute.xlu0 0
    %4316 = vperm.xlu0 %4315, %v3841
    %v4317 = vpop.permute.xlu0 %4316
    %4318 = vset.pattern.permute.xlu0 0
    %4319 = vperm.xlu0 %4318, %v3842
    %v4320 = vpop.permute.xlu0 %4319
    %4321 = vset.pattern.permute.xlu0 0
    %4322 = vperm.xlu0 %4321, %v3843
    %v4323 = vpop.permute.xlu0 %4322
    %4324 = vset.pattern.permute.xlu0 0
    %4325 = vperm.xlu0 %4324, %v3844
    %v4326 = vpop.permute.xlu0 %4325
    %4327 = vset.pattern.permute.xlu0 0
    %4328 = vperm.xlu0 %4327, %v3845
    %v4329 = vpop.permute.xlu0 %4328
    %4330 = vset.pattern.permute.xlu0 0
    %4331 = vperm.xlu0 %4330, %v3846
    %v4332 = vpop.permute.xlu0 %4331
    %4333 = vset.pattern.permute.xlu0 0
    %4334 = vperm.xlu0 %4333, %v3847
    %v4335 = vpop.permute.xlu0 %4334
    %4336 = vset.pattern.permute.xlu0 0
    %4337 = vperm.xlu0 %4336, %v3848
    %v4338 = vpop.permute.xlu0 %4337
    %4339 = vset.pattern.permute.xlu0 0
    %4340 = vperm.xlu0 %4339, %v3849
    %v4341 = vpop.permute.xlu0 %4340
    %4342 = vset.pattern.permute.xlu0 0
    %4343 = vperm.xlu0 %4342, %v3850
    %v4344 = vpop.permute.xlu0 %4343
    %4345 = vset.pattern.permute.xlu0 0
    %4346 = vperm.xlu0 %4345, %v3851
    %v4347 = vpop.permute.xlu0 %4346
    %4348 = vset.pattern.permute.xlu0 0
    %4349 = vperm.xlu0 %4348, %v3852
    %v4350 = vpop.permute.xlu0 %4349
    %4351 = vset.pattern.permute.xlu0 0
    %4352 = vperm.xlu0 %4351, %v3853
    %v4353 = vpop.permute.xlu0 %4352
    %4354 = vset.pattern.permute.xlu0 0
    %4355 = vperm.xlu0 %4354, %v3854
    %v4356 = vpop.permute.xlu0 %4355
    %4357 = vset.pattern.permute.xlu0 0
    %4358 = vperm.xlu0 %4357, %v3855
    %v4359 = vpop.permute.xlu0 %4358
    %4360 = vset.pattern.permute.xlu0 0
    %4361 = vperm.xlu0 %4360, %v3856
    %v4362 = vpop.permute.xlu0 %4361
    %4363 = vset.pattern.permute.xlu0 0
    %4364 = vperm.xlu0 %4363, %v3857
    %v4365 = vpop.permute.xlu0 %4364
    %4366 = vset.pattern.permute.xlu0 0
    %4367 = vperm.xlu0 %4366, %v3858
    %v4368 = vpop.permute.xlu0 %4367
    %4369 = vset.pattern.permute.xlu0 0
    %4370 = vperm.xlu0 %4369, %v3859
    %v4371 = vpop.permute.xlu0 %4370
    %v4372 = vlaneseq
    %v4373 = vshrl.u32 %v4372, 7
    %v4374 = vsub.s32 %v2692, %v4373
    %v4375 = vrot.slane %v3990, %v4374
    %v4376 = vlaneseq
    %v4377 = vshrl.u32 %v4376, 7
    %v4378 = vsub.s32 %v2697, %v4377
    %v4379 = vrot.slane %v3993, %v4378
    %v4380 = vsel %vm2702, %v4379, %v4375
    %v4381 = vlaneseq
    %v4382 = vshrl.u32 %v4381, 7
    %v4383 = vsub.s32 %v2704, %v4382
    %v4384 = vrot.slane %v3996, %v4383
    %v4385 = vsel %vm2709, %v4384, %v4380
    %v4386 = vlaneseq
    %v4387 = vshrl.u32 %v4386, 7
    %v4388 = vsub.s32 %v2711, %v4387
    %v4389 = vrot.slane %v3999, %v4388
    %v4390 = vsel %vm2716, %v4389, %v4385
    %v4391 = vlaneseq
    %v4392 = vshrl.u32 %v4391, 7
    %v4393 = vsub.s32 %v2718, %v4392
    %v4394 = vrot.slane %v4002, %v4393
    %v4395 = vsel %vm2723, %v4394, %v4390
    %v4396 = vlaneseq
    %v4397 = vshrl.u32 %v4396, 7
    %v4398 = vsub.s32 %v2725, %v4397
    %v4399 = vrot.slane %v4005, %v4398
    %v4400 = vsel %vm2730, %v4399, %v4395
    %v4401 = vlaneseq
    %v4402 = vshrl.u32 %v4401, 7
    %v4403 = vsub.s32 %v2732, %v4402
    %v4404 = vrot.slane %v4008, %v4403
    %v4405 = vsel %vm2737, %v4404, %v4400
    %v4406 = vlaneseq
    %v4407 = vshrl.u32 %v4406, 7
    %v4408 = vsub.s32 %v2739, %v4407
    %v4409 = vrot.slane %v4011, %v4408
    %v4410 = vsel %vm2744, %v4409, %v4405
    %v4411 = vlaneseq
    %v4412 = vshrl.u32 %v4411, 7
    %v4413 = vsub.s32 %v2746, %v4412
    %v4414 = vrot.slane %v4014, %v4413
    %v4415 = vsel %vm2751, %v4414, %v4410
    %v4416 = vlaneseq
    %v4417 = vshrl.u32 %v4416, 7
    %v4418 = vsub.s32 %v2753, %v4417
    %v4419 = vrot.slane %v4017, %v4418
    %v4420 = vsel %vm2758, %v4419, %v4415
    %v4421 = vlaneseq
    %v4422 = vshrl.u32 %v4421, 7
    %v4423 = vsub.s32 %v2760, %v4422
    %v4424 = vrot.slane %v4020, %v4423
    %v4425 = vsel %vm2765, %v4424, %v4420
    %v4426 = vlaneseq
    %v4427 = vshrl.u32 %v4426, 7
    %v4428 = vsub.s32 %v2767, %v4427
    %v4429 = vrot.slane %v4023, %v4428
    %v4430 = vsel %vm2772, %v4429, %v4425
    %v4431 = vlaneseq
    %v4432 = vshrl.u32 %v4431, 7
    %v4433 = vsub.s32 %v2774, %v4432
    %v4434 = vrot.slane %v4026, %v4433
    %v4435 = vsel %vm2779, %v4434, %v4430
    %v4436 = vlaneseq
    %v4437 = vshrl.u32 %v4436, 7
    %v4438 = vsub.s32 %v2781, %v4437
    %v4439 = vrot.slane %v4029, %v4438
    %v4440 = vsel %vm2786, %v4439, %v4435
    %v4441 = vlaneseq
    %v4442 = vshrl.u32 %v4441, 7
    %v4443 = vsub.s32 %v2788, %v4442
    %v4444 = vrot.slane %v4032, %v4443
    %v4445 = vsel %vm2793, %v4444, %v4440
    %v4446 = vlaneseq
    %v4447 = vshrl.u32 %v4446, 7
    %v4448 = vsub.s32 %v2795, %v4447
    %v4449 = vrot.slane %v4035, %v4448
    %v4450 = vsel %vm2800, %v4449, %v4445
    %v4451 = vlaneseq
    %v4452 = vshrl.u32 %v4451, 7
    %v4453 = vsub.s32 %v2692, %v4452
    %v4454 = vrot.slane %v4038, %v4453
    %v4455 = vlaneseq
    %v4456 = vshrl.u32 %v4455, 7
    %v4457 = vsub.s32 %v2697, %v4456
    %v4458 = vrot.slane %v4041, %v4457
    %v4459 = vsel %vm2702, %v4458, %v4454
    %v4460 = vlaneseq
    %v4461 = vshrl.u32 %v4460, 7
    %v4462 = vsub.s32 %v2704, %v4461
    %v4463 = vrot.slane %v4044, %v4462
    %v4464 = vsel %vm2709, %v4463, %v4459
    %v4465 = vlaneseq
    %v4466 = vshrl.u32 %v4465, 7
    %v4467 = vsub.s32 %v2711, %v4466
    %v4468 = vrot.slane %v4047, %v4467
    %v4469 = vsel %vm2716, %v4468, %v4464
    %v4470 = vlaneseq
    %v4471 = vshrl.u32 %v4470, 7
    %v4472 = vsub.s32 %v2718, %v4471
    %v4473 = vrot.slane %v4050, %v4472
    %v4474 = vsel %vm2723, %v4473, %v4469
    %v4475 = vlaneseq
    %v4476 = vshrl.u32 %v4475, 7
    %v4477 = vsub.s32 %v2725, %v4476
    %v4478 = vrot.slane %v4053, %v4477
    %v4479 = vsel %vm2730, %v4478, %v4474
    %v4480 = vlaneseq
    %v4481 = vshrl.u32 %v4480, 7
    %v4482 = vsub.s32 %v2732, %v4481
    %v4483 = vrot.slane %v4056, %v4482
    %v4484 = vsel %vm2737, %v4483, %v4479
    %v4485 = vlaneseq
    %v4486 = vshrl.u32 %v4485, 7
    %v4487 = vsub.s32 %v2739, %v4486
    %v4488 = vrot.slane %v4059, %v4487
    %v4489 = vsel %vm2744, %v4488, %v4484
    %v4490 = vlaneseq
    %v4491 = vshrl.u32 %v4490, 7
    %v4492 = vsub.s32 %v2746, %v4491
    %v4493 = vrot.slane %v4062, %v4492
    %v4494 = vsel %vm2751, %v4493, %v4489
    %v4495 = vlaneseq
    %v4496 = vshrl.u32 %v4495, 7
    %v4497 = vsub.s32 %v2753, %v4496
    %v4498 = vrot.slane %v4065, %v4497
    %v4499 = vsel %vm2758, %v4498, %v4494
    %v4500 = vlaneseq
    %v4501 = vshrl.u32 %v4500, 7
    %v4502 = vsub.s32 %v2760, %v4501
    %v4503 = vrot.slane %v4068, %v4502
    %v4504 = vsel %vm2765, %v4503, %v4499
    %v4505 = vlaneseq
    %v4506 = vshrl.u32 %v4505, 7
    %v4507 = vsub.s32 %v2767, %v4506
    %v4508 = vrot.slane %v4071, %v4507
    %v4509 = vsel %vm2772, %v4508, %v4504
    %v4510 = vlaneseq
    %v4511 = vshrl.u32 %v4510, 7
    %v4512 = vsub.s32 %v2774, %v4511
    %v4513 = vrot.slane %v4074, %v4512
    %v4514 = vsel %vm2779, %v4513, %v4509
    %v4515 = vlaneseq
    %v4516 = vshrl.u32 %v4515, 7
    %v4517 = vsub.s32 %v2781, %v4516
    %v4518 = vrot.slane %v4077, %v4517
    %v4519 = vsel %vm2786, %v4518, %v4514
    %v4520 = vlaneseq
    %v4521 = vshrl.u32 %v4520, 7
    %v4522 = vsub.s32 %v2788, %v4521
    %v4523 = vrot.slane %v4080, %v4522
    %v4524 = vsel %vm2793, %v4523, %v4519
    %v4525 = vlaneseq
    %v4526 = vshrl.u32 %v4525, 7
    %v4527 = vsub.s32 %v2795, %v4526
    %v4528 = vrot.slane %v4083, %v4527
    %v4529 = vsel %vm2800, %v4528, %v4524
    %v4530 = vlaneseq
    %v4531 = vshrl.u32 %v4530, 7
    %v4532 = vsub.s32 %v2692, %v4531
    %v4533 = vrot.slane %v4086, %v4532
    %v4534 = vlaneseq
    %v4535 = vshrl.u32 %v4534, 7
    %v4536 = vsub.s32 %v2697, %v4535
    %v4537 = vrot.slane %v4089, %v4536
    %v4538 = vsel %vm2702, %v4537, %v4533
    %v4539 = vlaneseq
    %v4540 = vshrl.u32 %v4539, 7
    %v4541 = vsub.s32 %v2704, %v4540
    %v4542 = vrot.slane %v4092, %v4541
    %v4543 = vsel %vm2709, %v4542, %v4538
    %v4544 = vlaneseq
    %v4545 = vshrl.u32 %v4544, 7
    %v4546 = vsub.s32 %v2711, %v4545
    %v4547 = vrot.slane %v4095, %v4546
    %v4548 = vsel %vm2716, %v4547, %v4543
    %v4549 = vlaneseq
    %v4550 = vshrl.u32 %v4549, 7
    %v4551 = vsub.s32 %v2718, %v4550
    %v4552 = vrot.slane %v4098, %v4551
    %v4553 = vsel %vm2723, %v4552, %v4548
    %v4554 = vlaneseq
    %v4555 = vshrl.u32 %v4554, 7
    %v4556 = vsub.s32 %v2725, %v4555
    %v4557 = vrot.slane %v4101, %v4556
    %v4558 = vsel %vm2730, %v4557, %v4553
    %v4559 = vlaneseq
    %v4560 = vshrl.u32 %v4559, 7
    %v4561 = vsub.s32 %v2732, %v4560
    %v4562 = vrot.slane %v4104, %v4561
    %v4563 = vsel %vm2737, %v4562, %v4558
    %v4564 = vlaneseq
    %v4565 = vshrl.u32 %v4564, 7
    %v4566 = vsub.s32 %v2739, %v4565
    %v4567 = vrot.slane %v4107, %v4566
    %v4568 = vsel %vm2744, %v4567, %v4563
    %v4569 = vlaneseq
    %v4570 = vshrl.u32 %v4569, 7
    %v4571 = vsub.s32 %v2746, %v4570
    %v4572 = vrot.slane %v4110, %v4571
    %v4573 = vsel %vm2751, %v4572, %v4568
    %v4574 = vlaneseq
    %v4575 = vshrl.u32 %v4574, 7
    %v4576 = vsub.s32 %v2753, %v4575
    %v4577 = vrot.slane %v4113, %v4576
    %v4578 = vsel %vm2758, %v4577, %v4573
    %v4579 = vlaneseq
    %v4580 = vshrl.u32 %v4579, 7
    %v4581 = vsub.s32 %v2760, %v4580
    %v4582 = vrot.slane %v4116, %v4581
    %v4583 = vsel %vm2765, %v4582, %v4578
    %v4584 = vlaneseq
    %v4585 = vshrl.u32 %v4584, 7
    %v4586 = vsub.s32 %v2767, %v4585
    %v4587 = vrot.slane %v4119, %v4586
    %v4588 = vsel %vm2772, %v4587, %v4583
    %v4589 = vlaneseq
    %v4590 = vshrl.u32 %v4589, 7
    %v4591 = vsub.s32 %v2774, %v4590
    %v4592 = vrot.slane %v4122, %v4591
    %v4593 = vsel %vm2779, %v4592, %v4588
    %v4594 = vlaneseq
    %v4595 = vshrl.u32 %v4594, 7
    %v4596 = vsub.s32 %v2781, %v4595
    %v4597 = vrot.slane %v4125, %v4596
    %v4598 = vsel %vm2786, %v4597, %v4593
    %v4599 = vlaneseq
    %v4600 = vshrl.u32 %v4599, 7
    %v4601 = vsub.s32 %v2788, %v4600
    %v4602 = vrot.slane %v4128, %v4601
    %v4603 = vsel %vm2793, %v4602, %v4598
    %v4604 = vlaneseq
    %v4605 = vshrl.u32 %v4604, 7
    %v4606 = vsub.s32 %v2795, %v4605
    %v4607 = vrot.slane %v4131, %v4606
    %v4608 = vsel %vm2800, %v4607, %v4603
    %v4609 = vlaneseq
    %v4610 = vshrl.u32 %v4609, 7
    %v4611 = vsub.s32 %v2692, %v4610
    %v4612 = vrot.slane %v4134, %v4611
    %v4613 = vlaneseq
    %v4614 = vshrl.u32 %v4613, 7
    %v4615 = vsub.s32 %v2697, %v4614
    %v4616 = vrot.slane %v4137, %v4615
    %v4617 = vsel %vm2702, %v4616, %v4612
    %v4618 = vlaneseq
    %v4619 = vshrl.u32 %v4618, 7
    %v4620 = vsub.s32 %v2704, %v4619
    %v4621 = vrot.slane %v4140, %v4620
    %v4622 = vsel %vm2709, %v4621, %v4617
    %v4623 = vlaneseq
    %v4624 = vshrl.u32 %v4623, 7
    %v4625 = vsub.s32 %v2711, %v4624
    %v4626 = vrot.slane %v4143, %v4625
    %v4627 = vsel %vm2716, %v4626, %v4622
    %v4628 = vlaneseq
    %v4629 = vshrl.u32 %v4628, 7
    %v4630 = vsub.s32 %v2718, %v4629
    %v4631 = vrot.slane %v4146, %v4630
    %v4632 = vsel %vm2723, %v4631, %v4627
    %v4633 = vlaneseq
    %v4634 = vshrl.u32 %v4633, 7
    %v4635 = vsub.s32 %v2725, %v4634
    %v4636 = vrot.slane %v4149, %v4635
    %v4637 = vsel %vm2730, %v4636, %v4632
    %v4638 = vlaneseq
    %v4639 = vshrl.u32 %v4638, 7
    %v4640 = vsub.s32 %v2732, %v4639
    %v4641 = vrot.slane %v4152, %v4640
    %v4642 = vsel %vm2737, %v4641, %v4637
    %v4643 = vlaneseq
    %v4644 = vshrl.u32 %v4643, 7
    %v4645 = vsub.s32 %v2739, %v4644
    %v4646 = vrot.slane %v4155, %v4645
    %v4647 = vsel %vm2744, %v4646, %v4642
    %v4648 = vlaneseq
    %v4649 = vshrl.u32 %v4648, 7
    %v4650 = vsub.s32 %v2746, %v4649
    %v4651 = vrot.slane %v4158, %v4650
    %v4652 = vsel %vm2751, %v4651, %v4647
    %v4653 = vlaneseq
    %v4654 = vshrl.u32 %v4653, 7
    %v4655 = vsub.s32 %v2753, %v4654
    %v4656 = vrot.slane %v4161, %v4655
    %v4657 = vsel %vm2758, %v4656, %v4652
    %v4658 = vlaneseq
    %v4659 = vshrl.u32 %v4658, 7
    %v4660 = vsub.s32 %v2760, %v4659
    %v4661 = vrot.slane %v4164, %v4660
    %v4662 = vsel %vm2765, %v4661, %v4657
    %v4663 = vlaneseq
    %v4664 = vshrl.u32 %v4663, 7
    %v4665 = vsub.s32 %v2767, %v4664
    %v4666 = vrot.slane %v4167, %v4665
    %v4667 = vsel %vm2772, %v4666, %v4662
    %v4668 = vlaneseq
    %v4669 = vshrl.u32 %v4668, 7
    %v4670 = vsub.s32 %v2774, %v4669
    %v4671 = vrot.slane %v4170, %v4670
    %v4672 = vsel %vm2779, %v4671, %v4667
    %v4673 = vlaneseq
    %v4674 = vshrl.u32 %v4673, 7
    %v4675 = vsub.s32 %v2781, %v4674
    %v4676 = vrot.slane %v4173, %v4675
    %v4677 = vsel %vm2786, %v4676, %v4672
    %v4678 = vlaneseq
    %v4679 = vshrl.u32 %v4678, 7
    %v4680 = vsub.s32 %v2788, %v4679
    %v4681 = vrot.slane %v4176, %v4680
    %v4682 = vsel %vm2793, %v4681, %v4677
    %v4683 = vlaneseq
    %v4684 = vshrl.u32 %v4683, 7
    %v4685 = vsub.s32 %v2795, %v4684
    %v4686 = vrot.slane %v4179, %v4685
    %v4687 = vsel %vm2800, %v4686, %v4682
    %v4688 = vlaneseq
    %v4689 = vshrl.u32 %v4688, 7
    %v4690 = vsub.s32 %v2692, %v4689
    %v4691 = vrot.slane %v4182, %v4690
    %v4692 = vlaneseq
    %v4693 = vshrl.u32 %v4692, 7
    %v4694 = vsub.s32 %v2697, %v4693
    %v4695 = vrot.slane %v4185, %v4694
    %v4696 = vsel %vm2702, %v4695, %v4691
    %v4697 = vlaneseq
    %v4698 = vshrl.u32 %v4697, 7
    %v4699 = vsub.s32 %v2704, %v4698
    %v4700 = vrot.slane %v4188, %v4699
    %v4701 = vsel %vm2709, %v4700, %v4696
    %v4702 = vlaneseq
    %v4703 = vshrl.u32 %v4702, 7
    %v4704 = vsub.s32 %v2711, %v4703
    %v4705 = vrot.slane %v4191, %v4704
    %v4706 = vsel %vm2716, %v4705, %v4701
    %v4707 = vlaneseq
    %v4708 = vshrl.u32 %v4707, 7
    %v4709 = vsub.s32 %v2718, %v4708
    %v4710 = vrot.slane %v4194, %v4709
    %v4711 = vsel %vm2723, %v4710, %v4706
    %v4712 = vlaneseq
    %v4713 = vshrl.u32 %v4712, 7
    %v4714 = vsub.s32 %v2725, %v4713
    %v4715 = vrot.slane %v4197, %v4714
    %v4716 = vsel %vm2730, %v4715, %v4711
    %v4717 = vlaneseq
    %v4718 = vshrl.u32 %v4717, 7
    %v4719 = vsub.s32 %v2732, %v4718
    %v4720 = vrot.slane %v4200, %v4719
    %v4721 = vsel %vm2737, %v4720, %v4716
    %v4722 = vlaneseq
    %v4723 = vshrl.u32 %v4722, 7
    %v4724 = vsub.s32 %v2739, %v4723
    %v4725 = vrot.slane %v4203, %v4724
    %v4726 = vsel %vm2744, %v4725, %v4721
    %v4727 = vlaneseq
    %v4728 = vshrl.u32 %v4727, 7
    %v4729 = vsub.s32 %v2746, %v4728
    %v4730 = vrot.slane %v4206, %v4729
    %v4731 = vsel %vm2751, %v4730, %v4726
    %v4732 = vlaneseq
    %v4733 = vshrl.u32 %v4732, 7
    %v4734 = vsub.s32 %v2753, %v4733
    %v4735 = vrot.slane %v4209, %v4734
    %v4736 = vsel %vm2758, %v4735, %v4731
    %v4737 = vlaneseq
    %v4738 = vshrl.u32 %v4737, 7
    %v4739 = vsub.s32 %v2760, %v4738
    %v4740 = vrot.slane %v4212, %v4739
    %v4741 = vsel %vm2765, %v4740, %v4736
    %v4742 = vlaneseq
    %v4743 = vshrl.u32 %v4742, 7
    %v4744 = vsub.s32 %v2767, %v4743
    %v4745 = vrot.slane %v4215, %v4744
    %v4746 = vsel %vm2772, %v4745, %v4741
    %v4747 = vlaneseq
    %v4748 = vshrl.u32 %v4747, 7
    %v4749 = vsub.s32 %v2774, %v4748
    %v4750 = vrot.slane %v4218, %v4749
    %v4751 = vsel %vm2779, %v4750, %v4746
    %v4752 = vlaneseq
    %v4753 = vshrl.u32 %v4752, 7
    %v4754 = vsub.s32 %v2781, %v4753
    %v4755 = vrot.slane %v4221, %v4754
    %v4756 = vsel %vm2786, %v4755, %v4751
    %v4757 = vlaneseq
    %v4758 = vshrl.u32 %v4757, 7
    %v4759 = vsub.s32 %v2788, %v4758
    %v4760 = vrot.slane %v4224, %v4759
    %v4761 = vsel %vm2793, %v4760, %v4756
    %v4762 = vlaneseq
    %v4763 = vshrl.u32 %v4762, 7
    %v4764 = vsub.s32 %v2795, %v4763
    %v4765 = vrot.slane %v4227, %v4764
    %v4766 = vsel %vm2800, %v4765, %v4761
    %v4767 = vlaneseq
    %v4768 = vshrl.u32 %v4767, 7
    %v4769 = vsub.s32 %v2692, %v4768
    %v4770 = vrot.slane %v4230, %v4769
    %v4771 = vlaneseq
    %v4772 = vshrl.u32 %v4771, 7
    %v4773 = vsub.s32 %v2697, %v4772
    %v4774 = vrot.slane %v4233, %v4773
    %v4775 = vsel %vm2702, %v4774, %v4770
    %v4776 = vlaneseq
    %v4777 = vshrl.u32 %v4776, 7
    %v4778 = vsub.s32 %v2704, %v4777
    %v4779 = vrot.slane %v4236, %v4778
    %v4780 = vsel %vm2709, %v4779, %v4775
    %v4781 = vlaneseq
    %v4782 = vshrl.u32 %v4781, 7
    %v4783 = vsub.s32 %v2711, %v4782
    %v4784 = vrot.slane %v4239, %v4783
    %v4785 = vsel %vm2716, %v4784, %v4780
    %v4786 = vlaneseq
    %v4787 = vshrl.u32 %v4786, 7
    %v4788 = vsub.s32 %v2718, %v4787
    %v4789 = vrot.slane %v4242, %v4788
    %v4790 = vsel %vm2723, %v4789, %v4785
    %v4791 = vlaneseq
    %v4792 = vshrl.u32 %v4791, 7
    %v4793 = vsub.s32 %v2725, %v4792
    %v4794 = vrot.slane %v4245, %v4793
    %v4795 = vsel %vm2730, %v4794, %v4790
    %v4796 = vlaneseq
    %v4797 = vshrl.u32 %v4796, 7
    %v4798 = vsub.s32 %v2732, %v4797
    %v4799 = vrot.slane %v4248, %v4798
    %v4800 = vsel %vm2737, %v4799, %v4795
    %v4801 = vlaneseq
    %v4802 = vshrl.u32 %v4801, 7
    %v4803 = vsub.s32 %v2739, %v4802
    %v4804 = vrot.slane %v4251, %v4803
    %v4805 = vsel %vm2744, %v4804, %v4800
    %v4806 = vlaneseq
    %v4807 = vshrl.u32 %v4806, 7
    %v4808 = vsub.s32 %v2746, %v4807
    %v4809 = vrot.slane %v4254, %v4808
    %v4810 = vsel %vm2751, %v4809, %v4805
    %v4811 = vlaneseq
    %v4812 = vshrl.u32 %v4811, 7
    %v4813 = vsub.s32 %v2753, %v4812
    %v4814 = vrot.slane %v4257, %v4813
    %v4815 = vsel %vm2758, %v4814, %v4810
    %v4816 = vlaneseq
    %v4817 = vshrl.u32 %v4816, 7
    %v4818 = vsub.s32 %v2760, %v4817
    %v4819 = vrot.slane %v4260, %v4818
    %v4820 = vsel %vm2765, %v4819, %v4815
    %v4821 = vlaneseq
    %v4822 = vshrl.u32 %v4821, 7
    %v4823 = vsub.s32 %v2767, %v4822
    %v4824 = vrot.slane %v4263, %v4823
    %v4825 = vsel %vm2772, %v4824, %v4820
    %v4826 = vlaneseq
    %v4827 = vshrl.u32 %v4826, 7
    %v4828 = vsub.s32 %v2774, %v4827
    %v4829 = vrot.slane %v4266, %v4828
    %v4830 = vsel %vm2779, %v4829, %v4825
    %v4831 = vlaneseq
    %v4832 = vshrl.u32 %v4831, 7
    %v4833 = vsub.s32 %v2781, %v4832
    %v4834 = vrot.slane %v4269, %v4833
    %v4835 = vsel %vm2786, %v4834, %v4830
    %v4836 = vlaneseq
    %v4837 = vshrl.u32 %v4836, 7
    %v4838 = vsub.s32 %v2788, %v4837
    %v4839 = vrot.slane %v4272, %v4838
    %v4840 = vsel %vm2793, %v4839, %v4835
    %v4841 = vlaneseq
    %v4842 = vshrl.u32 %v4841, 7
    %v4843 = vsub.s32 %v2795, %v4842
    %v4844 = vrot.slane %v4275, %v4843
    %v4845 = vsel %vm2800, %v4844, %v4840
    %v4846 = vlaneseq
    %v4847 = vshrl.u32 %v4846, 7
    %v4848 = vsub.s32 %v2692, %v4847
    %v4849 = vrot.slane %v4278, %v4848
    %v4850 = vlaneseq
    %v4851 = vshrl.u32 %v4850, 7
    %v4852 = vsub.s32 %v2697, %v4851
    %v4853 = vrot.slane %v4281, %v4852
    %v4854 = vsel %vm2702, %v4853, %v4849
    %v4855 = vlaneseq
    %v4856 = vshrl.u32 %v4855, 7
    %v4857 = vsub.s32 %v2704, %v4856
    %v4858 = vrot.slane %v4284, %v4857
    %v4859 = vsel %vm2709, %v4858, %v4854
    %v4860 = vlaneseq
    %v4861 = vshrl.u32 %v4860, 7
    %v4862 = vsub.s32 %v2711, %v4861
    %v4863 = vrot.slane %v4287, %v4862
    %v4864 = vsel %vm2716, %v4863, %v4859
    %v4865 = vlaneseq
    %v4866 = vshrl.u32 %v4865, 7
    %v4867 = vsub.s32 %v2718, %v4866
    %v4868 = vrot.slane %v4290, %v4867
    %v4869 = vsel %vm2723, %v4868, %v4864
    %v4870 = vlaneseq
    %v4871 = vshrl.u32 %v4870, 7
    %v4872 = vsub.s32 %v2725, %v4871
    %v4873 = vrot.slane %v4293, %v4872
    %v4874 = vsel %vm2730, %v4873, %v4869
    %v4875 = vlaneseq
    %v4876 = vshrl.u32 %v4875, 7
    %v4877 = vsub.s32 %v2732, %v4876
    %v4878 = vrot.slane %v4296, %v4877
    %v4879 = vsel %vm2737, %v4878, %v4874
    %v4880 = vlaneseq
    %v4881 = vshrl.u32 %v4880, 7
    %v4882 = vsub.s32 %v2739, %v4881
    %v4883 = vrot.slane %v4299, %v4882
    %v4884 = vsel %vm2744, %v4883, %v4879
    %v4885 = vlaneseq
    %v4886 = vshrl.u32 %v4885, 7
    %v4887 = vsub.s32 %v2746, %v4886
    %v4888 = vrot.slane %v4302, %v4887
    %v4889 = vsel %vm2751, %v4888, %v4884
    %v4890 = vlaneseq
    %v4891 = vshrl.u32 %v4890, 7
    %v4892 = vsub.s32 %v2753, %v4891
    %v4893 = vrot.slane %v4305, %v4892
    %v4894 = vsel %vm2758, %v4893, %v4889
    %v4895 = vlaneseq
    %v4896 = vshrl.u32 %v4895, 7
    %v4897 = vsub.s32 %v2760, %v4896
    %v4898 = vrot.slane %v4308, %v4897
    %v4899 = vsel %vm2765, %v4898, %v4894
    %v4900 = vlaneseq
    %v4901 = vshrl.u32 %v4900, 7
    %v4902 = vsub.s32 %v2767, %v4901
    %v4903 = vrot.slane %v4311, %v4902
    %v4904 = vsel %vm2772, %v4903, %v4899
    %v4905 = vlaneseq
    %v4906 = vshrl.u32 %v4905, 7
    %v4907 = vsub.s32 %v2774, %v4906
    %v4908 = vrot.slane %v4314, %v4907
    %v4909 = vsel %vm2779, %v4908, %v4904
    %v4910 = vlaneseq
    %v4911 = vshrl.u32 %v4910, 7
    %v4912 = vsub.s32 %v2781, %v4911
    %v4913 = vrot.slane %v4317, %v4912
    %v4914 = vsel %vm2786, %v4913, %v4909
    %v4915 = vlaneseq
    %v4916 = vshrl.u32 %v4915, 7
    %v4917 = vsub.s32 %v2788, %v4916
    %v4918 = vrot.slane %v4320, %v4917
    %v4919 = vsel %vm2793, %v4918, %v4914
    %v4920 = vlaneseq
    %v4921 = vshrl.u32 %v4920, 7
    %v4922 = vsub.s32 %v2795, %v4921
    %v4923 = vrot.slane %v4323, %v4922
    %v4924 = vsel %vm2800, %v4923, %v4919
    %v4925 = vlaneseq
    %v4926 = vshrl.u32 %v4925, 7
    %v4927 = vsub.s32 %v2692, %v4926
    %v4928 = vrot.slane %v4326, %v4927
    %v4929 = vlaneseq
    %v4930 = vshrl.u32 %v4929, 7
    %v4931 = vsub.s32 %v2697, %v4930
    %v4932 = vrot.slane %v4329, %v4931
    %v4933 = vsel %vm2702, %v4932, %v4928
    %v4934 = vlaneseq
    %v4935 = vshrl.u32 %v4934, 7
    %v4936 = vsub.s32 %v2704, %v4935
    %v4937 = vrot.slane %v4332, %v4936
    %v4938 = vsel %vm2709, %v4937, %v4933
    %v4939 = vlaneseq
    %v4940 = vshrl.u32 %v4939, 7
    %v4941 = vsub.s32 %v2711, %v4940
    %v4942 = vrot.slane %v4335, %v4941
    %v4943 = vsel %vm2716, %v4942, %v4938
    %v4944 = vlaneseq
    %v4945 = vshrl.u32 %v4944, 7
    %v4946 = vsub.s32 %v2718, %v4945
    %v4947 = vrot.slane %v4338, %v4946
    %v4948 = vsel %vm2723, %v4947, %v4943
    %v4949 = vlaneseq
    %v4950 = vshrl.u32 %v4949, 7
    %v4951 = vsub.s32 %v2725, %v4950
    %v4952 = vrot.slane %v4341, %v4951
    %v4953 = vsel %vm2730, %v4952, %v4948
    %v4954 = vlaneseq
    %v4955 = vshrl.u32 %v4954, 7
    %v4956 = vsub.s32 %v2732, %v4955
    %v4957 = vrot.slane %v4344, %v4956
    %v4958 = vsel %vm2737, %v4957, %v4953
    %v4959 = vlaneseq
    %v4960 = vshrl.u32 %v4959, 7
    %v4961 = vsub.s32 %v2739, %v4960
    %v4962 = vrot.slane %v4347, %v4961
    %v4963 = vsel %vm2744, %v4962, %v4958
    %v4964 = vlaneseq
    %v4965 = vshrl.u32 %v4964, 7
    %v4966 = vsub.s32 %v2746, %v4965
    %v4967 = vrot.slane %v4350, %v4966
    %v4968 = vsel %vm2751, %v4967, %v4963
    %v4969 = vlaneseq
    %v4970 = vshrl.u32 %v4969, 7
    %v4971 = vsub.s32 %v2753, %v4970
    %v4972 = vrot.slane %v4353, %v4971
    %v4973 = vsel %vm2758, %v4972, %v4968
    %v4974 = vlaneseq
    %v4975 = vshrl.u32 %v4974, 7
    %v4976 = vsub.s32 %v2760, %v4975
    %v4977 = vrot.slane %v4356, %v4976
    %v4978 = vsel %vm2765, %v4977, %v4973
    %v4979 = vlaneseq
    %v4980 = vshrl.u32 %v4979, 7
    %v4981 = vsub.s32 %v2767, %v4980
    %v4982 = vrot.slane %v4359, %v4981
    %v4983 = vsel %vm2772, %v4982, %v4978
    %v4984 = vlaneseq
    %v4985 = vshrl.u32 %v4984, 7
    %v4986 = vsub.s32 %v2774, %v4985
    %v4987 = vrot.slane %v4362, %v4986
    %v4988 = vsel %vm2779, %v4987, %v4983
    %v4989 = vlaneseq
    %v4990 = vshrl.u32 %v4989, 7
    %v4991 = vsub.s32 %v2781, %v4990
    %v4992 = vrot.slane %v4365, %v4991
    %v4993 = vsel %vm2786, %v4992, %v4988
    %v4994 = vlaneseq
    %v4995 = vshrl.u32 %v4994, 7
    %v4996 = vsub.s32 %v2788, %v4995
    %v4997 = vrot.slane %v4368, %v4996
    %v4998 = vsel %vm2793, %v4997, %v4993
    %v4999 = vlaneseq
    %v5000 = vshrl.u32 %v4999, 7
    %v5001 = vsub.s32 %v2795, %v5000
    %v5002 = vrot.slane %v4371, %v5001
    %v5003 = vsel %vm2800, %v5002, %v4998
    %v5004 = vsel %vm3355, %v4766, %v4450
    %v5005 = vsel %vm3355, %v4845, %v4529
    %v5006 = vsel %vm3355, %v4924, %v4608
    %v5007 = vsel %vm3355, %v5003, %v4687
    %v5012 = vadd.f32 %v3364, %v5004
    %v5013 = vadd.f32 %v3365, %v5005
    %v5014 = vadd.f32 %v3366, %v5006
    %v5015 = vadd.f32 %v3367, %v5007
    %v5016 = vlaneseq
    %v5017 = vshrl.u32 %v5016, 7
    %v5018 = vsub.s32 2, %v5017
    %v5019 = vrot.slane %v1659, %v5018
    %v5020 = vlaneseq
    %v5021 = vshrl.u32 %v5020, 7
    %v5022 = vsub.s32 2, %v5021
    %v5023 = vrot.slane %v1660, %v5022
    %v5024 = vlaneseq
    %v5025 = vshrl.u32 %v5024, 7
    %v5026 = vsub.s32 2, %v5025
    %v5027 = vrot.slane %v1661, %v5026
    %v5028 = vlaneseq
    %v5029 = vshrl.u32 %v5028, 7
    %v5030 = vsub.s32 6, %v5029
    %v5031 = vrot.slane %v1661, %v5030
    %v5032 = vlaneseq
    %v5033 = vshrl.u32 %v5032, 7
    %v5034 = vsub.s32 2, %v5033
    %v5035 = vrot.slane %v1662, %v5034
    %v5036 = vlaneseq
    %v5037 = vshrl.u32 %v5036, 7
    %v5038 = vsub.s32 6, %v5037
    %v5039 = vrot.slane %v1662, %v5038
    %v5044 = vlaneseq
    %v5045 = vshrl.u32 %v5044, 7
    %v5046 = vsub.s32 2, %v5045
    %v5047 = vrot.slane %v5027, %v5046
    %v5048 = vlaneseq
    %v5049 = vshrl.u32 %v5048, 7
    %v5050 = vsub.s32 2, %v5049
    %v5051 = vrot.slane %v5031, %v5050
    %v5052 = vlaneseq
    %v5053 = vshrl.u32 %v5052, 7
    %v5054 = vsub.s32 2, %v5053
    %v5055 = vrot.slane %v5035, %v5054
    %v5056 = vlaneseq
    %v5057 = vshrl.u32 %v5056, 7
    %v5058 = vsub.s32 2, %v5057
    %v5059 = vrot.slane %v5039, %v5058
    %5065 = vbcast.lane.b32.xlu0 %v5047, 256
    %v5066 = vpop.permute.xlu0 %5065
    %s5068 = sor.u32 256, 8
    %5069 = vbcast.lane.b32.xlu0 %v5047, %s5068
    %v5070 = vpop.permute.xlu0 %5069
    %s5072 = sor.u32 256, 16
    %5073 = vbcast.lane.b32.xlu0 %v5047, %s5072
    %v5074 = vpop.permute.xlu0 %5073
    %s5076 = sor.u32 256, 24
    %5077 = vbcast.lane.b32.xlu0 %v5047, %s5076
    %v5078 = vpop.permute.xlu0 %5077
    %s5080 = sor.u32 256, 32
    %5081 = vbcast.lane.b32.xlu0 %v5047, %s5080
    %v5082 = vpop.permute.xlu0 %5081
    %s5084 = sor.u32 256, 40
    %5085 = vbcast.lane.b32.xlu0 %v5047, %s5084
    %v5086 = vpop.permute.xlu0 %5085
    %s5088 = sor.u32 256, 48
    %5089 = vbcast.lane.b32.xlu0 %v5047, %s5088
    %v5090 = vpop.permute.xlu0 %5089
    %s5092 = sor.u32 256, 56
    %5093 = vbcast.lane.b32.xlu0 %v5047, %s5092
    %v5094 = vpop.permute.xlu0 %5093
    %s5096 = sor.u32 256, 64
    %5097 = vbcast.lane.b32.xlu0 %v5047, %s5096
    %v5098 = vpop.permute.xlu0 %5097
    %s5100 = sor.u32 256, 72
    %5101 = vbcast.lane.b32.xlu0 %v5047, %s5100
    %v5102 = vpop.permute.xlu0 %5101
    %s5104 = sor.u32 256, 80
    %5105 = vbcast.lane.b32.xlu0 %v5047, %s5104
    %v5106 = vpop.permute.xlu0 %5105
    %s5108 = sor.u32 256, 88
    %5109 = vbcast.lane.b32.xlu0 %v5047, %s5108
    %v5110 = vpop.permute.xlu0 %5109
    %s5112 = sor.u32 256, 96
    %5113 = vbcast.lane.b32.xlu0 %v5047, %s5112
    %v5114 = vpop.permute.xlu0 %5113
    %s5116 = sor.u32 256, 104
    %5117 = vbcast.lane.b32.xlu0 %v5047, %s5116
    %v5118 = vpop.permute.xlu0 %5117
    %s5120 = sor.u32 256, 112
    %5121 = vbcast.lane.b32.xlu0 %v5047, %s5120
    %v5122 = vpop.permute.xlu0 %5121
    %s5124 = sor.u32 256, 120
    %5125 = vbcast.lane.b32.xlu0 %v5047, %s5124
    %v5126 = vpop.permute.xlu0 %5125
    %5128 = vbcast.lane.b32.xlu0 %v5051, 256
    %v5129 = vpop.permute.xlu0 %5128
    %s5131 = sor.u32 256, 8
    %5132 = vbcast.lane.b32.xlu0 %v5051, %s5131
    %v5133 = vpop.permute.xlu0 %5132
    %s5135 = sor.u32 256, 16
    %5136 = vbcast.lane.b32.xlu0 %v5051, %s5135
    %v5137 = vpop.permute.xlu0 %5136
    %s5139 = sor.u32 256, 24
    %5140 = vbcast.lane.b32.xlu0 %v5051, %s5139
    %v5141 = vpop.permute.xlu0 %5140
    %s5143 = sor.u32 256, 32
    %5144 = vbcast.lane.b32.xlu0 %v5051, %s5143
    %v5145 = vpop.permute.xlu0 %5144
    %s5147 = sor.u32 256, 40
    %5148 = vbcast.lane.b32.xlu0 %v5051, %s5147
    %v5149 = vpop.permute.xlu0 %5148
    %s5151 = sor.u32 256, 48
    %5152 = vbcast.lane.b32.xlu0 %v5051, %s5151
    %v5153 = vpop.permute.xlu0 %5152
    %s5155 = sor.u32 256, 56
    %5156 = vbcast.lane.b32.xlu0 %v5051, %s5155
    %v5157 = vpop.permute.xlu0 %5156
    %s5159 = sor.u32 256, 64
    %5160 = vbcast.lane.b32.xlu0 %v5051, %s5159
    %v5161 = vpop.permute.xlu0 %5160
    %s5163 = sor.u32 256, 72
    %5164 = vbcast.lane.b32.xlu0 %v5051, %s5163
    %v5165 = vpop.permute.xlu0 %5164
    %s5167 = sor.u32 256, 80
    %5168 = vbcast.lane.b32.xlu0 %v5051, %s5167
    %v5169 = vpop.permute.xlu0 %5168
    %s5171 = sor.u32 256, 88
    %5172 = vbcast.lane.b32.xlu0 %v5051, %s5171
    %v5173 = vpop.permute.xlu0 %5172
    %s5175 = sor.u32 256, 96
    %5176 = vbcast.lane.b32.xlu0 %v5051, %s5175
    %v5177 = vpop.permute.xlu0 %5176
    %s5179 = sor.u32 256, 104
    %5180 = vbcast.lane.b32.xlu0 %v5051, %s5179
    %v5181 = vpop.permute.xlu0 %5180
    %s5183 = sor.u32 256, 112
    %5184 = vbcast.lane.b32.xlu0 %v5051, %s5183
    %v5185 = vpop.permute.xlu0 %5184
    %s5187 = sor.u32 256, 120
    %5188 = vbcast.lane.b32.xlu0 %v5051, %s5187
    %v5189 = vpop.permute.xlu0 %5188
    %5191 = vbcast.lane.b32.xlu0 %v5055, 256
    %v5192 = vpop.permute.xlu0 %5191
    %s5194 = sor.u32 256, 8
    %5195 = vbcast.lane.b32.xlu0 %v5055, %s5194
    %v5196 = vpop.permute.xlu0 %5195
    %s5198 = sor.u32 256, 16
    %5199 = vbcast.lane.b32.xlu0 %v5055, %s5198
    %v5200 = vpop.permute.xlu0 %5199
    %s5202 = sor.u32 256, 24
    %5203 = vbcast.lane.b32.xlu0 %v5055, %s5202
    %v5204 = vpop.permute.xlu0 %5203
    %s5206 = sor.u32 256, 32
    %5207 = vbcast.lane.b32.xlu0 %v5055, %s5206
    %v5208 = vpop.permute.xlu0 %5207
    %s5210 = sor.u32 256, 40
    %5211 = vbcast.lane.b32.xlu0 %v5055, %s5210
    %v5212 = vpop.permute.xlu0 %5211
    %s5214 = sor.u32 256, 48
    %5215 = vbcast.lane.b32.xlu0 %v5055, %s5214
    %v5216 = vpop.permute.xlu0 %5215
    %s5218 = sor.u32 256, 56
    %5219 = vbcast.lane.b32.xlu0 %v5055, %s5218
    %v5220 = vpop.permute.xlu0 %5219
    %s5222 = sor.u32 256, 64
    %5223 = vbcast.lane.b32.xlu0 %v5055, %s5222
    %v5224 = vpop.permute.xlu0 %5223
    %s5226 = sor.u32 256, 72
    %5227 = vbcast.lane.b32.xlu0 %v5055, %s5226
    %v5228 = vpop.permute.xlu0 %5227
    %s5230 = sor.u32 256, 80
    %5231 = vbcast.lane.b32.xlu0 %v5055, %s5230
    %v5232 = vpop.permute.xlu0 %5231
    %s5234 = sor.u32 256, 88
    %5235 = vbcast.lane.b32.xlu0 %v5055, %s5234
    %v5236 = vpop.permute.xlu0 %5235
    %s5238 = sor.u32 256, 96
    %5239 = vbcast.lane.b32.xlu0 %v5055, %s5238
    %v5240 = vpop.permute.xlu0 %5239
    %s5242 = sor.u32 256, 104
    %5243 = vbcast.lane.b32.xlu0 %v5055, %s5242
    %v5244 = vpop.permute.xlu0 %5243
    %s5246 = sor.u32 256, 112
    %5247 = vbcast.lane.b32.xlu0 %v5055, %s5246
    %v5248 = vpop.permute.xlu0 %5247
    %s5250 = sor.u32 256, 120
    %5251 = vbcast.lane.b32.xlu0 %v5055, %s5250
    %v5252 = vpop.permute.xlu0 %5251
    %5254 = vbcast.lane.b32.xlu0 %v5059, 256
    %v5255 = vpop.permute.xlu0 %5254
    %s5257 = sor.u32 256, 8
    %5258 = vbcast.lane.b32.xlu0 %v5059, %s5257
    %v5259 = vpop.permute.xlu0 %5258
    %s5261 = sor.u32 256, 16
    %5262 = vbcast.lane.b32.xlu0 %v5059, %s5261
    %v5263 = vpop.permute.xlu0 %5262
    %s5265 = sor.u32 256, 24
    %5266 = vbcast.lane.b32.xlu0 %v5059, %s5265
    %v5267 = vpop.permute.xlu0 %5266
    %s5269 = sor.u32 256, 32
    %5270 = vbcast.lane.b32.xlu0 %v5059, %s5269
    %v5271 = vpop.permute.xlu0 %5270
    %s5273 = sor.u32 256, 40
    %5274 = vbcast.lane.b32.xlu0 %v5059, %s5273
    %v5275 = vpop.permute.xlu0 %5274
    %s5277 = sor.u32 256, 48
    %5278 = vbcast.lane.b32.xlu0 %v5059, %s5277
    %v5279 = vpop.permute.xlu0 %5278
    %s5281 = sor.u32 256, 56
    %5282 = vbcast.lane.b32.xlu0 %v5059, %s5281
    %v5283 = vpop.permute.xlu0 %5282
    %s5285 = sor.u32 256, 64
    %5286 = vbcast.lane.b32.xlu0 %v5059, %s5285
    %v5287 = vpop.permute.xlu0 %5286
    %s5289 = sor.u32 256, 72
    %5290 = vbcast.lane.b32.xlu0 %v5059, %s5289
    %v5291 = vpop.permute.xlu0 %5290
    %s5293 = sor.u32 256, 80
    %5294 = vbcast.lane.b32.xlu0 %v5059, %s5293
    %v5295 = vpop.permute.xlu0 %5294
    %s5297 = sor.u32 256, 88
    %5298 = vbcast.lane.b32.xlu0 %v5059, %s5297
    %v5299 = vpop.permute.xlu0 %5298
    %s5301 = sor.u32 256, 96
    %5302 = vbcast.lane.b32.xlu0 %v5059, %s5301
    %v5303 = vpop.permute.xlu0 %5302
    %s5305 = sor.u32 256, 104
    %5306 = vbcast.lane.b32.xlu0 %v5059, %s5305
    %v5307 = vpop.permute.xlu0 %5306
    %s5309 = sor.u32 256, 112
    %5310 = vbcast.lane.b32.xlu0 %v5059, %s5309
    %v5311 = vpop.permute.xlu0 %5310
    %s5313 = sor.u32 256, 120
    %5314 = vbcast.lane.b32.xlu0 %v5059, %s5313
    %v5315 = vpop.permute.xlu0 %5314
    %v5380 = vmul.f32 %v5019, %v5066
    %v5381 = vmul.f32 %v5019, %v5070
    %v5382 = vmul.f32 %v5019, %v5074
    %v5383 = vmul.f32 %v5019, %v5078
    %v5384 = vmul.f32 %v5019, %v5082
    %v5385 = vmul.f32 %v5019, %v5086
    %v5386 = vmul.f32 %v5019, %v5090
    %v5387 = vmul.f32 %v5019, %v5094
    %v5388 = vmul.f32 %v5019, %v5098
    %v5389 = vmul.f32 %v5019, %v5102
    %v5390 = vmul.f32 %v5019, %v5106
    %v5391 = vmul.f32 %v5019, %v5110
    %v5392 = vmul.f32 %v5019, %v5114
    %v5393 = vmul.f32 %v5019, %v5118
    %v5394 = vmul.f32 %v5019, %v5122
    %v5395 = vmul.f32 %v5019, %v5126
    %v5396 = vmul.f32 %v5019, %v5129
    %v5397 = vmul.f32 %v5019, %v5133
    %v5398 = vmul.f32 %v5019, %v5137
    %v5399 = vmul.f32 %v5019, %v5141
    %v5400 = vmul.f32 %v5019, %v5145
    %v5401 = vmul.f32 %v5019, %v5149
    %v5402 = vmul.f32 %v5019, %v5153
    %v5403 = vmul.f32 %v5019, %v5157
    %v5404 = vmul.f32 %v5019, %v5161
    %v5405 = vmul.f32 %v5019, %v5165
    %v5406 = vmul.f32 %v5019, %v5169
    %v5407 = vmul.f32 %v5019, %v5173
    %v5408 = vmul.f32 %v5019, %v5177
    %v5409 = vmul.f32 %v5019, %v5181
    %v5410 = vmul.f32 %v5019, %v5185
    %v5411 = vmul.f32 %v5019, %v5189
    %v5412 = vmul.f32 %v5019, %v5192
    %v5413 = vmul.f32 %v5019, %v5196
    %v5414 = vmul.f32 %v5019, %v5200
    %v5415 = vmul.f32 %v5019, %v5204
    %v5416 = vmul.f32 %v5019, %v5208
    %v5417 = vmul.f32 %v5019, %v5212
    %v5418 = vmul.f32 %v5019, %v5216
    %v5419 = vmul.f32 %v5019, %v5220
    %v5420 = vmul.f32 %v5019, %v5224
    %v5421 = vmul.f32 %v5019, %v5228
    %v5422 = vmul.f32 %v5019, %v5232
    %v5423 = vmul.f32 %v5019, %v5236
    %v5424 = vmul.f32 %v5019, %v5240
    %v5425 = vmul.f32 %v5019, %v5244
    %v5426 = vmul.f32 %v5019, %v5248
    %v5427 = vmul.f32 %v5019, %v5252
    %v5428 = vmul.f32 %v5019, %v5255
    %v5429 = vmul.f32 %v5019, %v5259
    %v5430 = vmul.f32 %v5019, %v5263
    %v5431 = vmul.f32 %v5019, %v5267
    %v5432 = vmul.f32 %v5019, %v5271
    %v5433 = vmul.f32 %v5019, %v5275
    %v5434 = vmul.f32 %v5019, %v5279
    %v5435 = vmul.f32 %v5019, %v5283
    %v5436 = vmul.f32 %v5019, %v5287
    %v5437 = vmul.f32 %v5019, %v5291
    %v5438 = vmul.f32 %v5019, %v5295
    %v5439 = vmul.f32 %v5019, %v5299
    %v5440 = vmul.f32 %v5019, %v5303
    %v5441 = vmul.f32 %v5019, %v5307
    %v5442 = vmul.f32 %v5019, %v5311
    %v5443 = vmul.f32 %v5019, %v5315
    %v5444 = vmul.f32 %v5023, %v5066
    %v5445 = vmul.f32 %v5023, %v5070
    %v5446 = vmul.f32 %v5023, %v5074
    %v5447 = vmul.f32 %v5023, %v5078
    %v5448 = vmul.f32 %v5023, %v5082
    %v5449 = vmul.f32 %v5023, %v5086
    %v5450 = vmul.f32 %v5023, %v5090
    %v5451 = vmul.f32 %v5023, %v5094
    %v5452 = vmul.f32 %v5023, %v5098
    %v5453 = vmul.f32 %v5023, %v5102
    %v5454 = vmul.f32 %v5023, %v5106
    %v5455 = vmul.f32 %v5023, %v5110
    %v5456 = vmul.f32 %v5023, %v5114
    %v5457 = vmul.f32 %v5023, %v5118
    %v5458 = vmul.f32 %v5023, %v5122
    %v5459 = vmul.f32 %v5023, %v5126
    %v5460 = vmul.f32 %v5023, %v5129
    %v5461 = vmul.f32 %v5023, %v5133
    %v5462 = vmul.f32 %v5023, %v5137
    %v5463 = vmul.f32 %v5023, %v5141
    %v5464 = vmul.f32 %v5023, %v5145
    %v5465 = vmul.f32 %v5023, %v5149
    %v5466 = vmul.f32 %v5023, %v5153
    %v5467 = vmul.f32 %v5023, %v5157
    %v5468 = vmul.f32 %v5023, %v5161
    %v5469 = vmul.f32 %v5023, %v5165
    %v5470 = vmul.f32 %v5023, %v5169
    %v5471 = vmul.f32 %v5023, %v5173
    %v5472 = vmul.f32 %v5023, %v5177
    %v5473 = vmul.f32 %v5023, %v5181
    %v5474 = vmul.f32 %v5023, %v5185
    %v5475 = vmul.f32 %v5023, %v5189
    %v5476 = vmul.f32 %v5023, %v5192
    %v5477 = vmul.f32 %v5023, %v5196
    %v5478 = vmul.f32 %v5023, %v5200
    %v5479 = vmul.f32 %v5023, %v5204
    %v5480 = vmul.f32 %v5023, %v5208
    %v5481 = vmul.f32 %v5023, %v5212
    %v5482 = vmul.f32 %v5023, %v5216
    %v5483 = vmul.f32 %v5023, %v5220
    %v5484 = vmul.f32 %v5023, %v5224
    %v5485 = vmul.f32 %v5023, %v5228
    %v5486 = vmul.f32 %v5023, %v5232
    %v5487 = vmul.f32 %v5023, %v5236
    %v5488 = vmul.f32 %v5023, %v5240
    %v5489 = vmul.f32 %v5023, %v5244
    %v5490 = vmul.f32 %v5023, %v5248
    %v5491 = vmul.f32 %v5023, %v5252
    %v5492 = vmul.f32 %v5023, %v5255
    %v5493 = vmul.f32 %v5023, %v5259
    %v5494 = vmul.f32 %v5023, %v5263
    %v5495 = vmul.f32 %v5023, %v5267
    %v5496 = vmul.f32 %v5023, %v5271
    %v5497 = vmul.f32 %v5023, %v5275
    %v5498 = vmul.f32 %v5023, %v5279
    %v5499 = vmul.f32 %v5023, %v5283
    %v5500 = vmul.f32 %v5023, %v5287
    %v5501 = vmul.f32 %v5023, %v5291
    %v5502 = vmul.f32 %v5023, %v5295
    %v5503 = vmul.f32 %v5023, %v5299
    %v5504 = vmul.f32 %v5023, %v5303
    %v5505 = vmul.f32 %v5023, %v5307
    %v5506 = vmul.f32 %v5023, %v5311
    %v5507 = vmul.f32 %v5023, %v5315
    %5636 = vset.pattern.permute.xlu0 0
    %5637 = vperm.xlu0 %5636, %v5380
    %v5638 = vpop.permute.xlu0 %5637
    %5639 = vset.pattern.permute.xlu0 0
    %5640 = vperm.xlu0 %5639, %v5381
    %v5641 = vpop.permute.xlu0 %5640
    %5642 = vset.pattern.permute.xlu0 0
    %5643 = vperm.xlu0 %5642, %v5382
    %v5644 = vpop.permute.xlu0 %5643
    %5645 = vset.pattern.permute.xlu0 0
    %5646 = vperm.xlu0 %5645, %v5383
    %v5647 = vpop.permute.xlu0 %5646
    %5648 = vset.pattern.permute.xlu0 0
    %5649 = vperm.xlu0 %5648, %v5384
    %v5650 = vpop.permute.xlu0 %5649
    %5651 = vset.pattern.permute.xlu0 0
    %5652 = vperm.xlu0 %5651, %v5385
    %v5653 = vpop.permute.xlu0 %5652
    %5654 = vset.pattern.permute.xlu0 0
    %5655 = vperm.xlu0 %5654, %v5386
    %v5656 = vpop.permute.xlu0 %5655
    %5657 = vset.pattern.permute.xlu0 0
    %5658 = vperm.xlu0 %5657, %v5387
    %v5659 = vpop.permute.xlu0 %5658
    %5660 = vset.pattern.permute.xlu0 0
    %5661 = vperm.xlu0 %5660, %v5388
    %v5662 = vpop.permute.xlu0 %5661
    %5663 = vset.pattern.permute.xlu0 0
    %5664 = vperm.xlu0 %5663, %v5389
    %v5665 = vpop.permute.xlu0 %5664
    %5666 = vset.pattern.permute.xlu0 0
    %5667 = vperm.xlu0 %5666, %v5390
    %v5668 = vpop.permute.xlu0 %5667
    %5669 = vset.pattern.permute.xlu0 0
    %5670 = vperm.xlu0 %5669, %v5391
    %v5671 = vpop.permute.xlu0 %5670
    %5672 = vset.pattern.permute.xlu0 0
    %5673 = vperm.xlu0 %5672, %v5392
    %v5674 = vpop.permute.xlu0 %5673
    %5675 = vset.pattern.permute.xlu0 0
    %5676 = vperm.xlu0 %5675, %v5393
    %v5677 = vpop.permute.xlu0 %5676
    %5678 = vset.pattern.permute.xlu0 0
    %5679 = vperm.xlu0 %5678, %v5394
    %v5680 = vpop.permute.xlu0 %5679
    %5681 = vset.pattern.permute.xlu0 0
    %5682 = vperm.xlu0 %5681, %v5395
    %v5683 = vpop.permute.xlu0 %5682
    %5684 = vset.pattern.permute.xlu0 0
    %5685 = vperm.xlu0 %5684, %v5396
    %v5686 = vpop.permute.xlu0 %5685
    %5687 = vset.pattern.permute.xlu0 0
    %5688 = vperm.xlu0 %5687, %v5397
    %v5689 = vpop.permute.xlu0 %5688
    %5690 = vset.pattern.permute.xlu0 0
    %5691 = vperm.xlu0 %5690, %v5398
    %v5692 = vpop.permute.xlu0 %5691
    %5693 = vset.pattern.permute.xlu0 0
    %5694 = vperm.xlu0 %5693, %v5399
    %v5695 = vpop.permute.xlu0 %5694
    %5696 = vset.pattern.permute.xlu0 0
    %5697 = vperm.xlu0 %5696, %v5400
    %v5698 = vpop.permute.xlu0 %5697
    %5699 = vset.pattern.permute.xlu0 0
    %5700 = vperm.xlu0 %5699, %v5401
    %v5701 = vpop.permute.xlu0 %5700
    %5702 = vset.pattern.permute.xlu0 0
    %5703 = vperm.xlu0 %5702, %v5402
    %v5704 = vpop.permute.xlu0 %5703
    %5705 = vset.pattern.permute.xlu0 0
    %5706 = vperm.xlu0 %5705, %v5403
    %v5707 = vpop.permute.xlu0 %5706
    %5708 = vset.pattern.permute.xlu0 0
    %5709 = vperm.xlu0 %5708, %v5404
    %v5710 = vpop.permute.xlu0 %5709
    %5711 = vset.pattern.permute.xlu0 0
    %5712 = vperm.xlu0 %5711, %v5405
    %v5713 = vpop.permute.xlu0 %5712
    %5714 = vset.pattern.permute.xlu0 0
    %5715 = vperm.xlu0 %5714, %v5406
    %v5716 = vpop.permute.xlu0 %5715
    %5717 = vset.pattern.permute.xlu0 0
    %5718 = vperm.xlu0 %5717, %v5407
    %v5719 = vpop.permute.xlu0 %5718
    %5720 = vset.pattern.permute.xlu0 0
    %5721 = vperm.xlu0 %5720, %v5408
    %v5722 = vpop.permute.xlu0 %5721
    %5723 = vset.pattern.permute.xlu0 0
    %5724 = vperm.xlu0 %5723, %v5409
    %v5725 = vpop.permute.xlu0 %5724
    %5726 = vset.pattern.permute.xlu0 0
    %5727 = vperm.xlu0 %5726, %v5410
    %v5728 = vpop.permute.xlu0 %5727
    %5729 = vset.pattern.permute.xlu0 0
    %5730 = vperm.xlu0 %5729, %v5411
    %v5731 = vpop.permute.xlu0 %5730
    %5732 = vset.pattern.permute.xlu0 0
    %5733 = vperm.xlu0 %5732, %v5412
    %v5734 = vpop.permute.xlu0 %5733
    %5735 = vset.pattern.permute.xlu0 0
    %5736 = vperm.xlu0 %5735, %v5413
    %v5737 = vpop.permute.xlu0 %5736
    %5738 = vset.pattern.permute.xlu0 0
    %5739 = vperm.xlu0 %5738, %v5414
    %v5740 = vpop.permute.xlu0 %5739
    %5741 = vset.pattern.permute.xlu0 0
    %5742 = vperm.xlu0 %5741, %v5415
    %v5743 = vpop.permute.xlu0 %5742
    %5744 = vset.pattern.permute.xlu0 0
    %5745 = vperm.xlu0 %5744, %v5416
    %v5746 = vpop.permute.xlu0 %5745
    %5747 = vset.pattern.permute.xlu0 0
    %5748 = vperm.xlu0 %5747, %v5417
    %v5749 = vpop.permute.xlu0 %5748
    %5750 = vset.pattern.permute.xlu0 0
    %5751 = vperm.xlu0 %5750, %v5418
    %v5752 = vpop.permute.xlu0 %5751
    %5753 = vset.pattern.permute.xlu0 0
    %5754 = vperm.xlu0 %5753, %v5419
    %v5755 = vpop.permute.xlu0 %5754
    %5756 = vset.pattern.permute.xlu0 0
    %5757 = vperm.xlu0 %5756, %v5420
    %v5758 = vpop.permute.xlu0 %5757
    %5759 = vset.pattern.permute.xlu0 0
    %5760 = vperm.xlu0 %5759, %v5421
    %v5761 = vpop.permute.xlu0 %5760
    %5762 = vset.pattern.permute.xlu0 0
    %5763 = vperm.xlu0 %5762, %v5422
    %v5764 = vpop.permute.xlu0 %5763
    %5765 = vset.pattern.permute.xlu0 0
    %5766 = vperm.xlu0 %5765, %v5423
    %v5767 = vpop.permute.xlu0 %5766
    %5768 = vset.pattern.permute.xlu0 0
    %5769 = vperm.xlu0 %5768, %v5424
    %v5770 = vpop.permute.xlu0 %5769
    %5771 = vset.pattern.permute.xlu0 0
    %5772 = vperm.xlu0 %5771, %v5425
    %v5773 = vpop.permute.xlu0 %5772
    %5774 = vset.pattern.permute.xlu0 0
    %5775 = vperm.xlu0 %5774, %v5426
    %v5776 = vpop.permute.xlu0 %5775
    %5777 = vset.pattern.permute.xlu0 0
    %5778 = vperm.xlu0 %5777, %v5427
    %v5779 = vpop.permute.xlu0 %5778
    %5780 = vset.pattern.permute.xlu0 0
    %5781 = vperm.xlu0 %5780, %v5428
    %v5782 = vpop.permute.xlu0 %5781
    %5783 = vset.pattern.permute.xlu0 0
    %5784 = vperm.xlu0 %5783, %v5429
    %v5785 = vpop.permute.xlu0 %5784
    %5786 = vset.pattern.permute.xlu0 0
    %5787 = vperm.xlu0 %5786, %v5430
    %v5788 = vpop.permute.xlu0 %5787
    %5789 = vset.pattern.permute.xlu0 0
    %5790 = vperm.xlu0 %5789, %v5431
    %v5791 = vpop.permute.xlu0 %5790
    %5792 = vset.pattern.permute.xlu0 0
    %5793 = vperm.xlu0 %5792, %v5432
    %v5794 = vpop.permute.xlu0 %5793
    %5795 = vset.pattern.permute.xlu0 0
    %5796 = vperm.xlu0 %5795, %v5433
    %v5797 = vpop.permute.xlu0 %5796
    %5798 = vset.pattern.permute.xlu0 0
    %5799 = vperm.xlu0 %5798, %v5434
    %v5800 = vpop.permute.xlu0 %5799
    %5801 = vset.pattern.permute.xlu0 0
    %5802 = vperm.xlu0 %5801, %v5435
    %v5803 = vpop.permute.xlu0 %5802
    %5804 = vset.pattern.permute.xlu0 0
    %5805 = vperm.xlu0 %5804, %v5436
    %v5806 = vpop.permute.xlu0 %5805
    %5807 = vset.pattern.permute.xlu0 0
    %5808 = vperm.xlu0 %5807, %v5437
    %v5809 = vpop.permute.xlu0 %5808
    %5810 = vset.pattern.permute.xlu0 0
    %5811 = vperm.xlu0 %5810, %v5438
    %v5812 = vpop.permute.xlu0 %5811
    %5813 = vset.pattern.permute.xlu0 0
    %5814 = vperm.xlu0 %5813, %v5439
    %v5815 = vpop.permute.xlu0 %5814
    %5816 = vset.pattern.permute.xlu0 0
    %5817 = vperm.xlu0 %5816, %v5440
    %v5818 = vpop.permute.xlu0 %5817
    %5819 = vset.pattern.permute.xlu0 0
    %5820 = vperm.xlu0 %5819, %v5441
    %v5821 = vpop.permute.xlu0 %5820
    %5822 = vset.pattern.permute.xlu0 0
    %5823 = vperm.xlu0 %5822, %v5442
    %v5824 = vpop.permute.xlu0 %5823
    %5825 = vset.pattern.permute.xlu0 0
    %5826 = vperm.xlu0 %5825, %v5443
    %v5827 = vpop.permute.xlu0 %5826
    %5828 = vset.pattern.permute.xlu0 0
    %5829 = vperm.xlu0 %5828, %v5444
    %v5830 = vpop.permute.xlu0 %5829
    %5831 = vset.pattern.permute.xlu0 0
    %5832 = vperm.xlu0 %5831, %v5445
    %v5833 = vpop.permute.xlu0 %5832
    %5834 = vset.pattern.permute.xlu0 0
    %5835 = vperm.xlu0 %5834, %v5446
    %v5836 = vpop.permute.xlu0 %5835
    %5837 = vset.pattern.permute.xlu0 0
    %5838 = vperm.xlu0 %5837, %v5447
    %v5839 = vpop.permute.xlu0 %5838
    %5840 = vset.pattern.permute.xlu0 0
    %5841 = vperm.xlu0 %5840, %v5448
    %v5842 = vpop.permute.xlu0 %5841
    %5843 = vset.pattern.permute.xlu0 0
    %5844 = vperm.xlu0 %5843, %v5449
    %v5845 = vpop.permute.xlu0 %5844
    %5846 = vset.pattern.permute.xlu0 0
    %5847 = vperm.xlu0 %5846, %v5450
    %v5848 = vpop.permute.xlu0 %5847
    %5849 = vset.pattern.permute.xlu0 0
    %5850 = vperm.xlu0 %5849, %v5451
    %v5851 = vpop.permute.xlu0 %5850
    %5852 = vset.pattern.permute.xlu0 0
    %5853 = vperm.xlu0 %5852, %v5452
    %v5854 = vpop.permute.xlu0 %5853
    %5855 = vset.pattern.permute.xlu0 0
    %5856 = vperm.xlu0 %5855, %v5453
    %v5857 = vpop.permute.xlu0 %5856
    %5858 = vset.pattern.permute.xlu0 0
    %5859 = vperm.xlu0 %5858, %v5454
    %v5860 = vpop.permute.xlu0 %5859
    %5861 = vset.pattern.permute.xlu0 0
    %5862 = vperm.xlu0 %5861, %v5455
    %v5863 = vpop.permute.xlu0 %5862
    %5864 = vset.pattern.permute.xlu0 0
    %5865 = vperm.xlu0 %5864, %v5456
    %v5866 = vpop.permute.xlu0 %5865
    %5867 = vset.pattern.permute.xlu0 0
    %5868 = vperm.xlu0 %5867, %v5457
    %v5869 = vpop.permute.xlu0 %5868
    %5870 = vset.pattern.permute.xlu0 0
    %5871 = vperm.xlu0 %5870, %v5458
    %v5872 = vpop.permute.xlu0 %5871
    %5873 = vset.pattern.permute.xlu0 0
    %5874 = vperm.xlu0 %5873, %v5459
    %v5875 = vpop.permute.xlu0 %5874
    %5876 = vset.pattern.permute.xlu0 0
    %5877 = vperm.xlu0 %5876, %v5460
    %v5878 = vpop.permute.xlu0 %5877
    %5879 = vset.pattern.permute.xlu0 0
    %5880 = vperm.xlu0 %5879, %v5461
    %v5881 = vpop.permute.xlu0 %5880
    %5882 = vset.pattern.permute.xlu0 0
    %5883 = vperm.xlu0 %5882, %v5462
    %v5884 = vpop.permute.xlu0 %5883
    %5885 = vset.pattern.permute.xlu0 0
    %5886 = vperm.xlu0 %5885, %v5463
    %v5887 = vpop.permute.xlu0 %5886
    %5888 = vset.pattern.permute.xlu0 0
    %5889 = vperm.xlu0 %5888, %v5464
    %v5890 = vpop.permute.xlu0 %5889
    %5891 = vset.pattern.permute.xlu0 0
    %5892 = vperm.xlu0 %5891, %v5465
    %v5893 = vpop.permute.xlu0 %5892
    %5894 = vset.pattern.permute.xlu0 0
    %5895 = vperm.xlu0 %5894, %v5466
    %v5896 = vpop.permute.xlu0 %5895
    %5897 = vset.pattern.permute.xlu0 0
    %5898 = vperm.xlu0 %5897, %v5467
    %v5899 = vpop.permute.xlu0 %5898
    %5900 = vset.pattern.permute.xlu0 0
    %5901 = vperm.xlu0 %5900, %v5468
    %v5902 = vpop.permute.xlu0 %5901
    %5903 = vset.pattern.permute.xlu0 0
    %5904 = vperm.xlu0 %5903, %v5469
    %v5905 = vpop.permute.xlu0 %5904
    %5906 = vset.pattern.permute.xlu0 0
    %5907 = vperm.xlu0 %5906, %v5470
    %v5908 = vpop.permute.xlu0 %5907
    %5909 = vset.pattern.permute.xlu0 0
    %5910 = vperm.xlu0 %5909, %v5471
    %v5911 = vpop.permute.xlu0 %5910
    %5912 = vset.pattern.permute.xlu0 0
    %5913 = vperm.xlu0 %5912, %v5472
    %v5914 = vpop.permute.xlu0 %5913
    %5915 = vset.pattern.permute.xlu0 0
    %5916 = vperm.xlu0 %5915, %v5473
    %v5917 = vpop.permute.xlu0 %5916
    %5918 = vset.pattern.permute.xlu0 0
    %5919 = vperm.xlu0 %5918, %v5474
    %v5920 = vpop.permute.xlu0 %5919
    %5921 = vset.pattern.permute.xlu0 0
    %5922 = vperm.xlu0 %5921, %v5475
    %v5923 = vpop.permute.xlu0 %5922
    %5924 = vset.pattern.permute.xlu0 0
    %5925 = vperm.xlu0 %5924, %v5476
    %v5926 = vpop.permute.xlu0 %5925
    %5927 = vset.pattern.permute.xlu0 0
    %5928 = vperm.xlu0 %5927, %v5477
    %v5929 = vpop.permute.xlu0 %5928
    %5930 = vset.pattern.permute.xlu0 0
    %5931 = vperm.xlu0 %5930, %v5478
    %v5932 = vpop.permute.xlu0 %5931
    %5933 = vset.pattern.permute.xlu0 0
    %5934 = vperm.xlu0 %5933, %v5479
    %v5935 = vpop.permute.xlu0 %5934
    %5936 = vset.pattern.permute.xlu0 0
    %5937 = vperm.xlu0 %5936, %v5480
    %v5938 = vpop.permute.xlu0 %5937
    %5939 = vset.pattern.permute.xlu0 0
    %5940 = vperm.xlu0 %5939, %v5481
    %v5941 = vpop.permute.xlu0 %5940
    %5942 = vset.pattern.permute.xlu0 0
    %5943 = vperm.xlu0 %5942, %v5482
    %v5944 = vpop.permute.xlu0 %5943
    %5945 = vset.pattern.permute.xlu0 0
    %5946 = vperm.xlu0 %5945, %v5483
    %v5947 = vpop.permute.xlu0 %5946
    %5948 = vset.pattern.permute.xlu0 0
    %5949 = vperm.xlu0 %5948, %v5484
    %v5950 = vpop.permute.xlu0 %5949
    %5951 = vset.pattern.permute.xlu0 0
    %5952 = vperm.xlu0 %5951, %v5485
    %v5953 = vpop.permute.xlu0 %5952
    %5954 = vset.pattern.permute.xlu0 0
    %5955 = vperm.xlu0 %5954, %v5486
    %v5956 = vpop.permute.xlu0 %5955
    %5957 = vset.pattern.permute.xlu0 0
    %5958 = vperm.xlu0 %5957, %v5487
    %v5959 = vpop.permute.xlu0 %5958
    %5960 = vset.pattern.permute.xlu0 0
    %5961 = vperm.xlu0 %5960, %v5488
    %v5962 = vpop.permute.xlu0 %5961
    %5963 = vset.pattern.permute.xlu0 0
    %5964 = vperm.xlu0 %5963, %v5489
    %v5965 = vpop.permute.xlu0 %5964
    %5966 = vset.pattern.permute.xlu0 0
    %5967 = vperm.xlu0 %5966, %v5490
    %v5968 = vpop.permute.xlu0 %5967
    %5969 = vset.pattern.permute.xlu0 0
    %5970 = vperm.xlu0 %5969, %v5491
    %v5971 = vpop.permute.xlu0 %5970
    %5972 = vset.pattern.permute.xlu0 0
    %5973 = vperm.xlu0 %5972, %v5492
    %v5974 = vpop.permute.xlu0 %5973
    %5975 = vset.pattern.permute.xlu0 0
    %5976 = vperm.xlu0 %5975, %v5493
    %v5977 = vpop.permute.xlu0 %5976
    %5978 = vset.pattern.permute.xlu0 0
    %5979 = vperm.xlu0 %5978, %v5494
    %v5980 = vpop.permute.xlu0 %5979
    %5981 = vset.pattern.permute.xlu0 0
    %5982 = vperm.xlu0 %5981, %v5495
    %v5983 = vpop.permute.xlu0 %5982
    %5984 = vset.pattern.permute.xlu0 0
    %5985 = vperm.xlu0 %5984, %v5496
    %v5986 = vpop.permute.xlu0 %5985
    %5987 = vset.pattern.permute.xlu0 0
    %5988 = vperm.xlu0 %5987, %v5497
    %v5989 = vpop.permute.xlu0 %5988
    %5990 = vset.pattern.permute.xlu0 0
    %5991 = vperm.xlu0 %5990, %v5498
    %v5992 = vpop.permute.xlu0 %5991
    %5993 = vset.pattern.permute.xlu0 0
    %5994 = vperm.xlu0 %5993, %v5499
    %v5995 = vpop.permute.xlu0 %5994
    %5996 = vset.pattern.permute.xlu0 0
    %5997 = vperm.xlu0 %5996, %v5500
    %v5998 = vpop.permute.xlu0 %5997
    %5999 = vset.pattern.permute.xlu0 0
    %6000 = vperm.xlu0 %5999, %v5501
    %v6001 = vpop.permute.xlu0 %6000
    %6002 = vset.pattern.permute.xlu0 0
    %6003 = vperm.xlu0 %6002, %v5502
    %v6004 = vpop.permute.xlu0 %6003
    %6005 = vset.pattern.permute.xlu0 0
    %6006 = vperm.xlu0 %6005, %v5503
    %v6007 = vpop.permute.xlu0 %6006
    %6008 = vset.pattern.permute.xlu0 0
    %6009 = vperm.xlu0 %6008, %v5504
    %v6010 = vpop.permute.xlu0 %6009
    %6011 = vset.pattern.permute.xlu0 0
    %6012 = vperm.xlu0 %6011, %v5505
    %v6013 = vpop.permute.xlu0 %6012
    %6014 = vset.pattern.permute.xlu0 0
    %6015 = vperm.xlu0 %6014, %v5506
    %v6016 = vpop.permute.xlu0 %6015
    %6017 = vset.pattern.permute.xlu0 0
    %6018 = vperm.xlu0 %6017, %v5507
    %v6019 = vpop.permute.xlu0 %6018
    %v6020 = vlaneseq
    %v6021 = vshrl.u32 %v6020, 7
    %v6022 = vsub.s32 %v2692, %v6021
    %v6023 = vrot.slane %v5638, %v6022
    %v6024 = vlaneseq
    %v6025 = vshrl.u32 %v6024, 7
    %v6026 = vsub.s32 %v2697, %v6025
    %v6027 = vrot.slane %v5641, %v6026
    %v6028 = vsel %vm2702, %v6027, %v6023
    %v6029 = vlaneseq
    %v6030 = vshrl.u32 %v6029, 7
    %v6031 = vsub.s32 %v2704, %v6030
    %v6032 = vrot.slane %v5644, %v6031
    %v6033 = vsel %vm2709, %v6032, %v6028
    %v6034 = vlaneseq
    %v6035 = vshrl.u32 %v6034, 7
    %v6036 = vsub.s32 %v2711, %v6035
    %v6037 = vrot.slane %v5647, %v6036
    %v6038 = vsel %vm2716, %v6037, %v6033
    %v6039 = vlaneseq
    %v6040 = vshrl.u32 %v6039, 7
    %v6041 = vsub.s32 %v2718, %v6040
    %v6042 = vrot.slane %v5650, %v6041
    %v6043 = vsel %vm2723, %v6042, %v6038
    %v6044 = vlaneseq
    %v6045 = vshrl.u32 %v6044, 7
    %v6046 = vsub.s32 %v2725, %v6045
    %v6047 = vrot.slane %v5653, %v6046
    %v6048 = vsel %vm2730, %v6047, %v6043
    %v6049 = vlaneseq
    %v6050 = vshrl.u32 %v6049, 7
    %v6051 = vsub.s32 %v2732, %v6050
    %v6052 = vrot.slane %v5656, %v6051
    %v6053 = vsel %vm2737, %v6052, %v6048
    %v6054 = vlaneseq
    %v6055 = vshrl.u32 %v6054, 7
    %v6056 = vsub.s32 %v2739, %v6055
    %v6057 = vrot.slane %v5659, %v6056
    %v6058 = vsel %vm2744, %v6057, %v6053
    %v6059 = vlaneseq
    %v6060 = vshrl.u32 %v6059, 7
    %v6061 = vsub.s32 %v2746, %v6060
    %v6062 = vrot.slane %v5662, %v6061
    %v6063 = vsel %vm2751, %v6062, %v6058
    %v6064 = vlaneseq
    %v6065 = vshrl.u32 %v6064, 7
    %v6066 = vsub.s32 %v2753, %v6065
    %v6067 = vrot.slane %v5665, %v6066
    %v6068 = vsel %vm2758, %v6067, %v6063
    %v6069 = vlaneseq
    %v6070 = vshrl.u32 %v6069, 7
    %v6071 = vsub.s32 %v2760, %v6070
    %v6072 = vrot.slane %v5668, %v6071
    %v6073 = vsel %vm2765, %v6072, %v6068
    %v6074 = vlaneseq
    %v6075 = vshrl.u32 %v6074, 7
    %v6076 = vsub.s32 %v2767, %v6075
    %v6077 = vrot.slane %v5671, %v6076
    %v6078 = vsel %vm2772, %v6077, %v6073
    %v6079 = vlaneseq
    %v6080 = vshrl.u32 %v6079, 7
    %v6081 = vsub.s32 %v2774, %v6080
    %v6082 = vrot.slane %v5674, %v6081
    %v6083 = vsel %vm2779, %v6082, %v6078
    %v6084 = vlaneseq
    %v6085 = vshrl.u32 %v6084, 7
    %v6086 = vsub.s32 %v2781, %v6085
    %v6087 = vrot.slane %v5677, %v6086
    %v6088 = vsel %vm2786, %v6087, %v6083
    %v6089 = vlaneseq
    %v6090 = vshrl.u32 %v6089, 7
    %v6091 = vsub.s32 %v2788, %v6090
    %v6092 = vrot.slane %v5680, %v6091
    %v6093 = vsel %vm2793, %v6092, %v6088
    %v6094 = vlaneseq
    %v6095 = vshrl.u32 %v6094, 7
    %v6096 = vsub.s32 %v2795, %v6095
    %v6097 = vrot.slane %v5683, %v6096
    %v6098 = vsel %vm2800, %v6097, %v6093
    %v6099 = vlaneseq
    %v6100 = vshrl.u32 %v6099, 7
    %v6101 = vsub.s32 %v2692, %v6100
    %v6102 = vrot.slane %v5686, %v6101
    %v6103 = vlaneseq
    %v6104 = vshrl.u32 %v6103, 7
    %v6105 = vsub.s32 %v2697, %v6104
    %v6106 = vrot.slane %v5689, %v6105
    %v6107 = vsel %vm2702, %v6106, %v6102
    %v6108 = vlaneseq
    %v6109 = vshrl.u32 %v6108, 7
    %v6110 = vsub.s32 %v2704, %v6109
    %v6111 = vrot.slane %v5692, %v6110
    %v6112 = vsel %vm2709, %v6111, %v6107
    %v6113 = vlaneseq
    %v6114 = vshrl.u32 %v6113, 7
    %v6115 = vsub.s32 %v2711, %v6114
    %v6116 = vrot.slane %v5695, %v6115
    %v6117 = vsel %vm2716, %v6116, %v6112
    %v6118 = vlaneseq
    %v6119 = vshrl.u32 %v6118, 7
    %v6120 = vsub.s32 %v2718, %v6119
    %v6121 = vrot.slane %v5698, %v6120
    %v6122 = vsel %vm2723, %v6121, %v6117
    %v6123 = vlaneseq
    %v6124 = vshrl.u32 %v6123, 7
    %v6125 = vsub.s32 %v2725, %v6124
    %v6126 = vrot.slane %v5701, %v6125
    %v6127 = vsel %vm2730, %v6126, %v6122
    %v6128 = vlaneseq
    %v6129 = vshrl.u32 %v6128, 7
    %v6130 = vsub.s32 %v2732, %v6129
    %v6131 = vrot.slane %v5704, %v6130
    %v6132 = vsel %vm2737, %v6131, %v6127
    %v6133 = vlaneseq
    %v6134 = vshrl.u32 %v6133, 7
    %v6135 = vsub.s32 %v2739, %v6134
    %v6136 = vrot.slane %v5707, %v6135
    %v6137 = vsel %vm2744, %v6136, %v6132
    %v6138 = vlaneseq
    %v6139 = vshrl.u32 %v6138, 7
    %v6140 = vsub.s32 %v2746, %v6139
    %v6141 = vrot.slane %v5710, %v6140
    %v6142 = vsel %vm2751, %v6141, %v6137
    %v6143 = vlaneseq
    %v6144 = vshrl.u32 %v6143, 7
    %v6145 = vsub.s32 %v2753, %v6144
    %v6146 = vrot.slane %v5713, %v6145
    %v6147 = vsel %vm2758, %v6146, %v6142
    %v6148 = vlaneseq
    %v6149 = vshrl.u32 %v6148, 7
    %v6150 = vsub.s32 %v2760, %v6149
    %v6151 = vrot.slane %v5716, %v6150
    %v6152 = vsel %vm2765, %v6151, %v6147
    %v6153 = vlaneseq
    %v6154 = vshrl.u32 %v6153, 7
    %v6155 = vsub.s32 %v2767, %v6154
    %v6156 = vrot.slane %v5719, %v6155
    %v6157 = vsel %vm2772, %v6156, %v6152
    %v6158 = vlaneseq
    %v6159 = vshrl.u32 %v6158, 7
    %v6160 = vsub.s32 %v2774, %v6159
    %v6161 = vrot.slane %v5722, %v6160
    %v6162 = vsel %vm2779, %v6161, %v6157
    %v6163 = vlaneseq
    %v6164 = vshrl.u32 %v6163, 7
    %v6165 = vsub.s32 %v2781, %v6164
    %v6166 = vrot.slane %v5725, %v6165
    %v6167 = vsel %vm2786, %v6166, %v6162
    %v6168 = vlaneseq
    %v6169 = vshrl.u32 %v6168, 7
    %v6170 = vsub.s32 %v2788, %v6169
    %v6171 = vrot.slane %v5728, %v6170
    %v6172 = vsel %vm2793, %v6171, %v6167
    %v6173 = vlaneseq
    %v6174 = vshrl.u32 %v6173, 7
    %v6175 = vsub.s32 %v2795, %v6174
    %v6176 = vrot.slane %v5731, %v6175
    %v6177 = vsel %vm2800, %v6176, %v6172
    %v6178 = vlaneseq
    %v6179 = vshrl.u32 %v6178, 7
    %v6180 = vsub.s32 %v2692, %v6179
    %v6181 = vrot.slane %v5734, %v6180
    %v6182 = vlaneseq
    %v6183 = vshrl.u32 %v6182, 7
    %v6184 = vsub.s32 %v2697, %v6183
    %v6185 = vrot.slane %v5737, %v6184
    %v6186 = vsel %vm2702, %v6185, %v6181
    %v6187 = vlaneseq
    %v6188 = vshrl.u32 %v6187, 7
    %v6189 = vsub.s32 %v2704, %v6188
    %v6190 = vrot.slane %v5740, %v6189
    %v6191 = vsel %vm2709, %v6190, %v6186
    %v6192 = vlaneseq
    %v6193 = vshrl.u32 %v6192, 7
    %v6194 = vsub.s32 %v2711, %v6193
    %v6195 = vrot.slane %v5743, %v6194
    %v6196 = vsel %vm2716, %v6195, %v6191
    %v6197 = vlaneseq
    %v6198 = vshrl.u32 %v6197, 7
    %v6199 = vsub.s32 %v2718, %v6198
    %v6200 = vrot.slane %v5746, %v6199
    %v6201 = vsel %vm2723, %v6200, %v6196
    %v6202 = vlaneseq
    %v6203 = vshrl.u32 %v6202, 7
    %v6204 = vsub.s32 %v2725, %v6203
    %v6205 = vrot.slane %v5749, %v6204
    %v6206 = vsel %vm2730, %v6205, %v6201
    %v6207 = vlaneseq
    %v6208 = vshrl.u32 %v6207, 7
    %v6209 = vsub.s32 %v2732, %v6208
    %v6210 = vrot.slane %v5752, %v6209
    %v6211 = vsel %vm2737, %v6210, %v6206
    %v6212 = vlaneseq
    %v6213 = vshrl.u32 %v6212, 7
    %v6214 = vsub.s32 %v2739, %v6213
    %v6215 = vrot.slane %v5755, %v6214
    %v6216 = vsel %vm2744, %v6215, %v6211
    %v6217 = vlaneseq
    %v6218 = vshrl.u32 %v6217, 7
    %v6219 = vsub.s32 %v2746, %v6218
    %v6220 = vrot.slane %v5758, %v6219
    %v6221 = vsel %vm2751, %v6220, %v6216
    %v6222 = vlaneseq
    %v6223 = vshrl.u32 %v6222, 7
    %v6224 = vsub.s32 %v2753, %v6223
    %v6225 = vrot.slane %v5761, %v6224
    %v6226 = vsel %vm2758, %v6225, %v6221
    %v6227 = vlaneseq
    %v6228 = vshrl.u32 %v6227, 7
    %v6229 = vsub.s32 %v2760, %v6228
    %v6230 = vrot.slane %v5764, %v6229
    %v6231 = vsel %vm2765, %v6230, %v6226
    %v6232 = vlaneseq
    %v6233 = vshrl.u32 %v6232, 7
    %v6234 = vsub.s32 %v2767, %v6233
    %v6235 = vrot.slane %v5767, %v6234
    %v6236 = vsel %vm2772, %v6235, %v6231
    %v6237 = vlaneseq
    %v6238 = vshrl.u32 %v6237, 7
    %v6239 = vsub.s32 %v2774, %v6238
    %v6240 = vrot.slane %v5770, %v6239
    %v6241 = vsel %vm2779, %v6240, %v6236
    %v6242 = vlaneseq
    %v6243 = vshrl.u32 %v6242, 7
    %v6244 = vsub.s32 %v2781, %v6243
    %v6245 = vrot.slane %v5773, %v6244
    %v6246 = vsel %vm2786, %v6245, %v6241
    %v6247 = vlaneseq
    %v6248 = vshrl.u32 %v6247, 7
    %v6249 = vsub.s32 %v2788, %v6248
    %v6250 = vrot.slane %v5776, %v6249
    %v6251 = vsel %vm2793, %v6250, %v6246
    %v6252 = vlaneseq
    %v6253 = vshrl.u32 %v6252, 7
    %v6254 = vsub.s32 %v2795, %v6253
    %v6255 = vrot.slane %v5779, %v6254
    %v6256 = vsel %vm2800, %v6255, %v6251
    %v6257 = vlaneseq
    %v6258 = vshrl.u32 %v6257, 7
    %v6259 = vsub.s32 %v2692, %v6258
    %v6260 = vrot.slane %v5782, %v6259
    %v6261 = vlaneseq
    %v6262 = vshrl.u32 %v6261, 7
    %v6263 = vsub.s32 %v2697, %v6262
    %v6264 = vrot.slane %v5785, %v6263
    %v6265 = vsel %vm2702, %v6264, %v6260
    %v6266 = vlaneseq
    %v6267 = vshrl.u32 %v6266, 7
    %v6268 = vsub.s32 %v2704, %v6267
    %v6269 = vrot.slane %v5788, %v6268
    %v6270 = vsel %vm2709, %v6269, %v6265
    %v6271 = vlaneseq
    %v6272 = vshrl.u32 %v6271, 7
    %v6273 = vsub.s32 %v2711, %v6272
    %v6274 = vrot.slane %v5791, %v6273
    %v6275 = vsel %vm2716, %v6274, %v6270
    %v6276 = vlaneseq
    %v6277 = vshrl.u32 %v6276, 7
    %v6278 = vsub.s32 %v2718, %v6277
    %v6279 = vrot.slane %v5794, %v6278
    %v6280 = vsel %vm2723, %v6279, %v6275
    %v6281 = vlaneseq
    %v6282 = vshrl.u32 %v6281, 7
    %v6283 = vsub.s32 %v2725, %v6282
    %v6284 = vrot.slane %v5797, %v6283
    %v6285 = vsel %vm2730, %v6284, %v6280
    %v6286 = vlaneseq
    %v6287 = vshrl.u32 %v6286, 7
    %v6288 = vsub.s32 %v2732, %v6287
    %v6289 = vrot.slane %v5800, %v6288
    %v6290 = vsel %vm2737, %v6289, %v6285
    %v6291 = vlaneseq
    %v6292 = vshrl.u32 %v6291, 7
    %v6293 = vsub.s32 %v2739, %v6292
    %v6294 = vrot.slane %v5803, %v6293
    %v6295 = vsel %vm2744, %v6294, %v6290
    %v6296 = vlaneseq
    %v6297 = vshrl.u32 %v6296, 7
    %v6298 = vsub.s32 %v2746, %v6297
    %v6299 = vrot.slane %v5806, %v6298
    %v6300 = vsel %vm2751, %v6299, %v6295
    %v6301 = vlaneseq
    %v6302 = vshrl.u32 %v6301, 7
    %v6303 = vsub.s32 %v2753, %v6302
    %v6304 = vrot.slane %v5809, %v6303
    %v6305 = vsel %vm2758, %v6304, %v6300
    %v6306 = vlaneseq
    %v6307 = vshrl.u32 %v6306, 7
    %v6308 = vsub.s32 %v2760, %v6307
    %v6309 = vrot.slane %v5812, %v6308
    %v6310 = vsel %vm2765, %v6309, %v6305
    %v6311 = vlaneseq
    %v6312 = vshrl.u32 %v6311, 7
    %v6313 = vsub.s32 %v2767, %v6312
    %v6314 = vrot.slane %v5815, %v6313
    %v6315 = vsel %vm2772, %v6314, %v6310
    %v6316 = vlaneseq
    %v6317 = vshrl.u32 %v6316, 7
    %v6318 = vsub.s32 %v2774, %v6317
    %v6319 = vrot.slane %v5818, %v6318
    %v6320 = vsel %vm2779, %v6319, %v6315
    %v6321 = vlaneseq
    %v6322 = vshrl.u32 %v6321, 7
    %v6323 = vsub.s32 %v2781, %v6322
    %v6324 = vrot.slane %v5821, %v6323
    %v6325 = vsel %vm2786, %v6324, %v6320
    %v6326 = vlaneseq
    %v6327 = vshrl.u32 %v6326, 7
    %v6328 = vsub.s32 %v2788, %v6327
    %v6329 = vrot.slane %v5824, %v6328
    %v6330 = vsel %vm2793, %v6329, %v6325
    %v6331 = vlaneseq
    %v6332 = vshrl.u32 %v6331, 7
    %v6333 = vsub.s32 %v2795, %v6332
    %v6334 = vrot.slane %v5827, %v6333
    %v6335 = vsel %vm2800, %v6334, %v6330
    %v6336 = vlaneseq
    %v6337 = vshrl.u32 %v6336, 7
    %v6338 = vsub.s32 %v2692, %v6337
    %v6339 = vrot.slane %v5830, %v6338
    %v6340 = vlaneseq
    %v6341 = vshrl.u32 %v6340, 7
    %v6342 = vsub.s32 %v2697, %v6341
    %v6343 = vrot.slane %v5833, %v6342
    %v6344 = vsel %vm2702, %v6343, %v6339
    %v6345 = vlaneseq
    %v6346 = vshrl.u32 %v6345, 7
    %v6347 = vsub.s32 %v2704, %v6346
    %v6348 = vrot.slane %v5836, %v6347
    %v6349 = vsel %vm2709, %v6348, %v6344
    %v6350 = vlaneseq
    %v6351 = vshrl.u32 %v6350, 7
    %v6352 = vsub.s32 %v2711, %v6351
    %v6353 = vrot.slane %v5839, %v6352
    %v6354 = vsel %vm2716, %v6353, %v6349
    %v6355 = vlaneseq
    %v6356 = vshrl.u32 %v6355, 7
    %v6357 = vsub.s32 %v2718, %v6356
    %v6358 = vrot.slane %v5842, %v6357
    %v6359 = vsel %vm2723, %v6358, %v6354
    %v6360 = vlaneseq
    %v6361 = vshrl.u32 %v6360, 7
    %v6362 = vsub.s32 %v2725, %v6361
    %v6363 = vrot.slane %v5845, %v6362
    %v6364 = vsel %vm2730, %v6363, %v6359
    %v6365 = vlaneseq
    %v6366 = vshrl.u32 %v6365, 7
    %v6367 = vsub.s32 %v2732, %v6366
    %v6368 = vrot.slane %v5848, %v6367
    %v6369 = vsel %vm2737, %v6368, %v6364
    %v6370 = vlaneseq
    %v6371 = vshrl.u32 %v6370, 7
    %v6372 = vsub.s32 %v2739, %v6371
    %v6373 = vrot.slane %v5851, %v6372
    %v6374 = vsel %vm2744, %v6373, %v6369
    %v6375 = vlaneseq
    %v6376 = vshrl.u32 %v6375, 7
    %v6377 = vsub.s32 %v2746, %v6376
    %v6378 = vrot.slane %v5854, %v6377
    %v6379 = vsel %vm2751, %v6378, %v6374
    %v6380 = vlaneseq
    %v6381 = vshrl.u32 %v6380, 7
    %v6382 = vsub.s32 %v2753, %v6381
    %v6383 = vrot.slane %v5857, %v6382
    %v6384 = vsel %vm2758, %v6383, %v6379
    %v6385 = vlaneseq
    %v6386 = vshrl.u32 %v6385, 7
    %v6387 = vsub.s32 %v2760, %v6386
    %v6388 = vrot.slane %v5860, %v6387
    %v6389 = vsel %vm2765, %v6388, %v6384
    %v6390 = vlaneseq
    %v6391 = vshrl.u32 %v6390, 7
    %v6392 = vsub.s32 %v2767, %v6391
    %v6393 = vrot.slane %v5863, %v6392
    %v6394 = vsel %vm2772, %v6393, %v6389
    %v6395 = vlaneseq
    %v6396 = vshrl.u32 %v6395, 7
    %v6397 = vsub.s32 %v2774, %v6396
    %v6398 = vrot.slane %v5866, %v6397
    %v6399 = vsel %vm2779, %v6398, %v6394
    %v6400 = vlaneseq
    %v6401 = vshrl.u32 %v6400, 7
    %v6402 = vsub.s32 %v2781, %v6401
    %v6403 = vrot.slane %v5869, %v6402
    %v6404 = vsel %vm2786, %v6403, %v6399
    %v6405 = vlaneseq
    %v6406 = vshrl.u32 %v6405, 7
    %v6407 = vsub.s32 %v2788, %v6406
    %v6408 = vrot.slane %v5872, %v6407
    %v6409 = vsel %vm2793, %v6408, %v6404
    %v6410 = vlaneseq
    %v6411 = vshrl.u32 %v6410, 7
    %v6412 = vsub.s32 %v2795, %v6411
    %v6413 = vrot.slane %v5875, %v6412
    %v6414 = vsel %vm2800, %v6413, %v6409
    %v6415 = vlaneseq
    %v6416 = vshrl.u32 %v6415, 7
    %v6417 = vsub.s32 %v2692, %v6416
    %v6418 = vrot.slane %v5878, %v6417
    %v6419 = vlaneseq
    %v6420 = vshrl.u32 %v6419, 7
    %v6421 = vsub.s32 %v2697, %v6420
    %v6422 = vrot.slane %v5881, %v6421
    %v6423 = vsel %vm2702, %v6422, %v6418
    %v6424 = vlaneseq
    %v6425 = vshrl.u32 %v6424, 7
    %v6426 = vsub.s32 %v2704, %v6425
    %v6427 = vrot.slane %v5884, %v6426
    %v6428 = vsel %vm2709, %v6427, %v6423
    %v6429 = vlaneseq
    %v6430 = vshrl.u32 %v6429, 7
    %v6431 = vsub.s32 %v2711, %v6430
    %v6432 = vrot.slane %v5887, %v6431
    %v6433 = vsel %vm2716, %v6432, %v6428
    %v6434 = vlaneseq
    %v6435 = vshrl.u32 %v6434, 7
    %v6436 = vsub.s32 %v2718, %v6435
    %v6437 = vrot.slane %v5890, %v6436
    %v6438 = vsel %vm2723, %v6437, %v6433
    %v6439 = vlaneseq
    %v6440 = vshrl.u32 %v6439, 7
    %v6441 = vsub.s32 %v2725, %v6440
    %v6442 = vrot.slane %v5893, %v6441
    %v6443 = vsel %vm2730, %v6442, %v6438
    %v6444 = vlaneseq
    %v6445 = vshrl.u32 %v6444, 7
    %v6446 = vsub.s32 %v2732, %v6445
    %v6447 = vrot.slane %v5896, %v6446
    %v6448 = vsel %vm2737, %v6447, %v6443
    %v6449 = vlaneseq
    %v6450 = vshrl.u32 %v6449, 7
    %v6451 = vsub.s32 %v2739, %v6450
    %v6452 = vrot.slane %v5899, %v6451
    %v6453 = vsel %vm2744, %v6452, %v6448
    %v6454 = vlaneseq
    %v6455 = vshrl.u32 %v6454, 7
    %v6456 = vsub.s32 %v2746, %v6455
    %v6457 = vrot.slane %v5902, %v6456
    %v6458 = vsel %vm2751, %v6457, %v6453
    %v6459 = vlaneseq
    %v6460 = vshrl.u32 %v6459, 7
    %v6461 = vsub.s32 %v2753, %v6460
    %v6462 = vrot.slane %v5905, %v6461
    %v6463 = vsel %vm2758, %v6462, %v6458
    %v6464 = vlaneseq
    %v6465 = vshrl.u32 %v6464, 7
    %v6466 = vsub.s32 %v2760, %v6465
    %v6467 = vrot.slane %v5908, %v6466
    %v6468 = vsel %vm2765, %v6467, %v6463
    %v6469 = vlaneseq
    %v6470 = vshrl.u32 %v6469, 7
    %v6471 = vsub.s32 %v2767, %v6470
    %v6472 = vrot.slane %v5911, %v6471
    %v6473 = vsel %vm2772, %v6472, %v6468
    %v6474 = vlaneseq
    %v6475 = vshrl.u32 %v6474, 7
    %v6476 = vsub.s32 %v2774, %v6475
    %v6477 = vrot.slane %v5914, %v6476
    %v6478 = vsel %vm2779, %v6477, %v6473
    %v6479 = vlaneseq
    %v6480 = vshrl.u32 %v6479, 7
    %v6481 = vsub.s32 %v2781, %v6480
    %v6482 = vrot.slane %v5917, %v6481
    %v6483 = vsel %vm2786, %v6482, %v6478
    %v6484 = vlaneseq
    %v6485 = vshrl.u32 %v6484, 7
    %v6486 = vsub.s32 %v2788, %v6485
    %v6487 = vrot.slane %v5920, %v6486
    %v6488 = vsel %vm2793, %v6487, %v6483
    %v6489 = vlaneseq
    %v6490 = vshrl.u32 %v6489, 7
    %v6491 = vsub.s32 %v2795, %v6490
    %v6492 = vrot.slane %v5923, %v6491
    %v6493 = vsel %vm2800, %v6492, %v6488
    %v6494 = vlaneseq
    %v6495 = vshrl.u32 %v6494, 7
    %v6496 = vsub.s32 %v2692, %v6495
    %v6497 = vrot.slane %v5926, %v6496
    %v6498 = vlaneseq
    %v6499 = vshrl.u32 %v6498, 7
    %v6500 = vsub.s32 %v2697, %v6499
    %v6501 = vrot.slane %v5929, %v6500
    %v6502 = vsel %vm2702, %v6501, %v6497
    %v6503 = vlaneseq
    %v6504 = vshrl.u32 %v6503, 7
    %v6505 = vsub.s32 %v2704, %v6504
    %v6506 = vrot.slane %v5932, %v6505
    %v6507 = vsel %vm2709, %v6506, %v6502
    %v6508 = vlaneseq
    %v6509 = vshrl.u32 %v6508, 7
    %v6510 = vsub.s32 %v2711, %v6509
    %v6511 = vrot.slane %v5935, %v6510
    %v6512 = vsel %vm2716, %v6511, %v6507
    %v6513 = vlaneseq
    %v6514 = vshrl.u32 %v6513, 7
    %v6515 = vsub.s32 %v2718, %v6514
    %v6516 = vrot.slane %v5938, %v6515
    %v6517 = vsel %vm2723, %v6516, %v6512
    %v6518 = vlaneseq
    %v6519 = vshrl.u32 %v6518, 7
    %v6520 = vsub.s32 %v2725, %v6519
    %v6521 = vrot.slane %v5941, %v6520
    %v6522 = vsel %vm2730, %v6521, %v6517
    %v6523 = vlaneseq
    %v6524 = vshrl.u32 %v6523, 7
    %v6525 = vsub.s32 %v2732, %v6524
    %v6526 = vrot.slane %v5944, %v6525
    %v6527 = vsel %vm2737, %v6526, %v6522
    %v6528 = vlaneseq
    %v6529 = vshrl.u32 %v6528, 7
    %v6530 = vsub.s32 %v2739, %v6529
    %v6531 = vrot.slane %v5947, %v6530
    %v6532 = vsel %vm2744, %v6531, %v6527
    %v6533 = vlaneseq
    %v6534 = vshrl.u32 %v6533, 7
    %v6535 = vsub.s32 %v2746, %v6534
    %v6536 = vrot.slane %v5950, %v6535
    %v6537 = vsel %vm2751, %v6536, %v6532
    %v6538 = vlaneseq
    %v6539 = vshrl.u32 %v6538, 7
    %v6540 = vsub.s32 %v2753, %v6539
    %v6541 = vrot.slane %v5953, %v6540
    %v6542 = vsel %vm2758, %v6541, %v6537
    %v6543 = vlaneseq
    %v6544 = vshrl.u32 %v6543, 7
    %v6545 = vsub.s32 %v2760, %v6544
    %v6546 = vrot.slane %v5956, %v6545
    %v6547 = vsel %vm2765, %v6546, %v6542
    %v6548 = vlaneseq
    %v6549 = vshrl.u32 %v6548, 7
    %v6550 = vsub.s32 %v2767, %v6549
    %v6551 = vrot.slane %v5959, %v6550
    %v6552 = vsel %vm2772, %v6551, %v6547
    %v6553 = vlaneseq
    %v6554 = vshrl.u32 %v6553, 7
    %v6555 = vsub.s32 %v2774, %v6554
    %v6556 = vrot.slane %v5962, %v6555
    %v6557 = vsel %vm2779, %v6556, %v6552
    %v6558 = vlaneseq
    %v6559 = vshrl.u32 %v6558, 7
    %v6560 = vsub.s32 %v2781, %v6559
    %v6561 = vrot.slane %v5965, %v6560
    %v6562 = vsel %vm2786, %v6561, %v6557
    %v6563 = vlaneseq
    %v6564 = vshrl.u32 %v6563, 7
    %v6565 = vsub.s32 %v2788, %v6564
    %v6566 = vrot.slane %v5968, %v6565
    %v6567 = vsel %vm2793, %v6566, %v6562
    %v6568 = vlaneseq
    %v6569 = vshrl.u32 %v6568, 7
    %v6570 = vsub.s32 %v2795, %v6569
    %v6571 = vrot.slane %v5971, %v6570
    %v6572 = vsel %vm2800, %v6571, %v6567
    %v6573 = vlaneseq
    %v6574 = vshrl.u32 %v6573, 7
    %v6575 = vsub.s32 %v2692, %v6574
    %v6576 = vrot.slane %v5974, %v6575
    %v6577 = vlaneseq
    %v6578 = vshrl.u32 %v6577, 7
    %v6579 = vsub.s32 %v2697, %v6578
    %v6580 = vrot.slane %v5977, %v6579
    %v6581 = vsel %vm2702, %v6580, %v6576
    %v6582 = vlaneseq
    %v6583 = vshrl.u32 %v6582, 7
    %v6584 = vsub.s32 %v2704, %v6583
    %v6585 = vrot.slane %v5980, %v6584
    %v6586 = vsel %vm2709, %v6585, %v6581
    %v6587 = vlaneseq
    %v6588 = vshrl.u32 %v6587, 7
    %v6589 = vsub.s32 %v2711, %v6588
    %v6590 = vrot.slane %v5983, %v6589
    %v6591 = vsel %vm2716, %v6590, %v6586
    %v6592 = vlaneseq
    %v6593 = vshrl.u32 %v6592, 7
    %v6594 = vsub.s32 %v2718, %v6593
    %v6595 = vrot.slane %v5986, %v6594
    %v6596 = vsel %vm2723, %v6595, %v6591
    %v6597 = vlaneseq
    %v6598 = vshrl.u32 %v6597, 7
    %v6599 = vsub.s32 %v2725, %v6598
    %v6600 = vrot.slane %v5989, %v6599
    %v6601 = vsel %vm2730, %v6600, %v6596
    %v6602 = vlaneseq
    %v6603 = vshrl.u32 %v6602, 7
    %v6604 = vsub.s32 %v2732, %v6603
    %v6605 = vrot.slane %v5992, %v6604
    %v6606 = vsel %vm2737, %v6605, %v6601
    %v6607 = vlaneseq
    %v6608 = vshrl.u32 %v6607, 7
    %v6609 = vsub.s32 %v2739, %v6608
    %v6610 = vrot.slane %v5995, %v6609
    %v6611 = vsel %vm2744, %v6610, %v6606
    %v6612 = vlaneseq
    %v6613 = vshrl.u32 %v6612, 7
    %v6614 = vsub.s32 %v2746, %v6613
    %v6615 = vrot.slane %v5998, %v6614
    %v6616 = vsel %vm2751, %v6615, %v6611
    %v6617 = vlaneseq
    %v6618 = vshrl.u32 %v6617, 7
    %v6619 = vsub.s32 %v2753, %v6618
    %v6620 = vrot.slane %v6001, %v6619
    %v6621 = vsel %vm2758, %v6620, %v6616
    %v6622 = vlaneseq
    %v6623 = vshrl.u32 %v6622, 7
    %v6624 = vsub.s32 %v2760, %v6623
    %v6625 = vrot.slane %v6004, %v6624
    %v6626 = vsel %vm2765, %v6625, %v6621
    %v6627 = vlaneseq
    %v6628 = vshrl.u32 %v6627, 7
    %v6629 = vsub.s32 %v2767, %v6628
    %v6630 = vrot.slane %v6007, %v6629
    %v6631 = vsel %vm2772, %v6630, %v6626
    %v6632 = vlaneseq
    %v6633 = vshrl.u32 %v6632, 7
    %v6634 = vsub.s32 %v2774, %v6633
    %v6635 = vrot.slane %v6010, %v6634
    %v6636 = vsel %vm2779, %v6635, %v6631
    %v6637 = vlaneseq
    %v6638 = vshrl.u32 %v6637, 7
    %v6639 = vsub.s32 %v2781, %v6638
    %v6640 = vrot.slane %v6013, %v6639
    %v6641 = vsel %vm2786, %v6640, %v6636
    %v6642 = vlaneseq
    %v6643 = vshrl.u32 %v6642, 7
    %v6644 = vsub.s32 %v2788, %v6643
    %v6645 = vrot.slane %v6016, %v6644
    %v6646 = vsel %vm2793, %v6645, %v6641
    %v6647 = vlaneseq
    %v6648 = vshrl.u32 %v6647, 7
    %v6649 = vsub.s32 %v2795, %v6648
    %v6650 = vrot.slane %v6019, %v6649
    %v6651 = vsel %vm2800, %v6650, %v6646
    %v6652 = vsel %vm3355, %v6414, %v6098
    %v6653 = vsel %vm3355, %v6493, %v6177
    %v6654 = vsel %vm3355, %v6572, %v6256
    %v6655 = vsel %vm3355, %v6651, %v6335
    %v6660 = vadd.f32 %v5012, %v6652
    %v6661 = vadd.f32 %v5013, %v6653
    %v6662 = vadd.f32 %v5014, %v6654
    %v6663 = vadd.f32 %v5015, %v6655
    %v6664 = vmax.f32 %v6660, 0.0
    %v6665 = vmax.f32 %v6661, 0.0
    %v6666 = vmax.f32 %v6662, 0.0
    %v6667 = vmax.f32 %v6663, 0.0
    %v6668 = vpack.c.bf16 %v1638, %v1638
    %v6669 = vld [vmem:[%s7] sm:$0xff]
    %v6670 = vld [vmem:[%s7 + $0x8] sm:$0xff]
    %v6671 = vld [vmem:[%s7 + $0x10] sm:$0xff]
    %v6672 = vld [vmem:[%s7 + $0x18] sm:$0xff]
    %v6673 = vld [vmem:[%s7 + $0x20] sm:$0xff]
    %v6674 = vld [vmem:[%s7 + $0x28] sm:$0xff]
    %v6675 = vld [vmem:[%s7 + $0x30] sm:$0xff]
    %v6676 = vld [vmem:[%s7 + $0x38] sm:$0xff]
    %s6677 = scalar_lea.vmem %s8, 1
    %v6678 = vld [vmem:[%s6677] ss:$2 sm:$0xf]
    %v6680 = vlaneseq
    %v6681 = vshrl.u32 %v6680, 7
    %v6682 = vsub.s32 0, %v6681
    %v6683 = vrot.slane %v6678, %v6682
    %v6684 = vlaneseq
    %v6685 = vshrl.u32 %v6684, 7
    %v6686 = vsub.s32 1, %v6685
    %v6687 = vrot.slane %v6678, %v6686
    %v6688 = vlaneseq
    %v6689 = vshrl.u32 %v6688, 7
    %v6690 = vsub.s32 2, %v6689
    %v6691 = vrot.slane %v6678, %v6690
    %v6692 = vlaneseq
    %v6693 = vshrl.u32 %v6692, 7
    %v6694 = vsub.s32 3, %v6693
    %v6695 = vrot.slane %v6678, %v6694
    %6701 = vrot.lane.b32.xlu0 %v6668, 64
    %v6702 = vpop.permute.xlu0 %6701
    %v6711 = vunpack.c.l.b16 %v6669
    %v6712 = vunpack.c.h.b16 %v6669
    %v6713 = vunpack.c.l.b16 %v6670
    %v6714 = vunpack.c.h.b16 %v6670
    %v6715 = vunpack.c.l.b16 %v6671
    %v6716 = vunpack.c.h.b16 %v6671
    %v6717 = vunpack.c.l.b16 %v6672
    %v6718 = vunpack.c.h.b16 %v6672
    %v6719 = vunpack.c.l.b16 %v6673
    %v6720 = vunpack.c.h.b16 %v6673
    %v6721 = vunpack.c.l.b16 %v6674
    %v6722 = vunpack.c.h.b16 %v6674
    %v6723 = vunpack.c.l.b16 %v6675
    %v6724 = vunpack.c.h.b16 %v6675
    %v6725 = vunpack.c.l.b16 %v6676
    %v6726 = vunpack.c.h.b16 %v6676
    %v6727 = vpack.c.b16 %v6715, %v6711
    %v6728 = vpack.c.b16 %v6716, %v6712
    %v6729 = vpack.c.b16 %v6717, %v6713
    %v6730 = vpack.c.b16 %v6718, %v6714
    %v6731 = vpack.c.b16 %v6723, %v6719
    %v6732 = vpack.c.b16 %v6724, %v6720
    %v6733 = vpack.c.b16 %v6725, %v6721
    %v6734 = vpack.c.b16 %v6726, %v6722
    %v6744 = vsel %vm197, %v6702, 0
    %6746 = vmatprep.subr.bf16.mxu0 %v6728
    %6747 = vmatpush1.bf16.msra.mxu0 %v6727
    %6748 = vmatprep.subr.bf16.mxu0 %v6732
    %6749 = vmatpush1.bf16.msra.mxu0 %v6731
    %6750 = vmatprep.subr.bf16.mxu0 0
    %6751 = vmatpush1.bf16.msra.mxu0 0
    %6752 = vmatprep.subr.bf16.mxu0 0
    %6753 = vmatpush1.bf16.msra.mxu0 0
    %6754 = vmatprep.subr.bf16.mxu0 0
    %6755 = vmatpush1.bf16.msra.mxu0 0
    %6756 = vmatprep.subr.bf16.mxu0 0
    %6757 = vmatpush1.bf16.msra.mxu0 0
    %6758 = vmatprep.subr.bf16.mxu0 0
    %6759 = vmatpush1.bf16.msra.mxu0 0
    %6760 = vmatprep.subr.bf16.mxu0 0
    %6761 = vmatpush1.bf16.msra.mxu0 0
    %6762 = vmatprep.subr.bf16.mxu0 0
    %6763 = vmatpush1.bf16.msra.mxu0 0
    %6764 = vmatprep.subr.bf16.mxu0 0
    %6765 = vmatpush1.bf16.msra.mxu0 0
    %6766 = vmatprep.subr.bf16.mxu0 0
    %6767 = vmatpush1.bf16.msra.mxu0 0
    %6768 = vmatprep.subr.bf16.mxu0 0
    %6769 = vmatpush1.bf16.msra.mxu0 0
    %6770 = vmatprep.subr.bf16.mxu0 0
    %6771 = vmatpush1.bf16.msra.mxu0 0
    %6772 = vmatprep.subr.bf16.mxu0 0
    %6773 = vmatpush1.bf16.msra.mxu0 0
    %6774 = vmatprep.subr.bf16.mxu0 0
    %6775 = vmatpush1.bf16.msra.mxu0 0
    %6776 = vmatprep.subr.bf16.mxu0 0
    %6777 = vmatpush1.bf16.msra.mxu0 0
    %6778 = vmatprep.mubr.bf16.mxu0 0
    %6779 = vmatmul.mubr.bf16.gmra.mrb[0].mxu0 %v6744
    %v6780 = vpop.f32.mrb[0].mxu0
    %v6781 = vadd.f32 %v6683, %v6780
    %v6782 = vpop.f32.mrb[0].mxu0
    %v6783 = vadd.f32 %v6687, %v6782
    %v6784 = vpop.f32.mrb[0].mxu0
    %v6785 = vpop.f32.mrb[0].mxu0
    %6786 = vdwg.mxu0
    %6787 = vmatprep.subr.bf16.mxu0 %v6730
    %6788 = vmatpush1.bf16.msra.mxu0 %v6729
    %6789 = vmatprep.subr.bf16.mxu0 %v6734
    %6790 = vmatpush1.bf16.msra.mxu0 %v6733
    %6791 = vmatprep.subr.bf16.mxu0 0
    %6792 = vmatpush1.bf16.msra.mxu0 0
    %6793 = vmatprep.subr.bf16.mxu0 0
    %6794 = vmatpush1.bf16.msra.mxu0 0
    %6795 = vmatprep.subr.bf16.mxu0 0
    %6796 = vmatpush1.bf16.msra.mxu0 0
    %6797 = vmatprep.subr.bf16.mxu0 0
    %6798 = vmatpush1.bf16.msra.mxu0 0
    %6799 = vmatprep.subr.bf16.mxu0 0
    %6800 = vmatpush1.bf16.msra.mxu0 0
    %6801 = vmatprep.subr.bf16.mxu0 0
    %6802 = vmatpush1.bf16.msra.mxu0 0
    %6803 = vmatprep.subr.bf16.mxu0 0
    %6804 = vmatpush1.bf16.msra.mxu0 0
    %6805 = vmatprep.subr.bf16.mxu0 0
    %6806 = vmatpush1.bf16.msra.mxu0 0
    %6807 = vmatprep.subr.bf16.mxu0 0
    %6808 = vmatpush1.bf16.msra.mxu0 0
    %6809 = vmatprep.subr.bf16.mxu0 0
    %6810 = vmatpush1.bf16.msra.mxu0 0
    %6811 = vmatprep.subr.bf16.mxu0 0
    %6812 = vmatpush1.bf16.msra.mxu0 0
    %6813 = vmatprep.subr.bf16.mxu0 0
    %6814 = vmatpush1.bf16.msra.mxu0 0
    %6815 = vmatprep.subr.bf16.mxu0 0
    %6816 = vmatpush1.bf16.msra.mxu0 0
    %6817 = vmatprep.subr.bf16.mxu0 0
    %6818 = vmatpush1.bf16.msra.mxu0 0
    %6819 = vmatprep.mubr.bf16.mxu0 0
    %6820 = vmatmul.mubr.bf16.gmra.mrb[0].mxu0 %v6744
    %v6821 = vpop.f32.mrb[0].mxu0
    %v6822 = vadd.f32 %v6691, %v6821
    %v6823 = vpop.f32.mrb[0].mxu0
    %v6824 = vadd.f32 %v6695, %v6823
    %v6825 = vpop.f32.mrb[0].mxu0
    %v6826 = vpop.f32.mrb[0].mxu0
    %6827 = vdwg.mxu0
    %v6828 = vmax.f32 %v6781, 0.0
    %v6829 = vmax.f32 %v6783, 0.0
    %v6830 = vmax.f32 %v6822, 0.0
    %v6831 = vmax.f32 %v6824, 0.0
    %v6836 = vrot.slane %v6828, 6
    %v6837 = vrot.slane %v6829, 6
    %v6838 = vrot.slane %v6830, 6
    %v6839 = vrot.slane %v6831, 6
    %v6844 = vsel %vm880, %v6664, %v6836
    %v6845 = vsel %vm880, %v6665, %v6837
    %v6846 = vsel %vm880, %v6666, %v6838
    %v6847 = vsel %vm880, %v6667, %v6839
    %s6848 = smul.u32 4, 64
    %s6849 = smul.u32 %s6848, 1
    %s6850 = sshll.u32 %s6849, 4
    %6851 = dma.done [#allocation3], %s6850
    %v6852 = vpack.c.bf16 %v6844, %v6844
    %v6853 = vpack.c.bf16 %v6845, %v6845
    %v6854 = vpack.c.bf16 %v6846, %v6846
    %v6855 = vpack.c.bf16 %v6847, %v6847
    %v6856 = vld [vmem:[#allocation2] sm:$0xff]
    %v6857 = vld [vmem:[#allocation2 + $0x8] sm:$0xff]
    %v6858 = vld [vmem:[#allocation2 + $0x10] sm:$0xff]
    %v6859 = vld [vmem:[#allocation2 + $0x18] sm:$0xff]
    %v6860 = vld [vmem:[#allocation2 + $0x20] sm:$0xff]
    %v6861 = vld [vmem:[#allocation2 + $0x28] sm:$0xff]
    %v6862 = vld [vmem:[#allocation2 + $0x30] sm:$0xff]
    %v6863 = vld [vmem:[#allocation2 + $0x38] sm:$0xff]
    %v6864 = vld [vmem:[#allocation2 + $0x40] sm:$0xff]
    %v6865 = vld [vmem:[#allocation2 + $0x48] sm:$0xff]
    %v6866 = vld [vmem:[#allocation2 + $0x50] sm:$0xff]
    %v6867 = vld [vmem:[#allocation2 + $0x58] sm:$0xff]
    %v6868 = vld [vmem:[#allocation2 + $0x60] sm:$0xff]
    %v6869 = vld [vmem:[#allocation2 + $0x68] sm:$0xff]
    %v6870 = vld [vmem:[#allocation2 + $0x70] sm:$0xff]
    %v6871 = vld [vmem:[#allocation2 + $0x78] sm:$0xff]
    %v6872 = vld [vmem:[#allocation2 + $0x80] sm:$0xff]
    %v6873 = vld [vmem:[#allocation2 + $0x88] sm:$0xff]
    %v6874 = vld [vmem:[#allocation2 + $0x90] sm:$0xff]
    %v6875 = vld [vmem:[#allocation2 + $0x98] sm:$0xff]
    %v6876 = vld [vmem:[#allocation2 + $0xa0] sm:$0xff]
    %v6877 = vld [vmem:[#allocation2 + $0xa8] sm:$0xff]
    %v6878 = vld [vmem:[#allocation2 + $0xb0] sm:$0xff]
    %v6879 = vld [vmem:[#allocation2 + $0xb8] sm:$0xff]
    %v6880 = vld [vmem:[#allocation2 + $0xc0] sm:$0xff]
    %v6881 = vld [vmem:[#allocation2 + $0xc8] sm:$0xff]
    %v6882 = vld [vmem:[#allocation2 + $0xd0] sm:$0xff]
    %v6883 = vld [vmem:[#allocation2 + $0xd8] sm:$0xff]
    %v6884 = vld [vmem:[#allocation2 + $0xe0] sm:$0xff]
    %v6885 = vld [vmem:[#allocation2 + $0xe8] sm:$0xff]
    %v6886 = vld [vmem:[#allocation2 + $0xf0] sm:$0xff]
    %v6887 = vld [vmem:[#allocation2 + $0xf8] sm:$0xff]
    %6888 = vmatprep.subr.bf16.mxu0 0
    %6889 = vmatpush1.bf16.msra.mxu0 %v6856
    %6890 = vmatprep.subr.bf16.mxu0 0
    %6891 = vmatpush1.bf16.msra.mxu0 %v6857
    %6892 = vmatprep.subr.bf16.mxu0 0
    %6893 = vmatpush1.bf16.msra.mxu0 %v6858
    %6894 = vmatprep.subr.bf16.mxu0 0
    %6895 = vmatpush1.bf16.msra.mxu0 %v6859
    %6896 = vmatprep.subr.bf16.mxu0 0
    %6897 = vmatpush1.bf16.msra.mxu0 %v6860
    %6898 = vmatprep.subr.bf16.mxu0 0
    %6899 = vmatpush1.bf16.msra.mxu0 %v6861
    %6900 = vmatprep.subr.bf16.mxu0 0
    %6901 = vmatpush1.bf16.msra.mxu0 %v6862
    %6902 = vmatprep.subr.bf16.mxu0 0
    %6903 = vmatpush1.bf16.msra.mxu0 %v6863
    %6904 = vmatprep.subr.bf16.mxu0 0
    %6905 = vmatpush1.bf16.msra.mxu0 %v6864
    %6906 = vmatprep.subr.bf16.mxu0 0
    %6907 = vmatpush1.bf16.msra.mxu0 %v6865
    %6908 = vmatprep.subr.bf16.mxu0 0
    %6909 = vmatpush1.bf16.msra.mxu0 %v6866
    %6910 = vmatprep.subr.bf16.mxu0 0
    %6911 = vmatpush1.bf16.msra.mxu0 %v6867
    %6912 = vmatprep.subr.bf16.mxu0 0
    %6913 = vmatpush1.bf16.msra.mxu0 %v6868
    %6914 = vmatprep.subr.bf16.mxu0 0
    %6915 = vmatpush1.bf16.msra.mxu0 %v6869
    %6916 = vmatprep.subr.bf16.mxu0 0
    %6917 = vmatpush1.bf16.msra.mxu0 %v6870
    %6918 = vmatprep.subr.bf16.mxu0 0
    %6919 = vmatpush1.bf16.msra.mxu0 %v6871
    %6920 = vmatprep.mubr.bf16.mxu0 %v6853
    %6921 = vmatmul.mubr.bf16.gmra.mrb[0].mxu0 %v6852
    %v6922 = vpop.f32.mrb[0].mxu0
    %v6923 = vadd.f32 0.0, %v6922
    %v6924 = vpop.f32.mrb[0].mxu0
    %v6925 = vpop.f32.mrb[0].mxu0
    %v6926 = vpop.f32.mrb[0].mxu0
    %6927 = vdwg.mxu0
    %6928 = vmatprep.subr.bf16.mxu0 0
    %6929 = vmatpush1.bf16.msra.mxu0 %v6872
    %6930 = vmatprep.subr.bf16.mxu0 0
    %6931 = vmatpush1.bf16.msra.mxu0 %v6873
    %6932 = vmatprep.subr.bf16.mxu0 0
    %6933 = vmatpush1.bf16.msra.mxu0 %v6874
    %6934 = vmatprep.subr.bf16.mxu0 0
    %6935 = vmatpush1.bf16.msra.mxu0 %v6875
    %6936 = vmatprep.subr.bf16.mxu0 0
    %6937 = vmatpush1.bf16.msra.mxu0 %v6876
    %6938 = vmatprep.subr.bf16.mxu0 0
    %6939 = vmatpush1.bf16.msra.mxu0 %v6877
    %6940 = vmatprep.subr.bf16.mxu0 0
    %6941 = vmatpush1.bf16.msra.mxu0 %v6878
    %6942 = vmatprep.subr.bf16.mxu0 0
    %6943 = vmatpush1.bf16.msra.mxu0 %v6879
    %6944 = vmatprep.subr.bf16.mxu0 0
    %6945 = vmatpush1.bf16.msra.mxu0 %v6880
    %6946 = vmatprep.subr.bf16.mxu0 0
    %6947 = vmatpush1.bf16.msra.mxu0 %v6881
    %6948 = vmatprep.subr.bf16.mxu0 0
    %6949 = vmatpush1.bf16.msra.mxu0 %v6882
    %6950 = vmatprep.subr.bf16.mxu0 0
    %6951 = vmatpush1.bf16.msra.mxu0 %v6883
    %6952 = vmatprep.subr.bf16.mxu0 0
    %6953 = vmatpush1.bf16.msra.mxu0 %v6884
    %6954 = vmatprep.subr.bf16.mxu0 0
    %6955 = vmatpush1.bf16.msra.mxu0 %v6885
    %6956 = vmatprep.subr.bf16.mxu0 0
    %6957 = vmatpush1.bf16.msra.mxu0 %v6886
    %6958 = vmatprep.subr.bf16.mxu0 0
    %6959 = vmatpush1.bf16.msra.mxu0 %v6887
    %6960 = vmatprep.mubr.bf16.mxu0 %v6855
    %6961 = vmatmul.mubr.bf16.gmra.mrb[0].mxu0 %v6854
    %v6962 = vpop.f32.mrb[0].mxu0
    %v6963 = vadd.f32 %v6923, %v6962
    %v6964 = vpop.f32.mrb[0].mxu0
    %v6965 = vpop.f32.mrb[0].mxu0
    %v6966 = vpop.f32.mrb[0].mxu0
    %6967 = vdwg.mxu0
    %6969 = vrot.lane.b32.xlu0 %v6963, 64
    %v6970 = vpop.permute.xlu0 %6969
    %v6972 = vsel %vm880, %v6963, %v6970
    %v6973 = vld [vmem:[#allocation4] sm:$0xf]
    %v6974 = vld [vmem:[#allocation4 + $0x4] sm:$0xf]
    %v6975 = vld [vmem:[#allocation4 + $0x8] sm:$0xf]
    %v6976 = vadd.f32 %v6972, %v6973
    %vm6977 = vcmask 519168
    %v6978 = vsel %vm6977, %v6976, 0.0
    %6979 = vadd.xlane.f32.xlu0 %v6978
    %v6980 = vpop.xlane.xlu0 %6979
    %v6981 = vrcp.pop 64.0
    %v6982 = vmul.f32 %v6980, %v6981
    %v6983 = vsub.f32 %v6976, %v6982
    %v6984 = vmul.f32 %v6983, %v6983
    %v6985 = vsel %vm6977, %v6984, 0.0
    %6986 = vadd.xlane.f32.xlu0 %v6985
    %v6987 = vpop.xlane.xlu0 %6986
    %v6988 = vmul.f32 %v6987, %v6981
    %v6989 = vadd.f32 %v6988, 1e-05
    %v6990 = vrsqrt.pop %v6989
    %v6991 = vmul.f32 %v6983, %v6990
    %v6992 = vmul.f32 %v6991, %v6974
    %v6993 = vadd.f32 %v6992, %v6975
    %v6994 = vmul.f32 %v6993, %v6993
    %v6995 = vsel %vm6977, %v6994, 0.0
    %6996 = vadd.xlane.f32.xlu0 %v6995
    %v6997 = vpop.xlane.xlu0 %6996
    %v6998 = vmax.f32 %v6997, 1e-24
    %v6999 = vrsqrt.pop %v6998
    %v7000 = vmul.f32 %v6993, %v6999
    %7001 = vst.msk [vmem:[%s11] sm:$0xf] %vm6977, %v7000
    // Predicated region
    $region80: #{dual_encoder_forward.1} parent=1 // pred_check
      _
    $region81: #{dual_encoder_forward.1} parent=1 // pred_check_branch
      %7003 = sbr.rel (0) target = $region83
    $region82: #{dual_encoder_forward.1} parent=1 // pred_region
      _
    $region83: #{dual_encoder_forward.1} parent=1 // pred_fallthru
      _
    // Predicated region
    $region84: #{dual_encoder_forward.1} parent=1 // pred_check
      _
    $region85: #{dual_encoder_forward.1} parent=1 // pred_check_branch
      %7005 = sbr.rel (0) target = $region87
    $region86: #{dual_encoder_forward.1} parent=1 // pred_region
      _
    $region87: #{dual_encoder_forward.1} parent=1 // pred_fallthru
      _
    %7006 = vsyncpa [#allocation5], 1
  %7007 = vsyncmov [#allocation3]
  %s7008 = vpop.sfrf %7007
  %p7009 = scmp.eq.s32.totalorder %s7008, 0
  %p7010 = pneg %p7009
  %7012 = shalt.err (%p7010)

</llo_original>
